<compile_context>
chip_gen: v7x
topology: tpu7x:2x2x1
jax: 0.10.0
libtpu: 0.0.40
codegen_flags: <defaults>
</compile_context>

<pallas_src>
import jax
import jax.numpy as jnp
from jax.experimental import pallas as pl
from jax.experimental.pallas import tpu as pltpu

EPS = 1e-5  # nn.GroupNorm default eps


# ----------------------------------------------------------------------------
# Fused forward kernel factory.
# ----------------------------------------------------------------------------
def _make_fused_kernel(N, H, W, Cin, F, Vf, n_blocks):
    HW = H * W
    M = N * HW
    K3 = 9 * F

    def kernel(xpat_ref, stem_w_ref, vecs_f_ref, convw_ref, pool_f_ref,
               wv_ref, vecs_v_ref, pool_v_ref, out_ref, pad_ref):
        pool_f = pool_f_ref[...]                    # (F, F)  group-average matrix
        pool_v = pool_v_ref[...]                    # (Vf, Vf)

        def gn_relu(x3, pool, gamma, beta, residual=None):
            # torch GroupNorm (biased variance) + affine [+ residual] + ReLU.
            # x3: (N, HW, C); gamma/beta: (1, C); pool: (C, C) group-average.
            s = jnp.sum(x3, axis=1)                                   # (N, C)
            sq = jnp.sum(x3 * x3, axis=1)                             # (N, C)
            mean = jnp.dot(s, pool, preferred_element_type=jnp.float32)
            ex2 = jnp.dot(sq, pool, preferred_element_type=jnp.float32)
            var = jnp.maximum(ex2 - mean * mean, 0.0)
            inv = jax.lax.rsqrt(var + EPS)
            y = (x3 - mean[:, None, :]) * (inv[:, None, :] * gamma[None]) \
                + beta[None]
            if residual is not None:
                y = y + residual
            return jnp.maximum(y, 0.0)

        def conv3x3(x3, w, b):
            # 3x3 conv, padding=1, as ONE im2col matmul (K = 9*F).
            # Interior stored at sublane-aligned column offset 8; halo columns
            # 7 and 8+W and halo rows 0 / H+1 stay zero (zeroed once below).
            pad_ref[:, 1:H + 1, 8:8 + W, :] = x3.reshape(N, H, W, F)
            cols = [pad_ref[:, dy:dy + H, 7 + dx:7 + dx + W, :].reshape(M, F)
                    for dy in range(3) for dx in range(3)]
            patches = jnp.concatenate(cols, axis=-1)                  # (M, 9F)
            y = jnp.dot(patches, w, preferred_element_type=jnp.float32) + b
            return y.reshape(N, HW, F)

        # Zero the conv halo once; every conv only overwrites the interior.
        pad_ref[...] = jnp.zeros_like(pad_ref)

        # --- stem: conv3x3 (im2col'd in wrapper) -> GN -> ReLU ---------------
        pat = xpat_ref[...].reshape(M, 9 * Cin)
        x = jnp.dot(pat, stem_w_ref[...],
                    preferred_element_type=jnp.float32) + vecs_f_ref[0:1, :]
        x3 = gn_relu(x.reshape(N, HW, F), pool_f,
                     vecs_f_ref[1:2, :], vecs_f_ref[2:3, :])

        # --- residual tower ---------------------------------------------------
        for bi in range(n_blocks):
            r0 = 3 + 6 * bi
            w1 = convw_ref[(2 * bi) * K3:(2 * bi + 1) * K3, :]
            w2 = convw_ref[(2 * bi + 1) * K3:(2 * bi + 2) * K3, :]
            res = x3
            h = conv3x3(x3, w1, vecs_f_ref[r0:r0 + 1, :])
            h = gn_relu(h, pool_f,
                        vecs_f_ref[r0 + 1:r0 + 2, :], vecs_f_ref[r0 + 2:r0 + 3, :])
            h = conv3x3(h, w2, vecs_f_ref[r0 + 3:r0 + 4, :])
            x3 = gn_relu(h, pool_f,
                         vecs_f_ref[r0 + 4:r0 + 5, :], vecs_f_ref[r0 + 5:r0 + 6, :],
                         residual=res)                  # GN -> +res -> ReLU

        # --- value head: 1x1 conv -> GN -> ReLU -> FC -> sigmoid --------------
        v = jnp.dot(x3.reshape(M, F), wv_ref[0:F, :],
                    preferred_element_type=jnp.float32) + vecs_v_ref[0:1, :]
        v3 = gn_relu(v.reshape(N, HW, Vf), pool_v,
                     vecs_v_ref[1:2, :], vecs_v_ref[2:3, :])
        # FC with weight pre-permuted to (HW, Vf) NHWC order (== torch NCHW flatten)
        fcw = wv_ref[F:F + HW, :]                                      # (HW, Vf)
        t = v3 * fcw[None]
        s = jnp.sum(jnp.sum(t, axis=2), axis=1, keepdims=True) \
            + vecs_v_ref[3:4, 0:1]
        out_ref[...] = 1.0 / (1.0 + jnp.exp(-s))

    return kernel


# ----------------------------------------------------------------------------
# Parameter construction (deterministic, synthetic) + forward wrapper.
# ----------------------------------------------------------------------------
class Config:
    num_filters = 32
    num_groups = 4
    num_res_blocks = 2
    value_filters = 4
    value_num_groups = 2
    board_size = 8


def init_params(key, cfg):
    def nxt():
        nonlocal key
        key, sub = jax.random.split(key)
        return sub

    def conv_w(cin, cout, k):
        return 0.1 * jax.random.normal(nxt(), (k, k, cin, cout), jnp.float32)

    def bias(c):
        return 0.05 * jax.random.normal(nxt(), (c,), jnp.float32)

    F = cfg.num_filters
    params = {
        "conv_w": conv_w(2, F, 3), "conv_b": bias(F),
        "bn_g": jnp.ones((F,), jnp.float32), "bn_b": jnp.zeros((F,), jnp.float32),
        "res_blocks": [],
        "value_conv_w": conv_w(F, cfg.value_filters, 1)[0, 0],     # (Cin, Cout)
        "value_conv_b": bias(cfg.value_filters),
        "value_bn_g": jnp.ones((cfg.value_filters,), jnp.float32),
        "value_bn_b": jnp.zeros((cfg.value_filters,), jnp.float32),
        "fc_w": 0.1 * jax.random.normal(
            nxt(), (cfg.value_filters * cfg.board_size * cfg.board_size, 1),
            jnp.float32),
        "fc_b": bias(1),
    }
    for _ in range(cfg.num_res_blocks):
        params["res_blocks"].append({
            "conv1_w": conv_w(F, F, 3), "conv1_b": bias(F),
            "bn1_g": jnp.ones((F,), jnp.float32), "bn1_b": jnp.zeros((F,), jnp.float32),
            "conv2_w": conv_w(F, F, 3), "conv2_b": bias(F),
            "bn2_g": jnp.ones((F,), jnp.float32), "bn2_b": jnp.zeros((F,), jnp.float32),
        })
    return params


def _group_pool_matrix(C, G, hw):
    """(C, C) matrix A with A[i, j] = 1/(hw * C/G) if group(i) == group(j)."""
    cg = C // G
    idx = jnp.arange(C)
    same = (idx[:, None] // cg) == (idx[None, :] // cg)
    return same.astype(jnp.float32) / float(hw * cg)


def simple_value_network(x_nchw, params, cfg):
    if x_nchw.ndim == 3:                 # matches torch: unsqueeze(0)
        x_nchw = x_nchw[None]
    x = jnp.transpose(x_nchw, (0, 2, 3, 1)).astype(jnp.float32)   # NCHW -> NHWC
    N, H, W, Cin = x.shape
    F = cfg.num_filters
    Vf = cfg.value_filters
    HW = H * W
    n_blocks = len(params["res_blocks"])

    # Stem im2col in the wrapper (pure layout prep of the network input).
    xp = jnp.pad(x, ((0, 0), (1, 1), (1, 1), (0, 0)))
    stem_patches = jnp.concatenate(
        [xp[:, dy:dy + H, dx:dx + W, :] for dy in range(3) for dx in range(3)],
        axis=-1)                                                  # (N, H, W, 9*Cin)

    # Flatten conv weights to im2col form.
    stem_w = params["conv_w"].reshape(9 * Cin, F)

    # Pack all (F,)-wide per-channel vectors into one array (fewer DMAs):
    #   row 0..2: stem conv_b, bn_g, bn_b
    #   per block: conv1_b, bn1_g, bn1_b, conv2_b, bn2_g, bn2_b
    vec_rows = [params["conv_b"], params["bn_g"], params["bn_b"]]
    convw_rows = []
    for blk in params["res_blocks"]:
        vec_rows += [blk["conv1_b"], blk["bn1_g"], blk["bn1_b"],
                     blk["conv2_b"], blk["bn2_g"], blk["bn2_b"]]
        convw_rows += [blk["conv1_w"].reshape(9 * F, F),
                       blk["conv2_w"].reshape(9 * F, F)]
    vecs_f = jnp.stack(vec_rows, axis=0)                          # (3+6*nb, F)
    convw_all = (jnp.concatenate(convw_rows, axis=0) if convw_rows
                 else jnp.zeros((8, F), jnp.float32))             # (nb*2*9F, F)

    pool_f = _group_pool_matrix(F, cfg.num_groups, HW)
    pool_v = _group_pool_matrix(Vf, cfg.value_num_groups, HW)

    # Permute FC weight rows once so the kernel consumes NHWC-ordered activations
    # (numerically identical to torch's NCHW .view(B, -1) flatten), and pack it
    # together with the 1x1 value-conv weight.
    fcw_perm = params["fc_w"].reshape(Vf, H, W).transpose(1, 2, 0).reshape(HW, Vf)
    wv_all = jnp.concatenate([params["value_conv_w"], fcw_perm], axis=0)  # (F+HW, Vf)

    fcb_row = jnp.zeros((Vf,), jnp.float32).at[0].set(params["fc_b"][0])
    vecs_v = jnp.stack([params["value_conv_b"], params["value_bn_g"],
                        params["value_bn_b"], fcb_row], axis=0)   # (4, Vf)

    inputs = [stem_patches, stem_w, vecs_f, convw_all, pool_f,
              wv_all, vecs_v, pool_v]

    kernel = _make_fused_kernel(N, H, W, Cin, F, Vf, n_blocks)

    def _zero_map(ndim):
        return lambda i: (0,) * ndim

    in_specs = [pl.BlockSpec(a.shape, _zero_map(a.ndim)) for a in inputs]

    value = pl.pallas_call(
        kernel,
        out_shape=jax.ShapeDtypeStruct((N, 1), jnp.float32),
        grid=(1,),
        in_specs=in_specs,
        out_specs=pl.BlockSpec((N, 1), lambda i: (0, 0)),
        scratch_shapes=[
            # zero-haloed conv scratch; interior stored at column offset 8 so
            # all in-kernel stores are sublane-aligned.
            pltpu.VMEM((N, H + 2, W + 16, F), jnp.float32),
        ],
        compiler_params=pltpu.CompilerParams(
            dimension_semantics=("arbitrary",)),
    )(*inputs)
    return {"state_value": value}


if __name__ == "__main__":
    cfg = Config()
    key = jax.random.PRNGKey(0)
    pkey, xkey = jax.random.split(key)
    params = init_params(pkey, cfg)

    # PyTorch-style NCHW input: (batch=2, channels=2, board, board)
    x = jax.random.normal(xkey, (2, 2, cfg.board_size, cfg.board_size),
                          jnp.float32)

    fwd = jax.jit(lambda inp, p: simple_value_network(inp, p, cfg))
    out = fwd(x, params)
    value = jax.block_until_ready(out["state_value"])

    assert value.shape == (2, 1), value.shape
    assert bool(jnp.all(jnp.isfinite(value)))
    assert bool(jnp.all((value > 0.0) & (value < 1.0)))  # sigmoid range
    print("KERNEL_OK")
</pallas_src>

<mosaic_0001>
module attributes {stable_mosaic.version = 11 : i64} {
  func.func @kernel(%arg0: i32, %arg1: memref<2x8x8x18xf32, #tpu.memory_space<vmem>>, %arg2: memref<18x32xf32, #tpu.memory_space<vmem>>, %arg3: memref<15x32xf32, #tpu.memory_space<vmem>>, %arg4: memref<1152x32xf32, #tpu.memory_space<vmem>>, %arg5: memref<32x32xf32, #tpu.memory_space<vmem>>, %arg6: memref<96x4xf32, #tpu.memory_space<vmem>>, %arg7: memref<4x4xf32, #tpu.memory_space<vmem>>, %arg8: memref<4x4xf32, #tpu.memory_space<vmem>>, %arg9: memref<2x1xf32, #tpu.memory_space<vmem>>, %arg10: memref<2x10x24x32xf32, #tpu.memory_space<vmem>>) attributes {dimension_semantics = [#tpu.dimension_semantics<arbitrary>], iteration_bounds = array<i64: 1>, scalar_prefetch = 0 : i64, scratch_operands = 1 : i64, tpu.core_type = #tpu.core_type<tc>, window_params = [{pipeline_mode = #tpu.pipeline_mode<synchronous>, transform_indices = @transform_0, window_bounds = array<i64: 2, 8, 8, 18>}, {pipeline_mode = #tpu.pipeline_mode<synchronous>, transform_indices = @transform_1, window_bounds = array<i64: 18, 32>}, {pipeline_mode = #tpu.pipeline_mode<synchronous>, transform_indices = @transform_2, window_bounds = array<i64: 15, 32>}, {pipeline_mode = #tpu.pipeline_mode<synchronous>, transform_indices = @transform_3, window_bounds = array<i64: 1152, 32>}, {pipeline_mode = #tpu.pipeline_mode<synchronous>, transform_indices = @transform_4, window_bounds = array<i64: 32, 32>}, {pipeline_mode = #tpu.pipeline_mode<synchronous>, transform_indices = @transform_5, window_bounds = array<i64: 96, 4>}, {pipeline_mode = #tpu.pipeline_mode<synchronous>, transform_indices = @transform_6, window_bounds = array<i64: 4, 4>}, {pipeline_mode = #tpu.pipeline_mode<synchronous>, transform_indices = @transform_7, window_bounds = array<i64: 4, 4>}, {pipeline_mode = #tpu.pipeline_mode<synchronous>, transform_indices = @transform_8, window_bounds = array<i64: 2, 1>}]} {
    %c0 = arith.constant 0 : index
    %c0_0 = arith.constant 0 : index
    %0 = vector.load %arg5[%c0, %c0_0] : memref<32x32xf32, #tpu.memory_space<vmem>>, vector<32x32xf32>
    %c0_1 = arith.constant 0 : index
    %c0_2 = arith.constant 0 : index
    %1 = vector.load %arg8[%c0_1, %c0_2] : memref<4x4xf32, #tpu.memory_space<vmem>>, vector<4x4xf32>
    %cst = arith.constant 0.000000e+00 : f32
    %2 = vector.broadcast %cst : f32 to vector<2x10x24x32xf32>
    %c0_3 = arith.constant 0 : index
    %c0_4 = arith.constant 0 : index
    %c0_5 = arith.constant 0 : index
    %c0_6 = arith.constant 0 : index
    %3 = vector.load %arg10[%c0_3, %c0_4, %c0_5, %c0_6] : memref<2x10x24x32xf32, #tpu.memory_space<vmem>>, vector<2x10x24x32xf32>
    tpu.vector_store %arg10[%c0_3, %c0_4, %c0_5, %c0_6], %2 {strides = array<i32>} : memref<2x10x24x32xf32, #tpu.memory_space<vmem>>, vector<2x10x24x32xf32>,
    %c0_7 = arith.constant 0 : index
    %c0_8 = arith.constant 0 : index
    %c0_9 = arith.constant 0 : index
    %c0_10 = arith.constant 0 : index
    %4 = vector.load %arg1[%c0_7, %c0_8, %c0_9, %c0_10] : memref<2x8x8x18xf32, #tpu.memory_space<vmem>>, vector<2x8x8x18xf32>
    %5 = vector.shape_cast %4 : vector<2x8x8x18xf32> to vector<128x18xf32>
    %c0_11 = arith.constant 0 : index
    %c0_12 = arith.constant 0 : index
    %6 = vector.load %arg2[%c0_11, %c0_12] : memref<18x32xf32, #tpu.memory_space<vmem>>, vector<18x32xf32>
    %cst_13 = arith.constant dense<0.000000e+00> : vector<128x32xf32>
    %7 = tpu.matmul %5, %6, %cst_13 {dimension_numbers = #tpu.dot_dimension_numbers<[1], [0], [0], [1], [0, 0, 1, 1], [], []>} : vector<128x18xf32>, vector<18x32xf32>, vector<128x32xf32> -> vector<128x32xf32>
    %c0_14 = arith.constant 0 : index
    %c0_15 = arith.constant 0 : index
    %8 = vector.load %arg3[%c0_14, %c0_15] : memref<15x32xf32, #tpu.memory_space<vmem>>, vector<1x32xf32>
    %9 = vector.broadcast %8 : vector<1x32xf32> to vector<128x32xf32>
    %10 = arith.addf %7, %9 : vector<128x32xf32>
    %11 = vector.shape_cast %10 : vector<128x32xf32> to vector<2x64x32xf32>
    %c1 = arith.constant 1 : index
    %c0_16 = arith.constant 0 : index
    %12 = vector.load %arg3[%c1, %c0_16] : memref<15x32xf32, #tpu.memory_space<vmem>>, vector<1x32xf32>
    %c2 = arith.constant 2 : index
    %c0_17 = arith.constant 0 : index
    %13 = vector.load %arg3[%c2, %c0_17] : memref<15x32xf32, #tpu.memory_space<vmem>>, vector<1x32xf32>
    %cst_18 = arith.constant dense<0.000000e+00> : vector<2x32xf32>
    %14 = vector.multi_reduction <add>, %11, %cst_18 [1] : vector<2x64x32xf32> to vector<2x32xf32>
    %15 = arith.mulf %11, %11 : vector<2x64x32xf32>
    %cst_19 = arith.constant dense<0.000000e+00> : vector<2x32xf32>
    %16 = vector.multi_reduction <add>, %15, %cst_19 [1] : vector<2x64x32xf32> to vector<2x32xf32>
    %cst_20 = arith.constant dense<0.000000e+00> : vector<2x32xf32>
    %17 = tpu.matmul %14, %0, %cst_20 {dimension_numbers = #tpu.dot_dimension_numbers<[1], [0], [0], [1], [0, 0, 1, 1], [], []>} : vector<2x32xf32>, vector<32x32xf32>, vector<2x32xf32> -> vector<2x32xf32>
    %cst_21 = arith.constant dense<0.000000e+00> : vector<2x32xf32>
    %18 = tpu.matmul %16, %0, %cst_21 {dimension_numbers = #tpu.dot_dimension_numbers<[1], [0], [0], [1], [0, 0, 1, 1], [], []>} : vector<2x32xf32>, vector<32x32xf32>, vector<2x32xf32> -> vector<2x32xf32>
    %19 = arith.mulf %17, %17 : vector<2x32xf32>
    %20 = arith.subf %18, %19 : vector<2x32xf32>
    %cst_22 = arith.constant 0.000000e+00 : f32
    %21 = vector.broadcast %cst_22 : f32 to vector<2x32xf32>
    %22 = arith.maximumf %20, %21 : vector<2x32xf32>
    %cst_23 = arith.constant 9.99999974E-6 : f32
    %23 = vector.broadcast %cst_23 : f32 to vector<2x32xf32>
    %24 = arith.addf %22, %23 : vector<2x32xf32>
    %25 = math.rsqrt %24 : vector<2x32xf32>
    %26 = vector.shape_cast %17 : vector<2x32xf32> to vector<2x1x32xf32>
    %27 = vector.broadcast %26 : vector<2x1x32xf32> to vector<2x64x32xf32>
    %28 = arith.subf %11, %27 : vector<2x64x32xf32>
    %29 = vector.shape_cast %25 : vector<2x32xf32> to vector<2x1x32xf32>
    %30 = vector.shape_cast %12 : vector<1x32xf32> to vector<1x1x32xf32>
    %31 = vector.broadcast %30 : vector<1x1x32xf32> to vector<2x1x32xf32>
    %32 = arith.mulf %29, %31 : vector<2x1x32xf32>
    %33 = vector.broadcast %32 : vector<2x1x32xf32> to vector<2x64x32xf32>
    %34 = arith.mulf %28, %33 : vector<2x64x32xf32>
    %35 = vector.shape_cast %13 : vector<1x32xf32> to vector<1x1x32xf32>
    %36 = vector.broadcast %35 : vector<1x1x32xf32> to vector<2x64x32xf32>
    %37 = arith.addf %34, %36 : vector<2x64x32xf32>
    %cst_24 = arith.constant 0.000000e+00 : f32
    %38 = vector.broadcast %cst_24 : f32 to vector<2x64x32xf32>
    %39 = arith.maximumf %37, %38 : vector<2x64x32xf32>
    %c0_25 = arith.constant 0 : index
    %c0_26 = arith.constant 0 : index
    %40 = vector.load %arg4[%c0_25, %c0_26] : memref<1152x32xf32, #tpu.memory_space<vmem>>, vector<288x32xf32>
    %c288 = arith.constant 288 : index
    %c0_27 = arith.constant 0 : index
    %41 = vector.load %arg4[%c288, %c0_27] : memref<1152x32xf32, #tpu.memory_space<vmem>>, vector<288x32xf32>
    %c3 = arith.constant 3 : index
    %c0_28 = arith.constant 0 : index
    %42 = vector.load %arg3[%c3, %c0_28] : memref<15x32xf32, #tpu.memory_space<vmem>>, vector<1x32xf32>
    %43 = vector.shape_cast %39 : vector<2x64x32xf32> to vector<2x8x8x32xf32>
    %c0_29 = arith.constant 0 : index
    %c1_30 = arith.constant 1 : index
    %c8 = arith.constant 8 : index
    %c0_31 = arith.constant 0 : index
    %44 = vector.load %arg10[%c0_29, %c1_30, %c8, %c0_31] : memref<2x10x24x32xf32, #tpu.memory_space<vmem>>, vector<2x8x8x32xf32>
    tpu.vector_store %arg10[%c0_29, %c1_30, %c8, %c0_31], %43 {strides = array<i32>} : memref<2x10x24x32xf32, #tpu.memory_space<vmem>>, vector<2x8x8x32xf32>,
    %c0_32 = arith.constant 0 : index
    %c0_33 = arith.constant 0 : index
    %c7 = arith.constant 7 : index
    %c0_34 = arith.constant 0 : index
    %45 = vector.load %arg10[%c0_32, %c0_33, %c7, %c0_34] : memref<2x10x24x32xf32, #tpu.memory_space<vmem>>, vector<2x8x8x32xf32>
    %46 = vector.shape_cast %45 : vector<2x8x8x32xf32> to vector<128x32xf32>
    %c0_35 = arith.constant 0 : index
    %c0_36 = arith.constant 0 : index
    %c8_37 = arith.constant 8 : index
    %c0_38 = arith.constant 0 : index
    %47 = vector.load %arg10[%c0_35, %c0_36, %c8_37, %c0_38] : memref<2x10x24x32xf32, #tpu.memory_space<vmem>>, vector<2x8x8x32xf32>
    %48 = vector.shape_cast %47 : vector<2x8x8x32xf32> to vector<128x32xf32>
    %c0_39 = arith.constant 0 : index
    %c0_40 = arith.constant 0 : index
    %c9 = arith.constant 9 : index
    %c0_41 = arith.constant 0 : index
    %49 = vector.load %arg10[%c0_39, %c0_40, %c9, %c0_41] : memref<2x10x24x32xf32, #tpu.memory_space<vmem>>, vector<2x8x8x32xf32>
    %50 = vector.shape_cast %49 : vector<2x8x8x32xf32> to vector<128x32xf32>
    %c0_42 = arith.constant 0 : index
    %c1_43 = arith.constant 1 : index
    %c7_44 = arith.constant 7 : index
    %c0_45 = arith.constant 0 : index
    %51 = vector.load %arg10[%c0_42, %c1_43, %c7_44, %c0_45] : memref<2x10x24x32xf32, #tpu.memory_space<vmem>>, vector<2x8x8x32xf32>
    %52 = vector.shape_cast %51 : vector<2x8x8x32xf32> to vector<128x32xf32>
    %c0_46 = arith.constant 0 : index
    %c1_47 = arith.constant 1 : index
    %c8_48 = arith.constant 8 : index
    %c0_49 = arith.constant 0 : index
    %53 = vector.load %arg10[%c0_46, %c1_47, %c8_48, %c0_49] : memref<2x10x24x32xf32, #tpu.memory_space<vmem>>, vector<2x8x8x32xf32>
    %54 = vector.shape_cast %53 : vector<2x8x8x32xf32> to vector<128x32xf32>
    %c0_50 = arith.constant 0 : index
    %c1_51 = arith.constant 1 : index
    %c9_52 = arith.constant 9 : index
    %c0_53 = arith.constant 0 : index
    %55 = vector.load %arg10[%c0_50, %c1_51, %c9_52, %c0_53] : memref<2x10x24x32xf32, #tpu.memory_space<vmem>>, vector<2x8x8x32xf32>
    %56 = vector.shape_cast %55 : vector<2x8x8x32xf32> to vector<128x32xf32>
    %c0_54 = arith.constant 0 : index
    %c2_55 = arith.constant 2 : index
    %c7_56 = arith.constant 7 : index
    %c0_57 = arith.constant 0 : index
    %57 = vector.load %arg10[%c0_54, %c2_55, %c7_56, %c0_57] : memref<2x10x24x32xf32, #tpu.memory_space<vmem>>, vector<2x8x8x32xf32>
    %58 = vector.shape_cast %57 : vector<2x8x8x32xf32> to vector<128x32xf32>
    %c0_58 = arith.constant 0 : index
    %c2_59 = arith.constant 2 : index
    %c8_60 = arith.constant 8 : index
    %c0_61 = arith.constant 0 : index
    %59 = vector.load %arg10[%c0_58, %c2_59, %c8_60, %c0_61] : memref<2x10x24x32xf32, #tpu.memory_space<vmem>>, vector<2x8x8x32xf32>
    %60 = vector.shape_cast %59 : vector<2x8x8x32xf32> to vector<128x32xf32>
    %c0_62 = arith.constant 0 : index
    %c2_63 = arith.constant 2 : index
    %c9_64 = arith.constant 9 : index
    %c0_65 = arith.constant 0 : index
    %61 = vector.load %arg10[%c0_62, %c2_63, %c9_64, %c0_65] : memref<2x10x24x32xf32, #tpu.memory_space<vmem>>, vector<2x8x8x32xf32>
    %62 = vector.shape_cast %61 : vector<2x8x8x32xf32> to vector<128x32xf32>
    %63 = tpu.concatenate %46, %48, %50, %52, %54, %56, %58, %60, %62 in 1 : vector<128x32xf32>, vector<128x32xf32>, vector<128x32xf32>, vector<128x32xf32>, vector<128x32xf32>, vector<128x32xf32>, vector<128x32xf32>, vector<128x32xf32>, vector<128x32xf32> -> vector<128x288xf32>
    %cst_66 = arith.constant dense<0.000000e+00> : vector<128x32xf32>
    %64 = tpu.matmul %63, %40, %cst_66 {dimension_numbers = #tpu.dot_dimension_numbers<[1], [0], [0], [1], [0, 0, 1, 1], [], []>} : vector<128x288xf32>, vector<288x32xf32>, vector<128x32xf32> -> vector<128x32xf32>
    %65 = vector.broadcast %42 : vector<1x32xf32> to vector<128x32xf32>
    %66 = arith.addf %64, %65 : vector<128x32xf32>
    %67 = vector.shape_cast %66 : vector<128x32xf32> to vector<2x64x32xf32>
    %c4 = arith.constant 4 : index
    %c0_67 = arith.constant 0 : index
    %68 = vector.load %arg3[%c4, %c0_67] : memref<15x32xf32, #tpu.memory_space<vmem>>, vector<1x32xf32>
    %c5 = arith.constant 5 : index
    %c0_68 = arith.constant 0 : index
    %69 = vector.load %arg3[%c5, %c0_68] : memref<15x32xf32, #tpu.memory_space<vmem>>, vector<1x32xf32>
    %cst_69 = arith.constant dense<0.000000e+00> : vector<2x32xf32>
    %70 = vector.multi_reduction <add>, %67, %cst_69 [1] : vector<2x64x32xf32> to vector<2x32xf32>
    %71 = arith.mulf %67, %67 : vector<2x64x32xf32>
    %cst_70 = arith.constant dense<0.000000e+00> : vector<2x32xf32>
    %72 = vector.multi_reduction <add>, %71, %cst_70 [1] : vector<2x64x32xf32> to vector<2x32xf32>
    %cst_71 = arith.constant dense<0.000000e+00> : vector<2x32xf32>
    %73 = tpu.matmul %70, %0, %cst_71 {dimension_numbers = #tpu.dot_dimension_numbers<[1], [0], [0], [1], [0, 0, 1, 1], [], []>} : vector<2x32xf32>, vector<32x32xf32>, vector<2x32xf32> -> vector<2x32xf32>
    %cst_72 = arith.constant dense<0.000000e+00> : vector<2x32xf32>
    %74 = tpu.matmul %72, %0, %cst_72 {dimension_numbers = #tpu.dot_dimension_numbers<[1], [0], [0], [1], [0, 0, 1, 1], [], []>} : vector<2x32xf32>, vector<32x32xf32>, vector<2x32xf32> -> vector<2x32xf32>
    %75 = arith.mulf %73, %73 : vector<2x32xf32>
    %76 = arith.subf %74, %75 : vector<2x32xf32>
    %cst_73 = arith.constant 0.000000e+00 : f32
    %77 = vector.broadcast %cst_73 : f32 to vector<2x32xf32>
    %78 = arith.maximumf %76, %77 : vector<2x32xf32>
    %cst_74 = arith.constant 9.99999974E-6 : f32
    %79 = vector.broadcast %cst_74 : f32 to vector<2x32xf32>
    %80 = arith.addf %78, %79 : vector<2x32xf32>
    %81 = math.rsqrt %80 : vector<2x32xf32>
    %82 = vector.shape_cast %73 : vector<2x32xf32> to vector<2x1x32xf32>
    %83 = vector.broadcast %82 : vector<2x1x32xf32> to vector<2x64x32xf32>
    %84 = arith.subf %67, %83 : vector<2x64x32xf32>
    %85 = vector.shape_cast %81 : vector<2x32xf32> to vector<2x1x32xf32>
    %86 = vector.shape_cast %68 : vector<1x32xf32> to vector<1x1x32xf32>
    %87 = vector.broadcast %86 : vector<1x1x32xf32> to vector<2x1x32xf32>
    %88 = arith.mulf %85, %87 : vector<2x1x32xf32>
    %89 = vector.broadcast %88 : vector<2x1x32xf32> to vector<2x64x32xf32>
    %90 = arith.mulf %84, %89 : vector<2x64x32xf32>
    %91 = vector.shape_cast %69 : vector<1x32xf32> to vector<1x1x32xf32>
    %92 = vector.broadcast %91 : vector<1x1x32xf32> to vector<2x64x32xf32>
    %93 = arith.addf %90, %92 : vector<2x64x32xf32>
    %cst_75 = arith.constant 0.000000e+00 : f32
    %94 = vector.broadcast %cst_75 : f32 to vector<2x64x32xf32>
    %95 = arith.maximumf %93, %94 : vector<2x64x32xf32>
    %c6 = arith.constant 6 : index
    %c0_76 = arith.constant 0 : index
    %96 = vector.load %arg3[%c6, %c0_76] : memref<15x32xf32, #tpu.memory_space<vmem>>, vector<1x32xf32>
    %97 = vector.shape_cast %95 : vector<2x64x32xf32> to vector<2x8x8x32xf32>
    %c0_77 = arith.constant 0 : index
    %c1_78 = arith.constant 1 : index
    %c8_79 = arith.constant 8 : index
    %c0_80 = arith.constant 0 : index
    %98 = vector.load %arg10[%c0_77, %c1_78, %c8_79, %c0_80] : memref<2x10x24x32xf32, #tpu.memory_space<vmem>>, vector<2x8x8x32xf32>
    tpu.vector_store %arg10[%c0_77, %c1_78, %c8_79, %c0_80], %97 {strides = array<i32>} : memref<2x10x24x32xf32, #tpu.memory_space<vmem>>, vector<2x8x8x32xf32>,
    %c0_81 = arith.constant 0 : index
    %c0_82 = arith.constant 0 : index
    %c7_83 = arith.constant 7 : index
    %c0_84 = arith.constant 0 : index
    %99 = vector.load %arg10[%c0_81, %c0_82, %c7_83, %c0_84] : memref<2x10x24x32xf32, #tpu.memory_space<vmem>>, vector<2x8x8x32xf32>
    %100 = vector.shape_cast %99 : vector<2x8x8x32xf32> to vector<128x32xf32>
    %c0_85 = arith.constant 0 : index
    %c0_86 = arith.constant 0 : index
    %c8_87 = arith.constant 8 : index
    %c0_88 = arith.constant 0 : index
    %101 = vector.load %arg10[%c0_85, %c0_86, %c8_87, %c0_88] : memref<2x10x24x32xf32, #tpu.memory_space<vmem>>, vector<2x8x8x32xf32>
    %102 = vector.shape_cast %101 : vector<2x8x8x32xf32> to vector<128x32xf32>
    %c0_89 = arith.constant 0 : index
    %c0_90 = arith.constant 0 : index
    %c9_91 = arith.constant 9 : index
    %c0_92 = arith.constant 0 : index
    %103 = vector.load %arg10[%c0_89, %c0_90, %c9_91, %c0_92] : memref<2x10x24x32xf32, #tpu.memory_space<vmem>>, vector<2x8x8x32xf32>
    %104 = vector.shape_cast %103 : vector<2x8x8x32xf32> to vector<128x32xf32>
    %c0_93 = arith.constant 0 : index
    %c1_94 = arith.constant 1 : index
    %c7_95 = arith.constant 7 : index
    %c0_96 = arith.constant 0 : index
    %105 = vector.load %arg10[%c0_93, %c1_94, %c7_95, %c0_96] : memref<2x10x24x32xf32, #tpu.memory_space<vmem>>, vector<2x8x8x32xf32>
    %106 = vector.shape_cast %105 : vector<2x8x8x32xf32> to vector<128x32xf32>
    %c0_97 = arith.constant 0 : index
    %c1_98 = arith.constant 1 : index
    %c8_99 = arith.constant 8 : index
    %c0_100 = arith.constant 0 : index
    %107 = vector.load %arg10[%c0_97, %c1_98, %c8_99, %c0_100] : memref<2x10x24x32xf32, #tpu.memory_space<vmem>>, vector<2x8x8x32xf32>
    %108 = vector.shape_cast %107 : vector<2x8x8x32xf32> to vector<128x32xf32>
    %c0_101 = arith.constant 0 : index
    %c1_102 = arith.constant 1 : index
    %c9_103 = arith.constant 9 : index
    %c0_104 = arith.constant 0 : index
    %109 = vector.load %arg10[%c0_101, %c1_102, %c9_103, %c0_104] : memref<2x10x24x32xf32, #tpu.memory_space<vmem>>, vector<2x8x8x32xf32>
    %110 = vector.shape_cast %109 : vector<2x8x8x32xf32> to vector<128x32xf32>
    %c0_105 = arith.constant 0 : index
    %c2_106 = arith.constant 2 : index
    %c7_107 = arith.constant 7 : index
    %c0_108 = arith.constant 0 : index
    %111 = vector.load %arg10[%c0_105, %c2_106, %c7_107, %c0_108] : memref<2x10x24x32xf32, #tpu.memory_space<vmem>>, vector<2x8x8x32xf32>
    %112 = vector.shape_cast %111 : vector<2x8x8x32xf32> to vector<128x32xf32>
    %c0_109 = arith.constant 0 : index
    %c2_110 = arith.constant 2 : index
    %c8_111 = arith.constant 8 : index
    %c0_112 = arith.constant 0 : index
    %113 = vector.load %arg10[%c0_109, %c2_110, %c8_111, %c0_112] : memref<2x10x24x32xf32, #tpu.memory_space<vmem>>, vector<2x8x8x32xf32>
    %114 = vector.shape_cast %113 : vector<2x8x8x32xf32> to vector<128x32xf32>
    %c0_113 = arith.constant 0 : index
    %c2_114 = arith.constant 2 : index
    %c9_115 = arith.constant 9 : index
    %c0_116 = arith.constant 0 : index
    %115 = vector.load %arg10[%c0_113, %c2_114, %c9_115, %c0_116] : memref<2x10x24x32xf32, #tpu.memory_space<vmem>>, vector<2x8x8x32xf32>
    %116 = vector.shape_cast %115 : vector<2x8x8x32xf32> to vector<128x32xf32>
    %117 = tpu.concatenate %100, %102, %104, %106, %108, %110, %112, %114, %116 in 1 : vector<128x32xf32>, vector<128x32xf32>, vector<128x32xf32>, vector<128x32xf32>, vector<128x32xf32>, vector<128x32xf32>, vector<128x32xf32>, vector<128x32xf32>, vector<128x32xf32> -> vector<128x288xf32>
    %cst_117 = arith.constant dense<0.000000e+00> : vector<128x32xf32>
    %118 = tpu.matmul %117, %41, %cst_117 {dimension_numbers = #tpu.dot_dimension_numbers<[1], [0], [0], [1], [0, 0, 1, 1], [], []>} : vector<128x288xf32>, vector<288x32xf32>, vector<128x32xf32> -> vector<128x32xf32>
    %119 = vector.broadcast %96 : vector<1x32xf32> to vector<128x32xf32>
    %120 = arith.addf %118, %119 : vector<128x32xf32>
    %121 = vector.shape_cast %120 : vector<128x32xf32> to vector<2x64x32xf32>
    %c7_118 = arith.constant 7 : index
    %c0_119 = arith.constant 0 : index
    %122 = vector.load %arg3[%c7_118, %c0_119] : memref<15x32xf32, #tpu.memory_space<vmem>>, vector<1x32xf32>
    %c8_120 = arith.constant 8 : index
    %c0_121 = arith.constant 0 : index
    %123 = vector.load %arg3[%c8_120, %c0_121] : memref<15x32xf32, #tpu.memory_space<vmem>>, vector<1x32xf32>
    %cst_122 = arith.constant dense<0.000000e+00> : vector<2x32xf32>
    %124 = vector.multi_reduction <add>, %121, %cst_122 [1] : vector<2x64x32xf32> to vector<2x32xf32>
    %125 = arith.mulf %121, %121 : vector<2x64x32xf32>
    %cst_123 = arith.constant dense<0.000000e+00> : vector<2x32xf32>
    %126 = vector.multi_reduction <add>, %125, %cst_123 [1] : vector<2x64x32xf32> to vector<2x32xf32>
    %cst_124 = arith.constant dense<0.000000e+00> : vector<2x32xf32>
    %127 = tpu.matmul %124, %0, %cst_124 {dimension_numbers = #tpu.dot_dimension_numbers<[1], [0], [0], [1], [0, 0, 1, 1], [], []>} : vector<2x32xf32>, vector<32x32xf32>, vector<2x32xf32> -> vector<2x32xf32>
    %cst_125 = arith.constant dense<0.000000e+00> : vector<2x32xf32>
    %128 = tpu.matmul %126, %0, %cst_125 {dimension_numbers = #tpu.dot_dimension_numbers<[1], [0], [0], [1], [0, 0, 1, 1], [], []>} : vector<2x32xf32>, vector<32x32xf32>, vector<2x32xf32> -> vector<2x32xf32>
    %129 = arith.mulf %127, %127 : vector<2x32xf32>
    %130 = arith.subf %128, %129 : vector<2x32xf32>
    %cst_126 = arith.constant 0.000000e+00 : f32
    %131 = vector.broadcast %cst_126 : f32 to vector<2x32xf32>
    %132 = arith.maximumf %130, %131 : vector<2x32xf32>
    %cst_127 = arith.constant 9.99999974E-6 : f32
    %133 = vector.broadcast %cst_127 : f32 to vector<2x32xf32>
    %134 = arith.addf %132, %133 : vector<2x32xf32>
    %135 = math.rsqrt %134 : vector<2x32xf32>
    %136 = vector.shape_cast %127 : vector<2x32xf32> to vector<2x1x32xf32>
    %137 = vector.broadcast %136 : vector<2x1x32xf32> to vector<2x64x32xf32>
    %138 = arith.subf %121, %137 : vector<2x64x32xf32>
    %139 = vector.shape_cast %135 : vector<2x32xf32> to vector<2x1x32xf32>
    %140 = vector.shape_cast %122 : vector<1x32xf32> to vector<1x1x32xf32>
    %141 = vector.broadcast %140 : vector<1x1x32xf32> to vector<2x1x32xf32>
    %142 = arith.mulf %139, %141 : vector<2x1x32xf32>
    %143 = vector.broadcast %142 : vector<2x1x32xf32> to vector<2x64x32xf32>
    %144 = arith.mulf %138, %143 : vector<2x64x32xf32>
    %145 = vector.shape_cast %123 : vector<1x32xf32> to vector<1x1x32xf32>
    %146 = vector.broadcast %145 : vector<1x1x32xf32> to vector<2x64x32xf32>
    %147 = arith.addf %144, %146 : vector<2x64x32xf32>
    %148 = arith.addf %147, %39 : vector<2x64x32xf32>
    %cst_128 = arith.constant 0.000000e+00 : f32
    %149 = vector.broadcast %cst_128 : f32 to vector<2x64x32xf32>
    %150 = arith.maximumf %148, %149 : vector<2x64x32xf32>
    %c576 = arith.constant 576 : index
    %c0_129 = arith.constant 0 : index
    %151 = vector.load %arg4[%c576, %c0_129] : memref<1152x32xf32, #tpu.memory_space<vmem>>, vector<288x32xf32>
    %c864 = arith.constant 864 : index
    %c0_130 = arith.constant 0 : index
    %152 = vector.load %arg4[%c864, %c0_130] : memref<1152x32xf32, #tpu.memory_space<vmem>>, vector<288x32xf32>
    %c9_131 = arith.constant 9 : index
    %c0_132 = arith.constant 0 : index
    %153 = vector.load %arg3[%c9_131, %c0_132] : memref<15x32xf32, #tpu.memory_space<vmem>>, vector<1x32xf32>
    %154 = vector.shape_cast %150 : vector<2x64x32xf32> to vector<2x8x8x32xf32>
    %c0_133 = arith.constant 0 : index
    %c1_134 = arith.constant 1 : index
    %c8_135 = arith.constant 8 : index
    %c0_136 = arith.constant 0 : index
    %155 = vector.load %arg10[%c0_133, %c1_134, %c8_135, %c0_136] : memref<2x10x24x32xf32, #tpu.memory_space<vmem>>, vector<2x8x8x32xf32>
    tpu.vector_store %arg10[%c0_133, %c1_134, %c8_135, %c0_136], %154 {strides = array<i32>} : memref<2x10x24x32xf32, #tpu.memory_space<vmem>>, vector<2x8x8x32xf32>,
    %c0_137 = arith.constant 0 : index
    %c0_138 = arith.constant 0 : index
    %c7_139 = arith.constant 7 : index
    %c0_140 = arith.constant 0 : index
    %156 = vector.load %arg10[%c0_137, %c0_138, %c7_139, %c0_140] : memref<2x10x24x32xf32, #tpu.memory_space<vmem>>, vector<2x8x8x32xf32>
    %157 = vector.shape_cast %156 : vector<2x8x8x32xf32> to vector<128x32xf32>
    %c0_141 = arith.constant 0 : index
    %c0_142 = arith.constant 0 : index
    %c8_143 = arith.constant 8 : index
    %c0_144 = arith.constant 0 : index
    %158 = vector.load %arg10[%c0_141, %c0_142, %c8_143, %c0_144] : memref<2x10x24x32xf32, #tpu.memory_space<vmem>>, vector<2x8x8x32xf32>
    %159 = vector.shape_cast %158 : vector<2x8x8x32xf32> to vector<128x32xf32>
    %c0_145 = arith.constant 0 : index
    %c0_146 = arith.constant 0 : index
    %c9_147 = arith.constant 9 : index
    %c0_148 = arith.constant 0 : index
    %160 = vector.load %arg10[%c0_145, %c0_146, %c9_147, %c0_148] : memref<2x10x24x32xf32, #tpu.memory_space<vmem>>, vector<2x8x8x32xf32>
    %161 = vector.shape_cast %160 : vector<2x8x8x32xf32> to vector<128x32xf32>
    %c0_149 = arith.constant 0 : index
    %c1_150 = arith.constant 1 : index
    %c7_151 = arith.constant 7 : index
    %c0_152 = arith.constant 0 : index
    %162 = vector.load %arg10[%c0_149, %c1_150, %c7_151, %c0_152] : memref<2x10x24x32xf32, #tpu.memory_space<vmem>>, vector<2x8x8x32xf32>
    %163 = vector.shape_cast %162 : vector<2x8x8x32xf32> to vector<128x32xf32>
    %c0_153 = arith.constant 0 : index
    %c1_154 = arith.constant 1 : index
    %c8_155 = arith.constant 8 : index
    %c0_156 = arith.constant 0 : index
    %164 = vector.load %arg10[%c0_153, %c1_154, %c8_155, %c0_156] : memref<2x10x24x32xf32, #tpu.memory_space<vmem>>, vector<2x8x8x32xf32>
    %165 = vector.shape_cast %164 : vector<2x8x8x32xf32> to vector<128x32xf32>
    %c0_157 = arith.constant 0 : index
    %c1_158 = arith.constant 1 : index
    %c9_159 = arith.constant 9 : index
    %c0_160 = arith.constant 0 : index
    %166 = vector.load %arg10[%c0_157, %c1_158, %c9_159, %c0_160] : memref<2x10x24x32xf32, #tpu.memory_space<vmem>>, vector<2x8x8x32xf32>
    %167 = vector.shape_cast %166 : vector<2x8x8x32xf32> to vector<128x32xf32>
    %c0_161 = arith.constant 0 : index
    %c2_162 = arith.constant 2 : index
    %c7_163 = arith.constant 7 : index
    %c0_164 = arith.constant 0 : index
    %168 = vector.load %arg10[%c0_161, %c2_162, %c7_163, %c0_164] : memref<2x10x24x32xf32, #tpu.memory_space<vmem>>, vector<2x8x8x32xf32>
    %169 = vector.shape_cast %168 : vector<2x8x8x32xf32> to vector<128x32xf32>
    %c0_165 = arith.constant 0 : index
    %c2_166 = arith.constant 2 : index
    %c8_167 = arith.constant 8 : index
    %c0_168 = arith.constant 0 : index
    %170 = vector.load %arg10[%c0_165, %c2_166, %c8_167, %c0_168] : memref<2x10x24x32xf32, #tpu.memory_space<vmem>>, vector<2x8x8x32xf32>
    %171 = vector.shape_cast %170 : vector<2x8x8x32xf32> to vector<128x32xf32>
    %c0_169 = arith.constant 0 : index
    %c2_170 = arith.constant 2 : index
    %c9_171 = arith.constant 9 : index
    %c0_172 = arith.constant 0 : index
    %172 = vector.load %arg10[%c0_169, %c2_170, %c9_171, %c0_172] : memref<2x10x24x32xf32, #tpu.memory_space<vmem>>, vector<2x8x8x32xf32>
    %173 = vector.shape_cast %172 : vector<2x8x8x32xf32> to vector<128x32xf32>
    %174 = tpu.concatenate %157, %159, %161, %163, %165, %167, %169, %171, %173 in 1 : vector<128x32xf32>, vector<128x32xf32>, vector<128x32xf32>, vector<128x32xf32>, vector<128x32xf32>, vector<128x32xf32>, vector<128x32xf32>, vector<128x32xf32>, vector<128x32xf32> -> vector<128x288xf32>
    %cst_173 = arith.constant dense<0.000000e+00> : vector<128x32xf32>
    %175 = tpu.matmul %174, %151, %cst_173 {dimension_numbers = #tpu.dot_dimension_numbers<[1], [0], [0], [1], [0, 0, 1, 1], [], []>} : vector<128x288xf32>, vector<288x32xf32>, vector<128x32xf32> -> vector<128x32xf32>
    %176 = vector.broadcast %153 : vector<1x32xf32> to vector<128x32xf32>
    %177 = arith.addf %175, %176 : vector<128x32xf32>
    %178 = vector.shape_cast %177 : vector<128x32xf32> to vector<2x64x32xf32>
    %c10 = arith.constant 10 : index
    %c0_174 = arith.constant 0 : index
    %179 = vector.load %arg3[%c10, %c0_174] : memref<15x32xf32, #tpu.memory_space<vmem>>, vector<1x32xf32>
    %c11 = arith.constant 11 : index
    %c0_175 = arith.constant 0 : index
    %180 = vector.load %arg3[%c11, %c0_175] : memref<15x32xf32, #tpu.memory_space<vmem>>, vector<1x32xf32>
    %cst_176 = arith.constant dense<0.000000e+00> : vector<2x32xf32>
    %181 = vector.multi_reduction <add>, %178, %cst_176 [1] : vector<2x64x32xf32> to vector<2x32xf32>
    %182 = arith.mulf %178, %178 : vector<2x64x32xf32>
    %cst_177 = arith.constant dense<0.000000e+00> : vector<2x32xf32>
    %183 = vector.multi_reduction <add>, %182, %cst_177 [1] : vector<2x64x32xf32> to vector<2x32xf32>
    %cst_178 = arith.constant dense<0.000000e+00> : vector<2x32xf32>
    %184 = tpu.matmul %181, %0, %cst_178 {dimension_numbers = #tpu.dot_dimension_numbers<[1], [0], [0], [1], [0, 0, 1, 1], [], []>} : vector<2x32xf32>, vector<32x32xf32>, vector<2x32xf32> -> vector<2x32xf32>
    %cst_179 = arith.constant dense<0.000000e+00> : vector<2x32xf32>
    %185 = tpu.matmul %183, %0, %cst_179 {dimension_numbers = #tpu.dot_dimension_numbers<[1], [0], [0], [1], [0, 0, 1, 1], [], []>} : vector<2x32xf32>, vector<32x32xf32>, vector<2x32xf32> -> vector<2x32xf32>
    %186 = arith.mulf %184, %184 : vector<2x32xf32>
    %187 = arith.subf %185, %186 : vector<2x32xf32>
    %cst_180 = arith.constant 0.000000e+00 : f32
    %188 = vector.broadcast %cst_180 : f32 to vector<2x32xf32>
    %189 = arith.maximumf %187, %188 : vector<2x32xf32>
    %cst_181 = arith.constant 9.99999974E-6 : f32
    %190 = vector.broadcast %cst_181 : f32 to vector<2x32xf32>
    %191 = arith.addf %189, %190 : vector<2x32xf32>
    %192 = math.rsqrt %191 : vector<2x32xf32>
    %193 = vector.shape_cast %184 : vector<2x32xf32> to vector<2x1x32xf32>
    %194 = vector.broadcast %193 : vector<2x1x32xf32> to vector<2x64x32xf32>
    %195 = arith.subf %178, %194 : vector<2x64x32xf32>
    %196 = vector.shape_cast %192 : vector<2x32xf32> to vector<2x1x32xf32>
    %197 = vector.shape_cast %179 : vector<1x32xf32> to vector<1x1x32xf32>
    %198 = vector.broadcast %197 : vector<1x1x32xf32> to vector<2x1x32xf32>
    %199 = arith.mulf %196, %198 : vector<2x1x32xf32>
    %200 = vector.broadcast %199 : vector<2x1x32xf32> to vector<2x64x32xf32>
    %201 = arith.mulf %195, %200 : vector<2x64x32xf32>
    %202 = vector.shape_cast %180 : vector<1x32xf32> to vector<1x1x32xf32>
    %203 = vector.broadcast %202 : vector<1x1x32xf32> to vector<2x64x32xf32>
    %204 = arith.addf %201, %203 : vector<2x64x32xf32>
    %cst_182 = arith.constant 0.000000e+00 : f32
    %205 = vector.broadcast %cst_182 : f32 to vector<2x64x32xf32>
    %206 = arith.maximumf %204, %205 : vector<2x64x32xf32>
    %c12 = arith.constant 12 : index
    %c0_183 = arith.constant 0 : index
    %207 = vector.load %arg3[%c12, %c0_183] : memref<15x32xf32, #tpu.memory_space<vmem>>, vector<1x32xf32>
    %208 = vector.shape_cast %206 : vector<2x64x32xf32> to vector<2x8x8x32xf32>
    %c0_184 = arith.constant 0 : index
    %c1_185 = arith.constant 1 : index
    %c8_186 = arith.constant 8 : index
    %c0_187 = arith.constant 0 : index
    %209 = vector.load %arg10[%c0_184, %c1_185, %c8_186, %c0_187] : memref<2x10x24x32xf32, #tpu.memory_space<vmem>>, vector<2x8x8x32xf32>
    tpu.vector_store %arg10[%c0_184, %c1_185, %c8_186, %c0_187], %208 {strides = array<i32>} : memref<2x10x24x32xf32, #tpu.memory_space<vmem>>, vector<2x8x8x32xf32>,
    %c0_188 = arith.constant 0 : index
    %c0_189 = arith.constant 0 : index
    %c7_190 = arith.constant 7 : index
    %c0_191 = arith.constant 0 : index
    %210 = vector.load %arg10[%c0_188, %c0_189, %c7_190, %c0_191] : memref<2x10x24x32xf32, #tpu.memory_space<vmem>>, vector<2x8x8x32xf32>
    %211 = vector.shape_cast %210 : vector<2x8x8x32xf32> to vector<128x32xf32>
    %c0_192 = arith.constant 0 : index
    %c0_193 = arith.constant 0 : index
    %c8_194 = arith.constant 8 : index
    %c0_195 = arith.constant 0 : index
    %212 = vector.load %arg10[%c0_192, %c0_193, %c8_194, %c0_195] : memref<2x10x24x32xf32, #tpu.memory_space<vmem>>, vector<2x8x8x32xf32>
    %213 = vector.shape_cast %212 : vector<2x8x8x32xf32> to vector<128x32xf32>
    %c0_196 = arith.constant 0 : index
    %c0_197 = arith.constant 0 : index
    %c9_198 = arith.constant 9 : index
    %c0_199 = arith.constant 0 : index
    %214 = vector.load %arg10[%c0_196, %c0_197, %c9_198, %c0_199] : memref<2x10x24x32xf32, #tpu.memory_space<vmem>>, vector<2x8x8x32xf32>
    %215 = vector.shape_cast %214 : vector<2x8x8x32xf32> to vector<128x32xf32>
    %c0_200 = arith.constant 0 : index
    %c1_201 = arith.constant 1 : index
    %c7_202 = arith.constant 7 : index
    %c0_203 = arith.constant 0 : index
    %216 = vector.load %arg10[%c0_200, %c1_201, %c7_202, %c0_203] : memref<2x10x24x32xf32, #tpu.memory_space<vmem>>, vector<2x8x8x32xf32>
    %217 = vector.shape_cast %216 : vector<2x8x8x32xf32> to vector<128x32xf32>
    %c0_204 = arith.constant 0 : index
    %c1_205 = arith.constant 1 : index
    %c8_206 = arith.constant 8 : index
    %c0_207 = arith.constant 0 : index
    %218 = vector.load %arg10[%c0_204, %c1_205, %c8_206, %c0_207] : memref<2x10x24x32xf32, #tpu.memory_space<vmem>>, vector<2x8x8x32xf32>
    %219 = vector.shape_cast %218 : vector<2x8x8x32xf32> to vector<128x32xf32>
    %c0_208 = arith.constant 0 : index
    %c1_209 = arith.constant 1 : index
    %c9_210 = arith.constant 9 : index
    %c0_211 = arith.constant 0 : index
    %220 = vector.load %arg10[%c0_208, %c1_209, %c9_210, %c0_211] : memref<2x10x24x32xf32, #tpu.memory_space<vmem>>, vector<2x8x8x32xf32>
    %221 = vector.shape_cast %220 : vector<2x8x8x32xf32> to vector<128x32xf32>
    %c0_212 = arith.constant 0 : index
    %c2_213 = arith.constant 2 : index
    %c7_214 = arith.constant 7 : index
    %c0_215 = arith.constant 0 : index
    %222 = vector.load %arg10[%c0_212, %c2_213, %c7_214, %c0_215] : memref<2x10x24x32xf32, #tpu.memory_space<vmem>>, vector<2x8x8x32xf32>
    %223 = vector.shape_cast %222 : vector<2x8x8x32xf32> to vector<128x32xf32>
    %c0_216 = arith.constant 0 : index
    %c2_217 = arith.constant 2 : index
    %c8_218 = arith.constant 8 : index
    %c0_219 = arith.constant 0 : index
    %224 = vector.load %arg10[%c0_216, %c2_217, %c8_218, %c0_219] : memref<2x10x24x32xf32, #tpu.memory_space<vmem>>, vector<2x8x8x32xf32>
    %225 = vector.shape_cast %224 : vector<2x8x8x32xf32> to vector<128x32xf32>
    %c0_220 = arith.constant 0 : index
    %c2_221 = arith.constant 2 : index
    %c9_222 = arith.constant 9 : index
    %c0_223 = arith.constant 0 : index
    %226 = vector.load %arg10[%c0_220, %c2_221, %c9_222, %c0_223] : memref<2x10x24x32xf32, #tpu.memory_space<vmem>>, vector<2x8x8x32xf32>
    %227 = vector.shape_cast %226 : vector<2x8x8x32xf32> to vector<128x32xf32>
    %228 = tpu.concatenate %211, %213, %215, %217, %219, %221, %223, %225, %227 in 1 : vector<128x32xf32>, vector<128x32xf32>, vector<128x32xf32>, vector<128x32xf32>, vector<128x32xf32>, vector<128x32xf32>, vector<128x32xf32>, vector<128x32xf32>, vector<128x32xf32> -> vector<128x288xf32>
    %cst_224 = arith.constant dense<0.000000e+00> : vector<128x32xf32>
    %229 = tpu.matmul %228, %152, %cst_224 {dimension_numbers = #tpu.dot_dimension_numbers<[1], [0], [0], [1], [0, 0, 1, 1], [], []>} : vector<128x288xf32>, vector<288x32xf32>, vector<128x32xf32> -> vector<128x32xf32>
    %230 = vector.broadcast %207 : vector<1x32xf32> to vector<128x32xf32>
    %231 = arith.addf %229, %230 : vector<128x32xf32>
    %232 = vector.shape_cast %231 : vector<128x32xf32> to vector<2x64x32xf32>
    %c13 = arith.constant 13 : index
    %c0_225 = arith.constant 0 : index
    %233 = vector.load %arg3[%c13, %c0_225] : memref<15x32xf32, #tpu.memory_space<vmem>>, vector<1x32xf32>
    %c14 = arith.constant 14 : index
    %c0_226 = arith.constant 0 : index
    %234 = vector.load %arg3[%c14, %c0_226] : memref<15x32xf32, #tpu.memory_space<vmem>>, vector<1x32xf32>
    %cst_227 = arith.constant dense<0.000000e+00> : vector<2x32xf32>
    %235 = vector.multi_reduction <add>, %232, %cst_227 [1] : vector<2x64x32xf32> to vector<2x32xf32>
    %236 = arith.mulf %232, %232 : vector<2x64x32xf32>
    %cst_228 = arith.constant dense<0.000000e+00> : vector<2x32xf32>
    %237 = vector.multi_reduction <add>, %236, %cst_228 [1] : vector<2x64x32xf32> to vector<2x32xf32>
    %cst_229 = arith.constant dense<0.000000e+00> : vector<2x32xf32>
    %238 = tpu.matmul %235, %0, %cst_229 {dimension_numbers = #tpu.dot_dimension_numbers<[1], [0], [0], [1], [0, 0, 1, 1], [], []>} : vector<2x32xf32>, vector<32x32xf32>, vector<2x32xf32> -> vector<2x32xf32>
    %cst_230 = arith.constant dense<0.000000e+00> : vector<2x32xf32>
    %239 = tpu.matmul %237, %0, %cst_230 {dimension_numbers = #tpu.dot_dimension_numbers<[1], [0], [0], [1], [0, 0, 1, 1], [], []>} : vector<2x32xf32>, vector<32x32xf32>, vector<2x32xf32> -> vector<2x32xf32>
    %240 = arith.mulf %238, %238 : vector<2x32xf32>
    %241 = arith.subf %239, %240 : vector<2x32xf32>
    %cst_231 = arith.constant 0.000000e+00 : f32
    %242 = vector.broadcast %cst_231 : f32 to vector<2x32xf32>
    %243 = arith.maximumf %241, %242 : vector<2x32xf32>
    %cst_232 = arith.constant 9.99999974E-6 : f32
    %244 = vector.broadcast %cst_232 : f32 to vector<2x32xf32>
    %245 = arith.addf %243, %244 : vector<2x32xf32>
    %246 = math.rsqrt %245 : vector<2x32xf32>
    %247 = vector.shape_cast %238 : vector<2x32xf32> to vector<2x1x32xf32>
    %248 = vector.broadcast %247 : vector<2x1x32xf32> to vector<2x64x32xf32>
    %249 = arith.subf %232, %248 : vector<2x64x32xf32>
    %250 = vector.shape_cast %246 : vector<2x32xf32> to vector<2x1x32xf32>
    %251 = vector.shape_cast %233 : vector<1x32xf32> to vector<1x1x32xf32>
    %252 = vector.broadcast %251 : vector<1x1x32xf32> to vector<2x1x32xf32>
    %253 = arith.mulf %250, %252 : vector<2x1x32xf32>
    %254 = vector.broadcast %253 : vector<2x1x32xf32> to vector<2x64x32xf32>
    %255 = arith.mulf %249, %254 : vector<2x64x32xf32>
    %256 = vector.shape_cast %234 : vector<1x32xf32> to vector<1x1x32xf32>
    %257 = vector.broadcast %256 : vector<1x1x32xf32> to vector<2x64x32xf32>
    %258 = arith.addf %255, %257 : vector<2x64x32xf32>
    %259 = arith.addf %258, %150 : vector<2x64x32xf32>
    %cst_233 = arith.constant 0.000000e+00 : f32
    %260 = vector.broadcast %cst_233 : f32 to vector<2x64x32xf32>
    %261 = arith.maximumf %259, %260 : vector<2x64x32xf32>
    %262 = vector.shape_cast %261 : vector<2x64x32xf32> to vector<128x32xf32>
    %c0_234 = arith.constant 0 : index
    %c0_235 = arith.constant 0 : index
    %263 = vector.load %arg6[%c0_234, %c0_235] : memref<96x4xf32, #tpu.memory_space<vmem>>, vector<32x4xf32>
    %cst_236 = arith.constant dense<0.000000e+00> : vector<128x4xf32>
    %264 = tpu.matmul %262, %263, %cst_236 {dimension_numbers = #tpu.dot_dimension_numbers<[1], [0], [0], [1], [0, 0, 1, 1], [], []>} : vector<128x32xf32>, vector<32x4xf32>, vector<128x4xf32> -> vector<128x4xf32>
    %c0_237 = arith.constant 0 : index
    %c0_238 = arith.constant 0 : index
    %265 = vector.load %arg7[%c0_237, %c0_238] : memref<4x4xf32, #tpu.memory_space<vmem>>, vector<1x4xf32>
    %266 = vector.broadcast %265 : vector<1x4xf32> to vector<128x4xf32>
    %267 = arith.addf %264, %266 : vector<128x4xf32>
    %268 = vector.shape_cast %267 : vector<128x4xf32> to vector<2x64x4xf32>
    %c1_239 = arith.constant 1 : index
    %c0_240 = arith.constant 0 : index
    %269 = vector.load %arg7[%c1_239, %c0_240] : memref<4x4xf32, #tpu.memory_space<vmem>>, vector<1x4xf32>
    %c2_241 = arith.constant 2 : index
    %c0_242 = arith.constant 0 : index
    %270 = vector.load %arg7[%c2_241, %c0_242] : memref<4x4xf32, #tpu.memory_space<vmem>>, vector<1x4xf32>
    %cst_243 = arith.constant dense<0.000000e+00> : vector<2x4xf32>
    %271 = vector.multi_reduction <add>, %268, %cst_243 [1] : vector<2x64x4xf32> to vector<2x4xf32>
    %272 = arith.mulf %268, %268 : vector<2x64x4xf32>
    %cst_244 = arith.constant dense<0.000000e+00> : vector<2x4xf32>
    %273 = vector.multi_reduction <add>, %272, %cst_244 [1] : vector<2x64x4xf32> to vector<2x4xf32>
    %cst_245 = arith.constant dense<0.000000e+00> : vector<2x4xf32>
    %274 = tpu.matmul %271, %1, %cst_245 {dimension_numbers = #tpu.dot_dimension_numbers<[1], [0], [0], [1], [0, 0, 1, 1], [], []>} : vector<2x4xf32>, vector<4x4xf32>, vector<2x4xf32> -> vector<2x4xf32>
    %cst_246 = arith.constant dense<0.000000e+00> : vector<2x4xf32>
    %275 = tpu.matmul %273, %1, %cst_246 {dimension_numbers = #tpu.dot_dimension_numbers<[1], [0], [0], [1], [0, 0, 1, 1], [], []>} : vector<2x4xf32>, vector<4x4xf32>, vector<2x4xf32> -> vector<2x4xf32>
    %276 = arith.mulf %274, %274 : vector<2x4xf32>
    %277 = arith.subf %275, %276 : vector<2x4xf32>
    %cst_247 = arith.constant 0.000000e+00 : f32
    %278 = vector.broadcast %cst_247 : f32 to vector<2x4xf32>
    %279 = arith.maximumf %277, %278 : vector<2x4xf32>
    %cst_248 = arith.constant 9.99999974E-6 : f32
    %280 = vector.broadcast %cst_248 : f32 to vector<2x4xf32>
    %281 = arith.addf %279, %280 : vector<2x4xf32>
    %282 = math.rsqrt %281 : vector<2x4xf32>
    %283 = vector.shape_cast %274 : vector<2x4xf32> to vector<2x1x4xf32>
    %284 = vector.broadcast %283 : vector<2x1x4xf32> to vector<2x64x4xf32>
    %285 = arith.subf %268, %284 : vector<2x64x4xf32>
    %286 = vector.shape_cast %282 : vector<2x4xf32> to vector<2x1x4xf32>
    %287 = vector.shape_cast %269 : vector<1x4xf32> to vector<1x1x4xf32>
    %288 = vector.broadcast %287 : vector<1x1x4xf32> to vector<2x1x4xf32>
    %289 = arith.mulf %286, %288 : vector<2x1x4xf32>
    %290 = vector.broadcast %289 : vector<2x1x4xf32> to vector<2x64x4xf32>
    %291 = arith.mulf %285, %290 : vector<2x64x4xf32>
    %292 = vector.shape_cast %270 : vector<1x4xf32> to vector<1x1x4xf32>
    %293 = vector.broadcast %292 : vector<1x1x4xf32> to vector<2x64x4xf32>
    %294 = arith.addf %291, %293 : vector<2x64x4xf32>
    %cst_249 = arith.constant 0.000000e+00 : f32
    %295 = vector.broadcast %cst_249 : f32 to vector<2x64x4xf32>
    %296 = arith.maximumf %294, %295 : vector<2x64x4xf32>
    %c32 = arith.constant 32 : index
    %c0_250 = arith.constant 0 : index
    %297 = vector.load %arg6[%c32, %c0_250] : memref<96x4xf32, #tpu.memory_space<vmem>>, vector<64x4xf32>
    %298 = vector.shape_cast %297 : vector<64x4xf32> to vector<1x64x4xf32>
    %299 = vector.broadcast %298 : vector<1x64x4xf32> to vector<2x64x4xf32>
    %300 = arith.mulf %296, %299 : vector<2x64x4xf32>
    %cst_251 = arith.constant dense<0.000000e+00> : vector<2x64xf32>
    %301 = vector.multi_reduction <add>, %300, %cst_251 [2] : vector<2x64x4xf32> to vector<2x64xf32>
    %cst_252 = arith.constant dense<0.000000e+00> : vector<2xf32>
    %302 = vector.multi_reduction <add>, %301, %cst_252 [1] : vector<2x64xf32> to vector<2xf32>
    %303 = vector.shape_cast %302 : vector<2xf32> to vector<2x1xf32>
    %c3_253 = arith.constant 3 : index
    %c0_254 = arith.constant 0 : index
    %304 = vector.load %arg7[%c3_253, %c0_254] : memref<4x4xf32, #tpu.memory_space<vmem>>, vector<1x1xf32>
    %305 = vector.broadcast %304 : vector<1x1xf32> to vector<2x1xf32>
    %306 = arith.addf %303, %305 : vector<2x1xf32>
    %cst_255 = arith.constant 0.000000e+00 : f32
    %307 = vector.broadcast %cst_255 : f32 to vector<2x1xf32>
    %308 = arith.subf %307, %306 : vector<2x1xf32>
    %309 = math.exp %308 : vector<2x1xf32>
    %cst_256 = arith.constant 1.000000e+00 : f32
    %310 = vector.broadcast %cst_256 : f32 to vector<2x1xf32>
    %311 = arith.addf %310, %309 : vector<2x1xf32>
    %cst_257 = arith.constant 1.000000e+00 : f32
    %312 = vector.broadcast %cst_257 : f32 to vector<2x1xf32>
    %313 = arith.divf %312, %311 : vector<2x1xf32>
    %c0_258 = arith.constant 0 : index
    %c0_259 = arith.constant 0 : index
    %314 = vector.load %arg9[%c0_258, %c0_259] : memref<2x1xf32, #tpu.memory_space<vmem>>, vector<2x1xf32>
    tpu.vector_store %arg9[%c0_258, %c0_259], %313 {strides = array<i32>} : memref<2x1xf32, #tpu.memory_space<vmem>>, vector<2x1xf32>,
    return
  }
  func.func @transform_0(%arg0: i32) -> (i32, i32, i32, i32) {
    %c0_i32 = arith.constant 0 : i32
    %c0_i32_0 = arith.constant 0 : i32
    %c0_i32_1 = arith.constant 0 : i32
    %c0_i32_2 = arith.constant 0 : i32
    %c0_i32_3 = arith.constant 0 : i32
    return %c0_i32, %c0_i32_0, %c0_i32_1, %c0_i32_2 : i32, i32, i32, i32
  }
  func.func @transform_1(%arg0: i32) -> (i32, i32) {
    %c0_i32 = arith.constant 0 : i32
    %c0_i32_0 = arith.constant 0 : i32
    %c0_i32_1 = arith.constant 0 : i32
    return %c0_i32, %c0_i32_0 : i32, i32
  }
  func.func @transform_2(%arg0: i32) -> (i32, i32) {
    %c0_i32 = arith.constant 0 : i32
    %c0_i32_0 = arith.constant 0 : i32
    %c0_i32_1 = arith.constant 0 : i32
    return %c0_i32, %c0_i32_0 : i32, i32
  }
  func.func @transform_3(%arg0: i32) -> (i32, i32) {
    %c0_i32 = arith.constant 0 : i32
    %c0_i32_0 = arith.constant 0 : i32
    %c0_i32_1 = arith.constant 0 : i32
    return %c0_i32, %c0_i32_0 : i32, i32
  }
  func.func @transform_4(%arg0: i32) -> (i32, i32) {
    %c0_i32 = arith.constant 0 : i32
    %c0_i32_0 = arith.constant 0 : i32
    %c0_i32_1 = arith.constant 0 : i32
    return %c0_i32, %c0_i32_0 : i32, i32
  }
  func.func @transform_5(%arg0: i32) -> (i32, i32) {
    %c0_i32 = arith.constant 0 : i32
    %c0_i32_0 = arith.constant 0 : i32
    %c0_i32_1 = arith.constant 0 : i32
    return %c0_i32, %c0_i32_0 : i32, i32
  }
  func.func @transform_6(%arg0: i32) -> (i32, i32) {
    %c0_i32 = arith.constant 0 : i32
    %c0_i32_0 = arith.constant 0 : i32
    %c0_i32_1 = arith.constant 0 : i32
    return %c0_i32, %c0_i32_0 : i32, i32
  }
  func.func @transform_7(%arg0: i32) -> (i32, i32) {
    %c0_i32 = arith.constant 0 : i32
    %c0_i32_0 = arith.constant 0 : i32
    %c0_i32_1 = arith.constant 0 : i32
    return %c0_i32, %c0_i32_0 : i32, i32
  }
  func.func @transform_8(%arg0: i32) -> (i32, i32) {
    %c0_i32 = arith.constant 0 : i32
    %c0_i32_0 = arith.constant 0 : i32
    %c0_i32_1 = arith.constant 0 : i32
    return %c0_i32, %c0_i32_0 : i32, i32
  }
}

</mosaic_0001>

<llo_original>
// kernel: _lambda_.1
$region0: #{_lambda_.1}
  #allocation0 [shape = 'u32[]', space=smem, size = 0x4, offset = 0x4, fixed_abs, tag = 'smem constant byte address 0x4 - core index']
  #allocation1 [shape = 'u32[144,128]{1,0:T(1,128)}', space=vmem, size = 0x12000, scoped, tag = 'internal scratch']
  #allocation2 [shape = 'f32[2,10,24,32]{3,2,1,0:T(8,128)}', space=vmem, size = 0x3c000, scoped, tag = 'scratch operand']
  %s0 = inlined_call_operand.vmem [shape: f32[2,8,8,18], index: 0, kind: input, shape index: {}]
  %s1 = inlined_call_operand.vmem [shape: f32[18,32], index: 1, kind: input, shape index: {}]
  %s2 = inlined_call_operand.vmem [shape: f32[15,32], index: 2, kind: input, shape index: {}]
  %s3 = inlined_call_operand.vmem [shape: f32[1152,32], index: 3, kind: input, shape index: {}]
  %s4 = inlined_call_operand.vmem [shape: f32[32,32], index: 4, kind: input, shape index: {}]
  %s5 = inlined_call_operand.vmem [shape: f32[96,4], index: 5, kind: input, shape index: {}]
  %s6 = inlined_call_operand.vmem [shape: f32[4,4], index: 6, kind: input, shape index: {}]
  %s7 = inlined_call_operand.vmem [shape: f32[4,4], index: 7, kind: input, shape index: {}]
  %s8 = inlined_call_operand.vmem [shape: f32[2,1], index: 8, kind: output, shape index: {}]
  %s9 = sld [smem:[#allocation0]]
  $region42: #{_lambda_.1} parent=0
    _
  %s11 = ssub.s32 1, %s9
  %s12 = scalar_select 0, %s11, %s9
  // Predicated region
  $region2: #{_lambda_.1} parent=0 // pred_check
    _
  $region3: #{_lambda_.1} parent=0 // pred_check_branch
    %14 = sbr.rel (0) target = $region5
  $region4: #{_lambda_.1} parent=0 // pred_region
    _
  $region5: #{_lambda_.1} parent=0 // pred_fallthru
    _
  // Predicated region
  $region6: #{_lambda_.1} parent=0 // pred_check
    _
  $region7: #{_lambda_.1} parent=0 // pred_check_branch
    %16 = sbr.rel (0) target = $region9
  $region8: #{_lambda_.1} parent=0 // pred_region
    _
  $region9: #{_lambda_.1} parent=0 // pred_fallthru
    _
  // Predicated region
  $region10: #{_lambda_.1} parent=0 // pred_check
    _
  $region11: #{_lambda_.1} parent=0 // pred_check_branch
    %18 = sbr.rel (0) target = $region13
  $region12: #{_lambda_.1} parent=0 // pred_region
    _
  $region13: #{_lambda_.1} parent=0 // pred_fallthru
    _
  // Predicated region
  $region14: #{_lambda_.1} parent=0 // pred_check
    _
  $region15: #{_lambda_.1} parent=0 // pred_check_branch
    %20 = sbr.rel (0) target = $region17
  $region16: #{_lambda_.1} parent=0 // pred_region
    _
  $region17: #{_lambda_.1} parent=0 // pred_fallthru
    _
  // Predicated region
  $region18: #{_lambda_.1} parent=0 // pred_check
    _
  $region19: #{_lambda_.1} parent=0 // pred_check_branch
    %22 = sbr.rel (0) target = $region21
  $region20: #{_lambda_.1} parent=0 // pred_region
    _
  $region21: #{_lambda_.1} parent=0 // pred_fallthru
    _
  // Predicated region
  $region22: #{_lambda_.1} parent=0 // pred_check
    _
  $region23: #{_lambda_.1} parent=0 // pred_check_branch
    %24 = sbr.rel (0) target = $region25
  $region24: #{_lambda_.1} parent=0 // pred_region
    _
  $region25: #{_lambda_.1} parent=0 // pred_fallthru
    _
  // Predicated region
  $region26: #{_lambda_.1} parent=0 // pred_check
    _
  $region27: #{_lambda_.1} parent=0 // pred_check_branch
    %26 = sbr.rel (0) target = $region29
  $region28: #{_lambda_.1} parent=0 // pred_region
    _
  $region29: #{_lambda_.1} parent=0 // pred_fallthru
    _
  // Predicated region
  $region30: #{_lambda_.1} parent=0 // pred_check
    _
  $region31: #{_lambda_.1} parent=0 // pred_check_branch
    %28 = sbr.rel (0) target = $region33
  $region32: #{_lambda_.1} parent=0 // pred_region
    _
  $region33: #{_lambda_.1} parent=0 // pred_fallthru
    _
  %v29 = vld [vmem:[%s4] sm:$0xff]
  %v30 = vld [vmem:[%s4 + $0x8] sm:$0xff]
  %v31 = vld [vmem:[%s4 + $0x10] sm:$0xff]
  %v32 = vld [vmem:[%s4 + $0x18] sm:$0xff]
  %v33 = vld [vmem:[%s7] sm:$0xf]
  %vm34 = vcmask 261120
  %35 = vst.msk [vmem:[#allocation2] sm:$0xff] %vm34, 0.0
  %36 = vst.msk [vmem:[#allocation2 + $0x8] sm:$0xff] %vm34, 0.0
  %37 = vst.msk [vmem:[#allocation2 + $0x10] sm:$0xff] %vm34, 0.0
  %38 = vst.msk [vmem:[#allocation2 + $0x18] sm:$0xff] %vm34, 0.0
  %39 = vst.msk [vmem:[#allocation2 + $0x20] sm:$0xff] %vm34, 0.0
  %40 = vst.msk [vmem:[#allocation2 + $0x28] sm:$0xff] %vm34, 0.0
  %41 = vst.msk [vmem:[#allocation2 + $0x30] sm:$0xff] %vm34, 0.0
  %42 = vst.msk [vmem:[#allocation2 + $0x38] sm:$0xff] %vm34, 0.0
  %43 = vst.msk [vmem:[#allocation2 + $0x40] sm:$0xff] %vm34, 0.0
  %44 = vst.msk [vmem:[#allocation2 + $0x48] sm:$0xff] %vm34, 0.0
  %45 = vst.msk [vmem:[#allocation2 + $0x50] sm:$0xff] %vm34, 0.0
  %46 = vst.msk [vmem:[#allocation2 + $0x58] sm:$0xff] %vm34, 0.0
  %47 = vst.msk [vmem:[#allocation2 + $0x60] sm:$0xff] %vm34, 0.0
  %48 = vst.msk [vmem:[#allocation2 + $0x68] sm:$0xff] %vm34, 0.0
  %49 = vst.msk [vmem:[#allocation2 + $0x70] sm:$0xff] %vm34, 0.0
  %50 = vst.msk [vmem:[#allocation2 + $0x78] sm:$0xff] %vm34, 0.0
  %51 = vst.msk [vmem:[#allocation2 + $0x80] sm:$0xff] %vm34, 0.0
  %52 = vst.msk [vmem:[#allocation2 + $0x88] sm:$0xff] %vm34, 0.0
  %53 = vst.msk [vmem:[#allocation2 + $0x90] sm:$0xff] %vm34, 0.0
  %54 = vst.msk [vmem:[#allocation2 + $0x98] sm:$0xff] %vm34, 0.0
  %55 = vst.msk [vmem:[#allocation2 + $0xa0] sm:$0xff] %vm34, 0.0
  %56 = vst.msk [vmem:[#allocation2 + $0xa8] sm:$0xff] %vm34, 0.0
  %57 = vst.msk [vmem:[#allocation2 + $0xb0] sm:$0xff] %vm34, 0.0
  %58 = vst.msk [vmem:[#allocation2 + $0xb8] sm:$0xff] %vm34, 0.0
  %59 = vst.msk [vmem:[#allocation2 + $0xc0] sm:$0xff] %vm34, 0.0
  %60 = vst.msk [vmem:[#allocation2 + $0xc8] sm:$0xff] %vm34, 0.0
  %61 = vst.msk [vmem:[#allocation2 + $0xd0] sm:$0xff] %vm34, 0.0
  %62 = vst.msk [vmem:[#allocation2 + $0xd8] sm:$0xff] %vm34, 0.0
  %63 = vst.msk [vmem:[#allocation2 + $0xe0] sm:$0xff] %vm34, 0.0
  %64 = vst.msk [vmem:[#allocation2 + $0xe8] sm:$0xff] %vm34, 0.0
  %65 = vst.msk [vmem:[#allocation2 + $0xf0] sm:$0xff] %vm34, 0.0
  %66 = vst.msk [vmem:[#allocation2 + $0xf8] sm:$0xff] %vm34, 0.0
  %67 = vst.msk [vmem:[#allocation2 + $0x100] sm:$0xff] %vm34, 0.0
  %68 = vst.msk [vmem:[#allocation2 + $0x108] sm:$0xff] %vm34, 0.0
  %69 = vst.msk [vmem:[#allocation2 + $0x110] sm:$0xff] %vm34, 0.0
  %70 = vst.msk [vmem:[#allocation2 + $0x118] sm:$0xff] %vm34, 0.0
  %71 = vst.msk [vmem:[#allocation2 + $0x120] sm:$0xff] %vm34, 0.0
  %72 = vst.msk [vmem:[#allocation2 + $0x128] sm:$0xff] %vm34, 0.0
  %73 = vst.msk [vmem:[#allocation2 + $0x130] sm:$0xff] %vm34, 0.0
  %74 = vst.msk [vmem:[#allocation2 + $0x138] sm:$0xff] %vm34, 0.0
  %75 = vst.msk [vmem:[#allocation2 + $0x140] sm:$0xff] %vm34, 0.0
  %76 = vst.msk [vmem:[#allocation2 + $0x148] sm:$0xff] %vm34, 0.0
  %77 = vst.msk [vmem:[#allocation2 + $0x150] sm:$0xff] %vm34, 0.0
  %78 = vst.msk [vmem:[#allocation2 + $0x158] sm:$0xff] %vm34, 0.0
  %79 = vst.msk [vmem:[#allocation2 + $0x160] sm:$0xff] %vm34, 0.0
  %80 = vst.msk [vmem:[#allocation2 + $0x168] sm:$0xff] %vm34, 0.0
  %81 = vst.msk [vmem:[#allocation2 + $0x170] sm:$0xff] %vm34, 0.0
  %82 = vst.msk [vmem:[#allocation2 + $0x178] sm:$0xff] %vm34, 0.0
  %83 = vst.msk [vmem:[#allocation2 + $0x180] sm:$0xff] %vm34, 0.0
  %84 = vst.msk [vmem:[#allocation2 + $0x188] sm:$0xff] %vm34, 0.0
  %85 = vst.msk [vmem:[#allocation2 + $0x190] sm:$0xff] %vm34, 0.0
  %86 = vst.msk [vmem:[#allocation2 + $0x198] sm:$0xff] %vm34, 0.0
  %87 = vst.msk [vmem:[#allocation2 + $0x1a0] sm:$0xff] %vm34, 0.0
  %88 = vst.msk [vmem:[#allocation2 + $0x1a8] sm:$0xff] %vm34, 0.0
  %89 = vst.msk [vmem:[#allocation2 + $0x1b0] sm:$0xff] %vm34, 0.0
  %90 = vst.msk [vmem:[#allocation2 + $0x1b8] sm:$0xff] %vm34, 0.0
  %91 = vst.msk [vmem:[#allocation2 + $0x1c0] sm:$0xff] %vm34, 0.0
  %92 = vst.msk [vmem:[#allocation2 + $0x1c8] sm:$0xff] %vm34, 0.0
  %93 = vst.msk [vmem:[#allocation2 + $0x1d0] sm:$0xff] %vm34, 0.0
  %94 = vst.msk [vmem:[#allocation2 + $0x1d8] sm:$0xff] %vm34, 0.0
  %v95 = vld [vmem:[%s0] sm:$0xff]
  %v96 = vld [vmem:[%s0 + $0x8] sm:$0xff]
  %v97 = vld [vmem:[%s0 + $0x10] sm:$0xff]
  %v98 = vld [vmem:[%s0 + $0x18] sm:$0xff]
  %v99 = vld [vmem:[%s0 + $0x20] sm:$0xff]
  %v100 = vld [vmem:[%s0 + $0x28] sm:$0xff]
  %v101 = vld [vmem:[%s0 + $0x30] sm:$0xff]
  %v102 = vld [vmem:[%s0 + $0x38] sm:$0xff]
  %v103 = vld [vmem:[%s0 + $0x40] sm:$0xff]
  %v104 = vld [vmem:[%s0 + $0x48] sm:$0xff]
  %v105 = vld [vmem:[%s0 + $0x50] sm:$0xff]
  %v106 = vld [vmem:[%s0 + $0x58] sm:$0xff]
  %v107 = vld [vmem:[%s0 + $0x60] sm:$0xff]
  %v108 = vld [vmem:[%s0 + $0x68] sm:$0xff]
  %v109 = vld [vmem:[%s0 + $0x70] sm:$0xff]
  %v110 = vld [vmem:[%s0 + $0x78] sm:$0xff]
  %v111 = vld [vmem:[%s1] sm:$0xff]
  %v112 = vld [vmem:[%s1 + $0x8] sm:$0xff]
  %v113 = vld [vmem:[%s1 + $0x10] sm:$0x3]
  %v114 = vld [vmem:[%s2] sm:$0x1]
  %v115 = vlaneseq
  %v116 = vshrl.u32 %v115, 7
  %v117 = vsub.s32 0, %v116
  %v118 = vrot.slane %v114, %v117
  %vm119 = vcmask 146432
  %v121 = vsel %vm119, %v95, 0
  %v124 = vsel %vm119, %v96, 0
  %v127 = vsel %vm119, %v97, 0
  %v130 = vsel %vm119, %v98, 0
  %v133 = vsel %vm119, %v99, 0
  %v136 = vsel %vm119, %v100, 0
  %v139 = vsel %vm119, %v101, 0
  %v142 = vsel %vm119, %v102, 0
  %v145 = vsel %vm119, %v103, 0
  %v148 = vsel %vm119, %v104, 0
  %v151 = vsel %vm119, %v105, 0
  %v154 = vsel %vm119, %v106, 0
  %v157 = vsel %vm119, %v107, 0
  %v160 = vsel %vm119, %v108, 0
  %v163 = vsel %vm119, %v109, 0
  %v166 = vsel %vm119, %v110, 0
  %vm168 = vcmask 1041408
  %v170 = vsel %vm168, %v113, 0
  %172 = vmatprep.subr.mxu0 0.0
  %173 = vmatpush1.msra.mxu0 %v111
  %174 = vmatprep.subr.mxu0 0.0
  %175 = vmatpush1.msra.mxu0 %v112
  %176 = vmatprep.subr.mxu0 0.0
  %177 = vmatpush1.msra.mxu0 %v170
  %178 = vmatprep.subr.mxu0 0.0
  %179 = vmatpush1.msra.mxu0 0.0
  %180 = vmatprep.subr.mxu0 0.0
  %181 = vmatpush1.msra.mxu0 0.0
  %182 = vmatprep.subr.mxu0 0.0
  %183 = vmatpush1.msra.mxu0 0.0
  %184 = vmatprep.subr.mxu0 0.0
  %185 = vmatpush1.msra.mxu0 0.0
  %186 = vmatprep.subr.mxu0 0.0
  %187 = vmatpush1.msra.mxu0 0.0
  %188 = vmatprep.subr.mxu0 0.0
  %189 = vmatpush1.msra.mxu0 0.0
  %190 = vmatprep.subr.mxu0 0.0
  %191 = vmatpush1.msra.mxu0 0.0
  %192 = vmatprep.subr.mxu0 0.0
  %193 = vmatpush1.msra.mxu0 0.0
  %194 = vmatprep.subr.mxu0 0.0
  %195 = vmatpush1.msra.mxu0 0.0
  %196 = vmatprep.subr.mxu0 0.0
  %197 = vmatpush1.msra.mxu0 0.0
  %198 = vmatprep.subr.mxu0 0.0
  %199 = vmatpush1.msra.mxu0 0.0
  %200 = vmatprep.subr.mxu0 0.0
  %201 = vmatpush1.msra.mxu0 0.0
  %202 = vmatprep.subr.mxu0 0.0
  %203 = vmatpush1.msra.mxu0 0.0
  %204 = vmatprep.subr.mxu0 0.0
  %205 = vmatpush1.msra.mxu0 0.0
  %206 = vmatprep.subr.mxu0 0.0
  %207 = vmatpush1.msra.mxu0 0.0
  %208 = vmatprep.subr.mxu0 0.0
  %209 = vmatpush1.msra.mxu0 0.0
  %210 = vmatprep.subr.mxu0 0.0
  %211 = vmatpush1.msra.mxu0 0.0
  %212 = vmatprep.subr.mxu0 0.0
  %213 = vmatpush1.msra.mxu0 0.0
  %214 = vmatprep.subr.mxu0 0.0
  %215 = vmatpush1.msra.mxu0 0.0
  %216 = vmatprep.subr.mxu0 0.0
  %217 = vmatpush1.msra.mxu0 0.0
  %218 = vmatprep.subr.mxu0 0.0
  %219 = vmatpush1.msra.mxu0 0.0
  %220 = vmatprep.subr.mxu0 0.0
  %221 = vmatpush1.msra.mxu0 0.0
  %222 = vmatprep.subr.mxu0 0.0
  %223 = vmatpush1.msra.mxu0 0.0
  %224 = vmatprep.subr.mxu0 0.0
  %225 = vmatpush1.msra.mxu0 0.0
  %226 = vmatprep.subr.mxu0 0.0
  %227 = vmatpush1.msra.mxu0 0.0
  %228 = vmatprep.subr.mxu0 0.0
  %229 = vmatpush1.msra.mxu0 0.0
  %230 = vmatprep.subr.mxu0 0.0
  %231 = vmatpush1.msra.mxu0 0.0
  %232 = vmatprep.subr.mxu0 0.0
  %233 = vmatpush1.msra.mxu0 0.0
  %234 = vmatprep.subr.mxu0 0.0
  %235 = vmatpush1.msra.mxu0 0.0
  %236 = vmatprep.mubr.f32.mxu0 0.0
  %237 = vmatmul.mubr.f32.gmra.mrb[0].mxu0 %v121
  %v238 = vpop.f32.mrb[0].mxu0
  %v239 = vadd.f32 %v118, %v238
  %v240 = vpop.f32.mrb[0].mxu0
  %241 = vmatprep.mubr.f32.mxu0 0.0
  %242 = vmatmul.mubr.f32.gmra.mrb[0].mxu0 %v124
  %v243 = vpop.f32.mrb[0].mxu0
  %v244 = vadd.f32 %v118, %v243
  %v245 = vpop.f32.mrb[0].mxu0
  %246 = vmatprep.mubr.f32.mxu0 0.0
  %247 = vmatmul.mubr.f32.gmra.mrb[0].mxu0 %v127
  %v248 = vpop.f32.mrb[0].mxu0
  %v249 = vadd.f32 %v118, %v248
  %v250 = vpop.f32.mrb[0].mxu0
  %251 = vmatprep.mubr.f32.mxu0 0.0
  %252 = vmatmul.mubr.f32.gmra.mrb[0].mxu0 %v130
  %v253 = vpop.f32.mrb[0].mxu0
  %v254 = vadd.f32 %v118, %v253
  %v255 = vpop.f32.mrb[0].mxu0
  %256 = vmatprep.mubr.f32.mxu0 0.0
  %257 = vmatmul.mubr.f32.gmra.mrb[0].mxu0 %v133
  %v258 = vpop.f32.mrb[0].mxu0
  %v259 = vadd.f32 %v118, %v258
  %v260 = vpop.f32.mrb[0].mxu0
  %261 = vmatprep.mubr.f32.mxu0 0.0
  %262 = vmatmul.mubr.f32.gmra.mrb[0].mxu0 %v136
  %v263 = vpop.f32.mrb[0].mxu0
  %v264 = vadd.f32 %v118, %v263
  %v265 = vpop.f32.mrb[0].mxu0
  %266 = vmatprep.mubr.f32.mxu0 0.0
  %267 = vmatmul.mubr.f32.gmra.mrb[0].mxu0 %v139
  %v268 = vpop.f32.mrb[0].mxu0
  %v269 = vadd.f32 %v118, %v268
  %v270 = vpop.f32.mrb[0].mxu0
  %271 = vmatprep.mubr.f32.mxu0 0.0
  %272 = vmatmul.mubr.f32.gmra.mrb[0].mxu0 %v142
  %v273 = vpop.f32.mrb[0].mxu0
  %v274 = vadd.f32 %v118, %v273
  %v275 = vpop.f32.mrb[0].mxu0
  %276 = vmatprep.mubr.f32.mxu0 0.0
  %277 = vmatmul.mubr.f32.gmra.mrb[0].mxu0 %v145
  %v278 = vpop.f32.mrb[0].mxu0
  %v279 = vadd.f32 %v118, %v278
  %v280 = vpop.f32.mrb[0].mxu0
  %281 = vmatprep.mubr.f32.mxu0 0.0
  %282 = vmatmul.mubr.f32.gmra.mrb[0].mxu0 %v148
  %v283 = vpop.f32.mrb[0].mxu0
  %v284 = vadd.f32 %v118, %v283
  %v285 = vpop.f32.mrb[0].mxu0
  %286 = vmatprep.mubr.f32.mxu0 0.0
  %287 = vmatmul.mubr.f32.gmra.mrb[0].mxu0 %v151
  %v288 = vpop.f32.mrb[0].mxu0
  %v289 = vadd.f32 %v118, %v288
  %v290 = vpop.f32.mrb[0].mxu0
  %291 = vmatprep.mubr.f32.mxu0 0.0
  %292 = vmatmul.mubr.f32.gmra.mrb[0].mxu0 %v154
  %v293 = vpop.f32.mrb[0].mxu0
  %v294 = vadd.f32 %v118, %v293
  %v295 = vpop.f32.mrb[0].mxu0
  %296 = vmatprep.mubr.f32.mxu0 0.0
  %297 = vmatmul.mubr.f32.gmra.mrb[0].mxu0 %v157
  %v298 = vpop.f32.mrb[0].mxu0
  %v299 = vadd.f32 %v118, %v298
  %v300 = vpop.f32.mrb[0].mxu0
  %301 = vmatprep.mubr.f32.mxu0 0.0
  %302 = vmatmul.mubr.f32.gmra.mrb[0].mxu0 %v160
  %v303 = vpop.f32.mrb[0].mxu0
  %v304 = vadd.f32 %v118, %v303
  %v305 = vpop.f32.mrb[0].mxu0
  %306 = vmatprep.mubr.f32.mxu0 0.0
  %307 = vmatmul.mubr.f32.gmra.mrb[0].mxu0 %v163
  %v308 = vpop.f32.mrb[0].mxu0
  %v309 = vadd.f32 %v118, %v308
  %v310 = vpop.f32.mrb[0].mxu0
  %311 = vmatprep.mubr.f32.mxu0 0.0
  %312 = vmatmul.mubr.f32.gmra.mrb[0].mxu0 %v166
  %v313 = vpop.f32.mrb[0].mxu0
  %v314 = vadd.f32 %v118, %v313
  %v315 = vpop.f32.mrb[0].mxu0
  %316 = vdwg.mxu0
  %v317 = vld [vmem:[%s2 + $0x1] sm:$0x1]
  %v318 = vld [vmem:[%s2 + $0x2] sm:$0x1]
  %v319 = vsel %vm34, %v239, 0.0
  %v320 = vsel %vm34, %v244, 0.0
  %v321 = vadd.f32 %v319, %v320
  %v322 = vsel %vm34, %v249, 0.0
  %v323 = vadd.f32 %v321, %v322
  %v324 = vsel %vm34, %v254, 0.0
  %v325 = vadd.f32 %v323, %v324
  %v326 = vsel %vm34, %v259, 0.0
  %v327 = vadd.f32 %v325, %v326
  %v328 = vsel %vm34, %v264, 0.0
  %v329 = vadd.f32 %v327, %v328
  %v330 = vsel %vm34, %v269, 0.0
  %v331 = vadd.f32 %v329, %v330
  %v332 = vsel %vm34, %v274, 0.0
  %v333 = vadd.f32 %v331, %v332
  %v334 = vrot.slane %v333, 4
  %v335 = vadd.f32 %v333, %v334
  %v336 = vrot.slane %v335, 2
  %v337 = vadd.f32 %v335, %v336
  %v338 = vrot.slane %v337, 1
  %v339 = vadd.f32 %v337, %v338
  %v340 = vsel %vm34, %v279, 0.0
  %v341 = vsel %vm34, %v284, 0.0
  %v342 = vadd.f32 %v340, %v341
  %v343 = vsel %vm34, %v289, 0.0
  %v344 = vadd.f32 %v342, %v343
  %v345 = vsel %vm34, %v294, 0.0
  %v346 = vadd.f32 %v344, %v345
  %v347 = vsel %vm34, %v299, 0.0
  %v348 = vadd.f32 %v346, %v347
  %v349 = vsel %vm34, %v304, 0.0
  %v350 = vadd.f32 %v348, %v349
  %v351 = vsel %vm34, %v309, 0.0
  %v352 = vadd.f32 %v350, %v351
  %v353 = vsel %vm34, %v314, 0.0
  %v354 = vadd.f32 %v352, %v353
  %v355 = vrot.slane %v354, 4
  %v356 = vadd.f32 %v354, %v355
  %v357 = vrot.slane %v356, 2
  %v358 = vadd.f32 %v356, %v357
  %v359 = vrot.slane %v358, 1
  %v360 = vadd.f32 %v358, %v359
  %v361 = vmul.f32 %v239, %v239
  %v362 = vmul.f32 %v244, %v244
  %v363 = vmul.f32 %v249, %v249
  %v364 = vmul.f32 %v254, %v254
  %v365 = vmul.f32 %v259, %v259
  %v366 = vmul.f32 %v264, %v264
  %v367 = vmul.f32 %v269, %v269
  %v368 = vmul.f32 %v274, %v274
  %v369 = vmul.f32 %v279, %v279
  %v370 = vmul.f32 %v284, %v284
  %v371 = vmul.f32 %v289, %v289
  %v372 = vmul.f32 %v294, %v294
  %v373 = vmul.f32 %v299, %v299
  %v374 = vmul.f32 %v304, %v304
  %v375 = vmul.f32 %v309, %v309
  %v376 = vmul.f32 %v314, %v314
  %v377 = vsel %vm34, %v361, 0.0
  %v378 = vsel %vm34, %v362, 0.0
  %v379 = vadd.f32 %v377, %v378
  %v380 = vsel %vm34, %v363, 0.0
  %v381 = vadd.f32 %v379, %v380
  %v382 = vsel %vm34, %v364, 0.0
  %v383 = vadd.f32 %v381, %v382
  %v384 = vsel %vm34, %v365, 0.0
  %v385 = vadd.f32 %v383, %v384
  %v386 = vsel %vm34, %v366, 0.0
  %v387 = vadd.f32 %v385, %v386
  %v388 = vsel %vm34, %v367, 0.0
  %v389 = vadd.f32 %v387, %v388
  %v390 = vsel %vm34, %v368, 0.0
  %v391 = vadd.f32 %v389, %v390
  %v392 = vrot.slane %v391, 4
  %v393 = vadd.f32 %v391, %v392
  %v394 = vrot.slane %v393, 2
  %v395 = vadd.f32 %v393, %v394
  %v396 = vrot.slane %v395, 1
  %v397 = vadd.f32 %v395, %v396
  %v398 = vsel %vm34, %v369, 0.0
  %v399 = vsel %vm34, %v370, 0.0
  %v400 = vadd.f32 %v398, %v399
  %v401 = vsel %vm34, %v371, 0.0
  %v402 = vadd.f32 %v400, %v401
  %v403 = vsel %vm34, %v372, 0.0
  %v404 = vadd.f32 %v402, %v403
  %v405 = vsel %vm34, %v373, 0.0
  %v406 = vadd.f32 %v404, %v405
  %v407 = vsel %vm34, %v374, 0.0
  %v408 = vadd.f32 %v406, %v407
  %v409 = vsel %vm34, %v375, 0.0
  %v410 = vadd.f32 %v408, %v409
  %v411 = vsel %vm34, %v376, 0.0
  %v412 = vadd.f32 %v410, %v411
  %v413 = vrot.slane %v412, 4
  %v414 = vadd.f32 %v412, %v413
  %v415 = vrot.slane %v414, 2
  %v416 = vadd.f32 %v414, %v415
  %v417 = vrot.slane %v416, 1
  %v418 = vadd.f32 %v416, %v417
  %vm421 = vcmask 1041409
  %v422 = vsel %vm421, %v360, %v339
  %v423 = vsel %vm34, %v422, 0
  %425 = vmatprep.subr.mxu0 0.0
  %426 = vmatpush1.msra.mxu0 %v29
  %427 = vmatprep.subr.mxu0 0.0
  %428 = vmatpush1.msra.mxu0 %v30
  %429 = vmatprep.subr.mxu0 0.0
  %430 = vmatpush1.msra.mxu0 %v31
  %431 = vmatprep.subr.mxu0 0.0
  %432 = vmatpush1.msra.mxu0 %v32
  %433 = vmatprep.subr.mxu0 0.0
  %434 = vmatpush1.msra.mxu0 0.0
  %435 = vmatprep.subr.mxu0 0.0
  %436 = vmatpush1.msra.mxu0 0.0
  %437 = vmatprep.subr.mxu0 0.0
  %438 = vmatpush1.msra.mxu0 0.0
  %439 = vmatprep.subr.mxu0 0.0
  %440 = vmatpush1.msra.mxu0 0.0
  %441 = vmatprep.subr.mxu0 0.0
  %442 = vmatpush1.msra.mxu0 0.0
  %443 = vmatprep.subr.mxu0 0.0
  %444 = vmatpush1.msra.mxu0 0.0
  %445 = vmatprep.subr.mxu0 0.0
  %446 = vmatpush1.msra.mxu0 0.0
  %447 = vmatprep.subr.mxu0 0.0
  %448 = vmatpush1.msra.mxu0 0.0
  %449 = vmatprep.subr.mxu0 0.0
  %450 = vmatpush1.msra.mxu0 0.0
  %451 = vmatprep.subr.mxu0 0.0
  %452 = vmatpush1.msra.mxu0 0.0
  %453 = vmatprep.subr.mxu0 0.0
  %454 = vmatpush1.msra.mxu0 0.0
  %455 = vmatprep.subr.mxu0 0.0
  %456 = vmatpush1.msra.mxu0 0.0
  %457 = vmatprep.subr.mxu0 0.0
  %458 = vmatpush1.msra.mxu0 0.0
  %459 = vmatprep.subr.mxu0 0.0
  %460 = vmatpush1.msra.mxu0 0.0
  %461 = vmatprep.subr.mxu0 0.0
  %462 = vmatpush1.msra.mxu0 0.0
  %463 = vmatprep.subr.mxu0 0.0
  %464 = vmatpush1.msra.mxu0 0.0
  %465 = vmatprep.subr.mxu0 0.0
  %466 = vmatpush1.msra.mxu0 0.0
  %467 = vmatprep.subr.mxu0 0.0
  %468 = vmatpush1.msra.mxu0 0.0
  %469 = vmatprep.subr.mxu0 0.0
  %470 = vmatpush1.msra.mxu0 0.0
  %471 = vmatprep.subr.mxu0 0.0
  %472 = vmatpush1.msra.mxu0 0.0
  %473 = vmatprep.subr.mxu0 0.0
  %474 = vmatpush1.msra.mxu0 0.0
  %475 = vmatprep.subr.mxu0 0.0
  %476 = vmatpush1.msra.mxu0 0.0
  %477 = vmatprep.subr.mxu0 0.0
  %478 = vmatpush1.msra.mxu0 0.0
  %479 = vmatprep.subr.mxu0 0.0
  %480 = vmatpush1.msra.mxu0 0.0
  %481 = vmatprep.subr.mxu0 0.0
  %482 = vmatpush1.msra.mxu0 0.0
  %483 = vmatprep.subr.mxu0 0.0
  %484 = vmatpush1.msra.mxu0 0.0
  %485 = vmatprep.subr.mxu0 0.0
  %486 = vmatpush1.msra.mxu0 0.0
  %487 = vmatprep.subr.mxu0 0.0
  %488 = vmatpush1.msra.mxu0 0.0
  %489 = vmatprep.mubr.f32.mxu0 0.0
  %490 = vmatmul.mubr.f32.gmra.mrb[0].mxu0 %v423
  %v491 = vpop.f32.mrb[0].mxu0
  %v492 = vadd.f32 0.0, %v491
  %v493 = vpop.f32.mrb[0].mxu0
  %494 = vdwg.mxu0
  %v497 = vsel %vm421, %v418, %v397
  %v498 = vsel %vm34, %v497, 0
  %500 = vmatprep.subr.mxu0 0.0
  %501 = vmatpush1.msra.mxu0 %v29
  %502 = vmatprep.subr.mxu0 0.0
  %503 = vmatpush1.msra.mxu0 %v30
  %504 = vmatprep.subr.mxu0 0.0
  %505 = vmatpush1.msra.mxu0 %v31
  %506 = vmatprep.subr.mxu0 0.0
  %507 = vmatpush1.msra.mxu0 %v32
  %508 = vmatprep.subr.mxu0 0.0
  %509 = vmatpush1.msra.mxu0 0.0
  %510 = vmatprep.subr.mxu0 0.0
  %511 = vmatpush1.msra.mxu0 0.0
  %512 = vmatprep.subr.mxu0 0.0
  %513 = vmatpush1.msra.mxu0 0.0
  %514 = vmatprep.subr.mxu0 0.0
  %515 = vmatpush1.msra.mxu0 0.0
  %516 = vmatprep.subr.mxu0 0.0
  %517 = vmatpush1.msra.mxu0 0.0
  %518 = vmatprep.subr.mxu0 0.0
  %519 = vmatpush1.msra.mxu0 0.0
  %520 = vmatprep.subr.mxu0 0.0
  %521 = vmatpush1.msra.mxu0 0.0
  %522 = vmatprep.subr.mxu0 0.0
  %523 = vmatpush1.msra.mxu0 0.0
  %524 = vmatprep.subr.mxu0 0.0
  %525 = vmatpush1.msra.mxu0 0.0
  %526 = vmatprep.subr.mxu0 0.0
  %527 = vmatpush1.msra.mxu0 0.0
  %528 = vmatprep.subr.mxu0 0.0
  %529 = vmatpush1.msra.mxu0 0.0
  %530 = vmatprep.subr.mxu0 0.0
  %531 = vmatpush1.msra.mxu0 0.0
  %532 = vmatprep.subr.mxu0 0.0
  %533 = vmatpush1.msra.mxu0 0.0
  %534 = vmatprep.subr.mxu0 0.0
  %535 = vmatpush1.msra.mxu0 0.0
  %536 = vmatprep.subr.mxu0 0.0
  %537 = vmatpush1.msra.mxu0 0.0
  %538 = vmatprep.subr.mxu0 0.0
  %539 = vmatpush1.msra.mxu0 0.0
  %540 = vmatprep.subr.mxu0 0.0
  %541 = vmatpush1.msra.mxu0 0.0
  %542 = vmatprep.subr.mxu0 0.0
  %543 = vmatpush1.msra.mxu0 0.0
  %544 = vmatprep.subr.mxu0 0.0
  %545 = vmatpush1.msra.mxu0 0.0
  %546 = vmatprep.subr.mxu0 0.0
  %547 = vmatpush1.msra.mxu0 0.0
  %548 = vmatprep.subr.mxu0 0.0
  %549 = vmatpush1.msra.mxu0 0.0
  %550 = vmatprep.subr.mxu0 0.0
  %551 = vmatpush1.msra.mxu0 0.0
  %552 = vmatprep.subr.mxu0 0.0
  %553 = vmatpush1.msra.mxu0 0.0
  %554 = vmatprep.subr.mxu0 0.0
  %555 = vmatpush1.msra.mxu0 0.0
  %556 = vmatprep.subr.mxu0 0.0
  %557 = vmatpush1.msra.mxu0 0.0
  %558 = vmatprep.subr.mxu0 0.0
  %559 = vmatpush1.msra.mxu0 0.0
  %560 = vmatprep.subr.mxu0 0.0
  %561 = vmatpush1.msra.mxu0 0.0
  %562 = vmatprep.subr.mxu0 0.0
  %563 = vmatpush1.msra.mxu0 0.0
  %564 = vmatprep.mubr.f32.mxu0 0.0
  %565 = vmatmul.mubr.f32.gmra.mrb[0].mxu0 %v498
  %v566 = vpop.f32.mrb[0].mxu0
  %v567 = vadd.f32 0.0, %v566
  %v568 = vpop.f32.mrb[0].mxu0
  %569 = vdwg.mxu0
  %v570 = vmul.f32 %v492, %v492
  %v571 = vsub.f32 %v567, %v570
  %v572 = vmax.f32 %v571, 0.0
  %v573 = vadd.f32 %v572, 1e-05
  %v574 = vrsqrt.pop %v573
  %v577 = vunpack.c.l.s4 1966171168
  %v578 = vunpack.c.0.s8 %v577
  %v579 = vlaneseq
  %v580 = vshrl.u32 %v579, 7
  %v581 = vsub.s32 %v578, %v580
  %v582 = vrot.slane %v492, %v581
  %v583 = vcombine.high %v582, %v582
  %v585 = vunpack.c.l.s4 1966171168
  %v586 = vunpack.c.0.s8 %v585
  %v587 = vlaneseq
  %v588 = vshrl.u32 %v587, 7
  %v589 = vsub.s32 %v586, %v588
  %v590 = vrot.slane %v582, %v589
  %v592 = vunpack.c.l.s4 1966171168
  %v593 = vunpack.c.0.s8 %v592
  %v594 = vlaneseq
  %v595 = vshrl.u32 %v594, 7
  %v596 = vsub.s32 %v593, %v595
  %v597 = vrot.slane %v583, %v596
  %v598 = vlaneseq
  %v599 = vshrl.u32 %v598, 7
  %v600 = vsub.s32 0, %v599
  %v601 = vrot.slane %v590, %v600
  %v602 = vlaneseq
  %v603 = vshrl.u32 %v602, 7
  %v604 = vsub.s32 0, %v603
  %v605 = vrot.slane %v597, %v604
  %v608 = vsub.f32 %v239, %v601
  %v609 = vsub.f32 %v244, %v601
  %v610 = vsub.f32 %v249, %v601
  %v611 = vsub.f32 %v254, %v601
  %v612 = vsub.f32 %v259, %v601
  %v613 = vsub.f32 %v264, %v601
  %v614 = vsub.f32 %v269, %v601
  %v615 = vsub.f32 %v274, %v601
  %v616 = vsub.f32 %v279, %v605
  %v617 = vsub.f32 %v284, %v605
  %v618 = vsub.f32 %v289, %v605
  %v619 = vsub.f32 %v294, %v605
  %v620 = vsub.f32 %v299, %v605
  %v621 = vsub.f32 %v304, %v605
  %v622 = vsub.f32 %v309, %v605
  %v623 = vsub.f32 %v314, %v605
  %v626 = vunpack.c.l.s4 1966171168
  %v627 = vunpack.c.0.s8 %v626
  %v628 = vlaneseq
  %v629 = vshrl.u32 %v628, 7
  %v630 = vsub.s32 %v627, %v629
  %v631 = vrot.slane %v574, %v630
  %v632 = vcombine.high %v631, %v631
  %v634 = vunpack.c.l.s4 1966171168
  %v635 = vunpack.c.0.s8 %v634
  %v636 = vlaneseq
  %v637 = vshrl.u32 %v636, 7
  %v638 = vsub.s32 %v635, %v637
  %v639 = vrot.slane %v631, %v638
  %v641 = vunpack.c.l.s4 1966171168
  %v642 = vunpack.c.0.s8 %v641
  %v643 = vlaneseq
  %v644 = vshrl.u32 %v643, 7
  %v645 = vsub.s32 %v642, %v644
  %v646 = vrot.slane %v632, %v645
  %v649 = vmul.f32 %v639, %v317
  %v650 = vmul.f32 %v646, %v317
  %v653 = vlaneseq
  %v654 = vshrl.u32 %v653, 7
  %v655 = vsub.s32 0, %v654
  %v656 = vrot.slane %v649, %v655
  %v657 = vlaneseq
  %v658 = vshrl.u32 %v657, 7
  %v659 = vsub.s32 0, %v658
  %v660 = vrot.slane %v650, %v659
  %v663 = vmul.f32 %v608, %v656
  %v664 = vmul.f32 %v609, %v656
  %v665 = vmul.f32 %v610, %v656
  %v666 = vmul.f32 %v611, %v656
  %v667 = vmul.f32 %v612, %v656
  %v668 = vmul.f32 %v613, %v656
  %v669 = vmul.f32 %v614, %v656
  %v670 = vmul.f32 %v615, %v656
  %v671 = vmul.f32 %v616, %v660
  %v672 = vmul.f32 %v617, %v660
  %v673 = vmul.f32 %v618, %v660
  %v674 = vmul.f32 %v619, %v660
  %v675 = vmul.f32 %v620, %v660
  %v676 = vmul.f32 %v621, %v660
  %v677 = vmul.f32 %v622, %v660
  %v678 = vmul.f32 %v623, %v660
  %v679 = vlaneseq
  %v680 = vshrl.u32 %v679, 7
  %v681 = vsub.s32 0, %v680
  %v682 = vrot.slane %v318, %v681
  %v683 = vadd.f32 %v663, %v682
  %v684 = vadd.f32 %v664, %v682
  %v685 = vadd.f32 %v665, %v682
  %v686 = vadd.f32 %v666, %v682
  %v687 = vadd.f32 %v667, %v682
  %v688 = vadd.f32 %v668, %v682
  %v689 = vadd.f32 %v669, %v682
  %v690 = vadd.f32 %v670, %v682
  %v691 = vadd.f32 %v671, %v682
  %v692 = vadd.f32 %v672, %v682
  %v693 = vadd.f32 %v673, %v682
  %v694 = vadd.f32 %v674, %v682
  %v695 = vadd.f32 %v675, %v682
  %v696 = vadd.f32 %v676, %v682
  %v697 = vadd.f32 %v677, %v682
  %v698 = vadd.f32 %v678, %v682
  %v699 = vmax.f32 %v683, 0.0
  %v700 = vmax.f32 %v684, 0.0
  %v701 = vmax.f32 %v685, 0.0
  %v702 = vmax.f32 %v686, 0.0
  %v703 = vmax.f32 %v687, 0.0
  %v704 = vmax.f32 %v688, 0.0
  %v705 = vmax.f32 %v689, 0.0
  %v706 = vmax.f32 %v690, 0.0
  %v707 = vmax.f32 %v691, 0.0
  %v708 = vmax.f32 %v692, 0.0
  %v709 = vmax.f32 %v693, 0.0
  %v710 = vmax.f32 %v694, 0.0
  %v711 = vmax.f32 %v695, 0.0
  %v712 = vmax.f32 %v696, 0.0
  %v713 = vmax.f32 %v697, 0.0
  %v714 = vmax.f32 %v698, 0.0
  %v715 = vld [vmem:[%s3] sm:$0xff]
  %v716 = vld [vmem:[%s3 + $0x8] sm:$0xff]
  %v717 = vld [vmem:[%s3 + $0x10] sm:$0xff]
  %v718 = vld [vmem:[%s3 + $0x18] sm:$0xff]
  %v719 = vld [vmem:[%s3 + $0x20] sm:$0xff]
  %v720 = vld [vmem:[%s3 + $0x28] sm:$0xff]
  %v721 = vld [vmem:[%s3 + $0x30] sm:$0xff]
  %v722 = vld [vmem:[%s3 + $0x38] sm:$0xff]
  %v723 = vld [vmem:[%s3 + $0x40] sm:$0xff]
  %v724 = vld [vmem:[%s3 + $0x48] sm:$0xff]
  %v725 = vld [vmem:[%s3 + $0x50] sm:$0xff]
  %v726 = vld [vmem:[%s3 + $0x58] sm:$0xff]
  %v727 = vld [vmem:[%s3 + $0x60] sm:$0xff]
  %v728 = vld [vmem:[%s3 + $0x68] sm:$0xff]
  %v729 = vld [vmem:[%s3 + $0x70] sm:$0xff]
  %v730 = vld [vmem:[%s3 + $0x78] sm:$0xff]
  %v731 = vld [vmem:[%s3 + $0x80] sm:$0xff]
  %v732 = vld [vmem:[%s3 + $0x88] sm:$0xff]
  %v733 = vld [vmem:[%s3 + $0x90] sm:$0xff]
  %v734 = vld [vmem:[%s3 + $0x98] sm:$0xff]
  %v735 = vld [vmem:[%s3 + $0xa0] sm:$0xff]
  %v736 = vld [vmem:[%s3 + $0xa8] sm:$0xff]
  %v737 = vld [vmem:[%s3 + $0xb0] sm:$0xff]
  %v738 = vld [vmem:[%s3 + $0xb8] sm:$0xff]
  %v739 = vld [vmem:[%s3 + $0xc0] sm:$0xff]
  %v740 = vld [vmem:[%s3 + $0xc8] sm:$0xff]
  %v741 = vld [vmem:[%s3 + $0xd0] sm:$0xff]
  %v742 = vld [vmem:[%s3 + $0xd8] sm:$0xff]
  %v743 = vld [vmem:[%s3 + $0xe0] sm:$0xff]
  %v744 = vld [vmem:[%s3 + $0xe8] sm:$0xff]
  %v745 = vld [vmem:[%s3 + $0xf0] sm:$0xff]
  %v746 = vld [vmem:[%s3 + $0xf8] sm:$0xff]
  %v747 = vld [vmem:[%s3 + $0x100] sm:$0xff]
  %v748 = vld [vmem:[%s3 + $0x108] sm:$0xff]
  %v749 = vld [vmem:[%s3 + $0x110] sm:$0xff]
  %v750 = vld [vmem:[%s3 + $0x118] sm:$0xff]
  %v751 = vld [vmem:[%s3 + $0x120] sm:$0xff]
  %v752 = vld [vmem:[%s3 + $0x128] sm:$0xff]
  %v753 = vld [vmem:[%s3 + $0x130] sm:$0xff]
  %v754 = vld [vmem:[%s3 + $0x138] sm:$0xff]
  %v755 = vld [vmem:[%s3 + $0x140] sm:$0xff]
  %v756 = vld [vmem:[%s3 + $0x148] sm:$0xff]
  %v757 = vld [vmem:[%s3 + $0x150] sm:$0xff]
  %v758 = vld [vmem:[%s3 + $0x158] sm:$0xff]
  %v759 = vld [vmem:[%s3 + $0x160] sm:$0xff]
  %v760 = vld [vmem:[%s3 + $0x168] sm:$0xff]
  %v761 = vld [vmem:[%s3 + $0x170] sm:$0xff]
  %v762 = vld [vmem:[%s3 + $0x178] sm:$0xff]
  %v763 = vld [vmem:[%s3 + $0x180] sm:$0xff]
  %v764 = vld [vmem:[%s3 + $0x188] sm:$0xff]
  %v765 = vld [vmem:[%s3 + $0x190] sm:$0xff]
  %v766 = vld [vmem:[%s3 + $0x198] sm:$0xff]
  %v767 = vld [vmem:[%s3 + $0x1a0] sm:$0xff]
  %v768 = vld [vmem:[%s3 + $0x1a8] sm:$0xff]
  %v769 = vld [vmem:[%s3 + $0x1b0] sm:$0xff]
  %v770 = vld [vmem:[%s3 + $0x1b8] sm:$0xff]
  %v771 = vld [vmem:[%s3 + $0x1c0] sm:$0xff]
  %v772 = vld [vmem:[%s3 + $0x1c8] sm:$0xff]
  %v773 = vld [vmem:[%s3 + $0x1d0] sm:$0xff]
  %v774 = vld [vmem:[%s3 + $0x1d8] sm:$0xff]
  %v775 = vld [vmem:[%s3 + $0x1e0] sm:$0xff]
  %v776 = vld [vmem:[%s3 + $0x1e8] sm:$0xff]
  %v777 = vld [vmem:[%s3 + $0x1f0] sm:$0xff]
  %v778 = vld [vmem:[%s3 + $0x1f8] sm:$0xff]
  %v779 = vld [vmem:[%s3 + $0x200] sm:$0xff]
  %v780 = vld [vmem:[%s3 + $0x208] sm:$0xff]
  %v781 = vld [vmem:[%s3 + $0x210] sm:$0xff]
  %v782 = vld [vmem:[%s3 + $0x218] sm:$0xff]
  %v783 = vld [vmem:[%s3 + $0x220] sm:$0xff]
  %v784 = vld [vmem:[%s3 + $0x228] sm:$0xff]
  %v785 = vld [vmem:[%s3 + $0x230] sm:$0xff]
  %v786 = vld [vmem:[%s3 + $0x238] sm:$0xff]
  %v787 = vld [vmem:[%s2 + $0x3] sm:$0x1]
  %s788 = scalar_lea.vmem [#allocation2], 24
  %789 = vst.msk [vmem:[%s788 + $0x8] sm:$0xff] %vm34, %v699
  %790 = vst.msk [vmem:[%s788 + $0x20] sm:$0xff] %vm34, %v700
  %791 = vst.msk [vmem:[%s788 + $0x38] sm:$0xff] %vm34, %v701
  %792 = vst.msk [vmem:[%s788 + $0x50] sm:$0xff] %vm34, %v702
  %793 = vst.msk [vmem:[%s788 + $0x68] sm:$0xff] %vm34, %v703
  %794 = vst.msk [vmem:[%s788 + $0x80] sm:$0xff] %vm34, %v704
  %795 = vst.msk [vmem:[%s788 + $0x98] sm:$0xff] %vm34, %v705
  %796 = vst.msk [vmem:[%s788 + $0xb0] sm:$0xff] %vm34, %v706
  %797 = vst.msk [vmem:[%s788 + $0xf8] sm:$0xff] %vm34, %v707
  %798 = vst.msk [vmem:[%s788 + $0x110] sm:$0xff] %vm34, %v708
  %799 = vst.msk [vmem:[%s788 + $0x128] sm:$0xff] %vm34, %v709
  %800 = vst.msk [vmem:[%s788 + $0x140] sm:$0xff] %vm34, %v710
  %801 = vst.msk [vmem:[%s788 + $0x158] sm:$0xff] %vm34, %v711
  %802 = vst.msk [vmem:[%s788 + $0x170] sm:$0xff] %vm34, %v712
  %803 = vst.msk [vmem:[%s788 + $0x188] sm:$0xff] %vm34, %v713
  %804 = vst.msk [vmem:[%s788 + $0x1a0] sm:$0xff] %vm34, %v714
  %v805 = vld [vmem:[#allocation2 + $0x7] sm:$0xff]
  %v806 = vld [vmem:[#allocation2 + $0x1f] sm:$0xff]
  %v807 = vld [vmem:[#allocation2 + $0x37] sm:$0xff]
  %v808 = vld [vmem:[#allocation2 + $0x4f] sm:$0xff]
  %v809 = vld [vmem:[#allocation2 + $0x67] sm:$0xff]
  %v810 = vld [vmem:[#allocation2 + $0x7f] sm:$0xff]
  %v811 = vld [vmem:[#allocation2 + $0x97] sm:$0xff]
  %v812 = vld [vmem:[#allocation2 + $0xaf] sm:$0xff]
  %v813 = vld [vmem:[#allocation2 + $0xf7] sm:$0xff]
  %v814 = vld [vmem:[#allocation2 + $0x10f] sm:$0xff]
  %v815 = vld [vmem:[#allocation2 + $0x127] sm:$0xff]
  %v816 = vld [vmem:[#allocation2 + $0x13f] sm:$0xff]
  %v817 = vld [vmem:[#allocation2 + $0x157] sm:$0xff]
  %v818 = vld [vmem:[#allocation2 + $0x16f] sm:$0xff]
  %v819 = vld [vmem:[#allocation2 + $0x187] sm:$0xff]
  %v820 = vld [vmem:[#allocation2 + $0x19f] sm:$0xff]
  %v821 = vld [vmem:[#allocation2 + $0x8] sm:$0xff]
  %v822 = vld [vmem:[#allocation2 + $0x20] sm:$0xff]
  %v823 = vld [vmem:[#allocation2 + $0x38] sm:$0xff]
  %v824 = vld [vmem:[#allocation2 + $0x50] sm:$0xff]
  %v825 = vld [vmem:[#allocation2 + $0x68] sm:$0xff]
  %v826 = vld [vmem:[#allocation2 + $0x80] sm:$0xff]
  %v827 = vld [vmem:[#allocation2 + $0x98] sm:$0xff]
  %v828 = vld [vmem:[#allocation2 + $0xb0] sm:$0xff]
  %v829 = vld [vmem:[#allocation2 + $0xf8] sm:$0xff]
  %v830 = vld [vmem:[#allocation2 + $0x110] sm:$0xff]
  %v831 = vld [vmem:[#allocation2 + $0x128] sm:$0xff]
  %v832 = vld [vmem:[#allocation2 + $0x140] sm:$0xff]
  %v833 = vld [vmem:[#allocation2 + $0x158] sm:$0xff]
  %v834 = vld [vmem:[#allocation2 + $0x170] sm:$0xff]
  %v835 = vld [vmem:[#allocation2 + $0x188] sm:$0xff]
  %v836 = vld [vmem:[#allocation2 + $0x1a0] sm:$0xff]
  %v837 = vld [vmem:[#allocation2 + $0x9] sm:$0xff]
  %v838 = vld [vmem:[#allocation2 + $0x21] sm:$0xff]
  %v839 = vld [vmem:[#allocation2 + $0x39] sm:$0xff]
  %v840 = vld [vmem:[#allocation2 + $0x51] sm:$0xff]
  %v841 = vld [vmem:[#allocation2 + $0x69] sm:$0xff]
  %v842 = vld [vmem:[#allocation2 + $0x81] sm:$0xff]
  %v843 = vld [vmem:[#allocation2 + $0x99] sm:$0xff]
  %v844 = vld [vmem:[#allocation2 + $0xb1] sm:$0xff]
  %v845 = vld [vmem:[#allocation2 + $0xf9] sm:$0xff]
  %v846 = vld [vmem:[#allocation2 + $0x111] sm:$0xff]
  %v847 = vld [vmem:[#allocation2 + $0x129] sm:$0xff]
  %v848 = vld [vmem:[#allocation2 + $0x141] sm:$0xff]
  %v849 = vld [vmem:[#allocation2 + $0x159] sm:$0xff]
  %v850 = vld [vmem:[#allocation2 + $0x171] sm:$0xff]
  %v851 = vld [vmem:[#allocation2 + $0x189] sm:$0xff]
  %v852 = vld [vmem:[#allocation2 + $0x1a1] sm:$0xff]
  %v853 = vld [vmem:[%s788 + $0x7] sm:$0xff]
  %v854 = vld [vmem:[%s788 + $0x1f] sm:$0xff]
  %v855 = vld [vmem:[%s788 + $0x37] sm:$0xff]
  %v856 = vld [vmem:[%s788 + $0x4f] sm:$0xff]
  %v857 = vld [vmem:[%s788 + $0x67] sm:$0xff]
  %v858 = vld [vmem:[%s788 + $0x7f] sm:$0xff]
  %v859 = vld [vmem:[%s788 + $0x97] sm:$0xff]
  %v860 = vld [vmem:[%s788 + $0xaf] sm:$0xff]
  %v861 = vld [vmem:[%s788 + $0xf7] sm:$0xff]
  %v862 = vld [vmem:[%s788 + $0x10f] sm:$0xff]
  %v863 = vld [vmem:[%s788 + $0x127] sm:$0xff]
  %v864 = vld [vmem:[%s788 + $0x13f] sm:$0xff]
  %v865 = vld [vmem:[%s788 + $0x157] sm:$0xff]
  %v866 = vld [vmem:[%s788 + $0x16f] sm:$0xff]
  %v867 = vld [vmem:[%s788 + $0x187] sm:$0xff]
  %v868 = vld [vmem:[%s788 + $0x19f] sm:$0xff]
  %v869 = vld [vmem:[%s788 + $0x8] sm:$0xff]
  %v870 = vld [vmem:[%s788 + $0x20] sm:$0xff]
  %v871 = vld [vmem:[%s788 + $0x38] sm:$0xff]
  %v872 = vld [vmem:[%s788 + $0x50] sm:$0xff]
  %v873 = vld [vmem:[%s788 + $0x68] sm:$0xff]
  %v874 = vld [vmem:[%s788 + $0x80] sm:$0xff]
  %v875 = vld [vmem:[%s788 + $0x98] sm:$0xff]
  %v876 = vld [vmem:[%s788 + $0xb0] sm:$0xff]
  %v877 = vld [vmem:[%s788 + $0xf8] sm:$0xff]
  %v878 = vld [vmem:[%s788 + $0x110] sm:$0xff]
  %v879 = vld [vmem:[%s788 + $0x128] sm:$0xff]
  %v880 = vld [vmem:[%s788 + $0x140] sm:$0xff]
  %v881 = vld [vmem:[%s788 + $0x158] sm:$0xff]
  %v882 = vld [vmem:[%s788 + $0x170] sm:$0xff]
  %v883 = vld [vmem:[%s788 + $0x188] sm:$0xff]
  %v884 = vld [vmem:[%s788 + $0x1a0] sm:$0xff]
  %v885 = vld [vmem:[%s788 + $0x9] sm:$0xff]
  %v886 = vld [vmem:[%s788 + $0x21] sm:$0xff]
  %v887 = vld [vmem:[%s788 + $0x39] sm:$0xff]
  %v888 = vld [vmem:[%s788 + $0x51] sm:$0xff]
  %v889 = vld [vmem:[%s788 + $0x69] sm:$0xff]
  %v890 = vld [vmem:[%s788 + $0x81] sm:$0xff]
  %v891 = vld [vmem:[%s788 + $0x99] sm:$0xff]
  %v892 = vld [vmem:[%s788 + $0xb1] sm:$0xff]
  %v893 = vld [vmem:[%s788 + $0xf9] sm:$0xff]
  %v894 = vld [vmem:[%s788 + $0x111] sm:$0xff]
  %v895 = vld [vmem:[%s788 + $0x129] sm:$0xff]
  %v896 = vld [vmem:[%s788 + $0x141] sm:$0xff]
  %v897 = vld [vmem:[%s788 + $0x159] sm:$0xff]
  %v898 = vld [vmem:[%s788 + $0x171] sm:$0xff]
  %v899 = vld [vmem:[%s788 + $0x189] sm:$0xff]
  %v900 = vld [vmem:[%s788 + $0x1a1] sm:$0xff]
  %s901 = scalar_lea.vmem [#allocation2], 48
  %v902 = vld [vmem:[%s901 + $0x7] sm:$0xff]
  %v903 = vld [vmem:[%s901 + $0x1f] sm:$0xff]
  %v904 = vld [vmem:[%s901 + $0x37] sm:$0xff]
  %v905 = vld [vmem:[%s901 + $0x4f] sm:$0xff]
  %v906 = vld [vmem:[%s901 + $0x67] sm:$0xff]
  %v907 = vld [vmem:[%s901 + $0x7f] sm:$0xff]
  %v908 = vld [vmem:[%s901 + $0x97] sm:$0xff]
  %v909 = vld [vmem:[%s901 + $0xaf] sm:$0xff]
  %v910 = vld [vmem:[%s901 + $0xf7] sm:$0xff]
  %v911 = vld [vmem:[%s901 + $0x10f] sm:$0xff]
  %v912 = vld [vmem:[%s901 + $0x127] sm:$0xff]
  %v913 = vld [vmem:[%s901 + $0x13f] sm:$0xff]
  %v914 = vld [vmem:[%s901 + $0x157] sm:$0xff]
  %v915 = vld [vmem:[%s901 + $0x16f] sm:$0xff]
  %v916 = vld [vmem:[%s901 + $0x187] sm:$0xff]
  %v917 = vld [vmem:[%s901 + $0x19f] sm:$0xff]
  %v918 = vld [vmem:[%s901 + $0x8] sm:$0xff]
  %v919 = vld [vmem:[%s901 + $0x20] sm:$0xff]
  %v920 = vld [vmem:[%s901 + $0x38] sm:$0xff]
  %v921 = vld [vmem:[%s901 + $0x50] sm:$0xff]
  %v922 = vld [vmem:[%s901 + $0x68] sm:$0xff]
  %v923 = vld [vmem:[%s901 + $0x80] sm:$0xff]
  %v924 = vld [vmem:[%s901 + $0x98] sm:$0xff]
  %v925 = vld [vmem:[%s901 + $0xb0] sm:$0xff]
  %v926 = vld [vmem:[%s901 + $0xf8] sm:$0xff]
  %v927 = vld [vmem:[%s901 + $0x110] sm:$0xff]
  %v928 = vld [vmem:[%s901 + $0x128] sm:$0xff]
  %v929 = vld [vmem:[%s901 + $0x140] sm:$0xff]
  %v930 = vld [vmem:[%s901 + $0x158] sm:$0xff]
  %v931 = vld [vmem:[%s901 + $0x170] sm:$0xff]
  %v932 = vld [vmem:[%s901 + $0x188] sm:$0xff]
  %v933 = vld [vmem:[%s901 + $0x1a0] sm:$0xff]
  %v934 = vld [vmem:[%s901 + $0x9] sm:$0xff]
  %v935 = vld [vmem:[%s901 + $0x21] sm:$0xff]
  %v936 = vld [vmem:[%s901 + $0x39] sm:$0xff]
  %v937 = vld [vmem:[%s901 + $0x51] sm:$0xff]
  %v938 = vld [vmem:[%s901 + $0x69] sm:$0xff]
  %v939 = vld [vmem:[%s901 + $0x81] sm:$0xff]
  %v940 = vld [vmem:[%s901 + $0x99] sm:$0xff]
  %v941 = vld [vmem:[%s901 + $0xb1] sm:$0xff]
  %v942 = vld [vmem:[%s901 + $0xf9] sm:$0xff]
  %v943 = vld [vmem:[%s901 + $0x111] sm:$0xff]
  %v944 = vld [vmem:[%s901 + $0x129] sm:$0xff]
  %v945 = vld [vmem:[%s901 + $0x141] sm:$0xff]
  %v946 = vld [vmem:[%s901 + $0x159] sm:$0xff]
  %v947 = vld [vmem:[%s901 + $0x171] sm:$0xff]
  %v948 = vld [vmem:[%s901 + $0x189] sm:$0xff]
  %v949 = vld [vmem:[%s901 + $0x1a1] sm:$0xff]
  %966 = vrot.lane.b32.xlu0 %v821, 32
  %v967 = vpop.permute.xlu0 %966
  %968 = vrot.lane.b32.xlu0 %v822, 32
  %v969 = vpop.permute.xlu0 %968
  %970 = vrot.lane.b32.xlu0 %v823, 32
  %v971 = vpop.permute.xlu0 %970
  %972 = vrot.lane.b32.xlu0 %v824, 32
  %v973 = vpop.permute.xlu0 %972
  %974 = vrot.lane.b32.xlu0 %v825, 32
  %v975 = vpop.permute.xlu0 %974
  %976 = vrot.lane.b32.xlu0 %v826, 32
  %v977 = vpop.permute.xlu0 %976
  %978 = vrot.lane.b32.xlu0 %v827, 32
  %v979 = vpop.permute.xlu0 %978
  %980 = vrot.lane.b32.xlu0 %v828, 32
  %v981 = vpop.permute.xlu0 %980
  %982 = vrot.lane.b32.xlu0 %v829, 32
  %v983 = vpop.permute.xlu0 %982
  %984 = vrot.lane.b32.xlu0 %v830, 32
  %v985 = vpop.permute.xlu0 %984
  %986 = vrot.lane.b32.xlu0 %v831, 32
  %v987 = vpop.permute.xlu0 %986
  %988 = vrot.lane.b32.xlu0 %v832, 32
  %v989 = vpop.permute.xlu0 %988
  %990 = vrot.lane.b32.xlu0 %v833, 32
  %v991 = vpop.permute.xlu0 %990
  %992 = vrot.lane.b32.xlu0 %v834, 32
  %v993 = vpop.permute.xlu0 %992
  %994 = vrot.lane.b32.xlu0 %v835, 32
  %v995 = vpop.permute.xlu0 %994
  %996 = vrot.lane.b32.xlu0 %v836, 32
  %v997 = vpop.permute.xlu0 %996
  %1030 = vrot.lane.b32.xlu0 %v837, 64
  %v1031 = vpop.permute.xlu0 %1030
  %1032 = vrot.lane.b32.xlu0 %v838, 64
  %v1033 = vpop.permute.xlu0 %1032
  %1034 = vrot.lane.b32.xlu0 %v839, 64
  %v1035 = vpop.permute.xlu0 %1034
  %1036 = vrot.lane.b32.xlu0 %v840, 64
  %v1037 = vpop.permute.xlu0 %1036
  %1038 = vrot.lane.b32.xlu0 %v841, 64
  %v1039 = vpop.permute.xlu0 %1038
  %1040 = vrot.lane.b32.xlu0 %v842, 64
  %v1041 = vpop.permute.xlu0 %1040
  %1042 = vrot.lane.b32.xlu0 %v843, 64
  %v1043 = vpop.permute.xlu0 %1042
  %1044 = vrot.lane.b32.xlu0 %v844, 64
  %v1045 = vpop.permute.xlu0 %1044
  %1046 = vrot.lane.b32.xlu0 %v845, 64
  %v1047 = vpop.permute.xlu0 %1046
  %1048 = vrot.lane.b32.xlu0 %v846, 64
  %v1049 = vpop.permute.xlu0 %1048
  %1050 = vrot.lane.b32.xlu0 %v847, 64
  %v1051 = vpop.permute.xlu0 %1050
  %1052 = vrot.lane.b32.xlu0 %v848, 64
  %v1053 = vpop.permute.xlu0 %1052
  %1054 = vrot.lane.b32.xlu0 %v849, 64
  %v1055 = vpop.permute.xlu0 %1054
  %1056 = vrot.lane.b32.xlu0 %v850, 64
  %v1057 = vpop.permute.xlu0 %1056
  %1058 = vrot.lane.b32.xlu0 %v851, 64
  %v1059 = vpop.permute.xlu0 %1058
  %1060 = vrot.lane.b32.xlu0 %v852, 64
  %v1061 = vpop.permute.xlu0 %1060
  %1094 = vrot.lane.b32.xlu0 %v853, 96
  %v1095 = vpop.permute.xlu0 %1094
  %1096 = vrot.lane.b32.xlu0 %v854, 96
  %v1097 = vpop.permute.xlu0 %1096
  %1098 = vrot.lane.b32.xlu0 %v855, 96
  %v1099 = vpop.permute.xlu0 %1098
  %1100 = vrot.lane.b32.xlu0 %v856, 96
  %v1101 = vpop.permute.xlu0 %1100
  %1102 = vrot.lane.b32.xlu0 %v857, 96
  %v1103 = vpop.permute.xlu0 %1102
  %1104 = vrot.lane.b32.xlu0 %v858, 96
  %v1105 = vpop.permute.xlu0 %1104
  %1106 = vrot.lane.b32.xlu0 %v859, 96
  %v1107 = vpop.permute.xlu0 %1106
  %1108 = vrot.lane.b32.xlu0 %v860, 96
  %v1109 = vpop.permute.xlu0 %1108
  %1110 = vrot.lane.b32.xlu0 %v861, 96
  %v1111 = vpop.permute.xlu0 %1110
  %1112 = vrot.lane.b32.xlu0 %v862, 96
  %v1113 = vpop.permute.xlu0 %1112
  %1114 = vrot.lane.b32.xlu0 %v863, 96
  %v1115 = vpop.permute.xlu0 %1114
  %1116 = vrot.lane.b32.xlu0 %v864, 96
  %v1117 = vpop.permute.xlu0 %1116
  %1118 = vrot.lane.b32.xlu0 %v865, 96
  %v1119 = vpop.permute.xlu0 %1118
  %1120 = vrot.lane.b32.xlu0 %v866, 96
  %v1121 = vpop.permute.xlu0 %1120
  %1122 = vrot.lane.b32.xlu0 %v867, 96
  %v1123 = vpop.permute.xlu0 %1122
  %1124 = vrot.lane.b32.xlu0 %v868, 96
  %v1125 = vpop.permute.xlu0 %1124
  %1158 = vrot.lane.b32.xlu0 %v885, 32
  %v1159 = vpop.permute.xlu0 %1158
  %1160 = vrot.lane.b32.xlu0 %v886, 32
  %v1161 = vpop.permute.xlu0 %1160
  %1162 = vrot.lane.b32.xlu0 %v887, 32
  %v1163 = vpop.permute.xlu0 %1162
  %1164 = vrot.lane.b32.xlu0 %v888, 32
  %v1165 = vpop.permute.xlu0 %1164
  %1166 = vrot.lane.b32.xlu0 %v889, 32
  %v1167 = vpop.permute.xlu0 %1166
  %1168 = vrot.lane.b32.xlu0 %v890, 32
  %v1169 = vpop.permute.xlu0 %1168
  %1170 = vrot.lane.b32.xlu0 %v891, 32
  %v1171 = vpop.permute.xlu0 %1170
  %1172 = vrot.lane.b32.xlu0 %v892, 32
  %v1173 = vpop.permute.xlu0 %1172
  %1174 = vrot.lane.b32.xlu0 %v893, 32
  %v1175 = vpop.permute.xlu0 %1174
  %1176 = vrot.lane.b32.xlu0 %v894, 32
  %v1177 = vpop.permute.xlu0 %1176
  %1178 = vrot.lane.b32.xlu0 %v895, 32
  %v1179 = vpop.permute.xlu0 %1178
  %1180 = vrot.lane.b32.xlu0 %v896, 32
  %v1181 = vpop.permute.xlu0 %1180
  %1182 = vrot.lane.b32.xlu0 %v897, 32
  %v1183 = vpop.permute.xlu0 %1182
  %1184 = vrot.lane.b32.xlu0 %v898, 32
  %v1185 = vpop.permute.xlu0 %1184
  %1186 = vrot.lane.b32.xlu0 %v899, 32
  %v1187 = vpop.permute.xlu0 %1186
  %1188 = vrot.lane.b32.xlu0 %v900, 32
  %v1189 = vpop.permute.xlu0 %1188
  %1222 = vrot.lane.b32.xlu0 %v902, 64
  %v1223 = vpop.permute.xlu0 %1222
  %1224 = vrot.lane.b32.xlu0 %v903, 64
  %v1225 = vpop.permute.xlu0 %1224
  %1226 = vrot.lane.b32.xlu0 %v904, 64
  %v1227 = vpop.permute.xlu0 %1226
  %1228 = vrot.lane.b32.xlu0 %v905, 64
  %v1229 = vpop.permute.xlu0 %1228
  %1230 = vrot.lane.b32.xlu0 %v906, 64
  %v1231 = vpop.permute.xlu0 %1230
  %1232 = vrot.lane.b32.xlu0 %v907, 64
  %v1233 = vpop.permute.xlu0 %1232
  %1234 = vrot.lane.b32.xlu0 %v908, 64
  %v1235 = vpop.permute.xlu0 %1234
  %1236 = vrot.lane.b32.xlu0 %v909, 64
  %v1237 = vpop.permute.xlu0 %1236
  %1238 = vrot.lane.b32.xlu0 %v910, 64
  %v1239 = vpop.permute.xlu0 %1238
  %1240 = vrot.lane.b32.xlu0 %v911, 64
  %v1241 = vpop.permute.xlu0 %1240
  %1242 = vrot.lane.b32.xlu0 %v912, 64
  %v1243 = vpop.permute.xlu0 %1242
  %1244 = vrot.lane.b32.xlu0 %v913, 64
  %v1245 = vpop.permute.xlu0 %1244
  %1246 = vrot.lane.b32.xlu0 %v914, 64
  %v1247 = vpop.permute.xlu0 %1246
  %1248 = vrot.lane.b32.xlu0 %v915, 64
  %v1249 = vpop.permute.xlu0 %1248
  %1250 = vrot.lane.b32.xlu0 %v916, 64
  %v1251 = vpop.permute.xlu0 %1250
  %1252 = vrot.lane.b32.xlu0 %v917, 64
  %v1253 = vpop.permute.xlu0 %1252
  %1286 = vrot.lane.b32.xlu0 %v918, 96
  %v1287 = vpop.permute.xlu0 %1286
  %1288 = vrot.lane.b32.xlu0 %v919, 96
  %v1289 = vpop.permute.xlu0 %1288
  %1290 = vrot.lane.b32.xlu0 %v920, 96
  %v1291 = vpop.permute.xlu0 %1290
  %1292 = vrot.lane.b32.xlu0 %v921, 96
  %v1293 = vpop.permute.xlu0 %1292
  %1294 = vrot.lane.b32.xlu0 %v922, 96
  %v1295 = vpop.permute.xlu0 %1294
  %1296 = vrot.lane.b32.xlu0 %v923, 96
  %v1297 = vpop.permute.xlu0 %1296
  %1298 = vrot.lane.b32.xlu0 %v924, 96
  %v1299 = vpop.permute.xlu0 %1298
  %1300 = vrot.lane.b32.xlu0 %v925, 96
  %v1301 = vpop.permute.xlu0 %1300
  %1302 = vrot.lane.b32.xlu0 %v926, 96
  %v1303 = vpop.permute.xlu0 %1302
  %1304 = vrot.lane.b32.xlu0 %v927, 96
  %v1305 = vpop.permute.xlu0 %1304
  %1306 = vrot.lane.b32.xlu0 %v928, 96
  %v1307 = vpop.permute.xlu0 %1306
  %1308 = vrot.lane.b32.xlu0 %v929, 96
  %v1309 = vpop.permute.xlu0 %1308
  %1310 = vrot.lane.b32.xlu0 %v930, 96
  %v1311 = vpop.permute.xlu0 %1310
  %1312 = vrot.lane.b32.xlu0 %v931, 96
  %v1313 = vpop.permute.xlu0 %1312
  %1314 = vrot.lane.b32.xlu0 %v932, 96
  %v1315 = vpop.permute.xlu0 %1314
  %1316 = vrot.lane.b32.xlu0 %v933, 96
  %v1317 = vpop.permute.xlu0 %1316
  %v1334 = vsel %vm34, %v805, %v967
  %v1335 = vsel %vm34, %v806, %v969
  %v1336 = vsel %vm34, %v807, %v971
  %v1337 = vsel %vm34, %v808, %v973
  %v1338 = vsel %vm34, %v809, %v975
  %v1339 = vsel %vm34, %v810, %v977
  %v1340 = vsel %vm34, %v811, %v979
  %v1341 = vsel %vm34, %v812, %v981
  %v1342 = vsel %vm34, %v813, %v983
  %v1343 = vsel %vm34, %v814, %v985
  %v1344 = vsel %vm34, %v815, %v987
  %v1345 = vsel %vm34, %v816, %v989
  %v1346 = vsel %vm34, %v817, %v991
  %v1347 = vsel %vm34, %v818, %v993
  %v1348 = vsel %vm34, %v819, %v995
  %v1349 = vsel %vm34, %v820, %v997
  %vm1350 = vcmask 523264
  %v1351 = vsel %vm1350, %v1334, %v1031
  %v1352 = vsel %vm1350, %v1335, %v1033
  %v1353 = vsel %vm1350, %v1336, %v1035
  %v1354 = vsel %vm1350, %v1337, %v1037
  %v1355 = vsel %vm1350, %v1338, %v1039
  %v1356 = vsel %vm1350, %v1339, %v1041
  %v1357 = vsel %vm1350, %v1340, %v1043
  %v1358 = vsel %vm1350, %v1341, %v1045
  %v1359 = vsel %vm1350, %v1342, %v1047
  %v1360 = vsel %vm1350, %v1343, %v1049
  %v1361 = vsel %vm1350, %v1344, %v1051
  %v1362 = vsel %vm1350, %v1345, %v1053
  %v1363 = vsel %vm1350, %v1346, %v1055
  %v1364 = vsel %vm1350, %v1347, %v1057
  %v1365 = vsel %vm1350, %v1348, %v1059
  %v1366 = vsel %vm1350, %v1349, %v1061
  %vm1367 = vcmask 785408
  %v1368 = vsel %vm1367, %v1351, %v1095
  %v1369 = vsel %vm1367, %v1352, %v1097
  %v1370 = vsel %vm1367, %v1353, %v1099
  %v1371 = vsel %vm1367, %v1354, %v1101
  %v1372 = vsel %vm1367, %v1355, %v1103
  %v1373 = vsel %vm1367, %v1356, %v1105
  %v1374 = vsel %vm1367, %v1357, %v1107
  %v1375 = vsel %vm1367, %v1358, %v1109
  %v1376 = vsel %vm1367, %v1359, %v1111
  %v1377 = vsel %vm1367, %v1360, %v1113
  %v1378 = vsel %vm1367, %v1361, %v1115
  %v1379 = vsel %vm1367, %v1362, %v1117
  %v1380 = vsel %vm1367, %v1363, %v1119
  %v1381 = vsel %vm1367, %v1364, %v1121
  %v1382 = vsel %vm1367, %v1365, %v1123
  %v1383 = vsel %vm1367, %v1366, %v1125
  %v1384 = vsel %vm34, %v869, %v1159
  %v1385 = vsel %vm34, %v870, %v1161
  %v1386 = vsel %vm34, %v871, %v1163
  %v1387 = vsel %vm34, %v872, %v1165
  %v1388 = vsel %vm34, %v873, %v1167
  %v1389 = vsel %vm34, %v874, %v1169
  %v1390 = vsel %vm34, %v875, %v1171
  %v1391 = vsel %vm34, %v876, %v1173
  %v1392 = vsel %vm34, %v877, %v1175
  %v1393 = vsel %vm34, %v878, %v1177
  %v1394 = vsel %vm34, %v879, %v1179
  %v1395 = vsel %vm34, %v880, %v1181
  %v1396 = vsel %vm34, %v881, %v1183
  %v1397 = vsel %vm34, %v882, %v1185
  %v1398 = vsel %vm34, %v883, %v1187
  %v1399 = vsel %vm34, %v884, %v1189
  %v1400 = vsel %vm1350, %v1384, %v1223
  %v1401 = vsel %vm1350, %v1385, %v1225
  %v1402 = vsel %vm1350, %v1386, %v1227
  %v1403 = vsel %vm1350, %v1387, %v1229
  %v1404 = vsel %vm1350, %v1388, %v1231
  %v1405 = vsel %vm1350, %v1389, %v1233
  %v1406 = vsel %vm1350, %v1390, %v1235
  %v1407 = vsel %vm1350, %v1391, %v1237
  %v1408 = vsel %vm1350, %v1392, %v1239
  %v1409 = vsel %vm1350, %v1393, %v1241
  %v1410 = vsel %vm1350, %v1394, %v1243
  %v1411 = vsel %vm1350, %v1395, %v1245
  %v1412 = vsel %vm1350, %v1396, %v1247
  %v1413 = vsel %vm1350, %v1397, %v1249
  %v1414 = vsel %vm1350, %v1398, %v1251
  %v1415 = vsel %vm1350, %v1399, %v1253
  %v1416 = vsel %vm1367, %v1400, %v1287
  %v1417 = vsel %vm1367, %v1401, %v1289
  %v1418 = vsel %vm1367, %v1402, %v1291
  %v1419 = vsel %vm1367, %v1403, %v1293
  %v1420 = vsel %vm1367, %v1404, %v1295
  %v1421 = vsel %vm1367, %v1405, %v1297
  %v1422 = vsel %vm1367, %v1406, %v1299
  %v1423 = vsel %vm1367, %v1407, %v1301
  %v1424 = vsel %vm1367, %v1408, %v1303
  %v1425 = vsel %vm1367, %v1409, %v1305
  %v1426 = vsel %vm1367, %v1410, %v1307
  %v1427 = vsel %vm1367, %v1411, %v1309
  %v1428 = vsel %vm1367, %v1412, %v1311
  %v1429 = vsel %vm1367, %v1413, %v1313
  %v1430 = vsel %vm1367, %v1414, %v1315
  %v1431 = vsel %vm1367, %v1415, %v1317
  %v1432 = vlaneseq
  %v1433 = vshrl.u32 %v1432, 7
  %v1434 = vsub.s32 0, %v1433
  %v1435 = vrot.slane %v787, %v1434
  %v1437 = vsel %vm34, %v934, 0
  %v1440 = vsel %vm34, %v935, 0
  %v1443 = vsel %vm34, %v936, 0
  %v1446 = vsel %vm34, %v937, 0
  %v1449 = vsel %vm34, %v938, 0
  %v1452 = vsel %vm34, %v939, 0
  %v1455 = vsel %vm34, %v940, 0
  %v1458 = vsel %vm34, %v941, 0
  %v1461 = vsel %vm34, %v942, 0
  %v1464 = vsel %vm34, %v943, 0
  %v1467 = vsel %vm34, %v944, 0
  %v1470 = vsel %vm34, %v945, 0
  %v1473 = vsel %vm34, %v946, 0
  %v1476 = vsel %vm34, %v947, 0
  %v1479 = vsel %vm34, %v948, 0
  %v1482 = vsel %vm34, %v949, 0
  %1484 = vmatprep.subr.mxu0 0.0
  %1485 = vmatpush1.msra.mxu0 %v715
  %1486 = vmatprep.subr.mxu0 0.0
  %1487 = vmatpush1.msra.mxu0 %v716
  %1488 = vmatprep.subr.mxu0 0.0
  %1489 = vmatpush1.msra.mxu0 %v717
  %1490 = vmatprep.subr.mxu0 0.0
  %1491 = vmatpush1.msra.mxu0 %v718
  %1492 = vmatprep.subr.mxu0 0.0
  %1493 = vmatpush1.msra.mxu0 %v719
  %1494 = vmatprep.subr.mxu0 0.0
  %1495 = vmatpush1.msra.mxu0 %v720
  %1496 = vmatprep.subr.mxu0 0.0
  %1497 = vmatpush1.msra.mxu0 %v721
  %1498 = vmatprep.subr.mxu0 0.0
  %1499 = vmatpush1.msra.mxu0 %v722
  %1500 = vmatprep.subr.mxu0 0.0
  %1501 = vmatpush1.msra.mxu0 %v723
  %1502 = vmatprep.subr.mxu0 0.0
  %1503 = vmatpush1.msra.mxu0 %v724
  %1504 = vmatprep.subr.mxu0 0.0
  %1505 = vmatpush1.msra.mxu0 %v725
  %1506 = vmatprep.subr.mxu0 0.0
  %1507 = vmatpush1.msra.mxu0 %v726
  %1508 = vmatprep.subr.mxu0 0.0
  %1509 = vmatpush1.msra.mxu0 %v727
  %1510 = vmatprep.subr.mxu0 0.0
  %1511 = vmatpush1.msra.mxu0 %v728
  %1512 = vmatprep.subr.mxu0 0.0
  %1513 = vmatpush1.msra.mxu0 %v729
  %1514 = vmatprep.subr.mxu0 0.0
  %1515 = vmatpush1.msra.mxu0 %v730
  %1516 = vmatprep.subr.mxu0 0.0
  %1517 = vmatpush1.msra.mxu0 %v731
  %1518 = vmatprep.subr.mxu0 0.0
  %1519 = vmatpush1.msra.mxu0 %v732
  %1520 = vmatprep.subr.mxu0 0.0
  %1521 = vmatpush1.msra.mxu0 %v733
  %1522 = vmatprep.subr.mxu0 0.0
  %1523 = vmatpush1.msra.mxu0 %v734
  %1524 = vmatprep.subr.mxu0 0.0
  %1525 = vmatpush1.msra.mxu0 %v735
  %1526 = vmatprep.subr.mxu0 0.0
  %1527 = vmatpush1.msra.mxu0 %v736
  %1528 = vmatprep.subr.mxu0 0.0
  %1529 = vmatpush1.msra.mxu0 %v737
  %1530 = vmatprep.subr.mxu0 0.0
  %1531 = vmatpush1.msra.mxu0 %v738
  %1532 = vmatprep.subr.mxu0 0.0
  %1533 = vmatpush1.msra.mxu0 %v739
  %1534 = vmatprep.subr.mxu0 0.0
  %1535 = vmatpush1.msra.mxu0 %v740
  %1536 = vmatprep.subr.mxu0 0.0
  %1537 = vmatpush1.msra.mxu0 %v741
  %1538 = vmatprep.subr.mxu0 0.0
  %1539 = vmatpush1.msra.mxu0 %v742
  %1540 = vmatprep.subr.mxu0 0.0
  %1541 = vmatpush1.msra.mxu0 %v743
  %1542 = vmatprep.subr.mxu0 0.0
  %1543 = vmatpush1.msra.mxu0 %v744
  %1544 = vmatprep.subr.mxu0 0.0
  %1545 = vmatpush1.msra.mxu0 %v745
  %1546 = vmatprep.subr.mxu0 0.0
  %1547 = vmatpush1.msra.mxu0 %v746
  %1548 = vmatprep.mubr.f32.mxu0 %v1416
  %1549 = vmatmul.mubr.f32.gmra.mrb[0].mxu0 %v1368
  %v1550 = vpop.f32.mrb[0].mxu0
  %v1551 = vadd.f32 %v1435, %v1550
  %v1552 = vpop.f32.mrb[0].mxu0
  %1553 = vmatprep.mubr.f32.mxu0 %v1417
  %1554 = vmatmul.mubr.f32.gmra.mrb[0].mxu0 %v1369
  %v1555 = vpop.f32.mrb[0].mxu0
  %v1556 = vadd.f32 %v1435, %v1555
  %v1557 = vpop.f32.mrb[0].mxu0
  %1558 = vmatprep.mubr.f32.mxu0 %v1418
  %1559 = vmatmul.mubr.f32.gmra.mrb[0].mxu0 %v1370
  %v1560 = vpop.f32.mrb[0].mxu0
  %v1561 = vadd.f32 %v1435, %v1560
  %v1562 = vpop.f32.mrb[0].mxu0
  %1563 = vmatprep.mubr.f32.mxu0 %v1419
  %1564 = vmatmul.mubr.f32.gmra.mrb[0].mxu0 %v1371
  %v1565 = vpop.f32.mrb[0].mxu0
  %v1566 = vadd.f32 %v1435, %v1565
  %v1567 = vpop.f32.mrb[0].mxu0
  %1568 = vmatprep.mubr.f32.mxu0 %v1420
  %1569 = vmatmul.mubr.f32.gmra.mrb[0].mxu0 %v1372
  %v1570 = vpop.f32.mrb[0].mxu0
  %v1571 = vadd.f32 %v1435, %v1570
  %v1572 = vpop.f32.mrb[0].mxu0
  %1573 = vmatprep.mubr.f32.mxu0 %v1421
  %1574 = vmatmul.mubr.f32.gmra.mrb[0].mxu0 %v1373
  %v1575 = vpop.f32.mrb[0].mxu0
  %v1576 = vadd.f32 %v1435, %v1575
  %v1577 = vpop.f32.mrb[0].mxu0
  %1578 = vmatprep.mubr.f32.mxu0 %v1422
  %1579 = vmatmul.mubr.f32.gmra.mrb[0].mxu0 %v1374
  %v1580 = vpop.f32.mrb[0].mxu0
  %v1581 = vadd.f32 %v1435, %v1580
  %v1582 = vpop.f32.mrb[0].mxu0
  %1583 = vmatprep.mubr.f32.mxu0 %v1423
  %1584 = vmatmul.mubr.f32.gmra.mrb[0].mxu0 %v1375
  %v1585 = vpop.f32.mrb[0].mxu0
  %v1586 = vadd.f32 %v1435, %v1585
  %v1587 = vpop.f32.mrb[0].mxu0
  %1588 = vmatprep.mubr.f32.mxu0 %v1424
  %1589 = vmatmul.mubr.f32.gmra.mrb[0].mxu0 %v1376
  %v1590 = vpop.f32.mrb[0].mxu0
  %v1591 = vadd.f32 %v1435, %v1590
  %v1592 = vpop.f32.mrb[0].mxu0
  %1593 = vmatprep.mubr.f32.mxu0 %v1425
  %1594 = vmatmul.mubr.f32.gmra.mrb[0].mxu0 %v1377
  %v1595 = vpop.f32.mrb[0].mxu0
  %v1596 = vadd.f32 %v1435, %v1595
  %v1597 = vpop.f32.mrb[0].mxu0
  %1598 = vmatprep.mubr.f32.mxu0 %v1426
  %1599 = vmatmul.mubr.f32.gmra.mrb[0].mxu0 %v1378
  %v1600 = vpop.f32.mrb[0].mxu0
  %v1601 = vadd.f32 %v1435, %v1600
  %v1602 = vpop.f32.mrb[0].mxu0
  %1603 = vmatprep.mubr.f32.mxu0 %v1427
  %1604 = vmatmul.mubr.f32.gmra.mrb[0].mxu0 %v1379
  %v1605 = vpop.f32.mrb[0].mxu0
  %v1606 = vadd.f32 %v1435, %v1605
  %v1607 = vpop.f32.mrb[0].mxu0
  %1608 = vmatprep.mubr.f32.mxu0 %v1428
  %1609 = vmatmul.mubr.f32.gmra.mrb[0].mxu0 %v1380
  %v1610 = vpop.f32.mrb[0].mxu0
  %v1611 = vadd.f32 %v1435, %v1610
  %v1612 = vpop.f32.mrb[0].mxu0
  %1613 = vmatprep.mubr.f32.mxu0 %v1429
  %1614 = vmatmul.mubr.f32.gmra.mrb[0].mxu0 %v1381
  %v1615 = vpop.f32.mrb[0].mxu0
  %v1616 = vadd.f32 %v1435, %v1615
  %v1617 = vpop.f32.mrb[0].mxu0
  %1618 = vmatprep.mubr.f32.mxu0 %v1430
  %1619 = vmatmul.mubr.f32.gmra.mrb[0].mxu0 %v1382
  %v1620 = vpop.f32.mrb[0].mxu0
  %v1621 = vadd.f32 %v1435, %v1620
  %v1622 = vpop.f32.mrb[0].mxu0
  %1623 = vmatprep.mubr.f32.mxu0 %v1431
  %1624 = vmatmul.mubr.f32.gmra.mrb[0].mxu0 %v1383
  %v1625 = vpop.f32.mrb[0].mxu0
  %v1626 = vadd.f32 %v1435, %v1625
  %v1627 = vpop.f32.mrb[0].mxu0
  %1628 = vdwg.mxu0
  %1629 = vmatprep.subr.mxu0 0.0
  %1630 = vmatpush1.msra.mxu0 %v747
  %1631 = vmatprep.subr.mxu0 0.0
  %1632 = vmatpush1.msra.mxu0 %v748
  %1633 = vmatprep.subr.mxu0 0.0
  %1634 = vmatpush1.msra.mxu0 %v749
  %1635 = vmatprep.subr.mxu0 0.0
  %1636 = vmatpush1.msra.mxu0 %v750
  %1637 = vmatprep.subr.mxu0 0.0
  %1638 = vmatpush1.msra.mxu0 0.0
  %1639 = vmatprep.subr.mxu0 0.0
  %1640 = vmatpush1.msra.mxu0 0.0
  %1641 = vmatprep.subr.mxu0 0.0
  %1642 = vmatpush1.msra.mxu0 0.0
  %1643 = vmatprep.subr.mxu0 0.0
  %1644 = vmatpush1.msra.mxu0 0.0
  %1645 = vmatprep.subr.mxu0 0.0
  %1646 = vmatpush1.msra.mxu0 0.0
  %1647 = vmatprep.subr.mxu0 0.0
  %1648 = vmatpush1.msra.mxu0 0.0
  %1649 = vmatprep.subr.mxu0 0.0
  %1650 = vmatpush1.msra.mxu0 0.0
  %1651 = vmatprep.subr.mxu0 0.0
  %1652 = vmatpush1.msra.mxu0 0.0
  %1653 = vmatprep.subr.mxu0 0.0
  %1654 = vmatpush1.msra.mxu0 0.0
  %1655 = vmatprep.subr.mxu0 0.0
  %1656 = vmatpush1.msra.mxu0 0.0
  %1657 = vmatprep.subr.mxu0 0.0
  %1658 = vmatpush1.msra.mxu0 0.0
  %1659 = vmatprep.subr.mxu0 0.0
  %1660 = vmatpush1.msra.mxu0 0.0
  %1661 = vmatprep.subr.mxu0 0.0
  %1662 = vmatpush1.msra.mxu0 0.0
  %1663 = vmatprep.subr.mxu0 0.0
  %1664 = vmatpush1.msra.mxu0 0.0
  %1665 = vmatprep.subr.mxu0 0.0
  %1666 = vmatpush1.msra.mxu0 0.0
  %1667 = vmatprep.subr.mxu0 0.0
  %1668 = vmatpush1.msra.mxu0 0.0
  %1669 = vmatprep.subr.mxu0 0.0
  %1670 = vmatpush1.msra.mxu0 0.0
  %1671 = vmatprep.subr.mxu0 0.0
  %1672 = vmatpush1.msra.mxu0 0.0
  %1673 = vmatprep.subr.mxu0 0.0
  %1674 = vmatpush1.msra.mxu0 0.0
  %1675 = vmatprep.subr.mxu0 0.0
  %1676 = vmatpush1.msra.mxu0 0.0
  %1677 = vmatprep.subr.mxu0 0.0
  %1678 = vmatpush1.msra.mxu0 0.0
  %1679 = vmatprep.subr.mxu0 0.0
  %1680 = vmatpush1.msra.mxu0 0.0
  %1681 = vmatprep.subr.mxu0 0.0
  %1682 = vmatpush1.msra.mxu0 0.0
  %1683 = vmatprep.subr.mxu0 0.0
  %1684 = vmatpush1.msra.mxu0 0.0
  %1685 = vmatprep.subr.mxu0 0.0
  %1686 = vmatpush1.msra.mxu0 0.0
  %1687 = vmatprep.subr.mxu0 0.0
  %1688 = vmatpush1.msra.mxu0 0.0
  %1689 = vmatprep.subr.mxu0 0.0
  %1690 = vmatpush1.msra.mxu0 0.0
  %1691 = vmatprep.subr.mxu0 0.0
  %1692 = vmatpush1.msra.mxu0 0.0
  %1693 = vmatprep.mubr.f32.mxu0 0.0
  %1694 = vmatmul.mubr.f32.gmra.mrb[0].mxu0 %v1437
  %v1695 = vpop.f32.mrb[0].mxu0
  %v1696 = vadd.f32 %v1551, %v1695
  %v1697 = vpop.f32.mrb[0].mxu0
  %1698 = vmatprep.mubr.f32.mxu0 0.0
  %1699 = vmatmul.mubr.f32.gmra.mrb[0].mxu0 %v1440
  %v1700 = vpop.f32.mrb[0].mxu0
  %v1701 = vadd.f32 %v1556, %v1700
  %v1702 = vpop.f32.mrb[0].mxu0
  %1703 = vmatprep.mubr.f32.mxu0 0.0
  %1704 = vmatmul.mubr.f32.gmra.mrb[0].mxu0 %v1443
  %v1705 = vpop.f32.mrb[0].mxu0
  %v1706 = vadd.f32 %v1561, %v1705
  %v1707 = vpop.f32.mrb[0].mxu0
  %1708 = vmatprep.mubr.f32.mxu0 0.0
  %1709 = vmatmul.mubr.f32.gmra.mrb[0].mxu0 %v1446
  %v1710 = vpop.f32.mrb[0].mxu0
  %v1711 = vadd.f32 %v1566, %v1710
  %v1712 = vpop.f32.mrb[0].mxu0
  %1713 = vmatprep.mubr.f32.mxu0 0.0
  %1714 = vmatmul.mubr.f32.gmra.mrb[0].mxu0 %v1449
  %v1715 = vpop.f32.mrb[0].mxu0
  %v1716 = vadd.f32 %v1571, %v1715
  %v1717 = vpop.f32.mrb[0].mxu0
  %1718 = vmatprep.mubr.f32.mxu0 0.0
  %1719 = vmatmul.mubr.f32.gmra.mrb[0].mxu0 %v1452
  %v1720 = vpop.f32.mrb[0].mxu0
  %v1721 = vadd.f32 %v1576, %v1720
  %v1722 = vpop.f32.mrb[0].mxu0
  %1723 = vmatprep.mubr.f32.mxu0 0.0
  %1724 = vmatmul.mubr.f32.gmra.mrb[0].mxu0 %v1455
  %v1725 = vpop.f32.mrb[0].mxu0
  %v1726 = vadd.f32 %v1581, %v1725
  %v1727 = vpop.f32.mrb[0].mxu0
  %1728 = vmatprep.mubr.f32.mxu0 0.0
  %1729 = vmatmul.mubr.f32.gmra.mrb[0].mxu0 %v1458
  %v1730 = vpop.f32.mrb[0].mxu0
  %v1731 = vadd.f32 %v1586, %v1730
  %v1732 = vpop.f32.mrb[0].mxu0
  %1733 = vmatprep.mubr.f32.mxu0 0.0
  %1734 = vmatmul.mubr.f32.gmra.mrb[0].mxu0 %v1461
  %v1735 = vpop.f32.mrb[0].mxu0
  %v1736 = vadd.f32 %v1591, %v1735
  %v1737 = vpop.f32.mrb[0].mxu0
  %1738 = vmatprep.mubr.f32.mxu0 0.0
  %1739 = vmatmul.mubr.f32.gmra.mrb[0].mxu0 %v1464
  %v1740 = vpop.f32.mrb[0].mxu0
  %v1741 = vadd.f32 %v1596, %v1740
  %v1742 = vpop.f32.mrb[0].mxu0
  %1743 = vmatprep.mubr.f32.mxu0 0.0
  %1744 = vmatmul.mubr.f32.gmra.mrb[0].mxu0 %v1467
  %v1745 = vpop.f32.mrb[0].mxu0
  %v1746 = vadd.f32 %v1601, %v1745
  %v1747 = vpop.f32.mrb[0].mxu0
  %1748 = vmatprep.mubr.f32.mxu0 0.0
  %1749 = vmatmul.mubr.f32.gmra.mrb[0].mxu0 %v1470
  %v1750 = vpop.f32.mrb[0].mxu0
  %v1751 = vadd.f32 %v1606, %v1750
  %v1752 = vpop.f32.mrb[0].mxu0
  %1753 = vmatprep.mubr.f32.mxu0 0.0
  %1754 = vmatmul.mubr.f32.gmra.mrb[0].mxu0 %v1473
  %v1755 = vpop.f32.mrb[0].mxu0
  %v1756 = vadd.f32 %v1611, %v1755
  %v1757 = vpop.f32.mrb[0].mxu0
  %1758 = vmatprep.mubr.f32.mxu0 0.0
  %1759 = vmatmul.mubr.f32.gmra.mrb[0].mxu0 %v1476
  %v1760 = vpop.f32.mrb[0].mxu0
  %v1761 = vadd.f32 %v1616, %v1760
  %v1762 = vpop.f32.mrb[0].mxu0
  %1763 = vmatprep.mubr.f32.mxu0 0.0
  %1764 = vmatmul.mubr.f32.gmra.mrb[0].mxu0 %v1479
  %v1765 = vpop.f32.mrb[0].mxu0
  %v1766 = vadd.f32 %v1621, %v1765
  %v1767 = vpop.f32.mrb[0].mxu0
  %1768 = vmatprep.mubr.f32.mxu0 0.0
  %1769 = vmatmul.mubr.f32.gmra.mrb[0].mxu0 %v1482
  %v1770 = vpop.f32.mrb[0].mxu0
  %v1771 = vadd.f32 %v1626, %v1770
  %v1772 = vpop.f32.mrb[0].mxu0
  %1773 = vdwg.mxu0
  %v1774 = vld [vmem:[%s2 + $0x4] sm:$0x1]
  %v1775 = vld [vmem:[%s2 + $0x5] sm:$0x1]
  %v1776 = vsel %vm34, %v1696, 0.0
  %v1777 = vsel %vm34, %v1701, 0.0
  %v1778 = vadd.f32 %v1776, %v1777
  %v1779 = vsel %vm34, %v1706, 0.0
  %v1780 = vadd.f32 %v1778, %v1779
  %v1781 = vsel %vm34, %v1711, 0.0
  %v1782 = vadd.f32 %v1780, %v1781
  %v1783 = vsel %vm34, %v1716, 0.0
  %v1784 = vadd.f32 %v1782, %v1783
  %v1785 = vsel %vm34, %v1721, 0.0
  %v1786 = vadd.f32 %v1784, %v1785
  %v1787 = vsel %vm34, %v1726, 0.0
  %v1788 = vadd.f32 %v1786, %v1787
  %v1789 = vsel %vm34, %v1731, 0.0
  %v1790 = vadd.f32 %v1788, %v1789
  %v1791 = vrot.slane %v1790, 4
  %v1792 = vadd.f32 %v1790, %v1791
  %v1793 = vrot.slane %v1792, 2
  %v1794 = vadd.f32 %v1792, %v1793
  %v1795 = vrot.slane %v1794, 1
  %v1796 = vadd.f32 %v1794, %v1795
  %v1797 = vsel %vm34, %v1736, 0.0
  %v1798 = vsel %vm34, %v1741, 0.0
  %v1799 = vadd.f32 %v1797, %v1798
  %v1800 = vsel %vm34, %v1746, 0.0
  %v1801 = vadd.f32 %v1799, %v1800
  %v1802 = vsel %vm34, %v1751, 0.0
  %v1803 = vadd.f32 %v1801, %v1802
  %v1804 = vsel %vm34, %v1756, 0.0
  %v1805 = vadd.f32 %v1803, %v1804
  %v1806 = vsel %vm34, %v1761, 0.0
  %v1807 = vadd.f32 %v1805, %v1806
  %v1808 = vsel %vm34, %v1766, 0.0
  %v1809 = vadd.f32 %v1807, %v1808
  %v1810 = vsel %vm34, %v1771, 0.0
  %v1811 = vadd.f32 %v1809, %v1810
  %v1812 = vrot.slane %v1811, 4
  %v1813 = vadd.f32 %v1811, %v1812
  %v1814 = vrot.slane %v1813, 2
  %v1815 = vadd.f32 %v1813, %v1814
  %v1816 = vrot.slane %v1815, 1
  %v1817 = vadd.f32 %v1815, %v1816
  %v1818 = vmul.f32 %v1696, %v1696
  %v1819 = vmul.f32 %v1701, %v1701
  %v1820 = vmul.f32 %v1706, %v1706
  %v1821 = vmul.f32 %v1711, %v1711
  %v1822 = vmul.f32 %v1716, %v1716
  %v1823 = vmul.f32 %v1721, %v1721
  %v1824 = vmul.f32 %v1726, %v1726
  %v1825 = vmul.f32 %v1731, %v1731
  %v1826 = vmul.f32 %v1736, %v1736
  %v1827 = vmul.f32 %v1741, %v1741
  %v1828 = vmul.f32 %v1746, %v1746
  %v1829 = vmul.f32 %v1751, %v1751
  %v1830 = vmul.f32 %v1756, %v1756
  %v1831 = vmul.f32 %v1761, %v1761
  %v1832 = vmul.f32 %v1766, %v1766
  %v1833 = vmul.f32 %v1771, %v1771
  %v1834 = vsel %vm34, %v1818, 0.0
  %v1835 = vsel %vm34, %v1819, 0.0
  %v1836 = vadd.f32 %v1834, %v1835
  %v1837 = vsel %vm34, %v1820, 0.0
  %v1838 = vadd.f32 %v1836, %v1837
  %v1839 = vsel %vm34, %v1821, 0.0
  %v1840 = vadd.f32 %v1838, %v1839
  %v1841 = vsel %vm34, %v1822, 0.0
  %v1842 = vadd.f32 %v1840, %v1841
  %v1843 = vsel %vm34, %v1823, 0.0
  %v1844 = vadd.f32 %v1842, %v1843
  %v1845 = vsel %vm34, %v1824, 0.0
  %v1846 = vadd.f32 %v1844, %v1845
  %v1847 = vsel %vm34, %v1825, 0.0
  %v1848 = vadd.f32 %v1846, %v1847
  %v1849 = vrot.slane %v1848, 4
  %v1850 = vadd.f32 %v1848, %v1849
  %v1851 = vrot.slane %v1850, 2
  %v1852 = vadd.f32 %v1850, %v1851
  %v1853 = vrot.slane %v1852, 1
  %v1854 = vadd.f32 %v1852, %v1853
  %v1855 = vsel %vm34, %v1826, 0.0
  %v1856 = vsel %vm34, %v1827, 0.0
  %v1857 = vadd.f32 %v1855, %v1856
  %v1858 = vsel %vm34, %v1828, 0.0
  %v1859 = vadd.f32 %v1857, %v1858
  %v1860 = vsel %vm34, %v1829, 0.0
  %v1861 = vadd.f32 %v1859, %v1860
  %v1862 = vsel %vm34, %v1830, 0.0
  %v1863 = vadd.f32 %v1861, %v1862
  %v1864 = vsel %vm34, %v1831, 0.0
  %v1865 = vadd.f32 %v1863, %v1864
  %v1866 = vsel %vm34, %v1832, 0.0
  %v1867 = vadd.f32 %v1865, %v1866
  %v1868 = vsel %vm34, %v1833, 0.0
  %v1869 = vadd.f32 %v1867, %v1868
  %v1870 = vrot.slane %v1869, 4
  %v1871 = vadd.f32 %v1869, %v1870
  %v1872 = vrot.slane %v1871, 2
  %v1873 = vadd.f32 %v1871, %v1872
  %v1874 = vrot.slane %v1873, 1
  %v1875 = vadd.f32 %v1873, %v1874
  %v1878 = vsel %vm421, %v1817, %v1796
  %v1879 = vsel %vm34, %v1878, 0
  %1881 = vmatprep.subr.mxu0 0.0
  %1882 = vmatpush1.msra.mxu0 %v29
  %1883 = vmatprep.subr.mxu0 0.0
  %1884 = vmatpush1.msra.mxu0 %v30
  %1885 = vmatprep.subr.mxu0 0.0
  %1886 = vmatpush1.msra.mxu0 %v31
  %1887 = vmatprep.subr.mxu0 0.0
  %1888 = vmatpush1.msra.mxu0 %v32
  %1889 = vmatprep.subr.mxu0 0.0
  %1890 = vmatpush1.msra.mxu0 0.0
  %1891 = vmatprep.subr.mxu0 0.0
  %1892 = vmatpush1.msra.mxu0 0.0
  %1893 = vmatprep.subr.mxu0 0.0
  %1894 = vmatpush1.msra.mxu0 0.0
  %1895 = vmatprep.subr.mxu0 0.0
  %1896 = vmatpush1.msra.mxu0 0.0
  %1897 = vmatprep.subr.mxu0 0.0
  %1898 = vmatpush1.msra.mxu0 0.0
  %1899 = vmatprep.subr.mxu0 0.0
  %1900 = vmatpush1.msra.mxu0 0.0
  %1901 = vmatprep.subr.mxu0 0.0
  %1902 = vmatpush1.msra.mxu0 0.0
  %1903 = vmatprep.subr.mxu0 0.0
  %1904 = vmatpush1.msra.mxu0 0.0
  %1905 = vmatprep.subr.mxu0 0.0
  %1906 = vmatpush1.msra.mxu0 0.0
  %1907 = vmatprep.subr.mxu0 0.0
  %1908 = vmatpush1.msra.mxu0 0.0
  %1909 = vmatprep.subr.mxu0 0.0
  %1910 = vmatpush1.msra.mxu0 0.0
  %1911 = vmatprep.subr.mxu0 0.0
  %1912 = vmatpush1.msra.mxu0 0.0
  %1913 = vmatprep.subr.mxu0 0.0
  %1914 = vmatpush1.msra.mxu0 0.0
  %1915 = vmatprep.subr.mxu0 0.0
  %1916 = vmatpush1.msra.mxu0 0.0
  %1917 = vmatprep.subr.mxu0 0.0
  %1918 = vmatpush1.msra.mxu0 0.0
  %1919 = vmatprep.subr.mxu0 0.0
  %1920 = vmatpush1.msra.mxu0 0.0
  %1921 = vmatprep.subr.mxu0 0.0
  %1922 = vmatpush1.msra.mxu0 0.0
  %1923 = vmatprep.subr.mxu0 0.0
  %1924 = vmatpush1.msra.mxu0 0.0
  %1925 = vmatprep.subr.mxu0 0.0
  %1926 = vmatpush1.msra.mxu0 0.0
  %1927 = vmatprep.subr.mxu0 0.0
  %1928 = vmatpush1.msra.mxu0 0.0
  %1929 = vmatprep.subr.mxu0 0.0
  %1930 = vmatpush1.msra.mxu0 0.0
  %1931 = vmatprep.subr.mxu0 0.0
  %1932 = vmatpush1.msra.mxu0 0.0
  %1933 = vmatprep.subr.mxu0 0.0
  %1934 = vmatpush1.msra.mxu0 0.0
  %1935 = vmatprep.subr.mxu0 0.0
  %1936 = vmatpush1.msra.mxu0 0.0
  %1937 = vmatprep.subr.mxu0 0.0
  %1938 = vmatpush1.msra.mxu0 0.0
  %1939 = vmatprep.subr.mxu0 0.0
  %1940 = vmatpush1.msra.mxu0 0.0
  %1941 = vmatprep.subr.mxu0 0.0
  %1942 = vmatpush1.msra.mxu0 0.0
  %1943 = vmatprep.subr.mxu0 0.0
  %1944 = vmatpush1.msra.mxu0 0.0
  %1945 = vmatprep.mubr.f32.mxu0 0.0
  %1946 = vmatmul.mubr.f32.gmra.mrb[0].mxu0 %v1879
  %v1947 = vpop.f32.mrb[0].mxu0
  %v1948 = vadd.f32 0.0, %v1947
  %v1949 = vpop.f32.mrb[0].mxu0
  %1950 = vdwg.mxu0
  %v1953 = vsel %vm421, %v1875, %v1854
  %v1954 = vsel %vm34, %v1953, 0
  %1956 = vmatprep.subr.mxu0 0.0
  %1957 = vmatpush1.msra.mxu0 %v29
  %1958 = vmatprep.subr.mxu0 0.0
  %1959 = vmatpush1.msra.mxu0 %v30
  %1960 = vmatprep.subr.mxu0 0.0
  %1961 = vmatpush1.msra.mxu0 %v31
  %1962 = vmatprep.subr.mxu0 0.0
  %1963 = vmatpush1.msra.mxu0 %v32
  %1964 = vmatprep.subr.mxu0 0.0
  %1965 = vmatpush1.msra.mxu0 0.0
  %1966 = vmatprep.subr.mxu0 0.0
  %1967 = vmatpush1.msra.mxu0 0.0
  %1968 = vmatprep.subr.mxu0 0.0
  %1969 = vmatpush1.msra.mxu0 0.0
  %1970 = vmatprep.subr.mxu0 0.0
  %1971 = vmatpush1.msra.mxu0 0.0
  %1972 = vmatprep.subr.mxu0 0.0
  %1973 = vmatpush1.msra.mxu0 0.0
  %1974 = vmatprep.subr.mxu0 0.0
  %1975 = vmatpush1.msra.mxu0 0.0
  %1976 = vmatprep.subr.mxu0 0.0
  %1977 = vmatpush1.msra.mxu0 0.0
  %1978 = vmatprep.subr.mxu0 0.0
  %1979 = vmatpush1.msra.mxu0 0.0
  %1980 = vmatprep.subr.mxu0 0.0
  %1981 = vmatpush1.msra.mxu0 0.0
  %1982 = vmatprep.subr.mxu0 0.0
  %1983 = vmatpush1.msra.mxu0 0.0
  %1984 = vmatprep.subr.mxu0 0.0
  %1985 = vmatpush1.msra.mxu0 0.0
  %1986 = vmatprep.subr.mxu0 0.0
  %1987 = vmatpush1.msra.mxu0 0.0
  %1988 = vmatprep.subr.mxu0 0.0
  %1989 = vmatpush1.msra.mxu0 0.0
  %1990 = vmatprep.subr.mxu0 0.0
  %1991 = vmatpush1.msra.mxu0 0.0
  %1992 = vmatprep.subr.mxu0 0.0
  %1993 = vmatpush1.msra.mxu0 0.0
  %1994 = vmatprep.subr.mxu0 0.0
  %1995 = vmatpush1.msra.mxu0 0.0
  %1996 = vmatprep.subr.mxu0 0.0
  %1997 = vmatpush1.msra.mxu0 0.0
  %1998 = vmatprep.subr.mxu0 0.0
  %1999 = vmatpush1.msra.mxu0 0.0
  %2000 = vmatprep.subr.mxu0 0.0
  %2001 = vmatpush1.msra.mxu0 0.0
  %2002 = vmatprep.subr.mxu0 0.0
  %2003 = vmatpush1.msra.mxu0 0.0
  %2004 = vmatprep.subr.mxu0 0.0
  %2005 = vmatpush1.msra.mxu0 0.0
  %2006 = vmatprep.subr.mxu0 0.0
  %2007 = vmatpush1.msra.mxu0 0.0
  %2008 = vmatprep.subr.mxu0 0.0
  %2009 = vmatpush1.msra.mxu0 0.0
  %2010 = vmatprep.subr.mxu0 0.0
  %2011 = vmatpush1.msra.mxu0 0.0
  %2012 = vmatprep.subr.mxu0 0.0
  %2013 = vmatpush1.msra.mxu0 0.0
  %2014 = vmatprep.subr.mxu0 0.0
  %2015 = vmatpush1.msra.mxu0 0.0
  %2016 = vmatprep.subr.mxu0 0.0
  %2017 = vmatpush1.msra.mxu0 0.0
  %2018 = vmatprep.subr.mxu0 0.0
  %2019 = vmatpush1.msra.mxu0 0.0
  %2020 = vmatprep.mubr.f32.mxu0 0.0
  %2021 = vmatmul.mubr.f32.gmra.mrb[0].mxu0 %v1954
  %v2022 = vpop.f32.mrb[0].mxu0
  %v2023 = vadd.f32 0.0, %v2022
  %v2024 = vpop.f32.mrb[0].mxu0
  %2025 = vdwg.mxu0
  %v2026 = vmul.f32 %v1948, %v1948
  %v2027 = vsub.f32 %v2023, %v2026
  %v2028 = vmax.f32 %v2027, 0.0
  %v2029 = vadd.f32 %v2028, 1e-05
  %v2030 = vrsqrt.pop %v2029
  %v2033 = vunpack.c.l.s4 1966171168
  %v2034 = vunpack.c.0.s8 %v2033
  %v2035 = vlaneseq
  %v2036 = vshrl.u32 %v2035, 7
  %v2037 = vsub.s32 %v2034, %v2036
  %v2038 = vrot.slane %v1948, %v2037
  %v2039 = vcombine.high %v2038, %v2038
  %v2041 = vunpack.c.l.s4 1966171168
  %v2042 = vunpack.c.0.s8 %v2041
  %v2043 = vlaneseq
  %v2044 = vshrl.u32 %v2043, 7
  %v2045 = vsub.s32 %v2042, %v2044
  %v2046 = vrot.slane %v2038, %v2045
  %v2048 = vunpack.c.l.s4 1966171168
  %v2049 = vunpack.c.0.s8 %v2048
  %v2050 = vlaneseq
  %v2051 = vshrl.u32 %v2050, 7
  %v2052 = vsub.s32 %v2049, %v2051
  %v2053 = vrot.slane %v2039, %v2052
  %v2054 = vlaneseq
  %v2055 = vshrl.u32 %v2054, 7
  %v2056 = vsub.s32 0, %v2055
  %v2057 = vrot.slane %v2046, %v2056
  %v2058 = vlaneseq
  %v2059 = vshrl.u32 %v2058, 7
  %v2060 = vsub.s32 0, %v2059
  %v2061 = vrot.slane %v2053, %v2060
  %v2064 = vsub.f32 %v1696, %v2057
  %v2065 = vsub.f32 %v1701, %v2057
  %v2066 = vsub.f32 %v1706, %v2057
  %v2067 = vsub.f32 %v1711, %v2057
  %v2068 = vsub.f32 %v1716, %v2057
  %v2069 = vsub.f32 %v1721, %v2057
  %v2070 = vsub.f32 %v1726, %v2057
  %v2071 = vsub.f32 %v1731, %v2057
  %v2072 = vsub.f32 %v1736, %v2061
  %v2073 = vsub.f32 %v1741, %v2061
  %v2074 = vsub.f32 %v1746, %v2061
  %v2075 = vsub.f32 %v1751, %v2061
  %v2076 = vsub.f32 %v1756, %v2061
  %v2077 = vsub.f32 %v1761, %v2061
  %v2078 = vsub.f32 %v1766, %v2061
  %v2079 = vsub.f32 %v1771, %v2061
  %v2082 = vunpack.c.l.s4 1966171168
  %v2083 = vunpack.c.0.s8 %v2082
  %v2084 = vlaneseq
  %v2085 = vshrl.u32 %v2084, 7
  %v2086 = vsub.s32 %v2083, %v2085
  %v2087 = vrot.slane %v2030, %v2086
  %v2088 = vcombine.high %v2087, %v2087
  %v2090 = vunpack.c.l.s4 1966171168
  %v2091 = vunpack.c.0.s8 %v2090
  %v2092 = vlaneseq
  %v2093 = vshrl.u32 %v2092, 7
  %v2094 = vsub.s32 %v2091, %v2093
  %v2095 = vrot.slane %v2087, %v2094
  %v2097 = vunpack.c.l.s4 1966171168
  %v2098 = vunpack.c.0.s8 %v2097
  %v2099 = vlaneseq
  %v2100 = vshrl.u32 %v2099, 7
  %v2101 = vsub.s32 %v2098, %v2100
  %v2102 = vrot.slane %v2088, %v2101
  %v2105 = vmul.f32 %v2095, %v1774
  %v2106 = vmul.f32 %v2102, %v1774
  %v2109 = vlaneseq
  %v2110 = vshrl.u32 %v2109, 7
  %v2111 = vsub.s32 0, %v2110
  %v2112 = vrot.slane %v2105, %v2111
  %v2113 = vlaneseq
  %v2114 = vshrl.u32 %v2113, 7
  %v2115 = vsub.s32 0, %v2114
  %v2116 = vrot.slane %v2106, %v2115
  %v2119 = vmul.f32 %v2064, %v2112
  %v2120 = vmul.f32 %v2065, %v2112
  %v2121 = vmul.f32 %v2066, %v2112
  %v2122 = vmul.f32 %v2067, %v2112
  %v2123 = vmul.f32 %v2068, %v2112
  %v2124 = vmul.f32 %v2069, %v2112
  %v2125 = vmul.f32 %v2070, %v2112
  %v2126 = vmul.f32 %v2071, %v2112
  %v2127 = vmul.f32 %v2072, %v2116
  %v2128 = vmul.f32 %v2073, %v2116
  %v2129 = vmul.f32 %v2074, %v2116
  %v2130 = vmul.f32 %v2075, %v2116
  %v2131 = vmul.f32 %v2076, %v2116
  %v2132 = vmul.f32 %v2077, %v2116
  %v2133 = vmul.f32 %v2078, %v2116
  %v2134 = vmul.f32 %v2079, %v2116
  %v2135 = vlaneseq
  %v2136 = vshrl.u32 %v2135, 7
  %v2137 = vsub.s32 0, %v2136
  %v2138 = vrot.slane %v1775, %v2137
  %v2139 = vadd.f32 %v2119, %v2138
  %v2140 = vadd.f32 %v2120, %v2138
  %v2141 = vadd.f32 %v2121, %v2138
  %v2142 = vadd.f32 %v2122, %v2138
  %v2143 = vadd.f32 %v2123, %v2138
  %v2144 = vadd.f32 %v2124, %v2138
  %v2145 = vadd.f32 %v2125, %v2138
  %v2146 = vadd.f32 %v2126, %v2138
  %v2147 = vadd.f32 %v2127, %v2138
  %v2148 = vadd.f32 %v2128, %v2138
  %v2149 = vadd.f32 %v2129, %v2138
  %v2150 = vadd.f32 %v2130, %v2138
  %v2151 = vadd.f32 %v2131, %v2138
  %v2152 = vadd.f32 %v2132, %v2138
  %v2153 = vadd.f32 %v2133, %v2138
  %v2154 = vadd.f32 %v2134, %v2138
  %v2155 = vmax.f32 %v2139, 0.0
  %v2156 = vmax.f32 %v2140, 0.0
  %v2157 = vmax.f32 %v2141, 0.0
  %v2158 = vmax.f32 %v2142, 0.0
  %v2159 = vmax.f32 %v2143, 0.0
  %v2160 = vmax.f32 %v2144, 0.0
  %v2161 = vmax.f32 %v2145, 0.0
  %v2162 = vmax.f32 %v2146, 0.0
  %v2163 = vmax.f32 %v2147, 0.0
  %v2164 = vmax.f32 %v2148, 0.0
  %v2165 = vmax.f32 %v2149, 0.0
  %v2166 = vmax.f32 %v2150, 0.0
  %v2167 = vmax.f32 %v2151, 0.0
  %v2168 = vmax.f32 %v2152, 0.0
  %v2169 = vmax.f32 %v2153, 0.0
  %v2170 = vmax.f32 %v2154, 0.0
  %v2171 = vld [vmem:[%s2 + $0x6] sm:$0x1]
  %2172 = vst.msk [vmem:[%s788 + $0x8] sm:$0xff] %vm34, %v2155
  %2173 = vst.msk [vmem:[%s788 + $0x20] sm:$0xff] %vm34, %v2156
  %2174 = vst.msk [vmem:[%s788 + $0x38] sm:$0xff] %vm34, %v2157
  %2175 = vst.msk [vmem:[%s788 + $0x50] sm:$0xff] %vm34, %v2158
  %2176 = vst.msk [vmem:[%s788 + $0x68] sm:$0xff] %vm34, %v2159
  %2177 = vst.msk [vmem:[%s788 + $0x80] sm:$0xff] %vm34, %v2160
  %2178 = vst.msk [vmem:[%s788 + $0x98] sm:$0xff] %vm34, %v2161
  %2179 = vst.msk [vmem:[%s788 + $0xb0] sm:$0xff] %vm34, %v2162
  %2180 = vst.msk [vmem:[%s788 + $0xf8] sm:$0xff] %vm34, %v2163
  %2181 = vst.msk [vmem:[%s788 + $0x110] sm:$0xff] %vm34, %v2164
  %2182 = vst.msk [vmem:[%s788 + $0x128] sm:$0xff] %vm34, %v2165
  %2183 = vst.msk [vmem:[%s788 + $0x140] sm:$0xff] %vm34, %v2166
  %2184 = vst.msk [vmem:[%s788 + $0x158] sm:$0xff] %vm34, %v2167
  %2185 = vst.msk [vmem:[%s788 + $0x170] sm:$0xff] %vm34, %v2168
  %2186 = vst.msk [vmem:[%s788 + $0x188] sm:$0xff] %vm34, %v2169
  %2187 = vst.msk [vmem:[%s788 + $0x1a0] sm:$0xff] %vm34, %v2170
  %v2188 = vld [vmem:[#allocation2 + $0x7] sm:$0xff]
  %v2189 = vld [vmem:[#allocation2 + $0x1f] sm:$0xff]
  %v2190 = vld [vmem:[#allocation2 + $0x37] sm:$0xff]
  %v2191 = vld [vmem:[#allocation2 + $0x4f] sm:$0xff]
  %v2192 = vld [vmem:[#allocation2 + $0x67] sm:$0xff]
  %v2193 = vld [vmem:[#allocation2 + $0x7f] sm:$0xff]
  %v2194 = vld [vmem:[#allocation2 + $0x97] sm:$0xff]
  %v2195 = vld [vmem:[#allocation2 + $0xaf] sm:$0xff]
  %v2196 = vld [vmem:[#allocation2 + $0xf7] sm:$0xff]
  %v2197 = vld [vmem:[#allocation2 + $0x10f] sm:$0xff]
  %v2198 = vld [vmem:[#allocation2 + $0x127] sm:$0xff]
  %v2199 = vld [vmem:[#allocation2 + $0x13f] sm:$0xff]
  %v2200 = vld [vmem:[#allocation2 + $0x157] sm:$0xff]
  %v2201 = vld [vmem:[#allocation2 + $0x16f] sm:$0xff]
  %v2202 = vld [vmem:[#allocation2 + $0x187] sm:$0xff]
  %v2203 = vld [vmem:[#allocation2 + $0x19f] sm:$0xff]
  %v2204 = vld [vmem:[#allocation2 + $0x8] sm:$0xff]
  %v2205 = vld [vmem:[#allocation2 + $0x20] sm:$0xff]
  %v2206 = vld [vmem:[#allocation2 + $0x38] sm:$0xff]
  %v2207 = vld [vmem:[#allocation2 + $0x50] sm:$0xff]
  %v2208 = vld [vmem:[#allocation2 + $0x68] sm:$0xff]
  %v2209 = vld [vmem:[#allocation2 + $0x80] sm:$0xff]
  %v2210 = vld [vmem:[#allocation2 + $0x98] sm:$0xff]
  %v2211 = vld [vmem:[#allocation2 + $0xb0] sm:$0xff]
  %v2212 = vld [vmem:[#allocation2 + $0xf8] sm:$0xff]
  %v2213 = vld [vmem:[#allocation2 + $0x110] sm:$0xff]
  %v2214 = vld [vmem:[#allocation2 + $0x128] sm:$0xff]
  %v2215 = vld [vmem:[#allocation2 + $0x140] sm:$0xff]
  %v2216 = vld [vmem:[#allocation2 + $0x158] sm:$0xff]
  %v2217 = vld [vmem:[#allocation2 + $0x170] sm:$0xff]
  %v2218 = vld [vmem:[#allocation2 + $0x188] sm:$0xff]
  %v2219 = vld [vmem:[#allocation2 + $0x1a0] sm:$0xff]
  %v2220 = vld [vmem:[#allocation2 + $0x9] sm:$0xff]
  %v2221 = vld [vmem:[#allocation2 + $0x21] sm:$0xff]
  %v2222 = vld [vmem:[#allocation2 + $0x39] sm:$0xff]
  %v2223 = vld [vmem:[#allocation2 + $0x51] sm:$0xff]
  %v2224 = vld [vmem:[#allocation2 + $0x69] sm:$0xff]
  %v2225 = vld [vmem:[#allocation2 + $0x81] sm:$0xff]
  %v2226 = vld [vmem:[#allocation2 + $0x99] sm:$0xff]
  %v2227 = vld [vmem:[#allocation2 + $0xb1] sm:$0xff]
  %v2228 = vld [vmem:[#allocation2 + $0xf9] sm:$0xff]
  %v2229 = vld [vmem:[#allocation2 + $0x111] sm:$0xff]
  %v2230 = vld [vmem:[#allocation2 + $0x129] sm:$0xff]
  %v2231 = vld [vmem:[#allocation2 + $0x141] sm:$0xff]
  %v2232 = vld [vmem:[#allocation2 + $0x159] sm:$0xff]
  %v2233 = vld [vmem:[#allocation2 + $0x171] sm:$0xff]
  %v2234 = vld [vmem:[#allocation2 + $0x189] sm:$0xff]
  %v2235 = vld [vmem:[#allocation2 + $0x1a1] sm:$0xff]
  %v2236 = vld [vmem:[%s788 + $0x7] sm:$0xff]
  %v2237 = vld [vmem:[%s788 + $0x1f] sm:$0xff]
  %v2238 = vld [vmem:[%s788 + $0x37] sm:$0xff]
  %v2239 = vld [vmem:[%s788 + $0x4f] sm:$0xff]
  %v2240 = vld [vmem:[%s788 + $0x67] sm:$0xff]
  %v2241 = vld [vmem:[%s788 + $0x7f] sm:$0xff]
  %v2242 = vld [vmem:[%s788 + $0x97] sm:$0xff]
  %v2243 = vld [vmem:[%s788 + $0xaf] sm:$0xff]
  %v2244 = vld [vmem:[%s788 + $0xf7] sm:$0xff]
  %v2245 = vld [vmem:[%s788 + $0x10f] sm:$0xff]
  %v2246 = vld [vmem:[%s788 + $0x127] sm:$0xff]
  %v2247 = vld [vmem:[%s788 + $0x13f] sm:$0xff]
  %v2248 = vld [vmem:[%s788 + $0x157] sm:$0xff]
  %v2249 = vld [vmem:[%s788 + $0x16f] sm:$0xff]
  %v2250 = vld [vmem:[%s788 + $0x187] sm:$0xff]
  %v2251 = vld [vmem:[%s788 + $0x19f] sm:$0xff]
  %v2252 = vld [vmem:[%s788 + $0x8] sm:$0xff]
  %v2253 = vld [vmem:[%s788 + $0x20] sm:$0xff]
  %v2254 = vld [vmem:[%s788 + $0x38] sm:$0xff]
  %v2255 = vld [vmem:[%s788 + $0x50] sm:$0xff]
  %v2256 = vld [vmem:[%s788 + $0x68] sm:$0xff]
  %v2257 = vld [vmem:[%s788 + $0x80] sm:$0xff]
  %v2258 = vld [vmem:[%s788 + $0x98] sm:$0xff]
  %v2259 = vld [vmem:[%s788 + $0xb0] sm:$0xff]
  %v2260 = vld [vmem:[%s788 + $0xf8] sm:$0xff]
  %v2261 = vld [vmem:[%s788 + $0x110] sm:$0xff]
  %v2262 = vld [vmem:[%s788 + $0x128] sm:$0xff]
  %v2263 = vld [vmem:[%s788 + $0x140] sm:$0xff]
  %v2264 = vld [vmem:[%s788 + $0x158] sm:$0xff]
  %v2265 = vld [vmem:[%s788 + $0x170] sm:$0xff]
  %v2266 = vld [vmem:[%s788 + $0x188] sm:$0xff]
  %v2267 = vld [vmem:[%s788 + $0x1a0] sm:$0xff]
  %v2268 = vld [vmem:[%s788 + $0x9] sm:$0xff]
  %v2269 = vld [vmem:[%s788 + $0x21] sm:$0xff]
  %v2270 = vld [vmem:[%s788 + $0x39] sm:$0xff]
  %v2271 = vld [vmem:[%s788 + $0x51] sm:$0xff]
  %v2272 = vld [vmem:[%s788 + $0x69] sm:$0xff]
  %v2273 = vld [vmem:[%s788 + $0x81] sm:$0xff]
  %v2274 = vld [vmem:[%s788 + $0x99] sm:$0xff]
  %v2275 = vld [vmem:[%s788 + $0xb1] sm:$0xff]
  %v2276 = vld [vmem:[%s788 + $0xf9] sm:$0xff]
  %v2277 = vld [vmem:[%s788 + $0x111] sm:$0xff]
  %v2278 = vld [vmem:[%s788 + $0x129] sm:$0xff]
  %v2279 = vld [vmem:[%s788 + $0x141] sm:$0xff]
  %v2280 = vld [vmem:[%s788 + $0x159] sm:$0xff]
  %v2281 = vld [vmem:[%s788 + $0x171] sm:$0xff]
  %v2282 = vld [vmem:[%s788 + $0x189] sm:$0xff]
  %v2283 = vld [vmem:[%s788 + $0x1a1] sm:$0xff]
  %v2284 = vld [vmem:[%s901 + $0x7] sm:$0xff]
  %v2285 = vld [vmem:[%s901 + $0x1f] sm:$0xff]
  %v2286 = vld [vmem:[%s901 + $0x37] sm:$0xff]
  %v2287 = vld [vmem:[%s901 + $0x4f] sm:$0xff]
  %v2288 = vld [vmem:[%s901 + $0x67] sm:$0xff]
  %v2289 = vld [vmem:[%s901 + $0x7f] sm:$0xff]
  %v2290 = vld [vmem:[%s901 + $0x97] sm:$0xff]
  %v2291 = vld [vmem:[%s901 + $0xaf] sm:$0xff]
  %v2292 = vld [vmem:[%s901 + $0xf7] sm:$0xff]
  %v2293 = vld [vmem:[%s901 + $0x10f] sm:$0xff]
  %v2294 = vld [vmem:[%s901 + $0x127] sm:$0xff]
  %v2295 = vld [vmem:[%s901 + $0x13f] sm:$0xff]
  %v2296 = vld [vmem:[%s901 + $0x157] sm:$0xff]
  %v2297 = vld [vmem:[%s901 + $0x16f] sm:$0xff]
  %v2298 = vld [vmem:[%s901 + $0x187] sm:$0xff]
  %v2299 = vld [vmem:[%s901 + $0x19f] sm:$0xff]
  %v2300 = vld [vmem:[%s901 + $0x8] sm:$0xff]
  %v2301 = vld [vmem:[%s901 + $0x20] sm:$0xff]
  %v2302 = vld [vmem:[%s901 + $0x38] sm:$0xff]
  %v2303 = vld [vmem:[%s901 + $0x50] sm:$0xff]
  %v2304 = vld [vmem:[%s901 + $0x68] sm:$0xff]
  %v2305 = vld [vmem:[%s901 + $0x80] sm:$0xff]
  %v2306 = vld [vmem:[%s901 + $0x98] sm:$0xff]
  %v2307 = vld [vmem:[%s901 + $0xb0] sm:$0xff]
  %v2308 = vld [vmem:[%s901 + $0xf8] sm:$0xff]
  %v2309 = vld [vmem:[%s901 + $0x110] sm:$0xff]
  %v2310 = vld [vmem:[%s901 + $0x128] sm:$0xff]
  %v2311 = vld [vmem:[%s901 + $0x140] sm:$0xff]
  %v2312 = vld [vmem:[%s901 + $0x158] sm:$0xff]
  %v2313 = vld [vmem:[%s901 + $0x170] sm:$0xff]
  %v2314 = vld [vmem:[%s901 + $0x188] sm:$0xff]
  %v2315 = vld [vmem:[%s901 + $0x1a0] sm:$0xff]
  %v2316 = vld [vmem:[%s901 + $0x9] sm:$0xff]
  %v2317 = vld [vmem:[%s901 + $0x21] sm:$0xff]
  %v2318 = vld [vmem:[%s901 + $0x39] sm:$0xff]
  %v2319 = vld [vmem:[%s901 + $0x51] sm:$0xff]
  %v2320 = vld [vmem:[%s901 + $0x69] sm:$0xff]
  %v2321 = vld [vmem:[%s901 + $0x81] sm:$0xff]
  %v2322 = vld [vmem:[%s901 + $0x99] sm:$0xff]
  %v2323 = vld [vmem:[%s901 + $0xb1] sm:$0xff]
  %v2324 = vld [vmem:[%s901 + $0xf9] sm:$0xff]
  %v2325 = vld [vmem:[%s901 + $0x111] sm:$0xff]
  %v2326 = vld [vmem:[%s901 + $0x129] sm:$0xff]
  %v2327 = vld [vmem:[%s901 + $0x141] sm:$0xff]
  %v2328 = vld [vmem:[%s901 + $0x159] sm:$0xff]
  %v2329 = vld [vmem:[%s901 + $0x171] sm:$0xff]
  %v2330 = vld [vmem:[%s901 + $0x189] sm:$0xff]
  %v2331 = vld [vmem:[%s901 + $0x1a1] sm:$0xff]
  %2348 = vrot.lane.b32.xlu0 %v2204, 32
  %v2349 = vpop.permute.xlu0 %2348
  %2350 = vrot.lane.b32.xlu0 %v2205, 32
  %v2351 = vpop.permute.xlu0 %2350
  %2352 = vrot.lane.b32.xlu0 %v2206, 32
  %v2353 = vpop.permute.xlu0 %2352
  %2354 = vrot.lane.b32.xlu0 %v2207, 32
  %v2355 = vpop.permute.xlu0 %2354
  %2356 = vrot.lane.b32.xlu0 %v2208, 32
  %v2357 = vpop.permute.xlu0 %2356
  %2358 = vrot.lane.b32.xlu0 %v2209, 32
  %v2359 = vpop.permute.xlu0 %2358
  %2360 = vrot.lane.b32.xlu0 %v2210, 32
  %v2361 = vpop.permute.xlu0 %2360
  %2362 = vrot.lane.b32.xlu0 %v2211, 32
  %v2363 = vpop.permute.xlu0 %2362
  %2364 = vrot.lane.b32.xlu0 %v2212, 32
  %v2365 = vpop.permute.xlu0 %2364
  %2366 = vrot.lane.b32.xlu0 %v2213, 32
  %v2367 = vpop.permute.xlu0 %2366
  %2368 = vrot.lane.b32.xlu0 %v2214, 32
  %v2369 = vpop.permute.xlu0 %2368
  %2370 = vrot.lane.b32.xlu0 %v2215, 32
  %v2371 = vpop.permute.xlu0 %2370
  %2372 = vrot.lane.b32.xlu0 %v2216, 32
  %v2373 = vpop.permute.xlu0 %2372
  %2374 = vrot.lane.b32.xlu0 %v2217, 32
  %v2375 = vpop.permute.xlu0 %2374
  %2376 = vrot.lane.b32.xlu0 %v2218, 32
  %v2377 = vpop.permute.xlu0 %2376
  %2378 = vrot.lane.b32.xlu0 %v2219, 32
  %v2379 = vpop.permute.xlu0 %2378
  %2412 = vrot.lane.b32.xlu0 %v2220, 64
  %v2413 = vpop.permute.xlu0 %2412
  %2414 = vrot.lane.b32.xlu0 %v2221, 64
  %v2415 = vpop.permute.xlu0 %2414
  %2416 = vrot.lane.b32.xlu0 %v2222, 64
  %v2417 = vpop.permute.xlu0 %2416
  %2418 = vrot.lane.b32.xlu0 %v2223, 64
  %v2419 = vpop.permute.xlu0 %2418
  %2420 = vrot.lane.b32.xlu0 %v2224, 64
  %v2421 = vpop.permute.xlu0 %2420
  %2422 = vrot.lane.b32.xlu0 %v2225, 64
  %v2423 = vpop.permute.xlu0 %2422
  %2424 = vrot.lane.b32.xlu0 %v2226, 64
  %v2425 = vpop.permute.xlu0 %2424
  %2426 = vrot.lane.b32.xlu0 %v2227, 64
  %v2427 = vpop.permute.xlu0 %2426
  %2428 = vrot.lane.b32.xlu0 %v2228, 64
  %v2429 = vpop.permute.xlu0 %2428
  %2430 = vrot.lane.b32.xlu0 %v2229, 64
  %v2431 = vpop.permute.xlu0 %2430
  %2432 = vrot.lane.b32.xlu0 %v2230, 64
  %v2433 = vpop.permute.xlu0 %2432
  %2434 = vrot.lane.b32.xlu0 %v2231, 64
  %v2435 = vpop.permute.xlu0 %2434
  %2436 = vrot.lane.b32.xlu0 %v2232, 64
  %v2437 = vpop.permute.xlu0 %2436
  %2438 = vrot.lane.b32.xlu0 %v2233, 64
  %v2439 = vpop.permute.xlu0 %2438
  %2440 = vrot.lane.b32.xlu0 %v2234, 64
  %v2441 = vpop.permute.xlu0 %2440
  %2442 = vrot.lane.b32.xlu0 %v2235, 64
  %v2443 = vpop.permute.xlu0 %2442
  %2476 = vrot.lane.b32.xlu0 %v2236, 96
  %v2477 = vpop.permute.xlu0 %2476
  %2478 = vrot.lane.b32.xlu0 %v2237, 96
  %v2479 = vpop.permute.xlu0 %2478
  %2480 = vrot.lane.b32.xlu0 %v2238, 96
  %v2481 = vpop.permute.xlu0 %2480
  %2482 = vrot.lane.b32.xlu0 %v2239, 96
  %v2483 = vpop.permute.xlu0 %2482
  %2484 = vrot.lane.b32.xlu0 %v2240, 96
  %v2485 = vpop.permute.xlu0 %2484
  %2486 = vrot.lane.b32.xlu0 %v2241, 96
  %v2487 = vpop.permute.xlu0 %2486
  %2488 = vrot.lane.b32.xlu0 %v2242, 96
  %v2489 = vpop.permute.xlu0 %2488
  %2490 = vrot.lane.b32.xlu0 %v2243, 96
  %v2491 = vpop.permute.xlu0 %2490
  %2492 = vrot.lane.b32.xlu0 %v2244, 96
  %v2493 = vpop.permute.xlu0 %2492
  %2494 = vrot.lane.b32.xlu0 %v2245, 96
  %v2495 = vpop.permute.xlu0 %2494
  %2496 = vrot.lane.b32.xlu0 %v2246, 96
  %v2497 = vpop.permute.xlu0 %2496
  %2498 = vrot.lane.b32.xlu0 %v2247, 96
  %v2499 = vpop.permute.xlu0 %2498
  %2500 = vrot.lane.b32.xlu0 %v2248, 96
  %v2501 = vpop.permute.xlu0 %2500
  %2502 = vrot.lane.b32.xlu0 %v2249, 96
  %v2503 = vpop.permute.xlu0 %2502
  %2504 = vrot.lane.b32.xlu0 %v2250, 96
  %v2505 = vpop.permute.xlu0 %2504
  %2506 = vrot.lane.b32.xlu0 %v2251, 96
  %v2507 = vpop.permute.xlu0 %2506
  %2540 = vrot.lane.b32.xlu0 %v2268, 32
  %v2541 = vpop.permute.xlu0 %2540
  %2542 = vrot.lane.b32.xlu0 %v2269, 32
  %v2543 = vpop.permute.xlu0 %2542
  %2544 = vrot.lane.b32.xlu0 %v2270, 32
  %v2545 = vpop.permute.xlu0 %2544
  %2546 = vrot.lane.b32.xlu0 %v2271, 32
  %v2547 = vpop.permute.xlu0 %2546
  %2548 = vrot.lane.b32.xlu0 %v2272, 32
  %v2549 = vpop.permute.xlu0 %2548
  %2550 = vrot.lane.b32.xlu0 %v2273, 32
  %v2551 = vpop.permute.xlu0 %2550
  %2552 = vrot.lane.b32.xlu0 %v2274, 32
  %v2553 = vpop.permute.xlu0 %2552
  %2554 = vrot.lane.b32.xlu0 %v2275, 32
  %v2555 = vpop.permute.xlu0 %2554
  %2556 = vrot.lane.b32.xlu0 %v2276, 32
  %v2557 = vpop.permute.xlu0 %2556
  %2558 = vrot.lane.b32.xlu0 %v2277, 32
  %v2559 = vpop.permute.xlu0 %2558
  %2560 = vrot.lane.b32.xlu0 %v2278, 32
  %v2561 = vpop.permute.xlu0 %2560
  %2562 = vrot.lane.b32.xlu0 %v2279, 32
  %v2563 = vpop.permute.xlu0 %2562
  %2564 = vrot.lane.b32.xlu0 %v2280, 32
  %v2565 = vpop.permute.xlu0 %2564
  %2566 = vrot.lane.b32.xlu0 %v2281, 32
  %v2567 = vpop.permute.xlu0 %2566
  %2568 = vrot.lane.b32.xlu0 %v2282, 32
  %v2569 = vpop.permute.xlu0 %2568
  %2570 = vrot.lane.b32.xlu0 %v2283, 32
  %v2571 = vpop.permute.xlu0 %2570
  %2604 = vrot.lane.b32.xlu0 %v2284, 64
  %v2605 = vpop.permute.xlu0 %2604
  %2606 = vrot.lane.b32.xlu0 %v2285, 64
  %v2607 = vpop.permute.xlu0 %2606
  %2608 = vrot.lane.b32.xlu0 %v2286, 64
  %v2609 = vpop.permute.xlu0 %2608
  %2610 = vrot.lane.b32.xlu0 %v2287, 64
  %v2611 = vpop.permute.xlu0 %2610
  %2612 = vrot.lane.b32.xlu0 %v2288, 64
  %v2613 = vpop.permute.xlu0 %2612
  %2614 = vrot.lane.b32.xlu0 %v2289, 64
  %v2615 = vpop.permute.xlu0 %2614
  %2616 = vrot.lane.b32.xlu0 %v2290, 64
  %v2617 = vpop.permute.xlu0 %2616
  %2618 = vrot.lane.b32.xlu0 %v2291, 64
  %v2619 = vpop.permute.xlu0 %2618
  %2620 = vrot.lane.b32.xlu0 %v2292, 64
  %v2621 = vpop.permute.xlu0 %2620
  %2622 = vrot.lane.b32.xlu0 %v2293, 64
  %v2623 = vpop.permute.xlu0 %2622
  %2624 = vrot.lane.b32.xlu0 %v2294, 64
  %v2625 = vpop.permute.xlu0 %2624
  %2626 = vrot.lane.b32.xlu0 %v2295, 64
  %v2627 = vpop.permute.xlu0 %2626
  %2628 = vrot.lane.b32.xlu0 %v2296, 64
  %v2629 = vpop.permute.xlu0 %2628
  %2630 = vrot.lane.b32.xlu0 %v2297, 64
  %v2631 = vpop.permute.xlu0 %2630
  %2632 = vrot.lane.b32.xlu0 %v2298, 64
  %v2633 = vpop.permute.xlu0 %2632
  %2634 = vrot.lane.b32.xlu0 %v2299, 64
  %v2635 = vpop.permute.xlu0 %2634
  %2668 = vrot.lane.b32.xlu0 %v2300, 96
  %v2669 = vpop.permute.xlu0 %2668
  %2670 = vrot.lane.b32.xlu0 %v2301, 96
  %v2671 = vpop.permute.xlu0 %2670
  %2672 = vrot.lane.b32.xlu0 %v2302, 96
  %v2673 = vpop.permute.xlu0 %2672
  %2674 = vrot.lane.b32.xlu0 %v2303, 96
  %v2675 = vpop.permute.xlu0 %2674
  %2676 = vrot.lane.b32.xlu0 %v2304, 96
  %v2677 = vpop.permute.xlu0 %2676
  %2678 = vrot.lane.b32.xlu0 %v2305, 96
  %v2679 = vpop.permute.xlu0 %2678
  %2680 = vrot.lane.b32.xlu0 %v2306, 96
  %v2681 = vpop.permute.xlu0 %2680
  %2682 = vrot.lane.b32.xlu0 %v2307, 96
  %v2683 = vpop.permute.xlu0 %2682
  %2684 = vrot.lane.b32.xlu0 %v2308, 96
  %v2685 = vpop.permute.xlu0 %2684
  %2686 = vrot.lane.b32.xlu0 %v2309, 96
  %v2687 = vpop.permute.xlu0 %2686
  %2688 = vrot.lane.b32.xlu0 %v2310, 96
  %v2689 = vpop.permute.xlu0 %2688
  %2690 = vrot.lane.b32.xlu0 %v2311, 96
  %v2691 = vpop.permute.xlu0 %2690
  %2692 = vrot.lane.b32.xlu0 %v2312, 96
  %v2693 = vpop.permute.xlu0 %2692
  %2694 = vrot.lane.b32.xlu0 %v2313, 96
  %v2695 = vpop.permute.xlu0 %2694
  %2696 = vrot.lane.b32.xlu0 %v2314, 96
  %v2697 = vpop.permute.xlu0 %2696
  %2698 = vrot.lane.b32.xlu0 %v2315, 96
  %v2699 = vpop.permute.xlu0 %2698
  %v2716 = vsel %vm34, %v2188, %v2349
  %v2717 = vsel %vm34, %v2189, %v2351
  %v2718 = vsel %vm34, %v2190, %v2353
  %v2719 = vsel %vm34, %v2191, %v2355
  %v2720 = vsel %vm34, %v2192, %v2357
  %v2721 = vsel %vm34, %v2193, %v2359
  %v2722 = vsel %vm34, %v2194, %v2361
  %v2723 = vsel %vm34, %v2195, %v2363
  %v2724 = vsel %vm34, %v2196, %v2365
  %v2725 = vsel %vm34, %v2197, %v2367
  %v2726 = vsel %vm34, %v2198, %v2369
  %v2727 = vsel %vm34, %v2199, %v2371
  %v2728 = vsel %vm34, %v2200, %v2373
  %v2729 = vsel %vm34, %v2201, %v2375
  %v2730 = vsel %vm34, %v2202, %v2377
  %v2731 = vsel %vm34, %v2203, %v2379
  %v2732 = vsel %vm1350, %v2716, %v2413
  %v2733 = vsel %vm1350, %v2717, %v2415
  %v2734 = vsel %vm1350, %v2718, %v2417
  %v2735 = vsel %vm1350, %v2719, %v2419
  %v2736 = vsel %vm1350, %v2720, %v2421
  %v2737 = vsel %vm1350, %v2721, %v2423
  %v2738 = vsel %vm1350, %v2722, %v2425
  %v2739 = vsel %vm1350, %v2723, %v2427
  %v2740 = vsel %vm1350, %v2724, %v2429
  %v2741 = vsel %vm1350, %v2725, %v2431
  %v2742 = vsel %vm1350, %v2726, %v2433
  %v2743 = vsel %vm1350, %v2727, %v2435
  %v2744 = vsel %vm1350, %v2728, %v2437
  %v2745 = vsel %vm1350, %v2729, %v2439
  %v2746 = vsel %vm1350, %v2730, %v2441
  %v2747 = vsel %vm1350, %v2731, %v2443
  %v2748 = vsel %vm1367, %v2732, %v2477
  %v2749 = vsel %vm1367, %v2733, %v2479
  %v2750 = vsel %vm1367, %v2734, %v2481
  %v2751 = vsel %vm1367, %v2735, %v2483
  %v2752 = vsel %vm1367, %v2736, %v2485
  %v2753 = vsel %vm1367, %v2737, %v2487
  %v2754 = vsel %vm1367, %v2738, %v2489
  %v2755 = vsel %vm1367, %v2739, %v2491
  %v2756 = vsel %vm1367, %v2740, %v2493
  %v2757 = vsel %vm1367, %v2741, %v2495
  %v2758 = vsel %vm1367, %v2742, %v2497
  %v2759 = vsel %vm1367, %v2743, %v2499
  %v2760 = vsel %vm1367, %v2744, %v2501
  %v2761 = vsel %vm1367, %v2745, %v2503
  %v2762 = vsel %vm1367, %v2746, %v2505
  %v2763 = vsel %vm1367, %v2747, %v2507
  %v2764 = vsel %vm34, %v2252, %v2541
  %v2765 = vsel %vm34, %v2253, %v2543
  %v2766 = vsel %vm34, %v2254, %v2545
  %v2767 = vsel %vm34, %v2255, %v2547
  %v2768 = vsel %vm34, %v2256, %v2549
  %v2769 = vsel %vm34, %v2257, %v2551
  %v2770 = vsel %vm34, %v2258, %v2553
  %v2771 = vsel %vm34, %v2259, %v2555
  %v2772 = vsel %vm34, %v2260, %v2557
  %v2773 = vsel %vm34, %v2261, %v2559
  %v2774 = vsel %vm34, %v2262, %v2561
  %v2775 = vsel %vm34, %v2263, %v2563
  %v2776 = vsel %vm34, %v2264, %v2565
  %v2777 = vsel %vm34, %v2265, %v2567
  %v2778 = vsel %vm34, %v2266, %v2569
  %v2779 = vsel %vm34, %v2267, %v2571
  %v2780 = vsel %vm1350, %v2764, %v2605
  %v2781 = vsel %vm1350, %v2765, %v2607
  %v2782 = vsel %vm1350, %v2766, %v2609
  %v2783 = vsel %vm1350, %v2767, %v2611
  %v2784 = vsel %vm1350, %v2768, %v2613
  %v2785 = vsel %vm1350, %v2769, %v2615
  %v2786 = vsel %vm1350, %v2770, %v2617
  %v2787 = vsel %vm1350, %v2771, %v2619
  %v2788 = vsel %vm1350, %v2772, %v2621
  %v2789 = vsel %vm1350, %v2773, %v2623
  %v2790 = vsel %vm1350, %v2774, %v2625
  %v2791 = vsel %vm1350, %v2775, %v2627
  %v2792 = vsel %vm1350, %v2776, %v2629
  %v2793 = vsel %vm1350, %v2777, %v2631
  %v2794 = vsel %vm1350, %v2778, %v2633
  %v2795 = vsel %vm1350, %v2779, %v2635
  %v2796 = vsel %vm1367, %v2780, %v2669
  %v2797 = vsel %vm1367, %v2781, %v2671
  %v2798 = vsel %vm1367, %v2782, %v2673
  %v2799 = vsel %vm1367, %v2783, %v2675
  %v2800 = vsel %vm1367, %v2784, %v2677
  %v2801 = vsel %vm1367, %v2785, %v2679
  %v2802 = vsel %vm1367, %v2786, %v2681
  %v2803 = vsel %vm1367, %v2787, %v2683
  %v2804 = vsel %vm1367, %v2788, %v2685
  %v2805 = vsel %vm1367, %v2789, %v2687
  %v2806 = vsel %vm1367, %v2790, %v2689
  %v2807 = vsel %vm1367, %v2791, %v2691
  %v2808 = vsel %vm1367, %v2792, %v2693
  %v2809 = vsel %vm1367, %v2793, %v2695
  %v2810 = vsel %vm1367, %v2794, %v2697
  %v2811 = vsel %vm1367, %v2795, %v2699
  %v2812 = vlaneseq
  %v2813 = vshrl.u32 %v2812, 7
  %v2814 = vsub.s32 0, %v2813
  %v2815 = vrot.slane %v2171, %v2814
  %v2817 = vsel %vm34, %v2316, 0
  %v2820 = vsel %vm34, %v2317, 0
  %v2823 = vsel %vm34, %v2318, 0
  %v2826 = vsel %vm34, %v2319, 0
  %v2829 = vsel %vm34, %v2320, 0
  %v2832 = vsel %vm34, %v2321, 0
  %v2835 = vsel %vm34, %v2322, 0
  %v2838 = vsel %vm34, %v2323, 0
  %v2841 = vsel %vm34, %v2324, 0
  %v2844 = vsel %vm34, %v2325, 0
  %v2847 = vsel %vm34, %v2326, 0
  %v2850 = vsel %vm34, %v2327, 0
  %v2853 = vsel %vm34, %v2328, 0
  %v2856 = vsel %vm34, %v2329, 0
  %v2859 = vsel %vm34, %v2330, 0
  %v2862 = vsel %vm34, %v2331, 0
  %2864 = vmatprep.subr.mxu0 0.0
  %2865 = vmatpush1.msra.mxu0 %v751
  %2866 = vmatprep.subr.mxu0 0.0
  %2867 = vmatpush1.msra.mxu0 %v752
  %2868 = vmatprep.subr.mxu0 0.0
  %2869 = vmatpush1.msra.mxu0 %v753
  %2870 = vmatprep.subr.mxu0 0.0
  %2871 = vmatpush1.msra.mxu0 %v754
  %2872 = vmatprep.subr.mxu0 0.0
  %2873 = vmatpush1.msra.mxu0 %v755
  %2874 = vmatprep.subr.mxu0 0.0
  %2875 = vmatpush1.msra.mxu0 %v756
  %2876 = vmatprep.subr.mxu0 0.0
  %2877 = vmatpush1.msra.mxu0 %v757
  %2878 = vmatprep.subr.mxu0 0.0
  %2879 = vmatpush1.msra.mxu0 %v758
  %2880 = vmatprep.subr.mxu0 0.0
  %2881 = vmatpush1.msra.mxu0 %v759
  %2882 = vmatprep.subr.mxu0 0.0
  %2883 = vmatpush1.msra.mxu0 %v760
  %2884 = vmatprep.subr.mxu0 0.0
  %2885 = vmatpush1.msra.mxu0 %v761
  %2886 = vmatprep.subr.mxu0 0.0
  %2887 = vmatpush1.msra.mxu0 %v762
  %2888 = vmatprep.subr.mxu0 0.0
  %2889 = vmatpush1.msra.mxu0 %v763
  %2890 = vmatprep.subr.mxu0 0.0
  %2891 = vmatpush1.msra.mxu0 %v764
  %2892 = vmatprep.subr.mxu0 0.0
  %2893 = vmatpush1.msra.mxu0 %v765
  %2894 = vmatprep.subr.mxu0 0.0
  %2895 = vmatpush1.msra.mxu0 %v766
  %2896 = vmatprep.subr.mxu0 0.0
  %2897 = vmatpush1.msra.mxu0 %v767
  %2898 = vmatprep.subr.mxu0 0.0
  %2899 = vmatpush1.msra.mxu0 %v768
  %2900 = vmatprep.subr.mxu0 0.0
  %2901 = vmatpush1.msra.mxu0 %v769
  %2902 = vmatprep.subr.mxu0 0.0
  %2903 = vmatpush1.msra.mxu0 %v770
  %2904 = vmatprep.subr.mxu0 0.0
  %2905 = vmatpush1.msra.mxu0 %v771
  %2906 = vmatprep.subr.mxu0 0.0
  %2907 = vmatpush1.msra.mxu0 %v772
  %2908 = vmatprep.subr.mxu0 0.0
  %2909 = vmatpush1.msra.mxu0 %v773
  %2910 = vmatprep.subr.mxu0 0.0
  %2911 = vmatpush1.msra.mxu0 %v774
  %2912 = vmatprep.subr.mxu0 0.0
  %2913 = vmatpush1.msra.mxu0 %v775
  %2914 = vmatprep.subr.mxu0 0.0
  %2915 = vmatpush1.msra.mxu0 %v776
  %2916 = vmatprep.subr.mxu0 0.0
  %2917 = vmatpush1.msra.mxu0 %v777
  %2918 = vmatprep.subr.mxu0 0.0
  %2919 = vmatpush1.msra.mxu0 %v778
  %2920 = vmatprep.subr.mxu0 0.0
  %2921 = vmatpush1.msra.mxu0 %v779
  %2922 = vmatprep.subr.mxu0 0.0
  %2923 = vmatpush1.msra.mxu0 %v780
  %2924 = vmatprep.subr.mxu0 0.0
  %2925 = vmatpush1.msra.mxu0 %v781
  %2926 = vmatprep.subr.mxu0 0.0
  %2927 = vmatpush1.msra.mxu0 %v782
  %2928 = vmatprep.mubr.f32.mxu0 %v2796
  %2929 = vmatmul.mubr.f32.gmra.mrb[0].mxu0 %v2748
  %v2930 = vpop.f32.mrb[0].mxu0
  %v2931 = vadd.f32 %v2815, %v2930
  %v2932 = vpop.f32.mrb[0].mxu0
  %2933 = vmatprep.mubr.f32.mxu0 %v2797
  %2934 = vmatmul.mubr.f32.gmra.mrb[0].mxu0 %v2749
  %v2935 = vpop.f32.mrb[0].mxu0
  %v2936 = vadd.f32 %v2815, %v2935
  %v2937 = vpop.f32.mrb[0].mxu0
  %2938 = vmatprep.mubr.f32.mxu0 %v2798
  %2939 = vmatmul.mubr.f32.gmra.mrb[0].mxu0 %v2750
  %v2940 = vpop.f32.mrb[0].mxu0
  %v2941 = vadd.f32 %v2815, %v2940
  %v2942 = vpop.f32.mrb[0].mxu0
  %2943 = vmatprep.mubr.f32.mxu0 %v2799
  %2944 = vmatmul.mubr.f32.gmra.mrb[0].mxu0 %v2751
  %v2945 = vpop.f32.mrb[0].mxu0
  %v2946 = vadd.f32 %v2815, %v2945
  %v2947 = vpop.f32.mrb[0].mxu0
  %2948 = vmatprep.mubr.f32.mxu0 %v2800
  %2949 = vmatmul.mubr.f32.gmra.mrb[0].mxu0 %v2752
  %v2950 = vpop.f32.mrb[0].mxu0
  %v2951 = vadd.f32 %v2815, %v2950
  %v2952 = vpop.f32.mrb[0].mxu0
  %2953 = vmatprep.mubr.f32.mxu0 %v2801
  %2954 = vmatmul.mubr.f32.gmra.mrb[0].mxu0 %v2753
  %v2955 = vpop.f32.mrb[0].mxu0
  %v2956 = vadd.f32 %v2815, %v2955
  %v2957 = vpop.f32.mrb[0].mxu0
  %2958 = vmatprep.mubr.f32.mxu0 %v2802
  %2959 = vmatmul.mubr.f32.gmra.mrb[0].mxu0 %v2754
  %v2960 = vpop.f32.mrb[0].mxu0
  %v2961 = vadd.f32 %v2815, %v2960
  %v2962 = vpop.f32.mrb[0].mxu0
  %2963 = vmatprep.mubr.f32.mxu0 %v2803
  %2964 = vmatmul.mubr.f32.gmra.mrb[0].mxu0 %v2755
  %v2965 = vpop.f32.mrb[0].mxu0
  %v2966 = vadd.f32 %v2815, %v2965
  %v2967 = vpop.f32.mrb[0].mxu0
  %2968 = vmatprep.mubr.f32.mxu0 %v2804
  %2969 = vmatmul.mubr.f32.gmra.mrb[0].mxu0 %v2756
  %v2970 = vpop.f32.mrb[0].mxu0
  %v2971 = vadd.f32 %v2815, %v2970
  %v2972 = vpop.f32.mrb[0].mxu0
  %2973 = vmatprep.mubr.f32.mxu0 %v2805
  %2974 = vmatmul.mubr.f32.gmra.mrb[0].mxu0 %v2757
  %v2975 = vpop.f32.mrb[0].mxu0
  %v2976 = vadd.f32 %v2815, %v2975
  %v2977 = vpop.f32.mrb[0].mxu0
  %2978 = vmatprep.mubr.f32.mxu0 %v2806
  %2979 = vmatmul.mubr.f32.gmra.mrb[0].mxu0 %v2758
  %v2980 = vpop.f32.mrb[0].mxu0
  %v2981 = vadd.f32 %v2815, %v2980
  %v2982 = vpop.f32.mrb[0].mxu0
  %2983 = vmatprep.mubr.f32.mxu0 %v2807
  %2984 = vmatmul.mubr.f32.gmra.mrb[0].mxu0 %v2759
  %v2985 = vpop.f32.mrb[0].mxu0
  %v2986 = vadd.f32 %v2815, %v2985
  %v2987 = vpop.f32.mrb[0].mxu0
  %2988 = vmatprep.mubr.f32.mxu0 %v2808
  %2989 = vmatmul.mubr.f32.gmra.mrb[0].mxu0 %v2760
  %v2990 = vpop.f32.mrb[0].mxu0
  %v2991 = vadd.f32 %v2815, %v2990
  %v2992 = vpop.f32.mrb[0].mxu0
  %2993 = vmatprep.mubr.f32.mxu0 %v2809
  %2994 = vmatmul.mubr.f32.gmra.mrb[0].mxu0 %v2761
  %v2995 = vpop.f32.mrb[0].mxu0
  %v2996 = vadd.f32 %v2815, %v2995
  %v2997 = vpop.f32.mrb[0].mxu0
  %2998 = vmatprep.mubr.f32.mxu0 %v2810
  %2999 = vmatmul.mubr.f32.gmra.mrb[0].mxu0 %v2762
  %v3000 = vpop.f32.mrb[0].mxu0
  %v3001 = vadd.f32 %v2815, %v3000
  %v3002 = vpop.f32.mrb[0].mxu0
  %3003 = vmatprep.mubr.f32.mxu0 %v2811
  %3004 = vmatmul.mubr.f32.gmra.mrb[0].mxu0 %v2763
  %v3005 = vpop.f32.mrb[0].mxu0
  %v3006 = vadd.f32 %v2815, %v3005
  %v3007 = vpop.f32.mrb[0].mxu0
  %3008 = vdwg.mxu0
  %3009 = vmatprep.subr.mxu0 0.0
  %3010 = vmatpush1.msra.mxu0 %v783
  %3011 = vmatprep.subr.mxu0 0.0
  %3012 = vmatpush1.msra.mxu0 %v784
  %3013 = vmatprep.subr.mxu0 0.0
  %3014 = vmatpush1.msra.mxu0 %v785
  %3015 = vmatprep.subr.mxu0 0.0
  %3016 = vmatpush1.msra.mxu0 %v786
  %3017 = vmatprep.subr.mxu0 0.0
  %3018 = vmatpush1.msra.mxu0 0.0
  %3019 = vmatprep.subr.mxu0 0.0
  %3020 = vmatpush1.msra.mxu0 0.0
  %3021 = vmatprep.subr.mxu0 0.0
  %3022 = vmatpush1.msra.mxu0 0.0
  %3023 = vmatprep.subr.mxu0 0.0
  %3024 = vmatpush1.msra.mxu0 0.0
  %3025 = vmatprep.subr.mxu0 0.0
  %3026 = vmatpush1.msra.mxu0 0.0
  %3027 = vmatprep.subr.mxu0 0.0
  %3028 = vmatpush1.msra.mxu0 0.0
  %3029 = vmatprep.subr.mxu0 0.0
  %3030 = vmatpush1.msra.mxu0 0.0
  %3031 = vmatprep.subr.mxu0 0.0
  %3032 = vmatpush1.msra.mxu0 0.0
  %3033 = vmatprep.subr.mxu0 0.0
  %3034 = vmatpush1.msra.mxu0 0.0
  %3035 = vmatprep.subr.mxu0 0.0
  %3036 = vmatpush1.msra.mxu0 0.0
  %3037 = vmatprep.subr.mxu0 0.0
  %3038 = vmatpush1.msra.mxu0 0.0
  %3039 = vmatprep.subr.mxu0 0.0
  %3040 = vmatpush1.msra.mxu0 0.0
  %3041 = vmatprep.subr.mxu0 0.0
  %3042 = vmatpush1.msra.mxu0 0.0
  %3043 = vmatprep.subr.mxu0 0.0
  %3044 = vmatpush1.msra.mxu0 0.0
  %3045 = vmatprep.subr.mxu0 0.0
  %3046 = vmatpush1.msra.mxu0 0.0
  %3047 = vmatprep.subr.mxu0 0.0
  %3048 = vmatpush1.msra.mxu0 0.0
  %3049 = vmatprep.subr.mxu0 0.0
  %3050 = vmatpush1.msra.mxu0 0.0
  %3051 = vmatprep.subr.mxu0 0.0
  %3052 = vmatpush1.msra.mxu0 0.0
  %3053 = vmatprep.subr.mxu0 0.0
  %3054 = vmatpush1.msra.mxu0 0.0
  %3055 = vmatprep.subr.mxu0 0.0
  %3056 = vmatpush1.msra.mxu0 0.0
  %3057 = vmatprep.subr.mxu0 0.0
  %3058 = vmatpush1.msra.mxu0 0.0
  %3059 = vmatprep.subr.mxu0 0.0
  %3060 = vmatpush1.msra.mxu0 0.0
  %3061 = vmatprep.subr.mxu0 0.0
  %3062 = vmatpush1.msra.mxu0 0.0
  %3063 = vmatprep.subr.mxu0 0.0
  %3064 = vmatpush1.msra.mxu0 0.0
  %3065 = vmatprep.subr.mxu0 0.0
  %3066 = vmatpush1.msra.mxu0 0.0
  %3067 = vmatprep.subr.mxu0 0.0
  %3068 = vmatpush1.msra.mxu0 0.0
  %3069 = vmatprep.subr.mxu0 0.0
  %3070 = vmatpush1.msra.mxu0 0.0
  %3071 = vmatprep.subr.mxu0 0.0
  %3072 = vmatpush1.msra.mxu0 0.0
  %3073 = vmatprep.mubr.f32.mxu0 0.0
  %3074 = vmatmul.mubr.f32.gmra.mrb[0].mxu0 %v2817
  %v3075 = vpop.f32.mrb[0].mxu0
  %v3076 = vadd.f32 %v2931, %v3075
  %v3077 = vpop.f32.mrb[0].mxu0
  %3078 = vmatprep.mubr.f32.mxu0 0.0
  %3079 = vmatmul.mubr.f32.gmra.mrb[0].mxu0 %v2820
  %v3080 = vpop.f32.mrb[0].mxu0
  %v3081 = vadd.f32 %v2936, %v3080
  %v3082 = vpop.f32.mrb[0].mxu0
  %3083 = vmatprep.mubr.f32.mxu0 0.0
  %3084 = vmatmul.mubr.f32.gmra.mrb[0].mxu0 %v2823
  %v3085 = vpop.f32.mrb[0].mxu0
  %v3086 = vadd.f32 %v2941, %v3085
  %v3087 = vpop.f32.mrb[0].mxu0
  %3088 = vmatprep.mubr.f32.mxu0 0.0
  %3089 = vmatmul.mubr.f32.gmra.mrb[0].mxu0 %v2826
  %v3090 = vpop.f32.mrb[0].mxu0
  %v3091 = vadd.f32 %v2946, %v3090
  %v3092 = vpop.f32.mrb[0].mxu0
  %3093 = vmatprep.mubr.f32.mxu0 0.0
  %3094 = vmatmul.mubr.f32.gmra.mrb[0].mxu0 %v2829
  %v3095 = vpop.f32.mrb[0].mxu0
  %v3096 = vadd.f32 %v2951, %v3095
  %v3097 = vpop.f32.mrb[0].mxu0
  %3098 = vmatprep.mubr.f32.mxu0 0.0
  %3099 = vmatmul.mubr.f32.gmra.mrb[0].mxu0 %v2832
  %v3100 = vpop.f32.mrb[0].mxu0
  %v3101 = vadd.f32 %v2956, %v3100
  %v3102 = vpop.f32.mrb[0].mxu0
  %3103 = vmatprep.mubr.f32.mxu0 0.0
  %3104 = vmatmul.mubr.f32.gmra.mrb[0].mxu0 %v2835
  %v3105 = vpop.f32.mrb[0].mxu0
  %v3106 = vadd.f32 %v2961, %v3105
  %v3107 = vpop.f32.mrb[0].mxu0
  %3108 = vmatprep.mubr.f32.mxu0 0.0
  %3109 = vmatmul.mubr.f32.gmra.mrb[0].mxu0 %v2838
  %v3110 = vpop.f32.mrb[0].mxu0
  %v3111 = vadd.f32 %v2966, %v3110
  %v3112 = vpop.f32.mrb[0].mxu0
  %3113 = vmatprep.mubr.f32.mxu0 0.0
  %3114 = vmatmul.mubr.f32.gmra.mrb[0].mxu0 %v2841
  %v3115 = vpop.f32.mrb[0].mxu0
  %v3116 = vadd.f32 %v2971, %v3115
  %v3117 = vpop.f32.mrb[0].mxu0
  %3118 = vmatprep.mubr.f32.mxu0 0.0
  %3119 = vmatmul.mubr.f32.gmra.mrb[0].mxu0 %v2844
  %v3120 = vpop.f32.mrb[0].mxu0
  %v3121 = vadd.f32 %v2976, %v3120
  %v3122 = vpop.f32.mrb[0].mxu0
  %3123 = vmatprep.mubr.f32.mxu0 0.0
  %3124 = vmatmul.mubr.f32.gmra.mrb[0].mxu0 %v2847
  %v3125 = vpop.f32.mrb[0].mxu0
  %v3126 = vadd.f32 %v2981, %v3125
  %v3127 = vpop.f32.mrb[0].mxu0
  %3128 = vmatprep.mubr.f32.mxu0 0.0
  %3129 = vmatmul.mubr.f32.gmra.mrb[0].mxu0 %v2850
  %v3130 = vpop.f32.mrb[0].mxu0
  %v3131 = vadd.f32 %v2986, %v3130
  %v3132 = vpop.f32.mrb[0].mxu0
  %3133 = vmatprep.mubr.f32.mxu0 0.0
  %3134 = vmatmul.mubr.f32.gmra.mrb[0].mxu0 %v2853
  %v3135 = vpop.f32.mrb[0].mxu0
  %v3136 = vadd.f32 %v2991, %v3135
  %v3137 = vpop.f32.mrb[0].mxu0
  %3138 = vmatprep.mubr.f32.mxu0 0.0
  %3139 = vmatmul.mubr.f32.gmra.mrb[0].mxu0 %v2856
  %v3140 = vpop.f32.mrb[0].mxu0
  %v3141 = vadd.f32 %v2996, %v3140
  %v3142 = vpop.f32.mrb[0].mxu0
  %3143 = vmatprep.mubr.f32.mxu0 0.0
  %3144 = vmatmul.mubr.f32.gmra.mrb[0].mxu0 %v2859
  %v3145 = vpop.f32.mrb[0].mxu0
  %v3146 = vadd.f32 %v3001, %v3145
  %v3147 = vpop.f32.mrb[0].mxu0
  %3148 = vmatprep.mubr.f32.mxu0 0.0
  %3149 = vmatmul.mubr.f32.gmra.mrb[0].mxu0 %v2862
  %v3150 = vpop.f32.mrb[0].mxu0
  %v3151 = vadd.f32 %v3006, %v3150
  %v3152 = vpop.f32.mrb[0].mxu0
  %3153 = vdwg.mxu0
  %v3154 = vld [vmem:[%s2 + $0x7] sm:$0x1]
  %v3155 = vld [vmem:[%s2 + $0x8] sm:$0x1]
  %v3156 = vsel %vm34, %v3076, 0.0
  %v3157 = vsel %vm34, %v3081, 0.0
  %v3158 = vadd.f32 %v3156, %v3157
  %v3159 = vsel %vm34, %v3086, 0.0
  %v3160 = vadd.f32 %v3158, %v3159
  %v3161 = vsel %vm34, %v3091, 0.0
  %v3162 = vadd.f32 %v3160, %v3161
  %v3163 = vsel %vm34, %v3096, 0.0
  %v3164 = vadd.f32 %v3162, %v3163
  %v3165 = vsel %vm34, %v3101, 0.0
  %v3166 = vadd.f32 %v3164, %v3165
  %v3167 = vsel %vm34, %v3106, 0.0
  %v3168 = vadd.f32 %v3166, %v3167
  %v3169 = vsel %vm34, %v3111, 0.0
  %v3170 = vadd.f32 %v3168, %v3169
  %v3171 = vrot.slane %v3170, 4
  %v3172 = vadd.f32 %v3170, %v3171
  %v3173 = vrot.slane %v3172, 2
  %v3174 = vadd.f32 %v3172, %v3173
  %v3175 = vrot.slane %v3174, 1
  %v3176 = vadd.f32 %v3174, %v3175
  %v3177 = vsel %vm34, %v3116, 0.0
  %v3178 = vsel %vm34, %v3121, 0.0
  %v3179 = vadd.f32 %v3177, %v3178
  %v3180 = vsel %vm34, %v3126, 0.0
  %v3181 = vadd.f32 %v3179, %v3180
  %v3182 = vsel %vm34, %v3131, 0.0
  %v3183 = vadd.f32 %v3181, %v3182
  %v3184 = vsel %vm34, %v3136, 0.0
  %v3185 = vadd.f32 %v3183, %v3184
  %v3186 = vsel %vm34, %v3141, 0.0
  %v3187 = vadd.f32 %v3185, %v3186
  %v3188 = vsel %vm34, %v3146, 0.0
  %v3189 = vadd.f32 %v3187, %v3188
  %v3190 = vsel %vm34, %v3151, 0.0
  %v3191 = vadd.f32 %v3189, %v3190
  %v3192 = vrot.slane %v3191, 4
  %v3193 = vadd.f32 %v3191, %v3192
  %v3194 = vrot.slane %v3193, 2
  %v3195 = vadd.f32 %v3193, %v3194
  %v3196 = vrot.slane %v3195, 1
  %v3197 = vadd.f32 %v3195, %v3196
  %v3198 = vmul.f32 %v3076, %v3076
  %v3199 = vmul.f32 %v3081, %v3081
  %v3200 = vmul.f32 %v3086, %v3086
  %v3201 = vmul.f32 %v3091, %v3091
  %v3202 = vmul.f32 %v3096, %v3096
  %v3203 = vmul.f32 %v3101, %v3101
  %v3204 = vmul.f32 %v3106, %v3106
  %v3205 = vmul.f32 %v3111, %v3111
  %v3206 = vmul.f32 %v3116, %v3116
  %v3207 = vmul.f32 %v3121, %v3121
  %v3208 = vmul.f32 %v3126, %v3126
  %v3209 = vmul.f32 %v3131, %v3131
  %v3210 = vmul.f32 %v3136, %v3136
  %v3211 = vmul.f32 %v3141, %v3141
  %v3212 = vmul.f32 %v3146, %v3146
  %v3213 = vmul.f32 %v3151, %v3151
  %v3214 = vsel %vm34, %v3198, 0.0
  %v3215 = vsel %vm34, %v3199, 0.0
  %v3216 = vadd.f32 %v3214, %v3215
  %v3217 = vsel %vm34, %v3200, 0.0
  %v3218 = vadd.f32 %v3216, %v3217
  %v3219 = vsel %vm34, %v3201, 0.0
  %v3220 = vadd.f32 %v3218, %v3219
  %v3221 = vsel %vm34, %v3202, 0.0
  %v3222 = vadd.f32 %v3220, %v3221
  %v3223 = vsel %vm34, %v3203, 0.0
  %v3224 = vadd.f32 %v3222, %v3223
  %v3225 = vsel %vm34, %v3204, 0.0
  %v3226 = vadd.f32 %v3224, %v3225
  %v3227 = vsel %vm34, %v3205, 0.0
  %v3228 = vadd.f32 %v3226, %v3227
  %v3229 = vrot.slane %v3228, 4
  %v3230 = vadd.f32 %v3228, %v3229
  %v3231 = vrot.slane %v3230, 2
  %v3232 = vadd.f32 %v3230, %v3231
  %v3233 = vrot.slane %v3232, 1
  %v3234 = vadd.f32 %v3232, %v3233
  %v3235 = vsel %vm34, %v3206, 0.0
  %v3236 = vsel %vm34, %v3207, 0.0
  %v3237 = vadd.f32 %v3235, %v3236
  %v3238 = vsel %vm34, %v3208, 0.0
  %v3239 = vadd.f32 %v3237, %v3238
  %v3240 = vsel %vm34, %v3209, 0.0
  %v3241 = vadd.f32 %v3239, %v3240
  %v3242 = vsel %vm34, %v3210, 0.0
  %v3243 = vadd.f32 %v3241, %v3242
  %v3244 = vsel %vm34, %v3211, 0.0
  %v3245 = vadd.f32 %v3243, %v3244
  %v3246 = vsel %vm34, %v3212, 0.0
  %v3247 = vadd.f32 %v3245, %v3246
  %v3248 = vsel %vm34, %v3213, 0.0
  %v3249 = vadd.f32 %v3247, %v3248
  %v3250 = vrot.slane %v3249, 4
  %v3251 = vadd.f32 %v3249, %v3250
  %v3252 = vrot.slane %v3251, 2
  %v3253 = vadd.f32 %v3251, %v3252
  %v3254 = vrot.slane %v3253, 1
  %v3255 = vadd.f32 %v3253, %v3254
  %v3258 = vsel %vm421, %v3197, %v3176
  %v3259 = vsel %vm34, %v3258, 0
  %3261 = vmatprep.subr.mxu0 0.0
  %3262 = vmatpush1.msra.mxu0 %v29
  %3263 = vmatprep.subr.mxu0 0.0
  %3264 = vmatpush1.msra.mxu0 %v30
  %3265 = vmatprep.subr.mxu0 0.0
  %3266 = vmatpush1.msra.mxu0 %v31
  %3267 = vmatprep.subr.mxu0 0.0
  %3268 = vmatpush1.msra.mxu0 %v32
  %3269 = vmatprep.subr.mxu0 0.0
  %3270 = vmatpush1.msra.mxu0 0.0
  %3271 = vmatprep.subr.mxu0 0.0
  %3272 = vmatpush1.msra.mxu0 0.0
  %3273 = vmatprep.subr.mxu0 0.0
  %3274 = vmatpush1.msra.mxu0 0.0
  %3275 = vmatprep.subr.mxu0 0.0
  %3276 = vmatpush1.msra.mxu0 0.0
  %3277 = vmatprep.subr.mxu0 0.0
  %3278 = vmatpush1.msra.mxu0 0.0
  %3279 = vmatprep.subr.mxu0 0.0
  %3280 = vmatpush1.msra.mxu0 0.0
  %3281 = vmatprep.subr.mxu0 0.0
  %3282 = vmatpush1.msra.mxu0 0.0
  %3283 = vmatprep.subr.mxu0 0.0
  %3284 = vmatpush1.msra.mxu0 0.0
  %3285 = vmatprep.subr.mxu0 0.0
  %3286 = vmatpush1.msra.mxu0 0.0
  %3287 = vmatprep.subr.mxu0 0.0
  %3288 = vmatpush1.msra.mxu0 0.0
  %3289 = vmatprep.subr.mxu0 0.0
  %3290 = vmatpush1.msra.mxu0 0.0
  %3291 = vmatprep.subr.mxu0 0.0
  %3292 = vmatpush1.msra.mxu0 0.0
  %3293 = vmatprep.subr.mxu0 0.0
  %3294 = vmatpush1.msra.mxu0 0.0
  %3295 = vmatprep.subr.mxu0 0.0
  %3296 = vmatpush1.msra.mxu0 0.0
  %3297 = vmatprep.subr.mxu0 0.0
  %3298 = vmatpush1.msra.mxu0 0.0
  %3299 = vmatprep.subr.mxu0 0.0
  %3300 = vmatpush1.msra.mxu0 0.0
  %3301 = vmatprep.subr.mxu0 0.0
  %3302 = vmatpush1.msra.mxu0 0.0
  %3303 = vmatprep.subr.mxu0 0.0
  %3304 = vmatpush1.msra.mxu0 0.0
  %3305 = vmatprep.subr.mxu0 0.0
  %3306 = vmatpush1.msra.mxu0 0.0
  %3307 = vmatprep.subr.mxu0 0.0
  %3308 = vmatpush1.msra.mxu0 0.0
  %3309 = vmatprep.subr.mxu0 0.0
  %3310 = vmatpush1.msra.mxu0 0.0
  %3311 = vmatprep.subr.mxu0 0.0
  %3312 = vmatpush1.msra.mxu0 0.0
  %3313 = vmatprep.subr.mxu0 0.0
  %3314 = vmatpush1.msra.mxu0 0.0
  %3315 = vmatprep.subr.mxu0 0.0
  %3316 = vmatpush1.msra.mxu0 0.0
  %3317 = vmatprep.subr.mxu0 0.0
  %3318 = vmatpush1.msra.mxu0 0.0
  %3319 = vmatprep.subr.mxu0 0.0
  %3320 = vmatpush1.msra.mxu0 0.0
  %3321 = vmatprep.subr.mxu0 0.0
  %3322 = vmatpush1.msra.mxu0 0.0
  %3323 = vmatprep.subr.mxu0 0.0
  %3324 = vmatpush1.msra.mxu0 0.0
  %3325 = vmatprep.mubr.f32.mxu0 0.0
  %3326 = vmatmul.mubr.f32.gmra.mrb[0].mxu0 %v3259
  %v3327 = vpop.f32.mrb[0].mxu0
  %v3328 = vadd.f32 0.0, %v3327
  %v3329 = vpop.f32.mrb[0].mxu0
  %3330 = vdwg.mxu0
  %v3333 = vsel %vm421, %v3255, %v3234
  %v3334 = vsel %vm34, %v3333, 0
  %3336 = vmatprep.subr.mxu0 0.0
  %3337 = vmatpush1.msra.mxu0 %v29
  %3338 = vmatprep.subr.mxu0 0.0
  %3339 = vmatpush1.msra.mxu0 %v30
  %3340 = vmatprep.subr.mxu0 0.0
  %3341 = vmatpush1.msra.mxu0 %v31
  %3342 = vmatprep.subr.mxu0 0.0
  %3343 = vmatpush1.msra.mxu0 %v32
  %3344 = vmatprep.subr.mxu0 0.0
  %3345 = vmatpush1.msra.mxu0 0.0
  %3346 = vmatprep.subr.mxu0 0.0
  %3347 = vmatpush1.msra.mxu0 0.0
  %3348 = vmatprep.subr.mxu0 0.0
  %3349 = vmatpush1.msra.mxu0 0.0
  %3350 = vmatprep.subr.mxu0 0.0
  %3351 = vmatpush1.msra.mxu0 0.0
  %3352 = vmatprep.subr.mxu0 0.0
  %3353 = vmatpush1.msra.mxu0 0.0
  %3354 = vmatprep.subr.mxu0 0.0
  %3355 = vmatpush1.msra.mxu0 0.0
  %3356 = vmatprep.subr.mxu0 0.0
  %3357 = vmatpush1.msra.mxu0 0.0
  %3358 = vmatprep.subr.mxu0 0.0
  %3359 = vmatpush1.msra.mxu0 0.0
  %3360 = vmatprep.subr.mxu0 0.0
  %3361 = vmatpush1.msra.mxu0 0.0
  %3362 = vmatprep.subr.mxu0 0.0
  %3363 = vmatpush1.msra.mxu0 0.0
  %3364 = vmatprep.subr.mxu0 0.0
  %3365 = vmatpush1.msra.mxu0 0.0
  %3366 = vmatprep.subr.mxu0 0.0
  %3367 = vmatpush1.msra.mxu0 0.0
  %3368 = vmatprep.subr.mxu0 0.0
  %3369 = vmatpush1.msra.mxu0 0.0
  %3370 = vmatprep.subr.mxu0 0.0
  %3371 = vmatpush1.msra.mxu0 0.0
  %3372 = vmatprep.subr.mxu0 0.0
  %3373 = vmatpush1.msra.mxu0 0.0
  %3374 = vmatprep.subr.mxu0 0.0
  %3375 = vmatpush1.msra.mxu0 0.0
  %3376 = vmatprep.subr.mxu0 0.0
  %3377 = vmatpush1.msra.mxu0 0.0
  %3378 = vmatprep.subr.mxu0 0.0
  %3379 = vmatpush1.msra.mxu0 0.0
  %3380 = vmatprep.subr.mxu0 0.0
  %3381 = vmatpush1.msra.mxu0 0.0
  %3382 = vmatprep.subr.mxu0 0.0
  %3383 = vmatpush1.msra.mxu0 0.0
  %3384 = vmatprep.subr.mxu0 0.0
  %3385 = vmatpush1.msra.mxu0 0.0
  %3386 = vmatprep.subr.mxu0 0.0
  %3387 = vmatpush1.msra.mxu0 0.0
  %3388 = vmatprep.subr.mxu0 0.0
  %3389 = vmatpush1.msra.mxu0 0.0
  %3390 = vmatprep.subr.mxu0 0.0
  %3391 = vmatpush1.msra.mxu0 0.0
  %3392 = vmatprep.subr.mxu0 0.0
  %3393 = vmatpush1.msra.mxu0 0.0
  %3394 = vmatprep.subr.mxu0 0.0
  %3395 = vmatpush1.msra.mxu0 0.0
  %3396 = vmatprep.subr.mxu0 0.0
  %3397 = vmatpush1.msra.mxu0 0.0
  %3398 = vmatprep.subr.mxu0 0.0
  %3399 = vmatpush1.msra.mxu0 0.0
  %3400 = vmatprep.mubr.f32.mxu0 0.0
  %3401 = vmatmul.mubr.f32.gmra.mrb[0].mxu0 %v3334
  %v3402 = vpop.f32.mrb[0].mxu0
  %v3403 = vadd.f32 0.0, %v3402
  %v3404 = vpop.f32.mrb[0].mxu0
  %3405 = vdwg.mxu0
  %v3406 = vmul.f32 %v3328, %v3328
  %v3407 = vsub.f32 %v3403, %v3406
  %v3408 = vmax.f32 %v3407, 0.0
  %v3409 = vadd.f32 %v3408, 1e-05
  %v3410 = vrsqrt.pop %v3409
  %v3413 = vunpack.c.l.s4 1966171168
  %v3414 = vunpack.c.0.s8 %v3413
  %v3415 = vlaneseq
  %v3416 = vshrl.u32 %v3415, 7
  %v3417 = vsub.s32 %v3414, %v3416
  %v3418 = vrot.slane %v3328, %v3417
  %v3419 = vcombine.high %v3418, %v3418
  %v3421 = vunpack.c.l.s4 1966171168
  %v3422 = vunpack.c.0.s8 %v3421
  %v3423 = vlaneseq
  %v3424 = vshrl.u32 %v3423, 7
  %v3425 = vsub.s32 %v3422, %v3424
  %v3426 = vrot.slane %v3418, %v3425
  %v3428 = vunpack.c.l.s4 1966171168
  %v3429 = vunpack.c.0.s8 %v3428
  %v3430 = vlaneseq
  %v3431 = vshrl.u32 %v3430, 7
  %v3432 = vsub.s32 %v3429, %v3431
  %v3433 = vrot.slane %v3419, %v3432
  %v3434 = vlaneseq
  %v3435 = vshrl.u32 %v3434, 7
  %v3436 = vsub.s32 0, %v3435
  %v3437 = vrot.slane %v3426, %v3436
  %v3438 = vlaneseq
  %v3439 = vshrl.u32 %v3438, 7
  %v3440 = vsub.s32 0, %v3439
  %v3441 = vrot.slane %v3433, %v3440
  %v3444 = vsub.f32 %v3076, %v3437
  %v3445 = vsub.f32 %v3081, %v3437
  %v3446 = vsub.f32 %v3086, %v3437
  %v3447 = vsub.f32 %v3091, %v3437
  %v3448 = vsub.f32 %v3096, %v3437
  %v3449 = vsub.f32 %v3101, %v3437
  %v3450 = vsub.f32 %v3106, %v3437
  %v3451 = vsub.f32 %v3111, %v3437
  %v3452 = vsub.f32 %v3116, %v3441
  %v3453 = vsub.f32 %v3121, %v3441
  %v3454 = vsub.f32 %v3126, %v3441
  %v3455 = vsub.f32 %v3131, %v3441
  %v3456 = vsub.f32 %v3136, %v3441
  %v3457 = vsub.f32 %v3141, %v3441
  %v3458 = vsub.f32 %v3146, %v3441
  %v3459 = vsub.f32 %v3151, %v3441
  %v3462 = vunpack.c.l.s4 1966171168
  %v3463 = vunpack.c.0.s8 %v3462
  %v3464 = vlaneseq
  %v3465 = vshrl.u32 %v3464, 7
  %v3466 = vsub.s32 %v3463, %v3465
  %v3467 = vrot.slane %v3410, %v3466
  %v3468 = vcombine.high %v3467, %v3467
  %v3470 = vunpack.c.l.s4 1966171168
  %v3471 = vunpack.c.0.s8 %v3470
  %v3472 = vlaneseq
  %v3473 = vshrl.u32 %v3472, 7
  %v3474 = vsub.s32 %v3471, %v3473
  %v3475 = vrot.slane %v3467, %v3474
  %v3477 = vunpack.c.l.s4 1966171168
  %v3478 = vunpack.c.0.s8 %v3477
  %v3479 = vlaneseq
  %v3480 = vshrl.u32 %v3479, 7
  %v3481 = vsub.s32 %v3478, %v3480
  %v3482 = vrot.slane %v3468, %v3481
  %v3485 = vmul.f32 %v3475, %v3154
  %v3486 = vmul.f32 %v3482, %v3154
  %v3489 = vlaneseq
  %v3490 = vshrl.u32 %v3489, 7
  %v3491 = vsub.s32 0, %v3490
  %v3492 = vrot.slane %v3485, %v3491
  %v3493 = vlaneseq
  %v3494 = vshrl.u32 %v3493, 7
  %v3495 = vsub.s32 0, %v3494
  %v3496 = vrot.slane %v3486, %v3495
  %v3499 = vmul.f32 %v3444, %v3492
  %v3500 = vmul.f32 %v3445, %v3492
  %v3501 = vmul.f32 %v3446, %v3492
  %v3502 = vmul.f32 %v3447, %v3492
  %v3503 = vmul.f32 %v3448, %v3492
  %v3504 = vmul.f32 %v3449, %v3492
  %v3505 = vmul.f32 %v3450, %v3492
  %v3506 = vmul.f32 %v3451, %v3492
  %v3507 = vmul.f32 %v3452, %v3496
  %v3508 = vmul.f32 %v3453, %v3496
  %v3509 = vmul.f32 %v3454, %v3496
  %v3510 = vmul.f32 %v3455, %v3496
  %v3511 = vmul.f32 %v3456, %v3496
  %v3512 = vmul.f32 %v3457, %v3496
  %v3513 = vmul.f32 %v3458, %v3496
  %v3514 = vmul.f32 %v3459, %v3496
  %v3515 = vlaneseq
  %v3516 = vshrl.u32 %v3515, 7
  %v3517 = vsub.s32 0, %v3516
  %v3518 = vrot.slane %v3155, %v3517
  %v3519 = vadd.f32 %v3499, %v3518
  %v3520 = vadd.f32 %v3500, %v3518
  %v3521 = vadd.f32 %v3501, %v3518
  %v3522 = vadd.f32 %v3502, %v3518
  %v3523 = vadd.f32 %v3503, %v3518
  %v3524 = vadd.f32 %v3504, %v3518
  %v3525 = vadd.f32 %v3505, %v3518
  %v3526 = vadd.f32 %v3506, %v3518
  %v3527 = vadd.f32 %v3507, %v3518
  %v3528 = vadd.f32 %v3508, %v3518
  %v3529 = vadd.f32 %v3509, %v3518
  %v3530 = vadd.f32 %v3510, %v3518
  %v3531 = vadd.f32 %v3511, %v3518
  %v3532 = vadd.f32 %v3512, %v3518
  %v3533 = vadd.f32 %v3513, %v3518
  %v3534 = vadd.f32 %v3514, %v3518
  %v3535 = vadd.f32 %v3519, %v699
  %v3536 = vadd.f32 %v3520, %v700
  %v3537 = vadd.f32 %v3521, %v701
  %v3538 = vadd.f32 %v3522, %v702
  %v3539 = vadd.f32 %v3523, %v703
  %v3540 = vadd.f32 %v3524, %v704
  %v3541 = vadd.f32 %v3525, %v705
  %v3542 = vadd.f32 %v3526, %v706
  %v3543 = vadd.f32 %v3527, %v707
  %v3544 = vadd.f32 %v3528, %v708
  %v3545 = vadd.f32 %v3529, %v709
  %v3546 = vadd.f32 %v3530, %v710
  %v3547 = vadd.f32 %v3531, %v711
  %v3548 = vadd.f32 %v3532, %v712
  %v3549 = vadd.f32 %v3533, %v713
  %v3550 = vadd.f32 %v3534, %v714
  %v3551 = vmax.f32 %v3535, 0.0
  %v3552 = vmax.f32 %v3536, 0.0
  %v3553 = vmax.f32 %v3537, 0.0
  %v3554 = vmax.f32 %v3538, 0.0
  %v3555 = vmax.f32 %v3539, 0.0
  %v3556 = vmax.f32 %v3540, 0.0
  %v3557 = vmax.f32 %v3541, 0.0
  %v3558 = vmax.f32 %v3542, 0.0
  %v3559 = vmax.f32 %v3543, 0.0
  %v3560 = vmax.f32 %v3544, 0.0
  %v3561 = vmax.f32 %v3545, 0.0
  %v3562 = vmax.f32 %v3546, 0.0
  %v3563 = vmax.f32 %v3547, 0.0
  %v3564 = vmax.f32 %v3548, 0.0
  %v3565 = vmax.f32 %v3549, 0.0
  %v3566 = vmax.f32 %v3550, 0.0
  %v3567 = vld [vmem:[%s3 + $0x240] sm:$0xff]
  %v3568 = vld [vmem:[%s3 + $0x248] sm:$0xff]
  %v3569 = vld [vmem:[%s3 + $0x250] sm:$0xff]
  %v3570 = vld [vmem:[%s3 + $0x258] sm:$0xff]
  %v3571 = vld [vmem:[%s3 + $0x260] sm:$0xff]
  %v3572 = vld [vmem:[%s3 + $0x268] sm:$0xff]
  %v3573 = vld [vmem:[%s3 + $0x270] sm:$0xff]
  %v3574 = vld [vmem:[%s3 + $0x278] sm:$0xff]
  %v3575 = vld [vmem:[%s3 + $0x280] sm:$0xff]
  %v3576 = vld [vmem:[%s3 + $0x288] sm:$0xff]
  %v3577 = vld [vmem:[%s3 + $0x290] sm:$0xff]
  %v3578 = vld [vmem:[%s3 + $0x298] sm:$0xff]
  %v3579 = vld [vmem:[%s3 + $0x2a0] sm:$0xff]
  %v3580 = vld [vmem:[%s3 + $0x2a8] sm:$0xff]
  %v3581 = vld [vmem:[%s3 + $0x2b0] sm:$0xff]
  %v3582 = vld [vmem:[%s3 + $0x2b8] sm:$0xff]
  %v3583 = vld [vmem:[%s3 + $0x2c0] sm:$0xff]
  %v3584 = vld [vmem:[%s3 + $0x2c8] sm:$0xff]
  %v3585 = vld [vmem:[%s3 + $0x2d0] sm:$0xff]
  %v3586 = vld [vmem:[%s3 + $0x2d8] sm:$0xff]
  %v3587 = vld [vmem:[%s3 + $0x2e0] sm:$0xff]
  %v3588 = vld [vmem:[%s3 + $0x2e8] sm:$0xff]
  %v3589 = vld [vmem:[%s3 + $0x2f0] sm:$0xff]
  %v3590 = vld [vmem:[%s3 + $0x2f8] sm:$0xff]
  %v3591 = vld [vmem:[%s3 + $0x300] sm:$0xff]
  %v3592 = vld [vmem:[%s3 + $0x308] sm:$0xff]
  %v3593 = vld [vmem:[%s3 + $0x310] sm:$0xff]
  %v3594 = vld [vmem:[%s3 + $0x318] sm:$0xff]
  %v3595 = vld [vmem:[%s3 + $0x320] sm:$0xff]
  %v3596 = vld [vmem:[%s3 + $0x328] sm:$0xff]
  %v3597 = vld [vmem:[%s3 + $0x330] sm:$0xff]
  %v3598 = vld [vmem:[%s3 + $0x338] sm:$0xff]
  %v3599 = vld [vmem:[%s3 + $0x340] sm:$0xff]
  %v3600 = vld [vmem:[%s3 + $0x348] sm:$0xff]
  %v3601 = vld [vmem:[%s3 + $0x350] sm:$0xff]
  %v3602 = vld [vmem:[%s3 + $0x358] sm:$0xff]
  %v3603 = vld [vmem:[%s3 + $0x360] sm:$0xff]
  %v3604 = vld [vmem:[%s3 + $0x368] sm:$0xff]
  %v3605 = vld [vmem:[%s3 + $0x370] sm:$0xff]
  %v3606 = vld [vmem:[%s3 + $0x378] sm:$0xff]
  %v3607 = vld [vmem:[%s3 + $0x380] sm:$0xff]
  %v3608 = vld [vmem:[%s3 + $0x388] sm:$0xff]
  %v3609 = vld [vmem:[%s3 + $0x390] sm:$0xff]
  %v3610 = vld [vmem:[%s3 + $0x398] sm:$0xff]
  %v3611 = vld [vmem:[%s3 + $0x3a0] sm:$0xff]
  %v3612 = vld [vmem:[%s3 + $0x3a8] sm:$0xff]
  %v3613 = vld [vmem:[%s3 + $0x3b0] sm:$0xff]
  %v3614 = vld [vmem:[%s3 + $0x3b8] sm:$0xff]
  %v3615 = vld [vmem:[%s3 + $0x3c0] sm:$0xff]
  %v3616 = vld [vmem:[%s3 + $0x3c8] sm:$0xff]
  %v3617 = vld [vmem:[%s3 + $0x3d0] sm:$0xff]
  %v3618 = vld [vmem:[%s3 + $0x3d8] sm:$0xff]
  %v3619 = vld [vmem:[%s3 + $0x3e0] sm:$0xff]
  %v3620 = vld [vmem:[%s3 + $0x3e8] sm:$0xff]
  %v3621 = vld [vmem:[%s3 + $0x3f0] sm:$0xff]
  %v3622 = vld [vmem:[%s3 + $0x3f8] sm:$0xff]
  %v3623 = vld [vmem:[%s3 + $0x400] sm:$0xff]
  %v3624 = vld [vmem:[%s3 + $0x408] sm:$0xff]
  %v3625 = vld [vmem:[%s3 + $0x410] sm:$0xff]
  %v3626 = vld [vmem:[%s3 + $0x418] sm:$0xff]
  %v3627 = vld [vmem:[%s3 + $0x420] sm:$0xff]
  %v3628 = vld [vmem:[%s3 + $0x428] sm:$0xff]
  %v3629 = vld [vmem:[%s3 + $0x430] sm:$0xff]
  %v3630 = vld [vmem:[%s3 + $0x438] sm:$0xff]
  %v3631 = vld [vmem:[%s3 + $0x440] sm:$0xff]
  %v3632 = vld [vmem:[%s3 + $0x448] sm:$0xff]
  %v3633 = vld [vmem:[%s3 + $0x450] sm:$0xff]
  %v3634 = vld [vmem:[%s3 + $0x458] sm:$0xff]
  %v3635 = vld [vmem:[%s3 + $0x460] sm:$0xff]
  %v3636 = vld [vmem:[%s3 + $0x468] sm:$0xff]
  %v3637 = vld [vmem:[%s3 + $0x470] sm:$0xff]
  %v3638 = vld [vmem:[%s3 + $0x478] sm:$0xff]
  %v3639 = vld [vmem:[%s2 + $0x9] sm:$0x1]
  %3640 = vst.msk [vmem:[%s788 + $0x8] sm:$0xff] %vm34, %v3551
  %3641 = vst.msk [vmem:[%s788 + $0x20] sm:$0xff] %vm34, %v3552
  %3642 = vst.msk [vmem:[%s788 + $0x38] sm:$0xff] %vm34, %v3553
  %3643 = vst.msk [vmem:[%s788 + $0x50] sm:$0xff] %vm34, %v3554
  %3644 = vst.msk [vmem:[%s788 + $0x68] sm:$0xff] %vm34, %v3555
  %3645 = vst.msk [vmem:[%s788 + $0x80] sm:$0xff] %vm34, %v3556
  %3646 = vst.msk [vmem:[%s788 + $0x98] sm:$0xff] %vm34, %v3557
  %3647 = vst.msk [vmem:[%s788 + $0xb0] sm:$0xff] %vm34, %v3558
  %3648 = vst.msk [vmem:[%s788 + $0xf8] sm:$0xff] %vm34, %v3559
  %3649 = vst.msk [vmem:[%s788 + $0x110] sm:$0xff] %vm34, %v3560
  %3650 = vst.msk [vmem:[%s788 + $0x128] sm:$0xff] %vm34, %v3561
  %3651 = vst.msk [vmem:[%s788 + $0x140] sm:$0xff] %vm34, %v3562
  %3652 = vst.msk [vmem:[%s788 + $0x158] sm:$0xff] %vm34, %v3563
  %3653 = vst.msk [vmem:[%s788 + $0x170] sm:$0xff] %vm34, %v3564
  %3654 = vst.msk [vmem:[%s788 + $0x188] sm:$0xff] %vm34, %v3565
  %3655 = vst.msk [vmem:[%s788 + $0x1a0] sm:$0xff] %vm34, %v3566
  %v3656 = vld [vmem:[#allocation2 + $0x7] sm:$0xff]
  %v3657 = vld [vmem:[#allocation2 + $0x1f] sm:$0xff]
  %v3658 = vld [vmem:[#allocation2 + $0x37] sm:$0xff]
  %v3659 = vld [vmem:[#allocation2 + $0x4f] sm:$0xff]
  %v3660 = vld [vmem:[#allocation2 + $0x67] sm:$0xff]
  %v3661 = vld [vmem:[#allocation2 + $0x7f] sm:$0xff]
  %v3662 = vld [vmem:[#allocation2 + $0x97] sm:$0xff]
  %v3663 = vld [vmem:[#allocation2 + $0xaf] sm:$0xff]
  %v3664 = vld [vmem:[#allocation2 + $0xf7] sm:$0xff]
  %v3665 = vld [vmem:[#allocation2 + $0x10f] sm:$0xff]
  %v3666 = vld [vmem:[#allocation2 + $0x127] sm:$0xff]
  %v3667 = vld [vmem:[#allocation2 + $0x13f] sm:$0xff]
  %v3668 = vld [vmem:[#allocation2 + $0x157] sm:$0xff]
  %v3669 = vld [vmem:[#allocation2 + $0x16f] sm:$0xff]
  %v3670 = vld [vmem:[#allocation2 + $0x187] sm:$0xff]
  %v3671 = vld [vmem:[#allocation2 + $0x19f] sm:$0xff]
  %v3672 = vld [vmem:[#allocation2 + $0x8] sm:$0xff]
  %v3673 = vld [vmem:[#allocation2 + $0x20] sm:$0xff]
  %v3674 = vld [vmem:[#allocation2 + $0x38] sm:$0xff]
  %v3675 = vld [vmem:[#allocation2 + $0x50] sm:$0xff]
  %v3676 = vld [vmem:[#allocation2 + $0x68] sm:$0xff]
  %v3677 = vld [vmem:[#allocation2 + $0x80] sm:$0xff]
  %v3678 = vld [vmem:[#allocation2 + $0x98] sm:$0xff]
  %v3679 = vld [vmem:[#allocation2 + $0xb0] sm:$0xff]
  %v3680 = vld [vmem:[#allocation2 + $0xf8] sm:$0xff]
  %v3681 = vld [vmem:[#allocation2 + $0x110] sm:$0xff]
  %v3682 = vld [vmem:[#allocation2 + $0x128] sm:$0xff]
  %v3683 = vld [vmem:[#allocation2 + $0x140] sm:$0xff]
  %v3684 = vld [vmem:[#allocation2 + $0x158] sm:$0xff]
  %v3685 = vld [vmem:[#allocation2 + $0x170] sm:$0xff]
  %v3686 = vld [vmem:[#allocation2 + $0x188] sm:$0xff]
  %v3687 = vld [vmem:[#allocation2 + $0x1a0] sm:$0xff]
  %v3688 = vld [vmem:[#allocation2 + $0x9] sm:$0xff]
  %v3689 = vld [vmem:[#allocation2 + $0x21] sm:$0xff]
  %v3690 = vld [vmem:[#allocation2 + $0x39] sm:$0xff]
  %v3691 = vld [vmem:[#allocation2 + $0x51] sm:$0xff]
  %v3692 = vld [vmem:[#allocation2 + $0x69] sm:$0xff]
  %v3693 = vld [vmem:[#allocation2 + $0x81] sm:$0xff]
  %v3694 = vld [vmem:[#allocation2 + $0x99] sm:$0xff]
  %v3695 = vld [vmem:[#allocation2 + $0xb1] sm:$0xff]
  %v3696 = vld [vmem:[#allocation2 + $0xf9] sm:$0xff]
  %v3697 = vld [vmem:[#allocation2 + $0x111] sm:$0xff]
  %v3698 = vld [vmem:[#allocation2 + $0x129] sm:$0xff]
  %v3699 = vld [vmem:[#allocation2 + $0x141] sm:$0xff]
  %v3700 = vld [vmem:[#allocation2 + $0x159] sm:$0xff]
  %v3701 = vld [vmem:[#allocation2 + $0x171] sm:$0xff]
  %v3702 = vld [vmem:[#allocation2 + $0x189] sm:$0xff]
  %v3703 = vld [vmem:[#allocation2 + $0x1a1] sm:$0xff]
  %v3704 = vld [vmem:[%s788 + $0x7] sm:$0xff]
  %v3705 = vld [vmem:[%s788 + $0x1f] sm:$0xff]
  %v3706 = vld [vmem:[%s788 + $0x37] sm:$0xff]
  %v3707 = vld [vmem:[%s788 + $0x4f] sm:$0xff]
  %v3708 = vld [vmem:[%s788 + $0x67] sm:$0xff]
  %v3709 = vld [vmem:[%s788 + $0x7f] sm:$0xff]
  %v3710 = vld [vmem:[%s788 + $0x97] sm:$0xff]
  %v3711 = vld [vmem:[%s788 + $0xaf] sm:$0xff]
  %v3712 = vld [vmem:[%s788 + $0xf7] sm:$0xff]
  %v3713 = vld [vmem:[%s788 + $0x10f] sm:$0xff]
  %v3714 = vld [vmem:[%s788 + $0x127] sm:$0xff]
  %v3715 = vld [vmem:[%s788 + $0x13f] sm:$0xff]
  %v3716 = vld [vmem:[%s788 + $0x157] sm:$0xff]
  %v3717 = vld [vmem:[%s788 + $0x16f] sm:$0xff]
  %v3718 = vld [vmem:[%s788 + $0x187] sm:$0xff]
  %v3719 = vld [vmem:[%s788 + $0x19f] sm:$0xff]
  %v3720 = vld [vmem:[%s788 + $0x8] sm:$0xff]
  %v3721 = vld [vmem:[%s788 + $0x20] sm:$0xff]
  %v3722 = vld [vmem:[%s788 + $0x38] sm:$0xff]
  %v3723 = vld [vmem:[%s788 + $0x50] sm:$0xff]
  %v3724 = vld [vmem:[%s788 + $0x68] sm:$0xff]
  %v3725 = vld [vmem:[%s788 + $0x80] sm:$0xff]
  %v3726 = vld [vmem:[%s788 + $0x98] sm:$0xff]
  %v3727 = vld [vmem:[%s788 + $0xb0] sm:$0xff]
  %v3728 = vld [vmem:[%s788 + $0xf8] sm:$0xff]
  %v3729 = vld [vmem:[%s788 + $0x110] sm:$0xff]
  %v3730 = vld [vmem:[%s788 + $0x128] sm:$0xff]
  %v3731 = vld [vmem:[%s788 + $0x140] sm:$0xff]
  %v3732 = vld [vmem:[%s788 + $0x158] sm:$0xff]
  %v3733 = vld [vmem:[%s788 + $0x170] sm:$0xff]
  %v3734 = vld [vmem:[%s788 + $0x188] sm:$0xff]
  %v3735 = vld [vmem:[%s788 + $0x1a0] sm:$0xff]
  %v3736 = vld [vmem:[%s788 + $0x9] sm:$0xff]
  %v3737 = vld [vmem:[%s788 + $0x21] sm:$0xff]
  %v3738 = vld [vmem:[%s788 + $0x39] sm:$0xff]
  %v3739 = vld [vmem:[%s788 + $0x51] sm:$0xff]
  %v3740 = vld [vmem:[%s788 + $0x69] sm:$0xff]
  %v3741 = vld [vmem:[%s788 + $0x81] sm:$0xff]
  %v3742 = vld [vmem:[%s788 + $0x99] sm:$0xff]
  %v3743 = vld [vmem:[%s788 + $0xb1] sm:$0xff]
  %v3744 = vld [vmem:[%s788 + $0xf9] sm:$0xff]
  %v3745 = vld [vmem:[%s788 + $0x111] sm:$0xff]
  %v3746 = vld [vmem:[%s788 + $0x129] sm:$0xff]
  %v3747 = vld [vmem:[%s788 + $0x141] sm:$0xff]
  %v3748 = vld [vmem:[%s788 + $0x159] sm:$0xff]
  %v3749 = vld [vmem:[%s788 + $0x171] sm:$0xff]
  %v3750 = vld [vmem:[%s788 + $0x189] sm:$0xff]
  %v3751 = vld [vmem:[%s788 + $0x1a1] sm:$0xff]
  %v3752 = vld [vmem:[%s901 + $0x7] sm:$0xff]
  %v3753 = vld [vmem:[%s901 + $0x1f] sm:$0xff]
  %v3754 = vld [vmem:[%s901 + $0x37] sm:$0xff]
  %v3755 = vld [vmem:[%s901 + $0x4f] sm:$0xff]
  %v3756 = vld [vmem:[%s901 + $0x67] sm:$0xff]
  %v3757 = vld [vmem:[%s901 + $0x7f] sm:$0xff]
  %v3758 = vld [vmem:[%s901 + $0x97] sm:$0xff]
  %v3759 = vld [vmem:[%s901 + $0xaf] sm:$0xff]
  %v3760 = vld [vmem:[%s901 + $0xf7] sm:$0xff]
  %v3761 = vld [vmem:[%s901 + $0x10f] sm:$0xff]
  %v3762 = vld [vmem:[%s901 + $0x127] sm:$0xff]
  %v3763 = vld [vmem:[%s901 + $0x13f] sm:$0xff]
  %v3764 = vld [vmem:[%s901 + $0x157] sm:$0xff]
  %v3765 = vld [vmem:[%s901 + $0x16f] sm:$0xff]
  %v3766 = vld [vmem:[%s901 + $0x187] sm:$0xff]
  %v3767 = vld [vmem:[%s901 + $0x19f] sm:$0xff]
  %v3768 = vld [vmem:[%s901 + $0x8] sm:$0xff]
  %v3769 = vld [vmem:[%s901 + $0x20] sm:$0xff]
  %v3770 = vld [vmem:[%s901 + $0x38] sm:$0xff]
  %v3771 = vld [vmem:[%s901 + $0x50] sm:$0xff]
  %v3772 = vld [vmem:[%s901 + $0x68] sm:$0xff]
  %v3773 = vld [vmem:[%s901 + $0x80] sm:$0xff]
  %v3774 = vld [vmem:[%s901 + $0x98] sm:$0xff]
  %v3775 = vld [vmem:[%s901 + $0xb0] sm:$0xff]
  %v3776 = vld [vmem:[%s901 + $0xf8] sm:$0xff]
  %v3777 = vld [vmem:[%s901 + $0x110] sm:$0xff]
  %v3778 = vld [vmem:[%s901 + $0x128] sm:$0xff]
  %v3779 = vld [vmem:[%s901 + $0x140] sm:$0xff]
  %v3780 = vld [vmem:[%s901 + $0x158] sm:$0xff]
  %v3781 = vld [vmem:[%s901 + $0x170] sm:$0xff]
  %v3782 = vld [vmem:[%s901 + $0x188] sm:$0xff]
  %v3783 = vld [vmem:[%s901 + $0x1a0] sm:$0xff]
  %v3784 = vld [vmem:[%s901 + $0x9] sm:$0xff]
  %v3785 = vld [vmem:[%s901 + $0x21] sm:$0xff]
  %v3786 = vld [vmem:[%s901 + $0x39] sm:$0xff]
  %v3787 = vld [vmem:[%s901 + $0x51] sm:$0xff]
  %v3788 = vld [vmem:[%s901 + $0x69] sm:$0xff]
  %v3789 = vld [vmem:[%s901 + $0x81] sm:$0xff]
  %v3790 = vld [vmem:[%s901 + $0x99] sm:$0xff]
  %v3791 = vld [vmem:[%s901 + $0xb1] sm:$0xff]
  %v3792 = vld [vmem:[%s901 + $0xf9] sm:$0xff]
  %v3793 = vld [vmem:[%s901 + $0x111] sm:$0xff]
  %v3794 = vld [vmem:[%s901 + $0x129] sm:$0xff]
  %v3795 = vld [vmem:[%s901 + $0x141] sm:$0xff]
  %v3796 = vld [vmem:[%s901 + $0x159] sm:$0xff]
  %v3797 = vld [vmem:[%s901 + $0x171] sm:$0xff]
  %v3798 = vld [vmem:[%s901 + $0x189] sm:$0xff]
  %v3799 = vld [vmem:[%s901 + $0x1a1] sm:$0xff]
  %3816 = vrot.lane.b32.xlu0 %v3672, 32
  %v3817 = vpop.permute.xlu0 %3816
  %3818 = vrot.lane.b32.xlu0 %v3673, 32
  %v3819 = vpop.permute.xlu0 %3818
  %3820 = vrot.lane.b32.xlu0 %v3674, 32
  %v3821 = vpop.permute.xlu0 %3820
  %3822 = vrot.lane.b32.xlu0 %v3675, 32
  %v3823 = vpop.permute.xlu0 %3822
  %3824 = vrot.lane.b32.xlu0 %v3676, 32
  %v3825 = vpop.permute.xlu0 %3824
  %3826 = vrot.lane.b32.xlu0 %v3677, 32
  %v3827 = vpop.permute.xlu0 %3826
  %3828 = vrot.lane.b32.xlu0 %v3678, 32
  %v3829 = vpop.permute.xlu0 %3828
  %3830 = vrot.lane.b32.xlu0 %v3679, 32
  %v3831 = vpop.permute.xlu0 %3830
  %3832 = vrot.lane.b32.xlu0 %v3680, 32
  %v3833 = vpop.permute.xlu0 %3832
  %3834 = vrot.lane.b32.xlu0 %v3681, 32
  %v3835 = vpop.permute.xlu0 %3834
  %3836 = vrot.lane.b32.xlu0 %v3682, 32
  %v3837 = vpop.permute.xlu0 %3836
  %3838 = vrot.lane.b32.xlu0 %v3683, 32
  %v3839 = vpop.permute.xlu0 %3838
  %3840 = vrot.lane.b32.xlu0 %v3684, 32
  %v3841 = vpop.permute.xlu0 %3840
  %3842 = vrot.lane.b32.xlu0 %v3685, 32
  %v3843 = vpop.permute.xlu0 %3842
  %3844 = vrot.lane.b32.xlu0 %v3686, 32
  %v3845 = vpop.permute.xlu0 %3844
  %3846 = vrot.lane.b32.xlu0 %v3687, 32
  %v3847 = vpop.permute.xlu0 %3846
  %3880 = vrot.lane.b32.xlu0 %v3688, 64
  %v3881 = vpop.permute.xlu0 %3880
  %3882 = vrot.lane.b32.xlu0 %v3689, 64
  %v3883 = vpop.permute.xlu0 %3882
  %3884 = vrot.lane.b32.xlu0 %v3690, 64
  %v3885 = vpop.permute.xlu0 %3884
  %3886 = vrot.lane.b32.xlu0 %v3691, 64
  %v3887 = vpop.permute.xlu0 %3886
  %3888 = vrot.lane.b32.xlu0 %v3692, 64
  %v3889 = vpop.permute.xlu0 %3888
  %3890 = vrot.lane.b32.xlu0 %v3693, 64
  %v3891 = vpop.permute.xlu0 %3890
  %3892 = vrot.lane.b32.xlu0 %v3694, 64
  %v3893 = vpop.permute.xlu0 %3892
  %3894 = vrot.lane.b32.xlu0 %v3695, 64
  %v3895 = vpop.permute.xlu0 %3894
  %3896 = vrot.lane.b32.xlu0 %v3696, 64
  %v3897 = vpop.permute.xlu0 %3896
  %3898 = vrot.lane.b32.xlu0 %v3697, 64
  %v3899 = vpop.permute.xlu0 %3898
  %3900 = vrot.lane.b32.xlu0 %v3698, 64
  %v3901 = vpop.permute.xlu0 %3900
  %3902 = vrot.lane.b32.xlu0 %v3699, 64
  %v3903 = vpop.permute.xlu0 %3902
  %3904 = vrot.lane.b32.xlu0 %v3700, 64
  %v3905 = vpop.permute.xlu0 %3904
  %3906 = vrot.lane.b32.xlu0 %v3701, 64
  %v3907 = vpop.permute.xlu0 %3906
  %3908 = vrot.lane.b32.xlu0 %v3702, 64
  %v3909 = vpop.permute.xlu0 %3908
  %3910 = vrot.lane.b32.xlu0 %v3703, 64
  %v3911 = vpop.permute.xlu0 %3910
  %3944 = vrot.lane.b32.xlu0 %v3704, 96
  %v3945 = vpop.permute.xlu0 %3944
  %3946 = vrot.lane.b32.xlu0 %v3705, 96
  %v3947 = vpop.permute.xlu0 %3946
  %3948 = vrot.lane.b32.xlu0 %v3706, 96
  %v3949 = vpop.permute.xlu0 %3948
  %3950 = vrot.lane.b32.xlu0 %v3707, 96
  %v3951 = vpop.permute.xlu0 %3950
  %3952 = vrot.lane.b32.xlu0 %v3708, 96
  %v3953 = vpop.permute.xlu0 %3952
  %3954 = vrot.lane.b32.xlu0 %v3709, 96
  %v3955 = vpop.permute.xlu0 %3954
  %3956 = vrot.lane.b32.xlu0 %v3710, 96
  %v3957 = vpop.permute.xlu0 %3956
  %3958 = vrot.lane.b32.xlu0 %v3711, 96
  %v3959 = vpop.permute.xlu0 %3958
  %3960 = vrot.lane.b32.xlu0 %v3712, 96
  %v3961 = vpop.permute.xlu0 %3960
  %3962 = vrot.lane.b32.xlu0 %v3713, 96
  %v3963 = vpop.permute.xlu0 %3962
  %3964 = vrot.lane.b32.xlu0 %v3714, 96
  %v3965 = vpop.permute.xlu0 %3964
  %3966 = vrot.lane.b32.xlu0 %v3715, 96
  %v3967 = vpop.permute.xlu0 %3966
  %3968 = vrot.lane.b32.xlu0 %v3716, 96
  %v3969 = vpop.permute.xlu0 %3968
  %3970 = vrot.lane.b32.xlu0 %v3717, 96
  %v3971 = vpop.permute.xlu0 %3970
  %3972 = vrot.lane.b32.xlu0 %v3718, 96
  %v3973 = vpop.permute.xlu0 %3972
  %3974 = vrot.lane.b32.xlu0 %v3719, 96
  %v3975 = vpop.permute.xlu0 %3974
  %4008 = vrot.lane.b32.xlu0 %v3736, 32
  %v4009 = vpop.permute.xlu0 %4008
  %4010 = vrot.lane.b32.xlu0 %v3737, 32
  %v4011 = vpop.permute.xlu0 %4010
  %4012 = vrot.lane.b32.xlu0 %v3738, 32
  %v4013 = vpop.permute.xlu0 %4012
  %4014 = vrot.lane.b32.xlu0 %v3739, 32
  %v4015 = vpop.permute.xlu0 %4014
  %4016 = vrot.lane.b32.xlu0 %v3740, 32
  %v4017 = vpop.permute.xlu0 %4016
  %4018 = vrot.lane.b32.xlu0 %v3741, 32
  %v4019 = vpop.permute.xlu0 %4018
  %4020 = vrot.lane.b32.xlu0 %v3742, 32
  %v4021 = vpop.permute.xlu0 %4020
  %4022 = vrot.lane.b32.xlu0 %v3743, 32
  %v4023 = vpop.permute.xlu0 %4022
  %4024 = vrot.lane.b32.xlu0 %v3744, 32
  %v4025 = vpop.permute.xlu0 %4024
  %4026 = vrot.lane.b32.xlu0 %v3745, 32
  %v4027 = vpop.permute.xlu0 %4026
  %4028 = vrot.lane.b32.xlu0 %v3746, 32
  %v4029 = vpop.permute.xlu0 %4028
  %4030 = vrot.lane.b32.xlu0 %v3747, 32
  %v4031 = vpop.permute.xlu0 %4030
  %4032 = vrot.lane.b32.xlu0 %v3748, 32
  %v4033 = vpop.permute.xlu0 %4032
  %4034 = vrot.lane.b32.xlu0 %v3749, 32
  %v4035 = vpop.permute.xlu0 %4034
  %4036 = vrot.lane.b32.xlu0 %v3750, 32
  %v4037 = vpop.permute.xlu0 %4036
  %4038 = vrot.lane.b32.xlu0 %v3751, 32
  %v4039 = vpop.permute.xlu0 %4038
  %4072 = vrot.lane.b32.xlu0 %v3752, 64
  %v4073 = vpop.permute.xlu0 %4072
  %4074 = vrot.lane.b32.xlu0 %v3753, 64
  %v4075 = vpop.permute.xlu0 %4074
  %4076 = vrot.lane.b32.xlu0 %v3754, 64
  %v4077 = vpop.permute.xlu0 %4076
  %4078 = vrot.lane.b32.xlu0 %v3755, 64
  %v4079 = vpop.permute.xlu0 %4078
  %4080 = vrot.lane.b32.xlu0 %v3756, 64
  %v4081 = vpop.permute.xlu0 %4080
  %4082 = vrot.lane.b32.xlu0 %v3757, 64
  %v4083 = vpop.permute.xlu0 %4082
  %4084 = vrot.lane.b32.xlu0 %v3758, 64
  %v4085 = vpop.permute.xlu0 %4084
  %4086 = vrot.lane.b32.xlu0 %v3759, 64
  %v4087 = vpop.permute.xlu0 %4086
  %4088 = vrot.lane.b32.xlu0 %v3760, 64
  %v4089 = vpop.permute.xlu0 %4088
  %4090 = vrot.lane.b32.xlu0 %v3761, 64
  %v4091 = vpop.permute.xlu0 %4090
  %4092 = vrot.lane.b32.xlu0 %v3762, 64
  %v4093 = vpop.permute.xlu0 %4092
  %4094 = vrot.lane.b32.xlu0 %v3763, 64
  %v4095 = vpop.permute.xlu0 %4094
  %4096 = vrot.lane.b32.xlu0 %v3764, 64
  %v4097 = vpop.permute.xlu0 %4096
  %4098 = vrot.lane.b32.xlu0 %v3765, 64
  %v4099 = vpop.permute.xlu0 %4098
  %4100 = vrot.lane.b32.xlu0 %v3766, 64
  %v4101 = vpop.permute.xlu0 %4100
  %4102 = vrot.lane.b32.xlu0 %v3767, 64
  %v4103 = vpop.permute.xlu0 %4102
  %4136 = vrot.lane.b32.xlu0 %v3768, 96
  %v4137 = vpop.permute.xlu0 %4136
  %4138 = vrot.lane.b32.xlu0 %v3769, 96
  %v4139 = vpop.permute.xlu0 %4138
  %4140 = vrot.lane.b32.xlu0 %v3770, 96
  %v4141 = vpop.permute.xlu0 %4140
  %4142 = vrot.lane.b32.xlu0 %v3771, 96
  %v4143 = vpop.permute.xlu0 %4142
  %4144 = vrot.lane.b32.xlu0 %v3772, 96
  %v4145 = vpop.permute.xlu0 %4144
  %4146 = vrot.lane.b32.xlu0 %v3773, 96
  %v4147 = vpop.permute.xlu0 %4146
  %4148 = vrot.lane.b32.xlu0 %v3774, 96
  %v4149 = vpop.permute.xlu0 %4148
  %4150 = vrot.lane.b32.xlu0 %v3775, 96
  %v4151 = vpop.permute.xlu0 %4150
  %4152 = vrot.lane.b32.xlu0 %v3776, 96
  %v4153 = vpop.permute.xlu0 %4152
  %4154 = vrot.lane.b32.xlu0 %v3777, 96
  %v4155 = vpop.permute.xlu0 %4154
  %4156 = vrot.lane.b32.xlu0 %v3778, 96
  %v4157 = vpop.permute.xlu0 %4156
  %4158 = vrot.lane.b32.xlu0 %v3779, 96
  %v4159 = vpop.permute.xlu0 %4158
  %4160 = vrot.lane.b32.xlu0 %v3780, 96
  %v4161 = vpop.permute.xlu0 %4160
  %4162 = vrot.lane.b32.xlu0 %v3781, 96
  %v4163 = vpop.permute.xlu0 %4162
  %4164 = vrot.lane.b32.xlu0 %v3782, 96
  %v4165 = vpop.permute.xlu0 %4164
  %4166 = vrot.lane.b32.xlu0 %v3783, 96
  %v4167 = vpop.permute.xlu0 %4166
  %v4184 = vsel %vm34, %v3656, %v3817
  %v4185 = vsel %vm34, %v3657, %v3819
  %v4186 = vsel %vm34, %v3658, %v3821
  %v4187 = vsel %vm34, %v3659, %v3823
  %v4188 = vsel %vm34, %v3660, %v3825
  %v4189 = vsel %vm34, %v3661, %v3827
  %v4190 = vsel %vm34, %v3662, %v3829
  %v4191 = vsel %vm34, %v3663, %v3831
  %v4192 = vsel %vm34, %v3664, %v3833
  %v4193 = vsel %vm34, %v3665, %v3835
  %v4194 = vsel %vm34, %v3666, %v3837
  %v4195 = vsel %vm34, %v3667, %v3839
  %v4196 = vsel %vm34, %v3668, %v3841
  %v4197 = vsel %vm34, %v3669, %v3843
  %v4198 = vsel %vm34, %v3670, %v3845
  %v4199 = vsel %vm34, %v3671, %v3847
  %v4200 = vsel %vm1350, %v4184, %v3881
  %v4201 = vsel %vm1350, %v4185, %v3883
  %v4202 = vsel %vm1350, %v4186, %v3885
  %v4203 = vsel %vm1350, %v4187, %v3887
  %v4204 = vsel %vm1350, %v4188, %v3889
  %v4205 = vsel %vm1350, %v4189, %v3891
  %v4206 = vsel %vm1350, %v4190, %v3893
  %v4207 = vsel %vm1350, %v4191, %v3895
  %v4208 = vsel %vm1350, %v4192, %v3897
  %v4209 = vsel %vm1350, %v4193, %v3899
  %v4210 = vsel %vm1350, %v4194, %v3901
  %v4211 = vsel %vm1350, %v4195, %v3903
  %v4212 = vsel %vm1350, %v4196, %v3905
  %v4213 = vsel %vm1350, %v4197, %v3907
  %v4214 = vsel %vm1350, %v4198, %v3909
  %v4215 = vsel %vm1350, %v4199, %v3911
  %v4216 = vsel %vm1367, %v4200, %v3945
  %v4217 = vsel %vm1367, %v4201, %v3947
  %v4218 = vsel %vm1367, %v4202, %v3949
  %v4219 = vsel %vm1367, %v4203, %v3951
  %v4220 = vsel %vm1367, %v4204, %v3953
  %v4221 = vsel %vm1367, %v4205, %v3955
  %v4222 = vsel %vm1367, %v4206, %v3957
  %v4223 = vsel %vm1367, %v4207, %v3959
  %v4224 = vsel %vm1367, %v4208, %v3961
  %v4225 = vsel %vm1367, %v4209, %v3963
  %v4226 = vsel %vm1367, %v4210, %v3965
  %v4227 = vsel %vm1367, %v4211, %v3967
  %v4228 = vsel %vm1367, %v4212, %v3969
  %v4229 = vsel %vm1367, %v4213, %v3971
  %v4230 = vsel %vm1367, %v4214, %v3973
  %v4231 = vsel %vm1367, %v4215, %v3975
  %v4232 = vsel %vm34, %v3720, %v4009
  %v4233 = vsel %vm34, %v3721, %v4011
  %v4234 = vsel %vm34, %v3722, %v4013
  %v4235 = vsel %vm34, %v3723, %v4015
  %v4236 = vsel %vm34, %v3724, %v4017
  %v4237 = vsel %vm34, %v3725, %v4019
  %v4238 = vsel %vm34, %v3726, %v4021
  %v4239 = vsel %vm34, %v3727, %v4023
  %v4240 = vsel %vm34, %v3728, %v4025
  %v4241 = vsel %vm34, %v3729, %v4027
  %v4242 = vsel %vm34, %v3730, %v4029
  %v4243 = vsel %vm34, %v3731, %v4031
  %v4244 = vsel %vm34, %v3732, %v4033
  %v4245 = vsel %vm34, %v3733, %v4035
  %v4246 = vsel %vm34, %v3734, %v4037
  %v4247 = vsel %vm34, %v3735, %v4039
  %v4248 = vsel %vm1350, %v4232, %v4073
  %v4249 = vsel %vm1350, %v4233, %v4075
  %v4250 = vsel %vm1350, %v4234, %v4077
  %v4251 = vsel %vm1350, %v4235, %v4079
  %v4252 = vsel %vm1350, %v4236, %v4081
  %v4253 = vsel %vm1350, %v4237, %v4083
  %v4254 = vsel %vm1350, %v4238, %v4085
  %v4255 = vsel %vm1350, %v4239, %v4087
  %v4256 = vsel %vm1350, %v4240, %v4089
  %v4257 = vsel %vm1350, %v4241, %v4091
  %v4258 = vsel %vm1350, %v4242, %v4093
  %v4259 = vsel %vm1350, %v4243, %v4095
  %v4260 = vsel %vm1350, %v4244, %v4097
  %v4261 = vsel %vm1350, %v4245, %v4099
  %v4262 = vsel %vm1350, %v4246, %v4101
  %v4263 = vsel %vm1350, %v4247, %v4103
  %v4264 = vsel %vm1367, %v4248, %v4137
  %v4265 = vsel %vm1367, %v4249, %v4139
  %v4266 = vsel %vm1367, %v4250, %v4141
  %v4267 = vsel %vm1367, %v4251, %v4143
  %v4268 = vsel %vm1367, %v4252, %v4145
  %v4269 = vsel %vm1367, %v4253, %v4147
  %v4270 = vsel %vm1367, %v4254, %v4149
  %v4271 = vsel %vm1367, %v4255, %v4151
  %v4272 = vsel %vm1367, %v4256, %v4153
  %v4273 = vsel %vm1367, %v4257, %v4155
  %v4274 = vsel %vm1367, %v4258, %v4157
  %v4275 = vsel %vm1367, %v4259, %v4159
  %v4276 = vsel %vm1367, %v4260, %v4161
  %v4277 = vsel %vm1367, %v4261, %v4163
  %v4278 = vsel %vm1367, %v4262, %v4165
  %v4279 = vsel %vm1367, %v4263, %v4167
  %v4280 = vlaneseq
  %v4281 = vshrl.u32 %v4280, 7
  %v4282 = vsub.s32 0, %v4281
  %v4283 = vrot.slane %v3639, %v4282
  %v4285 = vsel %vm34, %v3784, 0
  %v4288 = vsel %vm34, %v3785, 0
  %v4291 = vsel %vm34, %v3786, 0
  %v4294 = vsel %vm34, %v3787, 0
  %v4297 = vsel %vm34, %v3788, 0
  %v4300 = vsel %vm34, %v3789, 0
  %v4303 = vsel %vm34, %v3790, 0
  %v4306 = vsel %vm34, %v3791, 0
  %v4309 = vsel %vm34, %v3792, 0
  %v4312 = vsel %vm34, %v3793, 0
  %v4315 = vsel %vm34, %v3794, 0
  %v4318 = vsel %vm34, %v3795, 0
  %v4321 = vsel %vm34, %v3796, 0
  %v4324 = vsel %vm34, %v3797, 0
  %v4327 = vsel %vm34, %v3798, 0
  %v4330 = vsel %vm34, %v3799, 0
  %4332 = vmatprep.subr.mxu0 0.0
  %4333 = vmatpush1.msra.mxu0 %v3567
  %4334 = vmatprep.subr.mxu0 0.0
  %4335 = vmatpush1.msra.mxu0 %v3568
  %4336 = vmatprep.subr.mxu0 0.0
  %4337 = vmatpush1.msra.mxu0 %v3569
  %4338 = vmatprep.subr.mxu0 0.0
  %4339 = vmatpush1.msra.mxu0 %v3570
  %4340 = vmatprep.subr.mxu0 0.0
  %4341 = vmatpush1.msra.mxu0 %v3571
  %4342 = vmatprep.subr.mxu0 0.0
  %4343 = vmatpush1.msra.mxu0 %v3572
  %4344 = vmatprep.subr.mxu0 0.0
  %4345 = vmatpush1.msra.mxu0 %v3573
  %4346 = vmatprep.subr.mxu0 0.0
  %4347 = vmatpush1.msra.mxu0 %v3574
  %4348 = vmatprep.subr.mxu0 0.0
  %4349 = vmatpush1.msra.mxu0 %v3575
  %4350 = vmatprep.subr.mxu0 0.0
  %4351 = vmatpush1.msra.mxu0 %v3576
  %4352 = vmatprep.subr.mxu0 0.0
  %4353 = vmatpush1.msra.mxu0 %v3577
  %4354 = vmatprep.subr.mxu0 0.0
  %4355 = vmatpush1.msra.mxu0 %v3578
  %4356 = vmatprep.subr.mxu0 0.0
  %4357 = vmatpush1.msra.mxu0 %v3579
  %4358 = vmatprep.subr.mxu0 0.0
  %4359 = vmatpush1.msra.mxu0 %v3580
  %4360 = vmatprep.subr.mxu0 0.0
  %4361 = vmatpush1.msra.mxu0 %v3581
  %4362 = vmatprep.subr.mxu0 0.0
  %4363 = vmatpush1.msra.mxu0 %v3582
  %4364 = vmatprep.subr.mxu0 0.0
  %4365 = vmatpush1.msra.mxu0 %v3583
  %4366 = vmatprep.subr.mxu0 0.0
  %4367 = vmatpush1.msra.mxu0 %v3584
  %4368 = vmatprep.subr.mxu0 0.0
  %4369 = vmatpush1.msra.mxu0 %v3585
  %4370 = vmatprep.subr.mxu0 0.0
  %4371 = vmatpush1.msra.mxu0 %v3586
  %4372 = vmatprep.subr.mxu0 0.0
  %4373 = vmatpush1.msra.mxu0 %v3587
  %4374 = vmatprep.subr.mxu0 0.0
  %4375 = vmatpush1.msra.mxu0 %v3588
  %4376 = vmatprep.subr.mxu0 0.0
  %4377 = vmatpush1.msra.mxu0 %v3589
  %4378 = vmatprep.subr.mxu0 0.0
  %4379 = vmatpush1.msra.mxu0 %v3590
  %4380 = vmatprep.subr.mxu0 0.0
  %4381 = vmatpush1.msra.mxu0 %v3591
  %4382 = vmatprep.subr.mxu0 0.0
  %4383 = vmatpush1.msra.mxu0 %v3592
  %4384 = vmatprep.subr.mxu0 0.0
  %4385 = vmatpush1.msra.mxu0 %v3593
  %4386 = vmatprep.subr.mxu0 0.0
  %4387 = vmatpush1.msra.mxu0 %v3594
  %4388 = vmatprep.subr.mxu0 0.0
  %4389 = vmatpush1.msra.mxu0 %v3595
  %4390 = vmatprep.subr.mxu0 0.0
  %4391 = vmatpush1.msra.mxu0 %v3596
  %4392 = vmatprep.subr.mxu0 0.0
  %4393 = vmatpush1.msra.mxu0 %v3597
  %4394 = vmatprep.subr.mxu0 0.0
  %4395 = vmatpush1.msra.mxu0 %v3598
  %4396 = vmatprep.mubr.f32.mxu0 %v4264
  %4397 = vmatmul.mubr.f32.gmra.mrb[0].mxu0 %v4216
  %v4398 = vpop.f32.mrb[0].mxu0
  %v4399 = vadd.f32 %v4283, %v4398
  %v4400 = vpop.f32.mrb[0].mxu0
  %4401 = vmatprep.mubr.f32.mxu0 %v4265
  %4402 = vmatmul.mubr.f32.gmra.mrb[0].mxu0 %v4217
  %v4403 = vpop.f32.mrb[0].mxu0
  %v4404 = vadd.f32 %v4283, %v4403
  %v4405 = vpop.f32.mrb[0].mxu0
  %4406 = vmatprep.mubr.f32.mxu0 %v4266
  %4407 = vmatmul.mubr.f32.gmra.mrb[0].mxu0 %v4218
  %v4408 = vpop.f32.mrb[0].mxu0
  %v4409 = vadd.f32 %v4283, %v4408
  %v4410 = vpop.f32.mrb[0].mxu0
  %4411 = vmatprep.mubr.f32.mxu0 %v4267
  %4412 = vmatmul.mubr.f32.gmra.mrb[0].mxu0 %v4219
  %v4413 = vpop.f32.mrb[0].mxu0
  %v4414 = vadd.f32 %v4283, %v4413
  %v4415 = vpop.f32.mrb[0].mxu0
  %4416 = vmatprep.mubr.f32.mxu0 %v4268
  %4417 = vmatmul.mubr.f32.gmra.mrb[0].mxu0 %v4220
  %v4418 = vpop.f32.mrb[0].mxu0
  %v4419 = vadd.f32 %v4283, %v4418
  %v4420 = vpop.f32.mrb[0].mxu0
  %4421 = vmatprep.mubr.f32.mxu0 %v4269
  %4422 = vmatmul.mubr.f32.gmra.mrb[0].mxu0 %v4221
  %v4423 = vpop.f32.mrb[0].mxu0
  %v4424 = vadd.f32 %v4283, %v4423
  %v4425 = vpop.f32.mrb[0].mxu0
  %4426 = vmatprep.mubr.f32.mxu0 %v4270
  %4427 = vmatmul.mubr.f32.gmra.mrb[0].mxu0 %v4222
  %v4428 = vpop.f32.mrb[0].mxu0
  %v4429 = vadd.f32 %v4283, %v4428
  %v4430 = vpop.f32.mrb[0].mxu0
  %4431 = vmatprep.mubr.f32.mxu0 %v4271
  %4432 = vmatmul.mubr.f32.gmra.mrb[0].mxu0 %v4223
  %v4433 = vpop.f32.mrb[0].mxu0
  %v4434 = vadd.f32 %v4283, %v4433
  %v4435 = vpop.f32.mrb[0].mxu0
  %4436 = vmatprep.mubr.f32.mxu0 %v4272
  %4437 = vmatmul.mubr.f32.gmra.mrb[0].mxu0 %v4224
  %v4438 = vpop.f32.mrb[0].mxu0
  %v4439 = vadd.f32 %v4283, %v4438
  %v4440 = vpop.f32.mrb[0].mxu0
  %4441 = vmatprep.mubr.f32.mxu0 %v4273
  %4442 = vmatmul.mubr.f32.gmra.mrb[0].mxu0 %v4225
  %v4443 = vpop.f32.mrb[0].mxu0
  %v4444 = vadd.f32 %v4283, %v4443
  %v4445 = vpop.f32.mrb[0].mxu0
  %4446 = vmatprep.mubr.f32.mxu0 %v4274
  %4447 = vmatmul.mubr.f32.gmra.mrb[0].mxu0 %v4226
  %v4448 = vpop.f32.mrb[0].mxu0
  %v4449 = vadd.f32 %v4283, %v4448
  %v4450 = vpop.f32.mrb[0].mxu0
  %4451 = vmatprep.mubr.f32.mxu0 %v4275
  %4452 = vmatmul.mubr.f32.gmra.mrb[0].mxu0 %v4227
  %v4453 = vpop.f32.mrb[0].mxu0
  %v4454 = vadd.f32 %v4283, %v4453
  %v4455 = vpop.f32.mrb[0].mxu0
  %4456 = vmatprep.mubr.f32.mxu0 %v4276
  %4457 = vmatmul.mubr.f32.gmra.mrb[0].mxu0 %v4228
  %v4458 = vpop.f32.mrb[0].mxu0
  %v4459 = vadd.f32 %v4283, %v4458
  %v4460 = vpop.f32.mrb[0].mxu0
  %4461 = vmatprep.mubr.f32.mxu0 %v4277
  %4462 = vmatmul.mubr.f32.gmra.mrb[0].mxu0 %v4229
  %v4463 = vpop.f32.mrb[0].mxu0
  %v4464 = vadd.f32 %v4283, %v4463
  %v4465 = vpop.f32.mrb[0].mxu0
  %4466 = vmatprep.mubr.f32.mxu0 %v4278
  %4467 = vmatmul.mubr.f32.gmra.mrb[0].mxu0 %v4230
  %v4468 = vpop.f32.mrb[0].mxu0
  %v4469 = vadd.f32 %v4283, %v4468
  %v4470 = vpop.f32.mrb[0].mxu0
  %4471 = vmatprep.mubr.f32.mxu0 %v4279
  %4472 = vmatmul.mubr.f32.gmra.mrb[0].mxu0 %v4231
  %v4473 = vpop.f32.mrb[0].mxu0
  %v4474 = vadd.f32 %v4283, %v4473
  %v4475 = vpop.f32.mrb[0].mxu0
  %4476 = vdwg.mxu0
  %4477 = vmatprep.subr.mxu0 0.0
  %4478 = vmatpush1.msra.mxu0 %v3599
  %4479 = vmatprep.subr.mxu0 0.0
  %4480 = vmatpush1.msra.mxu0 %v3600
  %4481 = vmatprep.subr.mxu0 0.0
  %4482 = vmatpush1.msra.mxu0 %v3601
  %4483 = vmatprep.subr.mxu0 0.0
  %4484 = vmatpush1.msra.mxu0 %v3602
  %4485 = vmatprep.subr.mxu0 0.0
  %4486 = vmatpush1.msra.mxu0 0.0
  %4487 = vmatprep.subr.mxu0 0.0
  %4488 = vmatpush1.msra.mxu0 0.0
  %4489 = vmatprep.subr.mxu0 0.0
  %4490 = vmatpush1.msra.mxu0 0.0
  %4491 = vmatprep.subr.mxu0 0.0
  %4492 = vmatpush1.msra.mxu0 0.0
  %4493 = vmatprep.subr.mxu0 0.0
  %4494 = vmatpush1.msra.mxu0 0.0
  %4495 = vmatprep.subr.mxu0 0.0
  %4496 = vmatpush1.msra.mxu0 0.0
  %4497 = vmatprep.subr.mxu0 0.0
  %4498 = vmatpush1.msra.mxu0 0.0
  %4499 = vmatprep.subr.mxu0 0.0
  %4500 = vmatpush1.msra.mxu0 0.0
  %4501 = vmatprep.subr.mxu0 0.0
  %4502 = vmatpush1.msra.mxu0 0.0
  %4503 = vmatprep.subr.mxu0 0.0
  %4504 = vmatpush1.msra.mxu0 0.0
  %4505 = vmatprep.subr.mxu0 0.0
  %4506 = vmatpush1.msra.mxu0 0.0
  %4507 = vmatprep.subr.mxu0 0.0
  %4508 = vmatpush1.msra.mxu0 0.0
  %4509 = vmatprep.subr.mxu0 0.0
  %4510 = vmatpush1.msra.mxu0 0.0
  %4511 = vmatprep.subr.mxu0 0.0
  %4512 = vmatpush1.msra.mxu0 0.0
  %4513 = vmatprep.subr.mxu0 0.0
  %4514 = vmatpush1.msra.mxu0 0.0
  %4515 = vmatprep.subr.mxu0 0.0
  %4516 = vmatpush1.msra.mxu0 0.0
  %4517 = vmatprep.subr.mxu0 0.0
  %4518 = vmatpush1.msra.mxu0 0.0
  %4519 = vmatprep.subr.mxu0 0.0
  %4520 = vmatpush1.msra.mxu0 0.0
  %4521 = vmatprep.subr.mxu0 0.0
  %4522 = vmatpush1.msra.mxu0 0.0
  %4523 = vmatprep.subr.mxu0 0.0
  %4524 = vmatpush1.msra.mxu0 0.0
  %4525 = vmatprep.subr.mxu0 0.0
  %4526 = vmatpush1.msra.mxu0 0.0
  %4527 = vmatprep.subr.mxu0 0.0
  %4528 = vmatpush1.msra.mxu0 0.0
  %4529 = vmatprep.subr.mxu0 0.0
  %4530 = vmatpush1.msra.mxu0 0.0
  %4531 = vmatprep.subr.mxu0 0.0
  %4532 = vmatpush1.msra.mxu0 0.0
  %4533 = vmatprep.subr.mxu0 0.0
  %4534 = vmatpush1.msra.mxu0 0.0
  %4535 = vmatprep.subr.mxu0 0.0
  %4536 = vmatpush1.msra.mxu0 0.0
  %4537 = vmatprep.subr.mxu0 0.0
  %4538 = vmatpush1.msra.mxu0 0.0
  %4539 = vmatprep.subr.mxu0 0.0
  %4540 = vmatpush1.msra.mxu0 0.0
  %4541 = vmatprep.mubr.f32.mxu0 0.0
  %4542 = vmatmul.mubr.f32.gmra.mrb[0].mxu0 %v4285
  %v4543 = vpop.f32.mrb[0].mxu0
  %v4544 = vadd.f32 %v4399, %v4543
  %v4545 = vpop.f32.mrb[0].mxu0
  %4546 = vmatprep.mubr.f32.mxu0 0.0
  %4547 = vmatmul.mubr.f32.gmra.mrb[0].mxu0 %v4288
  %v4548 = vpop.f32.mrb[0].mxu0
  %v4549 = vadd.f32 %v4404, %v4548
  %v4550 = vpop.f32.mrb[0].mxu0
  %4551 = vmatprep.mubr.f32.mxu0 0.0
  %4552 = vmatmul.mubr.f32.gmra.mrb[0].mxu0 %v4291
  %v4553 = vpop.f32.mrb[0].mxu0
  %v4554 = vadd.f32 %v4409, %v4553
  %v4555 = vpop.f32.mrb[0].mxu0
  %4556 = vmatprep.mubr.f32.mxu0 0.0
  %4557 = vmatmul.mubr.f32.gmra.mrb[0].mxu0 %v4294
  %v4558 = vpop.f32.mrb[0].mxu0
  %v4559 = vadd.f32 %v4414, %v4558
  %v4560 = vpop.f32.mrb[0].mxu0
  %4561 = vmatprep.mubr.f32.mxu0 0.0
  %4562 = vmatmul.mubr.f32.gmra.mrb[0].mxu0 %v4297
  %v4563 = vpop.f32.mrb[0].mxu0
  %v4564 = vadd.f32 %v4419, %v4563
  %v4565 = vpop.f32.mrb[0].mxu0
  %4566 = vmatprep.mubr.f32.mxu0 0.0
  %4567 = vmatmul.mubr.f32.gmra.mrb[0].mxu0 %v4300
  %v4568 = vpop.f32.mrb[0].mxu0
  %v4569 = vadd.f32 %v4424, %v4568
  %v4570 = vpop.f32.mrb[0].mxu0
  %4571 = vmatprep.mubr.f32.mxu0 0.0
  %4572 = vmatmul.mubr.f32.gmra.mrb[0].mxu0 %v4303
  %v4573 = vpop.f32.mrb[0].mxu0
  %v4574 = vadd.f32 %v4429, %v4573
  %v4575 = vpop.f32.mrb[0].mxu0
  %4576 = vmatprep.mubr.f32.mxu0 0.0
  %4577 = vmatmul.mubr.f32.gmra.mrb[0].mxu0 %v4306
  %v4578 = vpop.f32.mrb[0].mxu0
  %v4579 = vadd.f32 %v4434, %v4578
  %v4580 = vpop.f32.mrb[0].mxu0
  %4581 = vmatprep.mubr.f32.mxu0 0.0
  %4582 = vmatmul.mubr.f32.gmra.mrb[0].mxu0 %v4309
  %v4583 = vpop.f32.mrb[0].mxu0
  %v4584 = vadd.f32 %v4439, %v4583
  %v4585 = vpop.f32.mrb[0].mxu0
  %4586 = vmatprep.mubr.f32.mxu0 0.0
  %4587 = vmatmul.mubr.f32.gmra.mrb[0].mxu0 %v4312
  %v4588 = vpop.f32.mrb[0].mxu0
  %v4589 = vadd.f32 %v4444, %v4588
  %v4590 = vpop.f32.mrb[0].mxu0
  %4591 = vmatprep.mubr.f32.mxu0 0.0
  %4592 = vmatmul.mubr.f32.gmra.mrb[0].mxu0 %v4315
  %v4593 = vpop.f32.mrb[0].mxu0
  %v4594 = vadd.f32 %v4449, %v4593
  %v4595 = vpop.f32.mrb[0].mxu0
  %4596 = vmatprep.mubr.f32.mxu0 0.0
  %4597 = vmatmul.mubr.f32.gmra.mrb[0].mxu0 %v4318
  %v4598 = vpop.f32.mrb[0].mxu0
  %v4599 = vadd.f32 %v4454, %v4598
  %v4600 = vpop.f32.mrb[0].mxu0
  %4601 = vmatprep.mubr.f32.mxu0 0.0
  %4602 = vmatmul.mubr.f32.gmra.mrb[0].mxu0 %v4321
  %v4603 = vpop.f32.mrb[0].mxu0
  %v4604 = vadd.f32 %v4459, %v4603
  %v4605 = vpop.f32.mrb[0].mxu0
  %4606 = vmatprep.mubr.f32.mxu0 0.0
  %4607 = vmatmul.mubr.f32.gmra.mrb[0].mxu0 %v4324
  %v4608 = vpop.f32.mrb[0].mxu0
  %v4609 = vadd.f32 %v4464, %v4608
  %v4610 = vpop.f32.mrb[0].mxu0
  %4611 = vmatprep.mubr.f32.mxu0 0.0
  %4612 = vmatmul.mubr.f32.gmra.mrb[0].mxu0 %v4327
  %v4613 = vpop.f32.mrb[0].mxu0
  %v4614 = vadd.f32 %v4469, %v4613
  %v4615 = vpop.f32.mrb[0].mxu0
  %4616 = vmatprep.mubr.f32.mxu0 0.0
  %4617 = vmatmul.mubr.f32.gmra.mrb[0].mxu0 %v4330
  %v4618 = vpop.f32.mrb[0].mxu0
  %v4619 = vadd.f32 %v4474, %v4618
  %v4620 = vpop.f32.mrb[0].mxu0
  %4621 = vdwg.mxu0
  %v4622 = vld [vmem:[%s2 + $0xa] sm:$0x1]
  %v4623 = vld [vmem:[%s2 + $0xb] sm:$0x1]
  %v4624 = vsel %vm34, %v4544, 0.0
  %v4625 = vsel %vm34, %v4549, 0.0
  %v4626 = vadd.f32 %v4624, %v4625
  %v4627 = vsel %vm34, %v4554, 0.0
  %v4628 = vadd.f32 %v4626, %v4627
  %v4629 = vsel %vm34, %v4559, 0.0
  %v4630 = vadd.f32 %v4628, %v4629
  %v4631 = vsel %vm34, %v4564, 0.0
  %v4632 = vadd.f32 %v4630, %v4631
  %v4633 = vsel %vm34, %v4569, 0.0
  %v4634 = vadd.f32 %v4632, %v4633
  %v4635 = vsel %vm34, %v4574, 0.0
  %v4636 = vadd.f32 %v4634, %v4635
  %v4637 = vsel %vm34, %v4579, 0.0
  %v4638 = vadd.f32 %v4636, %v4637
  %v4639 = vrot.slane %v4638, 4
  %v4640 = vadd.f32 %v4638, %v4639
  %v4641 = vrot.slane %v4640, 2
  %v4642 = vadd.f32 %v4640, %v4641
  %v4643 = vrot.slane %v4642, 1
  %v4644 = vadd.f32 %v4642, %v4643
  %v4645 = vsel %vm34, %v4584, 0.0
  %v4646 = vsel %vm34, %v4589, 0.0
  %v4647 = vadd.f32 %v4645, %v4646
  %v4648 = vsel %vm34, %v4594, 0.0
  %v4649 = vadd.f32 %v4647, %v4648
  %v4650 = vsel %vm34, %v4599, 0.0
  %v4651 = vadd.f32 %v4649, %v4650
  %v4652 = vsel %vm34, %v4604, 0.0
  %v4653 = vadd.f32 %v4651, %v4652
  %v4654 = vsel %vm34, %v4609, 0.0
  %v4655 = vadd.f32 %v4653, %v4654
  %v4656 = vsel %vm34, %v4614, 0.0
  %v4657 = vadd.f32 %v4655, %v4656
  %v4658 = vsel %vm34, %v4619, 0.0
  %v4659 = vadd.f32 %v4657, %v4658
  %v4660 = vrot.slane %v4659, 4
  %v4661 = vadd.f32 %v4659, %v4660
  %v4662 = vrot.slane %v4661, 2
  %v4663 = vadd.f32 %v4661, %v4662
  %v4664 = vrot.slane %v4663, 1
  %v4665 = vadd.f32 %v4663, %v4664
  %v4666 = vmul.f32 %v4544, %v4544
  %v4667 = vmul.f32 %v4549, %v4549
  %v4668 = vmul.f32 %v4554, %v4554
  %v4669 = vmul.f32 %v4559, %v4559
  %v4670 = vmul.f32 %v4564, %v4564
  %v4671 = vmul.f32 %v4569, %v4569
  %v4672 = vmul.f32 %v4574, %v4574
  %v4673 = vmul.f32 %v4579, %v4579
  %v4674 = vmul.f32 %v4584, %v4584
  %v4675 = vmul.f32 %v4589, %v4589
  %v4676 = vmul.f32 %v4594, %v4594
  %v4677 = vmul.f32 %v4599, %v4599
  %v4678 = vmul.f32 %v4604, %v4604
  %v4679 = vmul.f32 %v4609, %v4609
  %v4680 = vmul.f32 %v4614, %v4614
  %v4681 = vmul.f32 %v4619, %v4619
  %v4682 = vsel %vm34, %v4666, 0.0
  %v4683 = vsel %vm34, %v4667, 0.0
  %v4684 = vadd.f32 %v4682, %v4683
  %v4685 = vsel %vm34, %v4668, 0.0
  %v4686 = vadd.f32 %v4684, %v4685
  %v4687 = vsel %vm34, %v4669, 0.0
  %v4688 = vadd.f32 %v4686, %v4687
  %v4689 = vsel %vm34, %v4670, 0.0
  %v4690 = vadd.f32 %v4688, %v4689
  %v4691 = vsel %vm34, %v4671, 0.0
  %v4692 = vadd.f32 %v4690, %v4691
  %v4693 = vsel %vm34, %v4672, 0.0
  %v4694 = vadd.f32 %v4692, %v4693
  %v4695 = vsel %vm34, %v4673, 0.0
  %v4696 = vadd.f32 %v4694, %v4695
  %v4697 = vrot.slane %v4696, 4
  %v4698 = vadd.f32 %v4696, %v4697
  %v4699 = vrot.slane %v4698, 2
  %v4700 = vadd.f32 %v4698, %v4699
  %v4701 = vrot.slane %v4700, 1
  %v4702 = vadd.f32 %v4700, %v4701
  %v4703 = vsel %vm34, %v4674, 0.0
  %v4704 = vsel %vm34, %v4675, 0.0
  %v4705 = vadd.f32 %v4703, %v4704
  %v4706 = vsel %vm34, %v4676, 0.0
  %v4707 = vadd.f32 %v4705, %v4706
  %v4708 = vsel %vm34, %v4677, 0.0
  %v4709 = vadd.f32 %v4707, %v4708
  %v4710 = vsel %vm34, %v4678, 0.0
  %v4711 = vadd.f32 %v4709, %v4710
  %v4712 = vsel %vm34, %v4679, 0.0
  %v4713 = vadd.f32 %v4711, %v4712
  %v4714 = vsel %vm34, %v4680, 0.0
  %v4715 = vadd.f32 %v4713, %v4714
  %v4716 = vsel %vm34, %v4681, 0.0
  %v4717 = vadd.f32 %v4715, %v4716
  %v4718 = vrot.slane %v4717, 4
  %v4719 = vadd.f32 %v4717, %v4718
  %v4720 = vrot.slane %v4719, 2
  %v4721 = vadd.f32 %v4719, %v4720
  %v4722 = vrot.slane %v4721, 1
  %v4723 = vadd.f32 %v4721, %v4722
  %v4726 = vsel %vm421, %v4665, %v4644
  %v4727 = vsel %vm34, %v4726, 0
  %4729 = vmatprep.subr.mxu0 0.0
  %4730 = vmatpush1.msra.mxu0 %v29
  %4731 = vmatprep.subr.mxu0 0.0
  %4732 = vmatpush1.msra.mxu0 %v30
  %4733 = vmatprep.subr.mxu0 0.0
  %4734 = vmatpush1.msra.mxu0 %v31
  %4735 = vmatprep.subr.mxu0 0.0
  %4736 = vmatpush1.msra.mxu0 %v32
  %4737 = vmatprep.subr.mxu0 0.0
  %4738 = vmatpush1.msra.mxu0 0.0
  %4739 = vmatprep.subr.mxu0 0.0
  %4740 = vmatpush1.msra.mxu0 0.0
  %4741 = vmatprep.subr.mxu0 0.0
  %4742 = vmatpush1.msra.mxu0 0.0
  %4743 = vmatprep.subr.mxu0 0.0
  %4744 = vmatpush1.msra.mxu0 0.0
  %4745 = vmatprep.subr.mxu0 0.0
  %4746 = vmatpush1.msra.mxu0 0.0
  %4747 = vmatprep.subr.mxu0 0.0
  %4748 = vmatpush1.msra.mxu0 0.0
  %4749 = vmatprep.subr.mxu0 0.0
  %4750 = vmatpush1.msra.mxu0 0.0
  %4751 = vmatprep.subr.mxu0 0.0
  %4752 = vmatpush1.msra.mxu0 0.0
  %4753 = vmatprep.subr.mxu0 0.0
  %4754 = vmatpush1.msra.mxu0 0.0
  %4755 = vmatprep.subr.mxu0 0.0
  %4756 = vmatpush1.msra.mxu0 0.0
  %4757 = vmatprep.subr.mxu0 0.0
  %4758 = vmatpush1.msra.mxu0 0.0
  %4759 = vmatprep.subr.mxu0 0.0
  %4760 = vmatpush1.msra.mxu0 0.0
  %4761 = vmatprep.subr.mxu0 0.0
  %4762 = vmatpush1.msra.mxu0 0.0
  %4763 = vmatprep.subr.mxu0 0.0
  %4764 = vmatpush1.msra.mxu0 0.0
  %4765 = vmatprep.subr.mxu0 0.0
  %4766 = vmatpush1.msra.mxu0 0.0
  %4767 = vmatprep.subr.mxu0 0.0
  %4768 = vmatpush1.msra.mxu0 0.0
  %4769 = vmatprep.subr.mxu0 0.0
  %4770 = vmatpush1.msra.mxu0 0.0
  %4771 = vmatprep.subr.mxu0 0.0
  %4772 = vmatpush1.msra.mxu0 0.0
  %4773 = vmatprep.subr.mxu0 0.0
  %4774 = vmatpush1.msra.mxu0 0.0
  %4775 = vmatprep.subr.mxu0 0.0
  %4776 = vmatpush1.msra.mxu0 0.0
  %4777 = vmatprep.subr.mxu0 0.0
  %4778 = vmatpush1.msra.mxu0 0.0
  %4779 = vmatprep.subr.mxu0 0.0
  %4780 = vmatpush1.msra.mxu0 0.0
  %4781 = vmatprep.subr.mxu0 0.0
  %4782 = vmatpush1.msra.mxu0 0.0
  %4783 = vmatprep.subr.mxu0 0.0
  %4784 = vmatpush1.msra.mxu0 0.0
  %4785 = vmatprep.subr.mxu0 0.0
  %4786 = vmatpush1.msra.mxu0 0.0
  %4787 = vmatprep.subr.mxu0 0.0
  %4788 = vmatpush1.msra.mxu0 0.0
  %4789 = vmatprep.subr.mxu0 0.0
  %4790 = vmatpush1.msra.mxu0 0.0
  %4791 = vmatprep.subr.mxu0 0.0
  %4792 = vmatpush1.msra.mxu0 0.0
  %4793 = vmatprep.mubr.f32.mxu0 0.0
  %4794 = vmatmul.mubr.f32.gmra.mrb[0].mxu0 %v4727
  %v4795 = vpop.f32.mrb[0].mxu0
  %v4796 = vadd.f32 0.0, %v4795
  %v4797 = vpop.f32.mrb[0].mxu0
  %4798 = vdwg.mxu0
  %v4801 = vsel %vm421, %v4723, %v4702
  %v4802 = vsel %vm34, %v4801, 0
  %4804 = vmatprep.subr.mxu0 0.0
  %4805 = vmatpush1.msra.mxu0 %v29
  %4806 = vmatprep.subr.mxu0 0.0
  %4807 = vmatpush1.msra.mxu0 %v30
  %4808 = vmatprep.subr.mxu0 0.0
  %4809 = vmatpush1.msra.mxu0 %v31
  %4810 = vmatprep.subr.mxu0 0.0
  %4811 = vmatpush1.msra.mxu0 %v32
  %4812 = vmatprep.subr.mxu0 0.0
  %4813 = vmatpush1.msra.mxu0 0.0
  %4814 = vmatprep.subr.mxu0 0.0
  %4815 = vmatpush1.msra.mxu0 0.0
  %4816 = vmatprep.subr.mxu0 0.0
  %4817 = vmatpush1.msra.mxu0 0.0
  %4818 = vmatprep.subr.mxu0 0.0
  %4819 = vmatpush1.msra.mxu0 0.0
  %4820 = vmatprep.subr.mxu0 0.0
  %4821 = vmatpush1.msra.mxu0 0.0
  %4822 = vmatprep.subr.mxu0 0.0
  %4823 = vmatpush1.msra.mxu0 0.0
  %4824 = vmatprep.subr.mxu0 0.0
  %4825 = vmatpush1.msra.mxu0 0.0
  %4826 = vmatprep.subr.mxu0 0.0
  %4827 = vmatpush1.msra.mxu0 0.0
  %4828 = vmatprep.subr.mxu0 0.0
  %4829 = vmatpush1.msra.mxu0 0.0
  %4830 = vmatprep.subr.mxu0 0.0
  %4831 = vmatpush1.msra.mxu0 0.0
  %4832 = vmatprep.subr.mxu0 0.0
  %4833 = vmatpush1.msra.mxu0 0.0
  %4834 = vmatprep.subr.mxu0 0.0
  %4835 = vmatpush1.msra.mxu0 0.0
  %4836 = vmatprep.subr.mxu0 0.0
  %4837 = vmatpush1.msra.mxu0 0.0
  %4838 = vmatprep.subr.mxu0 0.0
  %4839 = vmatpush1.msra.mxu0 0.0
  %4840 = vmatprep.subr.mxu0 0.0
  %4841 = vmatpush1.msra.mxu0 0.0
  %4842 = vmatprep.subr.mxu0 0.0
  %4843 = vmatpush1.msra.mxu0 0.0
  %4844 = vmatprep.subr.mxu0 0.0
  %4845 = vmatpush1.msra.mxu0 0.0
  %4846 = vmatprep.subr.mxu0 0.0
  %4847 = vmatpush1.msra.mxu0 0.0
  %4848 = vmatprep.subr.mxu0 0.0
  %4849 = vmatpush1.msra.mxu0 0.0
  %4850 = vmatprep.subr.mxu0 0.0
  %4851 = vmatpush1.msra.mxu0 0.0
  %4852 = vmatprep.subr.mxu0 0.0
  %4853 = vmatpush1.msra.mxu0 0.0
  %4854 = vmatprep.subr.mxu0 0.0
  %4855 = vmatpush1.msra.mxu0 0.0
  %4856 = vmatprep.subr.mxu0 0.0
  %4857 = vmatpush1.msra.mxu0 0.0
  %4858 = vmatprep.subr.mxu0 0.0
  %4859 = vmatpush1.msra.mxu0 0.0
  %4860 = vmatprep.subr.mxu0 0.0
  %4861 = vmatpush1.msra.mxu0 0.0
  %4862 = vmatprep.subr.mxu0 0.0
  %4863 = vmatpush1.msra.mxu0 0.0
  %4864 = vmatprep.subr.mxu0 0.0
  %4865 = vmatpush1.msra.mxu0 0.0
  %4866 = vmatprep.subr.mxu0 0.0
  %4867 = vmatpush1.msra.mxu0 0.0
  %4868 = vmatprep.mubr.f32.mxu0 0.0
  %4869 = vmatmul.mubr.f32.gmra.mrb[0].mxu0 %v4802
  %v4870 = vpop.f32.mrb[0].mxu0
  %v4871 = vadd.f32 0.0, %v4870
  %v4872 = vpop.f32.mrb[0].mxu0
  %4873 = vdwg.mxu0
  %v4874 = vmul.f32 %v4796, %v4796
  %v4875 = vsub.f32 %v4871, %v4874
  %v4876 = vmax.f32 %v4875, 0.0
  %v4877 = vadd.f32 %v4876, 1e-05
  %v4878 = vrsqrt.pop %v4877
  %v4881 = vunpack.c.l.s4 1966171168
  %v4882 = vunpack.c.0.s8 %v4881
  %v4883 = vlaneseq
  %v4884 = vshrl.u32 %v4883, 7
  %v4885 = vsub.s32 %v4882, %v4884
  %v4886 = vrot.slane %v4796, %v4885
  %v4887 = vcombine.high %v4886, %v4886
  %v4889 = vunpack.c.l.s4 1966171168
  %v4890 = vunpack.c.0.s8 %v4889
  %v4891 = vlaneseq
  %v4892 = vshrl.u32 %v4891, 7
  %v4893 = vsub.s32 %v4890, %v4892
  %v4894 = vrot.slane %v4886, %v4893
  %v4896 = vunpack.c.l.s4 1966171168
  %v4897 = vunpack.c.0.s8 %v4896
  %v4898 = vlaneseq
  %v4899 = vshrl.u32 %v4898, 7
  %v4900 = vsub.s32 %v4897, %v4899
  %v4901 = vrot.slane %v4887, %v4900
  %v4902 = vlaneseq
  %v4903 = vshrl.u32 %v4902, 7
  %v4904 = vsub.s32 0, %v4903
  %v4905 = vrot.slane %v4894, %v4904
  %v4906 = vlaneseq
  %v4907 = vshrl.u32 %v4906, 7
  %v4908 = vsub.s32 0, %v4907
  %v4909 = vrot.slane %v4901, %v4908
  %v4912 = vsub.f32 %v4544, %v4905
  %v4913 = vsub.f32 %v4549, %v4905
  %v4914 = vsub.f32 %v4554, %v4905
  %v4915 = vsub.f32 %v4559, %v4905
  %v4916 = vsub.f32 %v4564, %v4905
  %v4917 = vsub.f32 %v4569, %v4905
  %v4918 = vsub.f32 %v4574, %v4905
  %v4919 = vsub.f32 %v4579, %v4905
  %v4920 = vsub.f32 %v4584, %v4909
  %v4921 = vsub.f32 %v4589, %v4909
  %v4922 = vsub.f32 %v4594, %v4909
  %v4923 = vsub.f32 %v4599, %v4909
  %v4924 = vsub.f32 %v4604, %v4909
  %v4925 = vsub.f32 %v4609, %v4909
  %v4926 = vsub.f32 %v4614, %v4909
  %v4927 = vsub.f32 %v4619, %v4909
  %v4930 = vunpack.c.l.s4 1966171168
  %v4931 = vunpack.c.0.s8 %v4930
  %v4932 = vlaneseq
  %v4933 = vshrl.u32 %v4932, 7
  %v4934 = vsub.s32 %v4931, %v4933
  %v4935 = vrot.slane %v4878, %v4934
  %v4936 = vcombine.high %v4935, %v4935
  %v4938 = vunpack.c.l.s4 1966171168
  %v4939 = vunpack.c.0.s8 %v4938
  %v4940 = vlaneseq
  %v4941 = vshrl.u32 %v4940, 7
  %v4942 = vsub.s32 %v4939, %v4941
  %v4943 = vrot.slane %v4935, %v4942
  %v4945 = vunpack.c.l.s4 1966171168
  %v4946 = vunpack.c.0.s8 %v4945
  %v4947 = vlaneseq
  %v4948 = vshrl.u32 %v4947, 7
  %v4949 = vsub.s32 %v4946, %v4948
  %v4950 = vrot.slane %v4936, %v4949
  %v4953 = vmul.f32 %v4943, %v4622
  %v4954 = vmul.f32 %v4950, %v4622
  %v4957 = vlaneseq
  %v4958 = vshrl.u32 %v4957, 7
  %v4959 = vsub.s32 0, %v4958
  %v4960 = vrot.slane %v4953, %v4959
  %v4961 = vlaneseq
  %v4962 = vshrl.u32 %v4961, 7
  %v4963 = vsub.s32 0, %v4962
  %v4964 = vrot.slane %v4954, %v4963
  %v4967 = vmul.f32 %v4912, %v4960
  %v4968 = vmul.f32 %v4913, %v4960
  %v4969 = vmul.f32 %v4914, %v4960
  %v4970 = vmul.f32 %v4915, %v4960
  %v4971 = vmul.f32 %v4916, %v4960
  %v4972 = vmul.f32 %v4917, %v4960
  %v4973 = vmul.f32 %v4918, %v4960
  %v4974 = vmul.f32 %v4919, %v4960
  %v4975 = vmul.f32 %v4920, %v4964
  %v4976 = vmul.f32 %v4921, %v4964
  %v4977 = vmul.f32 %v4922, %v4964
  %v4978 = vmul.f32 %v4923, %v4964
  %v4979 = vmul.f32 %v4924, %v4964
  %v4980 = vmul.f32 %v4925, %v4964
  %v4981 = vmul.f32 %v4926, %v4964
  %v4982 = vmul.f32 %v4927, %v4964
  %v4983 = vlaneseq
  %v4984 = vshrl.u32 %v4983, 7
  %v4985 = vsub.s32 0, %v4984
  %v4986 = vrot.slane %v4623, %v4985
  %v4987 = vadd.f32 %v4967, %v4986
  %v4988 = vadd.f32 %v4968, %v4986
  %v4989 = vadd.f32 %v4969, %v4986
  %v4990 = vadd.f32 %v4970, %v4986
  %v4991 = vadd.f32 %v4971, %v4986
  %v4992 = vadd.f32 %v4972, %v4986
  %v4993 = vadd.f32 %v4973, %v4986
  %v4994 = vadd.f32 %v4974, %v4986
  %v4995 = vadd.f32 %v4975, %v4986
  %v4996 = vadd.f32 %v4976, %v4986
  %v4997 = vadd.f32 %v4977, %v4986
  %v4998 = vadd.f32 %v4978, %v4986
  %v4999 = vadd.f32 %v4979, %v4986
  %v5000 = vadd.f32 %v4980, %v4986
  %v5001 = vadd.f32 %v4981, %v4986
  %v5002 = vadd.f32 %v4982, %v4986
  %v5003 = vmax.f32 %v4987, 0.0
  %v5004 = vmax.f32 %v4988, 0.0
  %v5005 = vmax.f32 %v4989, 0.0
  %v5006 = vmax.f32 %v4990, 0.0
  %v5007 = vmax.f32 %v4991, 0.0
  %v5008 = vmax.f32 %v4992, 0.0
  %v5009 = vmax.f32 %v4993, 0.0
  %v5010 = vmax.f32 %v4994, 0.0
  %v5011 = vmax.f32 %v4995, 0.0
  %v5012 = vmax.f32 %v4996, 0.0
  %v5013 = vmax.f32 %v4997, 0.0
  %v5014 = vmax.f32 %v4998, 0.0
  %v5015 = vmax.f32 %v4999, 0.0
  %v5016 = vmax.f32 %v5000, 0.0
  %v5017 = vmax.f32 %v5001, 0.0
  %v5018 = vmax.f32 %v5002, 0.0
  %v5019 = vld [vmem:[%s2 + $0xc] sm:$0x1]
  %5020 = vst.msk [vmem:[%s788 + $0x8] sm:$0xff] %vm34, %v5003
  %5021 = vst.msk [vmem:[%s788 + $0x20] sm:$0xff] %vm34, %v5004
  %5022 = vst.msk [vmem:[%s788 + $0x38] sm:$0xff] %vm34, %v5005
  %5023 = vst.msk [vmem:[%s788 + $0x50] sm:$0xff] %vm34, %v5006
  %5024 = vst.msk [vmem:[%s788 + $0x68] sm:$0xff] %vm34, %v5007
  %5025 = vst.msk [vmem:[%s788 + $0x80] sm:$0xff] %vm34, %v5008
  %5026 = vst.msk [vmem:[%s788 + $0x98] sm:$0xff] %vm34, %v5009
  %5027 = vst.msk [vmem:[%s788 + $0xb0] sm:$0xff] %vm34, %v5010
  %5028 = vst.msk [vmem:[%s788 + $0xf8] sm:$0xff] %vm34, %v5011
  %5029 = vst.msk [vmem:[%s788 + $0x110] sm:$0xff] %vm34, %v5012
  %5030 = vst.msk [vmem:[%s788 + $0x128] sm:$0xff] %vm34, %v5013
  %5031 = vst.msk [vmem:[%s788 + $0x140] sm:$0xff] %vm34, %v5014
  %5032 = vst.msk [vmem:[%s788 + $0x158] sm:$0xff] %vm34, %v5015
  %5033 = vst.msk [vmem:[%s788 + $0x170] sm:$0xff] %vm34, %v5016
  %5034 = vst.msk [vmem:[%s788 + $0x188] sm:$0xff] %vm34, %v5017
  %5035 = vst.msk [vmem:[%s788 + $0x1a0] sm:$0xff] %vm34, %v5018
  %v5036 = vld [vmem:[#allocation2 + $0x7] sm:$0xff]
  %v5037 = vld [vmem:[#allocation2 + $0x1f] sm:$0xff]
  %v5038 = vld [vmem:[#allocation2 + $0x37] sm:$0xff]
  %v5039 = vld [vmem:[#allocation2 + $0x4f] sm:$0xff]
  %v5040 = vld [vmem:[#allocation2 + $0x67] sm:$0xff]
  %v5041 = vld [vmem:[#allocation2 + $0x7f] sm:$0xff]
  %v5042 = vld [vmem:[#allocation2 + $0x97] sm:$0xff]
  %v5043 = vld [vmem:[#allocation2 + $0xaf] sm:$0xff]
  %v5044 = vld [vmem:[#allocation2 + $0xf7] sm:$0xff]
  %v5045 = vld [vmem:[#allocation2 + $0x10f] sm:$0xff]
  %v5046 = vld [vmem:[#allocation2 + $0x127] sm:$0xff]
  %v5047 = vld [vmem:[#allocation2 + $0x13f] sm:$0xff]
  %v5048 = vld [vmem:[#allocation2 + $0x157] sm:$0xff]
  %v5049 = vld [vmem:[#allocation2 + $0x16f] sm:$0xff]
  %v5050 = vld [vmem:[#allocation2 + $0x187] sm:$0xff]
  %v5051 = vld [vmem:[#allocation2 + $0x19f] sm:$0xff]
  %v5052 = vld [vmem:[#allocation2 + $0x8] sm:$0xff]
  %v5053 = vld [vmem:[#allocation2 + $0x20] sm:$0xff]
  %v5054 = vld [vmem:[#allocation2 + $0x38] sm:$0xff]
  %v5055 = vld [vmem:[#allocation2 + $0x50] sm:$0xff]
  %v5056 = vld [vmem:[#allocation2 + $0x68] sm:$0xff]
  %v5057 = vld [vmem:[#allocation2 + $0x80] sm:$0xff]
  %v5058 = vld [vmem:[#allocation2 + $0x98] sm:$0xff]
  %v5059 = vld [vmem:[#allocation2 + $0xb0] sm:$0xff]
  %v5060 = vld [vmem:[#allocation2 + $0xf8] sm:$0xff]
  %v5061 = vld [vmem:[#allocation2 + $0x110] sm:$0xff]
  %v5062 = vld [vmem:[#allocation2 + $0x128] sm:$0xff]
  %v5063 = vld [vmem:[#allocation2 + $0x140] sm:$0xff]
  %v5064 = vld [vmem:[#allocation2 + $0x158] sm:$0xff]
  %v5065 = vld [vmem:[#allocation2 + $0x170] sm:$0xff]
  %v5066 = vld [vmem:[#allocation2 + $0x188] sm:$0xff]
  %v5067 = vld [vmem:[#allocation2 + $0x1a0] sm:$0xff]
  %v5068 = vld [vmem:[#allocation2 + $0x9] sm:$0xff]
  %v5069 = vld [vmem:[#allocation2 + $0x21] sm:$0xff]
  %v5070 = vld [vmem:[#allocation2 + $0x39] sm:$0xff]
  %v5071 = vld [vmem:[#allocation2 + $0x51] sm:$0xff]
  %v5072 = vld [vmem:[#allocation2 + $0x69] sm:$0xff]
  %v5073 = vld [vmem:[#allocation2 + $0x81] sm:$0xff]
  %v5074 = vld [vmem:[#allocation2 + $0x99] sm:$0xff]
  %v5075 = vld [vmem:[#allocation2 + $0xb1] sm:$0xff]
  %v5076 = vld [vmem:[#allocation2 + $0xf9] sm:$0xff]
  %v5077 = vld [vmem:[#allocation2 + $0x111] sm:$0xff]
  %v5078 = vld [vmem:[#allocation2 + $0x129] sm:$0xff]
  %v5079 = vld [vmem:[#allocation2 + $0x141] sm:$0xff]
  %v5080 = vld [vmem:[#allocation2 + $0x159] sm:$0xff]
  %v5081 = vld [vmem:[#allocation2 + $0x171] sm:$0xff]
  %v5082 = vld [vmem:[#allocation2 + $0x189] sm:$0xff]
  %v5083 = vld [vmem:[#allocation2 + $0x1a1] sm:$0xff]
  %v5084 = vld [vmem:[%s788 + $0x7] sm:$0xff]
  %v5085 = vld [vmem:[%s788 + $0x1f] sm:$0xff]
  %v5086 = vld [vmem:[%s788 + $0x37] sm:$0xff]
  %v5087 = vld [vmem:[%s788 + $0x4f] sm:$0xff]
  %v5088 = vld [vmem:[%s788 + $0x67] sm:$0xff]
  %v5089 = vld [vmem:[%s788 + $0x7f] sm:$0xff]
  %v5090 = vld [vmem:[%s788 + $0x97] sm:$0xff]
  %v5091 = vld [vmem:[%s788 + $0xaf] sm:$0xff]
  %v5092 = vld [vmem:[%s788 + $0xf7] sm:$0xff]
  %v5093 = vld [vmem:[%s788 + $0x10f] sm:$0xff]
  %v5094 = vld [vmem:[%s788 + $0x127] sm:$0xff]
  %v5095 = vld [vmem:[%s788 + $0x13f] sm:$0xff]
  %v5096 = vld [vmem:[%s788 + $0x157] sm:$0xff]
  %v5097 = vld [vmem:[%s788 + $0x16f] sm:$0xff]
  %v5098 = vld [vmem:[%s788 + $0x187] sm:$0xff]
  %v5099 = vld [vmem:[%s788 + $0x19f] sm:$0xff]
  %v5100 = vld [vmem:[%s788 + $0x8] sm:$0xff]
  %v5101 = vld [vmem:[%s788 + $0x20] sm:$0xff]
  %v5102 = vld [vmem:[%s788 + $0x38] sm:$0xff]
  %v5103 = vld [vmem:[%s788 + $0x50] sm:$0xff]
  %v5104 = vld [vmem:[%s788 + $0x68] sm:$0xff]
  %v5105 = vld [vmem:[%s788 + $0x80] sm:$0xff]
  %v5106 = vld [vmem:[%s788 + $0x98] sm:$0xff]
  %v5107 = vld [vmem:[%s788 + $0xb0] sm:$0xff]
  %v5108 = vld [vmem:[%s788 + $0xf8] sm:$0xff]
  %v5109 = vld [vmem:[%s788 + $0x110] sm:$0xff]
  %v5110 = vld [vmem:[%s788 + $0x128] sm:$0xff]
  %v5111 = vld [vmem:[%s788 + $0x140] sm:$0xff]
  %v5112 = vld [vmem:[%s788 + $0x158] sm:$0xff]
  %v5113 = vld [vmem:[%s788 + $0x170] sm:$0xff]
  %v5114 = vld [vmem:[%s788 + $0x188] sm:$0xff]
  %v5115 = vld [vmem:[%s788 + $0x1a0] sm:$0xff]
  %v5116 = vld [vmem:[%s788 + $0x9] sm:$0xff]
  %v5117 = vld [vmem:[%s788 + $0x21] sm:$0xff]
  %v5118 = vld [vmem:[%s788 + $0x39] sm:$0xff]
  %v5119 = vld [vmem:[%s788 + $0x51] sm:$0xff]
  %v5120 = vld [vmem:[%s788 + $0x69] sm:$0xff]
  %v5121 = vld [vmem:[%s788 + $0x81] sm:$0xff]
  %v5122 = vld [vmem:[%s788 + $0x99] sm:$0xff]
  %v5123 = vld [vmem:[%s788 + $0xb1] sm:$0xff]
  %v5124 = vld [vmem:[%s788 + $0xf9] sm:$0xff]
  %v5125 = vld [vmem:[%s788 + $0x111] sm:$0xff]
  %v5126 = vld [vmem:[%s788 + $0x129] sm:$0xff]
  %v5127 = vld [vmem:[%s788 + $0x141] sm:$0xff]
  %v5128 = vld [vmem:[%s788 + $0x159] sm:$0xff]
  %v5129 = vld [vmem:[%s788 + $0x171] sm:$0xff]
  %v5130 = vld [vmem:[%s788 + $0x189] sm:$0xff]
  %v5131 = vld [vmem:[%s788 + $0x1a1] sm:$0xff]
  %v5132 = vld [vmem:[%s901 + $0x7] sm:$0xff]
  %v5133 = vld [vmem:[%s901 + $0x1f] sm:$0xff]
  %v5134 = vld [vmem:[%s901 + $0x37] sm:$0xff]
  %v5135 = vld [vmem:[%s901 + $0x4f] sm:$0xff]
  %v5136 = vld [vmem:[%s901 + $0x67] sm:$0xff]
  %v5137 = vld [vmem:[%s901 + $0x7f] sm:$0xff]
  %v5138 = vld [vmem:[%s901 + $0x97] sm:$0xff]
  %v5139 = vld [vmem:[%s901 + $0xaf] sm:$0xff]
  %v5140 = vld [vmem:[%s901 + $0xf7] sm:$0xff]
  %v5141 = vld [vmem:[%s901 + $0x10f] sm:$0xff]
  %v5142 = vld [vmem:[%s901 + $0x127] sm:$0xff]
  %v5143 = vld [vmem:[%s901 + $0x13f] sm:$0xff]
  %v5144 = vld [vmem:[%s901 + $0x157] sm:$0xff]
  %v5145 = vld [vmem:[%s901 + $0x16f] sm:$0xff]
  %v5146 = vld [vmem:[%s901 + $0x187] sm:$0xff]
  %v5147 = vld [vmem:[%s901 + $0x19f] sm:$0xff]
  %v5148 = vld [vmem:[%s901 + $0x8] sm:$0xff]
  %v5149 = vld [vmem:[%s901 + $0x20] sm:$0xff]
  %v5150 = vld [vmem:[%s901 + $0x38] sm:$0xff]
  %v5151 = vld [vmem:[%s901 + $0x50] sm:$0xff]
  %v5152 = vld [vmem:[%s901 + $0x68] sm:$0xff]
  %v5153 = vld [vmem:[%s901 + $0x80] sm:$0xff]
  %v5154 = vld [vmem:[%s901 + $0x98] sm:$0xff]
  %v5155 = vld [vmem:[%s901 + $0xb0] sm:$0xff]
  %v5156 = vld [vmem:[%s901 + $0xf8] sm:$0xff]
  %v5157 = vld [vmem:[%s901 + $0x110] sm:$0xff]
  %v5158 = vld [vmem:[%s901 + $0x128] sm:$0xff]
  %v5159 = vld [vmem:[%s901 + $0x140] sm:$0xff]
  %v5160 = vld [vmem:[%s901 + $0x158] sm:$0xff]
  %v5161 = vld [vmem:[%s901 + $0x170] sm:$0xff]
  %v5162 = vld [vmem:[%s901 + $0x188] sm:$0xff]
  %v5163 = vld [vmem:[%s901 + $0x1a0] sm:$0xff]
  %v5164 = vld [vmem:[%s901 + $0x9] sm:$0xff]
  %v5165 = vld [vmem:[%s901 + $0x21] sm:$0xff]
  %v5166 = vld [vmem:[%s901 + $0x39] sm:$0xff]
  %v5167 = vld [vmem:[%s901 + $0x51] sm:$0xff]
  %v5168 = vld [vmem:[%s901 + $0x69] sm:$0xff]
  %v5169 = vld [vmem:[%s901 + $0x81] sm:$0xff]
  %v5170 = vld [vmem:[%s901 + $0x99] sm:$0xff]
  %v5171 = vld [vmem:[%s901 + $0xb1] sm:$0xff]
  %v5172 = vld [vmem:[%s901 + $0xf9] sm:$0xff]
  %v5173 = vld [vmem:[%s901 + $0x111] sm:$0xff]
  %v5174 = vld [vmem:[%s901 + $0x129] sm:$0xff]
  %v5175 = vld [vmem:[%s901 + $0x141] sm:$0xff]
  %v5176 = vld [vmem:[%s901 + $0x159] sm:$0xff]
  %v5177 = vld [vmem:[%s901 + $0x171] sm:$0xff]
  %v5178 = vld [vmem:[%s901 + $0x189] sm:$0xff]
  %v5179 = vld [vmem:[%s901 + $0x1a1] sm:$0xff]
  %5196 = vrot.lane.b32.xlu0 %v5052, 32
  %v5197 = vpop.permute.xlu0 %5196
  %5198 = vrot.lane.b32.xlu0 %v5053, 32
  %v5199 = vpop.permute.xlu0 %5198
  %5200 = vrot.lane.b32.xlu0 %v5054, 32
  %v5201 = vpop.permute.xlu0 %5200
  %5202 = vrot.lane.b32.xlu0 %v5055, 32
  %v5203 = vpop.permute.xlu0 %5202
  %5204 = vrot.lane.b32.xlu0 %v5056, 32
  %v5205 = vpop.permute.xlu0 %5204
  %5206 = vrot.lane.b32.xlu0 %v5057, 32
  %v5207 = vpop.permute.xlu0 %5206
  %5208 = vrot.lane.b32.xlu0 %v5058, 32
  %v5209 = vpop.permute.xlu0 %5208
  %5210 = vrot.lane.b32.xlu0 %v5059, 32
  %v5211 = vpop.permute.xlu0 %5210
  %5212 = vrot.lane.b32.xlu0 %v5060, 32
  %v5213 = vpop.permute.xlu0 %5212
  %5214 = vrot.lane.b32.xlu0 %v5061, 32
  %v5215 = vpop.permute.xlu0 %5214
  %5216 = vrot.lane.b32.xlu0 %v5062, 32
  %v5217 = vpop.permute.xlu0 %5216
  %5218 = vrot.lane.b32.xlu0 %v5063, 32
  %v5219 = vpop.permute.xlu0 %5218
  %5220 = vrot.lane.b32.xlu0 %v5064, 32
  %v5221 = vpop.permute.xlu0 %5220
  %5222 = vrot.lane.b32.xlu0 %v5065, 32
  %v5223 = vpop.permute.xlu0 %5222
  %5224 = vrot.lane.b32.xlu0 %v5066, 32
  %v5225 = vpop.permute.xlu0 %5224
  %5226 = vrot.lane.b32.xlu0 %v5067, 32
  %v5227 = vpop.permute.xlu0 %5226
  %5260 = vrot.lane.b32.xlu0 %v5068, 64
  %v5261 = vpop.permute.xlu0 %5260
  %5262 = vrot.lane.b32.xlu0 %v5069, 64
  %v5263 = vpop.permute.xlu0 %5262
  %5264 = vrot.lane.b32.xlu0 %v5070, 64
  %v5265 = vpop.permute.xlu0 %5264
  %5266 = vrot.lane.b32.xlu0 %v5071, 64
  %v5267 = vpop.permute.xlu0 %5266
  %5268 = vrot.lane.b32.xlu0 %v5072, 64
  %v5269 = vpop.permute.xlu0 %5268
  %5270 = vrot.lane.b32.xlu0 %v5073, 64
  %v5271 = vpop.permute.xlu0 %5270
  %5272 = vrot.lane.b32.xlu0 %v5074, 64
  %v5273 = vpop.permute.xlu0 %5272
  %5274 = vrot.lane.b32.xlu0 %v5075, 64
  %v5275 = vpop.permute.xlu0 %5274
  %5276 = vrot.lane.b32.xlu0 %v5076, 64
  %v5277 = vpop.permute.xlu0 %5276
  %5278 = vrot.lane.b32.xlu0 %v5077, 64
  %v5279 = vpop.permute.xlu0 %5278
  %5280 = vrot.lane.b32.xlu0 %v5078, 64
  %v5281 = vpop.permute.xlu0 %5280
  %5282 = vrot.lane.b32.xlu0 %v5079, 64
  %v5283 = vpop.permute.xlu0 %5282
  %5284 = vrot.lane.b32.xlu0 %v5080, 64
  %v5285 = vpop.permute.xlu0 %5284
  %5286 = vrot.lane.b32.xlu0 %v5081, 64
  %v5287 = vpop.permute.xlu0 %5286
  %5288 = vrot.lane.b32.xlu0 %v5082, 64
  %v5289 = vpop.permute.xlu0 %5288
  %5290 = vrot.lane.b32.xlu0 %v5083, 64
  %v5291 = vpop.permute.xlu0 %5290
  %5324 = vrot.lane.b32.xlu0 %v5084, 96
  %v5325 = vpop.permute.xlu0 %5324
  %5326 = vrot.lane.b32.xlu0 %v5085, 96
  %v5327 = vpop.permute.xlu0 %5326
  %5328 = vrot.lane.b32.xlu0 %v5086, 96
  %v5329 = vpop.permute.xlu0 %5328
  %5330 = vrot.lane.b32.xlu0 %v5087, 96
  %v5331 = vpop.permute.xlu0 %5330
  %5332 = vrot.lane.b32.xlu0 %v5088, 96
  %v5333 = vpop.permute.xlu0 %5332
  %5334 = vrot.lane.b32.xlu0 %v5089, 96
  %v5335 = vpop.permute.xlu0 %5334
  %5336 = vrot.lane.b32.xlu0 %v5090, 96
  %v5337 = vpop.permute.xlu0 %5336
  %5338 = vrot.lane.b32.xlu0 %v5091, 96
  %v5339 = vpop.permute.xlu0 %5338
  %5340 = vrot.lane.b32.xlu0 %v5092, 96
  %v5341 = vpop.permute.xlu0 %5340
  %5342 = vrot.lane.b32.xlu0 %v5093, 96
  %v5343 = vpop.permute.xlu0 %5342
  %5344 = vrot.lane.b32.xlu0 %v5094, 96
  %v5345 = vpop.permute.xlu0 %5344
  %5346 = vrot.lane.b32.xlu0 %v5095, 96
  %v5347 = vpop.permute.xlu0 %5346
  %5348 = vrot.lane.b32.xlu0 %v5096, 96
  %v5349 = vpop.permute.xlu0 %5348
  %5350 = vrot.lane.b32.xlu0 %v5097, 96
  %v5351 = vpop.permute.xlu0 %5350
  %5352 = vrot.lane.b32.xlu0 %v5098, 96
  %v5353 = vpop.permute.xlu0 %5352
  %5354 = vrot.lane.b32.xlu0 %v5099, 96
  %v5355 = vpop.permute.xlu0 %5354
  %5388 = vrot.lane.b32.xlu0 %v5116, 32
  %v5389 = vpop.permute.xlu0 %5388
  %5390 = vrot.lane.b32.xlu0 %v5117, 32
  %v5391 = vpop.permute.xlu0 %5390
  %5392 = vrot.lane.b32.xlu0 %v5118, 32
  %v5393 = vpop.permute.xlu0 %5392
  %5394 = vrot.lane.b32.xlu0 %v5119, 32
  %v5395 = vpop.permute.xlu0 %5394
  %5396 = vrot.lane.b32.xlu0 %v5120, 32
  %v5397 = vpop.permute.xlu0 %5396
  %5398 = vrot.lane.b32.xlu0 %v5121, 32
  %v5399 = vpop.permute.xlu0 %5398
  %5400 = vrot.lane.b32.xlu0 %v5122, 32
  %v5401 = vpop.permute.xlu0 %5400
  %5402 = vrot.lane.b32.xlu0 %v5123, 32
  %v5403 = vpop.permute.xlu0 %5402
  %5404 = vrot.lane.b32.xlu0 %v5124, 32
  %v5405 = vpop.permute.xlu0 %5404
  %5406 = vrot.lane.b32.xlu0 %v5125, 32
  %v5407 = vpop.permute.xlu0 %5406
  %5408 = vrot.lane.b32.xlu0 %v5126, 32
  %v5409 = vpop.permute.xlu0 %5408
  %5410 = vrot.lane.b32.xlu0 %v5127, 32
  %v5411 = vpop.permute.xlu0 %5410
  %5412 = vrot.lane.b32.xlu0 %v5128, 32
  %v5413 = vpop.permute.xlu0 %5412
  %5414 = vrot.lane.b32.xlu0 %v5129, 32
  %v5415 = vpop.permute.xlu0 %5414
  %5416 = vrot.lane.b32.xlu0 %v5130, 32
  %v5417 = vpop.permute.xlu0 %5416
  %5418 = vrot.lane.b32.xlu0 %v5131, 32
  %v5419 = vpop.permute.xlu0 %5418
  %5452 = vrot.lane.b32.xlu0 %v5132, 64
  %v5453 = vpop.permute.xlu0 %5452
  %5454 = vrot.lane.b32.xlu0 %v5133, 64
  %v5455 = vpop.permute.xlu0 %5454
  %5456 = vrot.lane.b32.xlu0 %v5134, 64
  %v5457 = vpop.permute.xlu0 %5456
  %5458 = vrot.lane.b32.xlu0 %v5135, 64
  %v5459 = vpop.permute.xlu0 %5458
  %5460 = vrot.lane.b32.xlu0 %v5136, 64
  %v5461 = vpop.permute.xlu0 %5460
  %5462 = vrot.lane.b32.xlu0 %v5137, 64
  %v5463 = vpop.permute.xlu0 %5462
  %5464 = vrot.lane.b32.xlu0 %v5138, 64
  %v5465 = vpop.permute.xlu0 %5464
  %5466 = vrot.lane.b32.xlu0 %v5139, 64
  %v5467 = vpop.permute.xlu0 %5466
  %5468 = vrot.lane.b32.xlu0 %v5140, 64
  %v5469 = vpop.permute.xlu0 %5468
  %5470 = vrot.lane.b32.xlu0 %v5141, 64
  %v5471 = vpop.permute.xlu0 %5470
  %5472 = vrot.lane.b32.xlu0 %v5142, 64
  %v5473 = vpop.permute.xlu0 %5472
  %5474 = vrot.lane.b32.xlu0 %v5143, 64
  %v5475 = vpop.permute.xlu0 %5474
  %5476 = vrot.lane.b32.xlu0 %v5144, 64
  %v5477 = vpop.permute.xlu0 %5476
  %5478 = vrot.lane.b32.xlu0 %v5145, 64
  %v5479 = vpop.permute.xlu0 %5478
  %5480 = vrot.lane.b32.xlu0 %v5146, 64
  %v5481 = vpop.permute.xlu0 %5480
  %5482 = vrot.lane.b32.xlu0 %v5147, 64
  %v5483 = vpop.permute.xlu0 %5482
  %5516 = vrot.lane.b32.xlu0 %v5148, 96
  %v5517 = vpop.permute.xlu0 %5516
  %5518 = vrot.lane.b32.xlu0 %v5149, 96
  %v5519 = vpop.permute.xlu0 %5518
  %5520 = vrot.lane.b32.xlu0 %v5150, 96
  %v5521 = vpop.permute.xlu0 %5520
  %5522 = vrot.lane.b32.xlu0 %v5151, 96
  %v5523 = vpop.permute.xlu0 %5522
  %5524 = vrot.lane.b32.xlu0 %v5152, 96
  %v5525 = vpop.permute.xlu0 %5524
  %5526 = vrot.lane.b32.xlu0 %v5153, 96
  %v5527 = vpop.permute.xlu0 %5526
  %5528 = vrot.lane.b32.xlu0 %v5154, 96
  %v5529 = vpop.permute.xlu0 %5528
  %5530 = vrot.lane.b32.xlu0 %v5155, 96
  %v5531 = vpop.permute.xlu0 %5530
  %5532 = vrot.lane.b32.xlu0 %v5156, 96
  %v5533 = vpop.permute.xlu0 %5532
  %5534 = vrot.lane.b32.xlu0 %v5157, 96
  %v5535 = vpop.permute.xlu0 %5534
  %5536 = vrot.lane.b32.xlu0 %v5158, 96
  %v5537 = vpop.permute.xlu0 %5536
  %5538 = vrot.lane.b32.xlu0 %v5159, 96
  %v5539 = vpop.permute.xlu0 %5538
  %5540 = vrot.lane.b32.xlu0 %v5160, 96
  %v5541 = vpop.permute.xlu0 %5540
  %5542 = vrot.lane.b32.xlu0 %v5161, 96
  %v5543 = vpop.permute.xlu0 %5542
  %5544 = vrot.lane.b32.xlu0 %v5162, 96
  %v5545 = vpop.permute.xlu0 %5544
  %5546 = vrot.lane.b32.xlu0 %v5163, 96
  %v5547 = vpop.permute.xlu0 %5546
  %v5564 = vsel %vm34, %v5036, %v5197
  %v5565 = vsel %vm34, %v5037, %v5199
  %v5566 = vsel %vm34, %v5038, %v5201
  %v5567 = vsel %vm34, %v5039, %v5203
  %v5568 = vsel %vm34, %v5040, %v5205
  %v5569 = vsel %vm34, %v5041, %v5207
  %v5570 = vsel %vm34, %v5042, %v5209
  %v5571 = vsel %vm34, %v5043, %v5211
  %v5572 = vsel %vm34, %v5044, %v5213
  %v5573 = vsel %vm34, %v5045, %v5215
  %v5574 = vsel %vm34, %v5046, %v5217
  %v5575 = vsel %vm34, %v5047, %v5219
  %v5576 = vsel %vm34, %v5048, %v5221
  %v5577 = vsel %vm34, %v5049, %v5223
  %v5578 = vsel %vm34, %v5050, %v5225
  %v5579 = vsel %vm34, %v5051, %v5227
  %v5580 = vsel %vm1350, %v5564, %v5261
  %v5581 = vsel %vm1350, %v5565, %v5263
  %v5582 = vsel %vm1350, %v5566, %v5265
  %v5583 = vsel %vm1350, %v5567, %v5267
  %v5584 = vsel %vm1350, %v5568, %v5269
  %v5585 = vsel %vm1350, %v5569, %v5271
  %v5586 = vsel %vm1350, %v5570, %v5273
  %v5587 = vsel %vm1350, %v5571, %v5275
  %v5588 = vsel %vm1350, %v5572, %v5277
  %v5589 = vsel %vm1350, %v5573, %v5279
  %v5590 = vsel %vm1350, %v5574, %v5281
  %v5591 = vsel %vm1350, %v5575, %v5283
  %v5592 = vsel %vm1350, %v5576, %v5285
  %v5593 = vsel %vm1350, %v5577, %v5287
  %v5594 = vsel %vm1350, %v5578, %v5289
  %v5595 = vsel %vm1350, %v5579, %v5291
  %v5596 = vsel %vm1367, %v5580, %v5325
  %v5597 = vsel %vm1367, %v5581, %v5327
  %v5598 = vsel %vm1367, %v5582, %v5329
  %v5599 = vsel %vm1367, %v5583, %v5331
  %v5600 = vsel %vm1367, %v5584, %v5333
  %v5601 = vsel %vm1367, %v5585, %v5335
  %v5602 = vsel %vm1367, %v5586, %v5337
  %v5603 = vsel %vm1367, %v5587, %v5339
  %v5604 = vsel %vm1367, %v5588, %v5341
  %v5605 = vsel %vm1367, %v5589, %v5343
  %v5606 = vsel %vm1367, %v5590, %v5345
  %v5607 = vsel %vm1367, %v5591, %v5347
  %v5608 = vsel %vm1367, %v5592, %v5349
  %v5609 = vsel %vm1367, %v5593, %v5351
  %v5610 = vsel %vm1367, %v5594, %v5353
  %v5611 = vsel %vm1367, %v5595, %v5355
  %v5612 = vsel %vm34, %v5100, %v5389
  %v5613 = vsel %vm34, %v5101, %v5391
  %v5614 = vsel %vm34, %v5102, %v5393
  %v5615 = vsel %vm34, %v5103, %v5395
  %v5616 = vsel %vm34, %v5104, %v5397
  %v5617 = vsel %vm34, %v5105, %v5399
  %v5618 = vsel %vm34, %v5106, %v5401
  %v5619 = vsel %vm34, %v5107, %v5403
  %v5620 = vsel %vm34, %v5108, %v5405
  %v5621 = vsel %vm34, %v5109, %v5407
  %v5622 = vsel %vm34, %v5110, %v5409
  %v5623 = vsel %vm34, %v5111, %v5411
  %v5624 = vsel %vm34, %v5112, %v5413
  %v5625 = vsel %vm34, %v5113, %v5415
  %v5626 = vsel %vm34, %v5114, %v5417
  %v5627 = vsel %vm34, %v5115, %v5419
  %v5628 = vsel %vm1350, %v5612, %v5453
  %v5629 = vsel %vm1350, %v5613, %v5455
  %v5630 = vsel %vm1350, %v5614, %v5457
  %v5631 = vsel %vm1350, %v5615, %v5459
  %v5632 = vsel %vm1350, %v5616, %v5461
  %v5633 = vsel %vm1350, %v5617, %v5463
  %v5634 = vsel %vm1350, %v5618, %v5465
  %v5635 = vsel %vm1350, %v5619, %v5467
  %v5636 = vsel %vm1350, %v5620, %v5469
  %v5637 = vsel %vm1350, %v5621, %v5471
  %v5638 = vsel %vm1350, %v5622, %v5473
  %v5639 = vsel %vm1350, %v5623, %v5475
  %v5640 = vsel %vm1350, %v5624, %v5477
  %v5641 = vsel %vm1350, %v5625, %v5479
  %v5642 = vsel %vm1350, %v5626, %v5481
  %v5643 = vsel %vm1350, %v5627, %v5483
  %v5644 = vsel %vm1367, %v5628, %v5517
  %v5645 = vsel %vm1367, %v5629, %v5519
  %v5646 = vsel %vm1367, %v5630, %v5521
  %v5647 = vsel %vm1367, %v5631, %v5523
  %v5648 = vsel %vm1367, %v5632, %v5525
  %v5649 = vsel %vm1367, %v5633, %v5527
  %v5650 = vsel %vm1367, %v5634, %v5529
  %v5651 = vsel %vm1367, %v5635, %v5531
  %v5652 = vsel %vm1367, %v5636, %v5533
  %v5653 = vsel %vm1367, %v5637, %v5535
  %v5654 = vsel %vm1367, %v5638, %v5537
  %v5655 = vsel %vm1367, %v5639, %v5539
  %v5656 = vsel %vm1367, %v5640, %v5541
  %v5657 = vsel %vm1367, %v5641, %v5543
  %v5658 = vsel %vm1367, %v5642, %v5545
  %v5659 = vsel %vm1367, %v5643, %v5547
  %v5660 = vlaneseq
  %v5661 = vshrl.u32 %v5660, 7
  %v5662 = vsub.s32 0, %v5661
  %v5663 = vrot.slane %v5019, %v5662
  %v5665 = vsel %vm34, %v5164, 0
  %v5668 = vsel %vm34, %v5165, 0
  %v5671 = vsel %vm34, %v5166, 0
  %v5674 = vsel %vm34, %v5167, 0
  %v5677 = vsel %vm34, %v5168, 0
  %v5680 = vsel %vm34, %v5169, 0
  %v5683 = vsel %vm34, %v5170, 0
  %v5686 = vsel %vm34, %v5171, 0
  %v5689 = vsel %vm34, %v5172, 0
  %v5692 = vsel %vm34, %v5173, 0
  %v5695 = vsel %vm34, %v5174, 0
  %v5698 = vsel %vm34, %v5175, 0
  %v5701 = vsel %vm34, %v5176, 0
  %v5704 = vsel %vm34, %v5177, 0
  %v5707 = vsel %vm34, %v5178, 0
  %v5710 = vsel %vm34, %v5179, 0
  %5712 = vmatprep.subr.mxu0 0.0
  %5713 = vmatpush1.msra.mxu0 %v3603
  %5714 = vmatprep.subr.mxu0 0.0
  %5715 = vmatpush1.msra.mxu0 %v3604
  %5716 = vmatprep.subr.mxu0 0.0
  %5717 = vmatpush1.msra.mxu0 %v3605
  %5718 = vmatprep.subr.mxu0 0.0
  %5719 = vmatpush1.msra.mxu0 %v3606
  %5720 = vmatprep.subr.mxu0 0.0
  %5721 = vmatpush1.msra.mxu0 %v3607
  %5722 = vmatprep.subr.mxu0 0.0
  %5723 = vmatpush1.msra.mxu0 %v3608
  %5724 = vmatprep.subr.mxu0 0.0
  %5725 = vmatpush1.msra.mxu0 %v3609
  %5726 = vmatprep.subr.mxu0 0.0
  %5727 = vmatpush1.msra.mxu0 %v3610
  %5728 = vmatprep.subr.mxu0 0.0
  %5729 = vmatpush1.msra.mxu0 %v3611
  %5730 = vmatprep.subr.mxu0 0.0
  %5731 = vmatpush1.msra.mxu0 %v3612
  %5732 = vmatprep.subr.mxu0 0.0
  %5733 = vmatpush1.msra.mxu0 %v3613
  %5734 = vmatprep.subr.mxu0 0.0
  %5735 = vmatpush1.msra.mxu0 %v3614
  %5736 = vmatprep.subr.mxu0 0.0
  %5737 = vmatpush1.msra.mxu0 %v3615
  %5738 = vmatprep.subr.mxu0 0.0
  %5739 = vmatpush1.msra.mxu0 %v3616
  %5740 = vmatprep.subr.mxu0 0.0
  %5741 = vmatpush1.msra.mxu0 %v3617
  %5742 = vmatprep.subr.mxu0 0.0
  %5743 = vmatpush1.msra.mxu0 %v3618
  %5744 = vmatprep.subr.mxu0 0.0
  %5745 = vmatpush1.msra.mxu0 %v3619
  %5746 = vmatprep.subr.mxu0 0.0
  %5747 = vmatpush1.msra.mxu0 %v3620
  %5748 = vmatprep.subr.mxu0 0.0
  %5749 = vmatpush1.msra.mxu0 %v3621
  %5750 = vmatprep.subr.mxu0 0.0
  %5751 = vmatpush1.msra.mxu0 %v3622
  %5752 = vmatprep.subr.mxu0 0.0
  %5753 = vmatpush1.msra.mxu0 %v3623
  %5754 = vmatprep.subr.mxu0 0.0
  %5755 = vmatpush1.msra.mxu0 %v3624
  %5756 = vmatprep.subr.mxu0 0.0
  %5757 = vmatpush1.msra.mxu0 %v3625
  %5758 = vmatprep.subr.mxu0 0.0
  %5759 = vmatpush1.msra.mxu0 %v3626
  %5760 = vmatprep.subr.mxu0 0.0
  %5761 = vmatpush1.msra.mxu0 %v3627
  %5762 = vmatprep.subr.mxu0 0.0
  %5763 = vmatpush1.msra.mxu0 %v3628
  %5764 = vmatprep.subr.mxu0 0.0
  %5765 = vmatpush1.msra.mxu0 %v3629
  %5766 = vmatprep.subr.mxu0 0.0
  %5767 = vmatpush1.msra.mxu0 %v3630
  %5768 = vmatprep.subr.mxu0 0.0
  %5769 = vmatpush1.msra.mxu0 %v3631
  %5770 = vmatprep.subr.mxu0 0.0
  %5771 = vmatpush1.msra.mxu0 %v3632
  %5772 = vmatprep.subr.mxu0 0.0
  %5773 = vmatpush1.msra.mxu0 %v3633
  %5774 = vmatprep.subr.mxu0 0.0
  %5775 = vmatpush1.msra.mxu0 %v3634
  %5776 = vmatprep.mubr.f32.mxu0 %v5644
  %5777 = vmatmul.mubr.f32.gmra.mrb[0].mxu0 %v5596
  %v5778 = vpop.f32.mrb[0].mxu0
  %v5779 = vadd.f32 %v5663, %v5778
  %v5780 = vpop.f32.mrb[0].mxu0
  %5781 = vmatprep.mubr.f32.mxu0 %v5645
  %5782 = vmatmul.mubr.f32.gmra.mrb[0].mxu0 %v5597
  %v5783 = vpop.f32.mrb[0].mxu0
  %v5784 = vadd.f32 %v5663, %v5783
  %v5785 = vpop.f32.mrb[0].mxu0
  %5786 = vmatprep.mubr.f32.mxu0 %v5646
  %5787 = vmatmul.mubr.f32.gmra.mrb[0].mxu0 %v5598
  %v5788 = vpop.f32.mrb[0].mxu0
  %v5789 = vadd.f32 %v5663, %v5788
  %v5790 = vpop.f32.mrb[0].mxu0
  %5791 = vmatprep.mubr.f32.mxu0 %v5647
  %5792 = vmatmul.mubr.f32.gmra.mrb[0].mxu0 %v5599
  %v5793 = vpop.f32.mrb[0].mxu0
  %v5794 = vadd.f32 %v5663, %v5793
  %v5795 = vpop.f32.mrb[0].mxu0
  %5796 = vmatprep.mubr.f32.mxu0 %v5648
  %5797 = vmatmul.mubr.f32.gmra.mrb[0].mxu0 %v5600
  %v5798 = vpop.f32.mrb[0].mxu0
  %v5799 = vadd.f32 %v5663, %v5798
  %v5800 = vpop.f32.mrb[0].mxu0
  %5801 = vmatprep.mubr.f32.mxu0 %v5649
  %5802 = vmatmul.mubr.f32.gmra.mrb[0].mxu0 %v5601
  %v5803 = vpop.f32.mrb[0].mxu0
  %v5804 = vadd.f32 %v5663, %v5803
  %v5805 = vpop.f32.mrb[0].mxu0
  %5806 = vmatprep.mubr.f32.mxu0 %v5650
  %5807 = vmatmul.mubr.f32.gmra.mrb[0].mxu0 %v5602
  %v5808 = vpop.f32.mrb[0].mxu0
  %v5809 = vadd.f32 %v5663, %v5808
  %v5810 = vpop.f32.mrb[0].mxu0
  %5811 = vmatprep.mubr.f32.mxu0 %v5651
  %5812 = vmatmul.mubr.f32.gmra.mrb[0].mxu0 %v5603
  %v5813 = vpop.f32.mrb[0].mxu0
  %v5814 = vadd.f32 %v5663, %v5813
  %v5815 = vpop.f32.mrb[0].mxu0
  %5816 = vmatprep.mubr.f32.mxu0 %v5652
  %5817 = vmatmul.mubr.f32.gmra.mrb[0].mxu0 %v5604
  %v5818 = vpop.f32.mrb[0].mxu0
  %v5819 = vadd.f32 %v5663, %v5818
  %v5820 = vpop.f32.mrb[0].mxu0
  %5821 = vmatprep.mubr.f32.mxu0 %v5653
  %5822 = vmatmul.mubr.f32.gmra.mrb[0].mxu0 %v5605
  %v5823 = vpop.f32.mrb[0].mxu0
  %v5824 = vadd.f32 %v5663, %v5823
  %v5825 = vpop.f32.mrb[0].mxu0
  %5826 = vmatprep.mubr.f32.mxu0 %v5654
  %5827 = vmatmul.mubr.f32.gmra.mrb[0].mxu0 %v5606
  %v5828 = vpop.f32.mrb[0].mxu0
  %v5829 = vadd.f32 %v5663, %v5828
  %v5830 = vpop.f32.mrb[0].mxu0
  %5831 = vmatprep.mubr.f32.mxu0 %v5655
  %5832 = vmatmul.mubr.f32.gmra.mrb[0].mxu0 %v5607
  %v5833 = vpop.f32.mrb[0].mxu0
  %v5834 = vadd.f32 %v5663, %v5833
  %v5835 = vpop.f32.mrb[0].mxu0
  %5836 = vmatprep.mubr.f32.mxu0 %v5656
  %5837 = vmatmul.mubr.f32.gmra.mrb[0].mxu0 %v5608
  %v5838 = vpop.f32.mrb[0].mxu0
  %v5839 = vadd.f32 %v5663, %v5838
  %v5840 = vpop.f32.mrb[0].mxu0
  %5841 = vmatprep.mubr.f32.mxu0 %v5657
  %5842 = vmatmul.mubr.f32.gmra.mrb[0].mxu0 %v5609
  %v5843 = vpop.f32.mrb[0].mxu0
  %v5844 = vadd.f32 %v5663, %v5843
  %v5845 = vpop.f32.mrb[0].mxu0
  %5846 = vmatprep.mubr.f32.mxu0 %v5658
  %5847 = vmatmul.mubr.f32.gmra.mrb[0].mxu0 %v5610
  %v5848 = vpop.f32.mrb[0].mxu0
  %v5849 = vadd.f32 %v5663, %v5848
  %v5850 = vpop.f32.mrb[0].mxu0
  %5851 = vmatprep.mubr.f32.mxu0 %v5659
  %5852 = vmatmul.mubr.f32.gmra.mrb[0].mxu0 %v5611
  %v5853 = vpop.f32.mrb[0].mxu0
  %v5854 = vadd.f32 %v5663, %v5853
  %v5855 = vpop.f32.mrb[0].mxu0
  %5856 = vdwg.mxu0
  %5857 = vmatprep.subr.mxu0 0.0
  %5858 = vmatpush1.msra.mxu0 %v3635
  %5859 = vmatprep.subr.mxu0 0.0
  %5860 = vmatpush1.msra.mxu0 %v3636
  %5861 = vmatprep.subr.mxu0 0.0
  %5862 = vmatpush1.msra.mxu0 %v3637
  %5863 = vmatprep.subr.mxu0 0.0
  %5864 = vmatpush1.msra.mxu0 %v3638
  %5865 = vmatprep.subr.mxu0 0.0
  %5866 = vmatpush1.msra.mxu0 0.0
  %5867 = vmatprep.subr.mxu0 0.0
  %5868 = vmatpush1.msra.mxu0 0.0
  %5869 = vmatprep.subr.mxu0 0.0
  %5870 = vmatpush1.msra.mxu0 0.0
  %5871 = vmatprep.subr.mxu0 0.0
  %5872 = vmatpush1.msra.mxu0 0.0
  %5873 = vmatprep.subr.mxu0 0.0
  %5874 = vmatpush1.msra.mxu0 0.0
  %5875 = vmatprep.subr.mxu0 0.0
  %5876 = vmatpush1.msra.mxu0 0.0
  %5877 = vmatprep.subr.mxu0 0.0
  %5878 = vmatpush1.msra.mxu0 0.0
  %5879 = vmatprep.subr.mxu0 0.0
  %5880 = vmatpush1.msra.mxu0 0.0
  %5881 = vmatprep.subr.mxu0 0.0
  %5882 = vmatpush1.msra.mxu0 0.0
  %5883 = vmatprep.subr.mxu0 0.0
  %5884 = vmatpush1.msra.mxu0 0.0
  %5885 = vmatprep.subr.mxu0 0.0
  %5886 = vmatpush1.msra.mxu0 0.0
  %5887 = vmatprep.subr.mxu0 0.0
  %5888 = vmatpush1.msra.mxu0 0.0
  %5889 = vmatprep.subr.mxu0 0.0
  %5890 = vmatpush1.msra.mxu0 0.0
  %5891 = vmatprep.subr.mxu0 0.0
  %5892 = vmatpush1.msra.mxu0 0.0
  %5893 = vmatprep.subr.mxu0 0.0
  %5894 = vmatpush1.msra.mxu0 0.0
  %5895 = vmatprep.subr.mxu0 0.0
  %5896 = vmatpush1.msra.mxu0 0.0
  %5897 = vmatprep.subr.mxu0 0.0
  %5898 = vmatpush1.msra.mxu0 0.0
  %5899 = vmatprep.subr.mxu0 0.0
  %5900 = vmatpush1.msra.mxu0 0.0
  %5901 = vmatprep.subr.mxu0 0.0
  %5902 = vmatpush1.msra.mxu0 0.0
  %5903 = vmatprep.subr.mxu0 0.0
  %5904 = vmatpush1.msra.mxu0 0.0
  %5905 = vmatprep.subr.mxu0 0.0
  %5906 = vmatpush1.msra.mxu0 0.0
  %5907 = vmatprep.subr.mxu0 0.0
  %5908 = vmatpush1.msra.mxu0 0.0
  %5909 = vmatprep.subr.mxu0 0.0
  %5910 = vmatpush1.msra.mxu0 0.0
  %5911 = vmatprep.subr.mxu0 0.0
  %5912 = vmatpush1.msra.mxu0 0.0
  %5913 = vmatprep.subr.mxu0 0.0
  %5914 = vmatpush1.msra.mxu0 0.0
  %5915 = vmatprep.subr.mxu0 0.0
  %5916 = vmatpush1.msra.mxu0 0.0
  %5917 = vmatprep.subr.mxu0 0.0
  %5918 = vmatpush1.msra.mxu0 0.0
  %5919 = vmatprep.subr.mxu0 0.0
  %5920 = vmatpush1.msra.mxu0 0.0
  %5921 = vmatprep.mubr.f32.mxu0 0.0
  %5922 = vmatmul.mubr.f32.gmra.mrb[0].mxu0 %v5665
  %v5923 = vpop.f32.mrb[0].mxu0
  %v5924 = vadd.f32 %v5779, %v5923
  %v5925 = vpop.f32.mrb[0].mxu0
  %5926 = vmatprep.mubr.f32.mxu0 0.0
  %5927 = vmatmul.mubr.f32.gmra.mrb[0].mxu0 %v5668
  %v5928 = vpop.f32.mrb[0].mxu0
  %v5929 = vadd.f32 %v5784, %v5928
  %v5930 = vpop.f32.mrb[0].mxu0
  %5931 = vmatprep.mubr.f32.mxu0 0.0
  %5932 = vmatmul.mubr.f32.gmra.mrb[0].mxu0 %v5671
  %v5933 = vpop.f32.mrb[0].mxu0
  %v5934 = vadd.f32 %v5789, %v5933
  %v5935 = vpop.f32.mrb[0].mxu0
  %5936 = vmatprep.mubr.f32.mxu0 0.0
  %5937 = vmatmul.mubr.f32.gmra.mrb[0].mxu0 %v5674
  %v5938 = vpop.f32.mrb[0].mxu0
  %v5939 = vadd.f32 %v5794, %v5938
  %v5940 = vpop.f32.mrb[0].mxu0
  %5941 = vmatprep.mubr.f32.mxu0 0.0
  %5942 = vmatmul.mubr.f32.gmra.mrb[0].mxu0 %v5677
  %v5943 = vpop.f32.mrb[0].mxu0
  %v5944 = vadd.f32 %v5799, %v5943
  %v5945 = vpop.f32.mrb[0].mxu0
  %5946 = vmatprep.mubr.f32.mxu0 0.0
  %5947 = vmatmul.mubr.f32.gmra.mrb[0].mxu0 %v5680
  %v5948 = vpop.f32.mrb[0].mxu0
  %v5949 = vadd.f32 %v5804, %v5948
  %v5950 = vpop.f32.mrb[0].mxu0
  %5951 = vmatprep.mubr.f32.mxu0 0.0
  %5952 = vmatmul.mubr.f32.gmra.mrb[0].mxu0 %v5683
  %v5953 = vpop.f32.mrb[0].mxu0
  %v5954 = vadd.f32 %v5809, %v5953
  %v5955 = vpop.f32.mrb[0].mxu0
  %5956 = vmatprep.mubr.f32.mxu0 0.0
  %5957 = vmatmul.mubr.f32.gmra.mrb[0].mxu0 %v5686
  %v5958 = vpop.f32.mrb[0].mxu0
  %v5959 = vadd.f32 %v5814, %v5958
  %v5960 = vpop.f32.mrb[0].mxu0
  %5961 = vmatprep.mubr.f32.mxu0 0.0
  %5962 = vmatmul.mubr.f32.gmra.mrb[0].mxu0 %v5689
  %v5963 = vpop.f32.mrb[0].mxu0
  %v5964 = vadd.f32 %v5819, %v5963
  %v5965 = vpop.f32.mrb[0].mxu0
  %5966 = vmatprep.mubr.f32.mxu0 0.0
  %5967 = vmatmul.mubr.f32.gmra.mrb[0].mxu0 %v5692
  %v5968 = vpop.f32.mrb[0].mxu0
  %v5969 = vadd.f32 %v5824, %v5968
  %v5970 = vpop.f32.mrb[0].mxu0
  %5971 = vmatprep.mubr.f32.mxu0 0.0
  %5972 = vmatmul.mubr.f32.gmra.mrb[0].mxu0 %v5695
  %v5973 = vpop.f32.mrb[0].mxu0
  %v5974 = vadd.f32 %v5829, %v5973
  %v5975 = vpop.f32.mrb[0].mxu0
  %5976 = vmatprep.mubr.f32.mxu0 0.0
  %5977 = vmatmul.mubr.f32.gmra.mrb[0].mxu0 %v5698
  %v5978 = vpop.f32.mrb[0].mxu0
  %v5979 = vadd.f32 %v5834, %v5978
  %v5980 = vpop.f32.mrb[0].mxu0
  %5981 = vmatprep.mubr.f32.mxu0 0.0
  %5982 = vmatmul.mubr.f32.gmra.mrb[0].mxu0 %v5701
  %v5983 = vpop.f32.mrb[0].mxu0
  %v5984 = vadd.f32 %v5839, %v5983
  %v5985 = vpop.f32.mrb[0].mxu0
  %5986 = vmatprep.mubr.f32.mxu0 0.0
  %5987 = vmatmul.mubr.f32.gmra.mrb[0].mxu0 %v5704
  %v5988 = vpop.f32.mrb[0].mxu0
  %v5989 = vadd.f32 %v5844, %v5988
  %v5990 = vpop.f32.mrb[0].mxu0
  %5991 = vmatprep.mubr.f32.mxu0 0.0
  %5992 = vmatmul.mubr.f32.gmra.mrb[0].mxu0 %v5707
  %v5993 = vpop.f32.mrb[0].mxu0
  %v5994 = vadd.f32 %v5849, %v5993
  %v5995 = vpop.f32.mrb[0].mxu0
  %5996 = vmatprep.mubr.f32.mxu0 0.0
  %5997 = vmatmul.mubr.f32.gmra.mrb[0].mxu0 %v5710
  %v5998 = vpop.f32.mrb[0].mxu0
  %v5999 = vadd.f32 %v5854, %v5998
  %v6000 = vpop.f32.mrb[0].mxu0
  %6001 = vdwg.mxu0
  %v6002 = vld [vmem:[%s2 + $0xd] sm:$0x1]
  %v6003 = vld [vmem:[%s2 + $0xe] sm:$0x1]
  %v6004 = vsel %vm34, %v5924, 0.0
  %v6005 = vsel %vm34, %v5929, 0.0
  %v6006 = vadd.f32 %v6004, %v6005
  %v6007 = vsel %vm34, %v5934, 0.0
  %v6008 = vadd.f32 %v6006, %v6007
  %v6009 = vsel %vm34, %v5939, 0.0
  %v6010 = vadd.f32 %v6008, %v6009
  %v6011 = vsel %vm34, %v5944, 0.0
  %v6012 = vadd.f32 %v6010, %v6011
  %v6013 = vsel %vm34, %v5949, 0.0
  %v6014 = vadd.f32 %v6012, %v6013
  %v6015 = vsel %vm34, %v5954, 0.0
  %v6016 = vadd.f32 %v6014, %v6015
  %v6017 = vsel %vm34, %v5959, 0.0
  %v6018 = vadd.f32 %v6016, %v6017
  %v6019 = vrot.slane %v6018, 4
  %v6020 = vadd.f32 %v6018, %v6019
  %v6021 = vrot.slane %v6020, 2
  %v6022 = vadd.f32 %v6020, %v6021
  %v6023 = vrot.slane %v6022, 1
  %v6024 = vadd.f32 %v6022, %v6023
  %v6025 = vsel %vm34, %v5964, 0.0
  %v6026 = vsel %vm34, %v5969, 0.0
  %v6027 = vadd.f32 %v6025, %v6026
  %v6028 = vsel %vm34, %v5974, 0.0
  %v6029 = vadd.f32 %v6027, %v6028
  %v6030 = vsel %vm34, %v5979, 0.0
  %v6031 = vadd.f32 %v6029, %v6030
  %v6032 = vsel %vm34, %v5984, 0.0
  %v6033 = vadd.f32 %v6031, %v6032
  %v6034 = vsel %vm34, %v5989, 0.0
  %v6035 = vadd.f32 %v6033, %v6034
  %v6036 = vsel %vm34, %v5994, 0.0
  %v6037 = vadd.f32 %v6035, %v6036
  %v6038 = vsel %vm34, %v5999, 0.0
  %v6039 = vadd.f32 %v6037, %v6038
  %v6040 = vrot.slane %v6039, 4
  %v6041 = vadd.f32 %v6039, %v6040
  %v6042 = vrot.slane %v6041, 2
  %v6043 = vadd.f32 %v6041, %v6042
  %v6044 = vrot.slane %v6043, 1
  %v6045 = vadd.f32 %v6043, %v6044
  %v6046 = vmul.f32 %v5924, %v5924
  %v6047 = vmul.f32 %v5929, %v5929
  %v6048 = vmul.f32 %v5934, %v5934
  %v6049 = vmul.f32 %v5939, %v5939
  %v6050 = vmul.f32 %v5944, %v5944
  %v6051 = vmul.f32 %v5949, %v5949
  %v6052 = vmul.f32 %v5954, %v5954
  %v6053 = vmul.f32 %v5959, %v5959
  %v6054 = vmul.f32 %v5964, %v5964
  %v6055 = vmul.f32 %v5969, %v5969
  %v6056 = vmul.f32 %v5974, %v5974
  %v6057 = vmul.f32 %v5979, %v5979
  %v6058 = vmul.f32 %v5984, %v5984
  %v6059 = vmul.f32 %v5989, %v5989
  %v6060 = vmul.f32 %v5994, %v5994
  %v6061 = vmul.f32 %v5999, %v5999
  %v6062 = vsel %vm34, %v6046, 0.0
  %v6063 = vsel %vm34, %v6047, 0.0
  %v6064 = vadd.f32 %v6062, %v6063
  %v6065 = vsel %vm34, %v6048, 0.0
  %v6066 = vadd.f32 %v6064, %v6065
  %v6067 = vsel %vm34, %v6049, 0.0
  %v6068 = vadd.f32 %v6066, %v6067
  %v6069 = vsel %vm34, %v6050, 0.0
  %v6070 = vadd.f32 %v6068, %v6069
  %v6071 = vsel %vm34, %v6051, 0.0
  %v6072 = vadd.f32 %v6070, %v6071
  %v6073 = vsel %vm34, %v6052, 0.0
  %v6074 = vadd.f32 %v6072, %v6073
  %v6075 = vsel %vm34, %v6053, 0.0
  %v6076 = vadd.f32 %v6074, %v6075
  %v6077 = vrot.slane %v6076, 4
  %v6078 = vadd.f32 %v6076, %v6077
  %v6079 = vrot.slane %v6078, 2
  %v6080 = vadd.f32 %v6078, %v6079
  %v6081 = vrot.slane %v6080, 1
  %v6082 = vadd.f32 %v6080, %v6081
  %v6083 = vsel %vm34, %v6054, 0.0
  %v6084 = vsel %vm34, %v6055, 0.0
  %v6085 = vadd.f32 %v6083, %v6084
  %v6086 = vsel %vm34, %v6056, 0.0
  %v6087 = vadd.f32 %v6085, %v6086
  %v6088 = vsel %vm34, %v6057, 0.0
  %v6089 = vadd.f32 %v6087, %v6088
  %v6090 = vsel %vm34, %v6058, 0.0
  %v6091 = vadd.f32 %v6089, %v6090
  %v6092 = vsel %vm34, %v6059, 0.0
  %v6093 = vadd.f32 %v6091, %v6092
  %v6094 = vsel %vm34, %v6060, 0.0
  %v6095 = vadd.f32 %v6093, %v6094
  %v6096 = vsel %vm34, %v6061, 0.0
  %v6097 = vadd.f32 %v6095, %v6096
  %v6098 = vrot.slane %v6097, 4
  %v6099 = vadd.f32 %v6097, %v6098
  %v6100 = vrot.slane %v6099, 2
  %v6101 = vadd.f32 %v6099, %v6100
  %v6102 = vrot.slane %v6101, 1
  %v6103 = vadd.f32 %v6101, %v6102
  %v6106 = vsel %vm421, %v6045, %v6024
  %v6107 = vsel %vm34, %v6106, 0
  %6109 = vmatprep.subr.mxu0 0.0
  %6110 = vmatpush1.msra.mxu0 %v29
  %6111 = vmatprep.subr.mxu0 0.0
  %6112 = vmatpush1.msra.mxu0 %v30
  %6113 = vmatprep.subr.mxu0 0.0
  %6114 = vmatpush1.msra.mxu0 %v31
  %6115 = vmatprep.subr.mxu0 0.0
  %6116 = vmatpush1.msra.mxu0 %v32
  %6117 = vmatprep.subr.mxu0 0.0
  %6118 = vmatpush1.msra.mxu0 0.0
  %6119 = vmatprep.subr.mxu0 0.0
  %6120 = vmatpush1.msra.mxu0 0.0
  %6121 = vmatprep.subr.mxu0 0.0
  %6122 = vmatpush1.msra.mxu0 0.0
  %6123 = vmatprep.subr.mxu0 0.0
  %6124 = vmatpush1.msra.mxu0 0.0
  %6125 = vmatprep.subr.mxu0 0.0
  %6126 = vmatpush1.msra.mxu0 0.0
  %6127 = vmatprep.subr.mxu0 0.0
  %6128 = vmatpush1.msra.mxu0 0.0
  %6129 = vmatprep.subr.mxu0 0.0
  %6130 = vmatpush1.msra.mxu0 0.0
  %6131 = vmatprep.subr.mxu0 0.0
  %6132 = vmatpush1.msra.mxu0 0.0
  %6133 = vmatprep.subr.mxu0 0.0
  %6134 = vmatpush1.msra.mxu0 0.0
  %6135 = vmatprep.subr.mxu0 0.0
  %6136 = vmatpush1.msra.mxu0 0.0
  %6137 = vmatprep.subr.mxu0 0.0
  %6138 = vmatpush1.msra.mxu0 0.0
  %6139 = vmatprep.subr.mxu0 0.0
  %6140 = vmatpush1.msra.mxu0 0.0
  %6141 = vmatprep.subr.mxu0 0.0
  %6142 = vmatpush1.msra.mxu0 0.0
  %6143 = vmatprep.subr.mxu0 0.0
  %6144 = vmatpush1.msra.mxu0 0.0
  %6145 = vmatprep.subr.mxu0 0.0
  %6146 = vmatpush1.msra.mxu0 0.0
  %6147 = vmatprep.subr.mxu0 0.0
  %6148 = vmatpush1.msra.mxu0 0.0
  %6149 = vmatprep.subr.mxu0 0.0
  %6150 = vmatpush1.msra.mxu0 0.0
  %6151 = vmatprep.subr.mxu0 0.0
  %6152 = vmatpush1.msra.mxu0 0.0
  %6153 = vmatprep.subr.mxu0 0.0
  %6154 = vmatpush1.msra.mxu0 0.0
  %6155 = vmatprep.subr.mxu0 0.0
  %6156 = vmatpush1.msra.mxu0 0.0
  %6157 = vmatprep.subr.mxu0 0.0
  %6158 = vmatpush1.msra.mxu0 0.0
  %6159 = vmatprep.subr.mxu0 0.0
  %6160 = vmatpush1.msra.mxu0 0.0
  %6161 = vmatprep.subr.mxu0 0.0
  %6162 = vmatpush1.msra.mxu0 0.0
  %6163 = vmatprep.subr.mxu0 0.0
  %6164 = vmatpush1.msra.mxu0 0.0
  %6165 = vmatprep.subr.mxu0 0.0
  %6166 = vmatpush1.msra.mxu0 0.0
  %6167 = vmatprep.subr.mxu0 0.0
  %6168 = vmatpush1.msra.mxu0 0.0
  %6169 = vmatprep.subr.mxu0 0.0
  %6170 = vmatpush1.msra.mxu0 0.0
  %6171 = vmatprep.subr.mxu0 0.0
  %6172 = vmatpush1.msra.mxu0 0.0
  %6173 = vmatprep.mubr.f32.mxu0 0.0
  %6174 = vmatmul.mubr.f32.gmra.mrb[0].mxu0 %v6107
  %v6175 = vpop.f32.mrb[0].mxu0
  %v6176 = vadd.f32 0.0, %v6175
  %v6177 = vpop.f32.mrb[0].mxu0
  %6178 = vdwg.mxu0
  %v6181 = vsel %vm421, %v6103, %v6082
  %v6182 = vsel %vm34, %v6181, 0
  %6184 = vmatprep.subr.mxu0 0.0
  %6185 = vmatpush1.msra.mxu0 %v29
  %6186 = vmatprep.subr.mxu0 0.0
  %6187 = vmatpush1.msra.mxu0 %v30
  %6188 = vmatprep.subr.mxu0 0.0
  %6189 = vmatpush1.msra.mxu0 %v31
  %6190 = vmatprep.subr.mxu0 0.0
  %6191 = vmatpush1.msra.mxu0 %v32
  %6192 = vmatprep.subr.mxu0 0.0
  %6193 = vmatpush1.msra.mxu0 0.0
  %6194 = vmatprep.subr.mxu0 0.0
  %6195 = vmatpush1.msra.mxu0 0.0
  %6196 = vmatprep.subr.mxu0 0.0
  %6197 = vmatpush1.msra.mxu0 0.0
  %6198 = vmatprep.subr.mxu0 0.0
  %6199 = vmatpush1.msra.mxu0 0.0
  %6200 = vmatprep.subr.mxu0 0.0
  %6201 = vmatpush1.msra.mxu0 0.0
  %6202 = vmatprep.subr.mxu0 0.0
  %6203 = vmatpush1.msra.mxu0 0.0
  %6204 = vmatprep.subr.mxu0 0.0
  %6205 = vmatpush1.msra.mxu0 0.0
  %6206 = vmatprep.subr.mxu0 0.0
  %6207 = vmatpush1.msra.mxu0 0.0
  %6208 = vmatprep.subr.mxu0 0.0
  %6209 = vmatpush1.msra.mxu0 0.0
  %6210 = vmatprep.subr.mxu0 0.0
  %6211 = vmatpush1.msra.mxu0 0.0
  %6212 = vmatprep.subr.mxu0 0.0
  %6213 = vmatpush1.msra.mxu0 0.0
  %6214 = vmatprep.subr.mxu0 0.0
  %6215 = vmatpush1.msra.mxu0 0.0
  %6216 = vmatprep.subr.mxu0 0.0
  %6217 = vmatpush1.msra.mxu0 0.0
  %6218 = vmatprep.subr.mxu0 0.0
  %6219 = vmatpush1.msra.mxu0 0.0
  %6220 = vmatprep.subr.mxu0 0.0
  %6221 = vmatpush1.msra.mxu0 0.0
  %6222 = vmatprep.subr.mxu0 0.0
  %6223 = vmatpush1.msra.mxu0 0.0
  %6224 = vmatprep.subr.mxu0 0.0
  %6225 = vmatpush1.msra.mxu0 0.0
  %6226 = vmatprep.subr.mxu0 0.0
  %6227 = vmatpush1.msra.mxu0 0.0
  %6228 = vmatprep.subr.mxu0 0.0
  %6229 = vmatpush1.msra.mxu0 0.0
  %6230 = vmatprep.subr.mxu0 0.0
  %6231 = vmatpush1.msra.mxu0 0.0
  %6232 = vmatprep.subr.mxu0 0.0
  %6233 = vmatpush1.msra.mxu0 0.0
  %6234 = vmatprep.subr.mxu0 0.0
  %6235 = vmatpush1.msra.mxu0 0.0
  %6236 = vmatprep.subr.mxu0 0.0
  %6237 = vmatpush1.msra.mxu0 0.0
  %6238 = vmatprep.subr.mxu0 0.0
  %6239 = vmatpush1.msra.mxu0 0.0
  %6240 = vmatprep.subr.mxu0 0.0
  %6241 = vmatpush1.msra.mxu0 0.0
  %6242 = vmatprep.subr.mxu0 0.0
  %6243 = vmatpush1.msra.mxu0 0.0
  %6244 = vmatprep.subr.mxu0 0.0
  %6245 = vmatpush1.msra.mxu0 0.0
  %6246 = vmatprep.subr.mxu0 0.0
  %6247 = vmatpush1.msra.mxu0 0.0
  %6248 = vmatprep.mubr.f32.mxu0 0.0
  %6249 = vmatmul.mubr.f32.gmra.mrb[0].mxu0 %v6182
  %v6250 = vpop.f32.mrb[0].mxu0
  %v6251 = vadd.f32 0.0, %v6250
  %v6252 = vpop.f32.mrb[0].mxu0
  %6253 = vdwg.mxu0
  %v6254 = vmul.f32 %v6176, %v6176
  %v6255 = vsub.f32 %v6251, %v6254
  %v6256 = vmax.f32 %v6255, 0.0
  %v6257 = vadd.f32 %v6256, 1e-05
  %v6258 = vrsqrt.pop %v6257
  %v6261 = vunpack.c.l.s4 1966171168
  %v6262 = vunpack.c.0.s8 %v6261
  %v6263 = vlaneseq
  %v6264 = vshrl.u32 %v6263, 7
  %v6265 = vsub.s32 %v6262, %v6264
  %v6266 = vrot.slane %v6176, %v6265
  %v6267 = vcombine.high %v6266, %v6266
  %v6269 = vunpack.c.l.s4 1966171168
  %v6270 = vunpack.c.0.s8 %v6269
  %v6271 = vlaneseq
  %v6272 = vshrl.u32 %v6271, 7
  %v6273 = vsub.s32 %v6270, %v6272
  %v6274 = vrot.slane %v6266, %v6273
  %v6276 = vunpack.c.l.s4 1966171168
  %v6277 = vunpack.c.0.s8 %v6276
  %v6278 = vlaneseq
  %v6279 = vshrl.u32 %v6278, 7
  %v6280 = vsub.s32 %v6277, %v6279
  %v6281 = vrot.slane %v6267, %v6280
  %v6282 = vlaneseq
  %v6283 = vshrl.u32 %v6282, 7
  %v6284 = vsub.s32 0, %v6283
  %v6285 = vrot.slane %v6274, %v6284
  %v6286 = vlaneseq
  %v6287 = vshrl.u32 %v6286, 7
  %v6288 = vsub.s32 0, %v6287
  %v6289 = vrot.slane %v6281, %v6288
  %v6292 = vsub.f32 %v5924, %v6285
  %v6293 = vsub.f32 %v5929, %v6285
  %v6294 = vsub.f32 %v5934, %v6285
  %v6295 = vsub.f32 %v5939, %v6285
  %v6296 = vsub.f32 %v5944, %v6285
  %v6297 = vsub.f32 %v5949, %v6285
  %v6298 = vsub.f32 %v5954, %v6285
  %v6299 = vsub.f32 %v5959, %v6285
  %v6300 = vsub.f32 %v5964, %v6289
  %v6301 = vsub.f32 %v5969, %v6289
  %v6302 = vsub.f32 %v5974, %v6289
  %v6303 = vsub.f32 %v5979, %v6289
  %v6304 = vsub.f32 %v5984, %v6289
  %v6305 = vsub.f32 %v5989, %v6289
  %v6306 = vsub.f32 %v5994, %v6289
  %v6307 = vsub.f32 %v5999, %v6289
  %v6310 = vunpack.c.l.s4 1966171168
  %v6311 = vunpack.c.0.s8 %v6310
  %v6312 = vlaneseq
  %v6313 = vshrl.u32 %v6312, 7
  %v6314 = vsub.s32 %v6311, %v6313
  %v6315 = vrot.slane %v6258, %v6314
  %v6316 = vcombine.high %v6315, %v6315
  %v6318 = vunpack.c.l.s4 1966171168
  %v6319 = vunpack.c.0.s8 %v6318
  %v6320 = vlaneseq
  %v6321 = vshrl.u32 %v6320, 7
  %v6322 = vsub.s32 %v6319, %v6321
  %v6323 = vrot.slane %v6315, %v6322
  %v6325 = vunpack.c.l.s4 1966171168
  %v6326 = vunpack.c.0.s8 %v6325
  %v6327 = vlaneseq
  %v6328 = vshrl.u32 %v6327, 7
  %v6329 = vsub.s32 %v6326, %v6328
  %v6330 = vrot.slane %v6316, %v6329
  %v6333 = vmul.f32 %v6323, %v6002
  %v6334 = vmul.f32 %v6330, %v6002
  %v6337 = vlaneseq
  %v6338 = vshrl.u32 %v6337, 7
  %v6339 = vsub.s32 0, %v6338
  %v6340 = vrot.slane %v6333, %v6339
  %v6341 = vlaneseq
  %v6342 = vshrl.u32 %v6341, 7
  %v6343 = vsub.s32 0, %v6342
  %v6344 = vrot.slane %v6334, %v6343
  %v6347 = vmul.f32 %v6292, %v6340
  %v6348 = vmul.f32 %v6293, %v6340
  %v6349 = vmul.f32 %v6294, %v6340
  %v6350 = vmul.f32 %v6295, %v6340
  %v6351 = vmul.f32 %v6296, %v6340
  %v6352 = vmul.f32 %v6297, %v6340
  %v6353 = vmul.f32 %v6298, %v6340
  %v6354 = vmul.f32 %v6299, %v6340
  %v6355 = vmul.f32 %v6300, %v6344
  %v6356 = vmul.f32 %v6301, %v6344
  %v6357 = vmul.f32 %v6302, %v6344
  %v6358 = vmul.f32 %v6303, %v6344
  %v6359 = vmul.f32 %v6304, %v6344
  %v6360 = vmul.f32 %v6305, %v6344
  %v6361 = vmul.f32 %v6306, %v6344
  %v6362 = vmul.f32 %v6307, %v6344
  %v6363 = vlaneseq
  %v6364 = vshrl.u32 %v6363, 7
  %v6365 = vsub.s32 0, %v6364
  %v6366 = vrot.slane %v6003, %v6365
  %v6367 = vadd.f32 %v6347, %v6366
  %v6368 = vadd.f32 %v6348, %v6366
  %v6369 = vadd.f32 %v6349, %v6366
  %v6370 = vadd.f32 %v6350, %v6366
  %v6371 = vadd.f32 %v6351, %v6366
  %v6372 = vadd.f32 %v6352, %v6366
  %v6373 = vadd.f32 %v6353, %v6366
  %v6374 = vadd.f32 %v6354, %v6366
  %v6375 = vadd.f32 %v6355, %v6366
  %v6376 = vadd.f32 %v6356, %v6366
  %v6377 = vadd.f32 %v6357, %v6366
  %v6378 = vadd.f32 %v6358, %v6366
  %v6379 = vadd.f32 %v6359, %v6366
  %v6380 = vadd.f32 %v6360, %v6366
  %v6381 = vadd.f32 %v6361, %v6366
  %v6382 = vadd.f32 %v6362, %v6366
  %v6383 = vadd.f32 %v6367, %v3551
  %v6384 = vadd.f32 %v6368, %v3552
  %v6385 = vadd.f32 %v6369, %v3553
  %v6386 = vadd.f32 %v6370, %v3554
  %v6387 = vadd.f32 %v6371, %v3555
  %v6388 = vadd.f32 %v6372, %v3556
  %v6389 = vadd.f32 %v6373, %v3557
  %v6390 = vadd.f32 %v6374, %v3558
  %v6391 = vadd.f32 %v6375, %v3559
  %v6392 = vadd.f32 %v6376, %v3560
  %v6393 = vadd.f32 %v6377, %v3561
  %v6394 = vadd.f32 %v6378, %v3562
  %v6395 = vadd.f32 %v6379, %v3563
  %v6396 = vadd.f32 %v6380, %v3564
  %v6397 = vadd.f32 %v6381, %v3565
  %v6398 = vadd.f32 %v6382, %v3566
  %v6399 = vmax.f32 %v6383, 0.0
  %v6400 = vmax.f32 %v6384, 0.0
  %v6401 = vmax.f32 %v6385, 0.0
  %v6402 = vmax.f32 %v6386, 0.0
  %v6403 = vmax.f32 %v6387, 0.0
  %v6404 = vmax.f32 %v6388, 0.0
  %v6405 = vmax.f32 %v6389, 0.0
  %v6406 = vmax.f32 %v6390, 0.0
  %v6407 = vmax.f32 %v6391, 0.0
  %v6408 = vmax.f32 %v6392, 0.0
  %v6409 = vmax.f32 %v6393, 0.0
  %v6410 = vmax.f32 %v6394, 0.0
  %v6411 = vmax.f32 %v6395, 0.0
  %v6412 = vmax.f32 %v6396, 0.0
  %v6413 = vmax.f32 %v6397, 0.0
  %v6414 = vmax.f32 %v6398, 0.0
  %v6415 = vld [vmem:[%s5] sm:$0xff]
  %v6416 = vld [vmem:[%s5 + $0x8] sm:$0xff]
  %v6417 = vld [vmem:[%s5 + $0x10] sm:$0xff]
  %v6418 = vld [vmem:[%s5 + $0x18] sm:$0xff]
  %v6419 = vld [vmem:[%s6] sm:$0x1]
  %v6420 = vlaneseq
  %v6421 = vshrl.u32 %v6420, 7
  %v6422 = vsub.s32 0, %v6421
  %v6423 = vrot.slane %v6419, %v6422
  %v6425 = vsel %vm34, %v6399, 0
  %v6428 = vsel %vm34, %v6400, 0
  %v6431 = vsel %vm34, %v6401, 0
  %v6434 = vsel %vm34, %v6402, 0
  %v6437 = vsel %vm34, %v6403, 0
  %v6440 = vsel %vm34, %v6404, 0
  %v6443 = vsel %vm34, %v6405, 0
  %v6446 = vsel %vm34, %v6406, 0
  %v6449 = vsel %vm34, %v6407, 0
  %v6452 = vsel %vm34, %v6408, 0
  %v6455 = vsel %vm34, %v6409, 0
  %v6458 = vsel %vm34, %v6410, 0
  %v6461 = vsel %vm34, %v6411, 0
  %v6464 = vsel %vm34, %v6412, 0
  %v6467 = vsel %vm34, %v6413, 0
  %v6470 = vsel %vm34, %v6414, 0
  %6472 = vmatprep.subr.mxu0 0.0
  %6473 = vmatpush1.msra.mxu0 %v6415
  %6474 = vmatprep.subr.mxu0 0.0
  %6475 = vmatpush1.msra.mxu0 %v6416
  %6476 = vmatprep.subr.mxu0 0.0
  %6477 = vmatpush1.msra.mxu0 %v6417
  %6478 = vmatprep.subr.mxu0 0.0
  %6479 = vmatpush1.msra.mxu0 %v6418
  %6480 = vmatprep.subr.mxu0 0.0
  %6481 = vmatpush1.msra.mxu0 0.0
  %6482 = vmatprep.subr.mxu0 0.0
  %6483 = vmatpush1.msra.mxu0 0.0
  %6484 = vmatprep.subr.mxu0 0.0
  %6485 = vmatpush1.msra.mxu0 0.0
  %6486 = vmatprep.subr.mxu0 0.0
  %6487 = vmatpush1.msra.mxu0 0.0
  %6488 = vmatprep.subr.mxu0 0.0
  %6489 = vmatpush1.msra.mxu0 0.0
  %6490 = vmatprep.subr.mxu0 0.0
  %6491 = vmatpush1.msra.mxu0 0.0
  %6492 = vmatprep.subr.mxu0 0.0
  %6493 = vmatpush1.msra.mxu0 0.0
  %6494 = vmatprep.subr.mxu0 0.0
  %6495 = vmatpush1.msra.mxu0 0.0
  %6496 = vmatprep.subr.mxu0 0.0
  %6497 = vmatpush1.msra.mxu0 0.0
  %6498 = vmatprep.subr.mxu0 0.0
  %6499 = vmatpush1.msra.mxu0 0.0
  %6500 = vmatprep.subr.mxu0 0.0
  %6501 = vmatpush1.msra.mxu0 0.0
  %6502 = vmatprep.subr.mxu0 0.0
  %6503 = vmatpush1.msra.mxu0 0.0
  %6504 = vmatprep.subr.mxu0 0.0
  %6505 = vmatpush1.msra.mxu0 0.0
  %6506 = vmatprep.subr.mxu0 0.0
  %6507 = vmatpush1.msra.mxu0 0.0
  %6508 = vmatprep.subr.mxu0 0.0
  %6509 = vmatpush1.msra.mxu0 0.0
  %6510 = vmatprep.subr.mxu0 0.0
  %6511 = vmatpush1.msra.mxu0 0.0
  %6512 = vmatprep.subr.mxu0 0.0
  %6513 = vmatpush1.msra.mxu0 0.0
  %6514 = vmatprep.subr.mxu0 0.0
  %6515 = vmatpush1.msra.mxu0 0.0
  %6516 = vmatprep.subr.mxu0 0.0
  %6517 = vmatpush1.msra.mxu0 0.0
  %6518 = vmatprep.subr.mxu0 0.0
  %6519 = vmatpush1.msra.mxu0 0.0
  %6520 = vmatprep.subr.mxu0 0.0
  %6521 = vmatpush1.msra.mxu0 0.0
  %6522 = vmatprep.subr.mxu0 0.0
  %6523 = vmatpush1.msra.mxu0 0.0
  %6524 = vmatprep.subr.mxu0 0.0
  %6525 = vmatpush1.msra.mxu0 0.0
  %6526 = vmatprep.subr.mxu0 0.0
  %6527 = vmatpush1.msra.mxu0 0.0
  %6528 = vmatprep.subr.mxu0 0.0
  %6529 = vmatpush1.msra.mxu0 0.0
  %6530 = vmatprep.subr.mxu0 0.0
  %6531 = vmatpush1.msra.mxu0 0.0
  %6532 = vmatprep.subr.mxu0 0.0
  %6533 = vmatpush1.msra.mxu0 0.0
  %6534 = vmatprep.subr.mxu0 0.0
  %6535 = vmatpush1.msra.mxu0 0.0
  %6536 = vmatprep.mubr.f32.mxu0 0.0
  %6537 = vmatmul.mubr.f32.gmra.mrb[0].mxu0 %v6425
  %v6538 = vpop.f32.mrb[0].mxu0
  %v6539 = vadd.f32 %v6423, %v6538
  %v6540 = vpop.f32.mrb[0].mxu0
  %6541 = vmatprep.mubr.f32.mxu0 0.0
  %6542 = vmatmul.mubr.f32.gmra.mrb[0].mxu0 %v6428
  %v6543 = vpop.f32.mrb[0].mxu0
  %v6544 = vadd.f32 %v6423, %v6543
  %v6545 = vpop.f32.mrb[0].mxu0
  %6546 = vmatprep.mubr.f32.mxu0 0.0
  %6547 = vmatmul.mubr.f32.gmra.mrb[0].mxu0 %v6431
  %v6548 = vpop.f32.mrb[0].mxu0
  %v6549 = vadd.f32 %v6423, %v6548
  %v6550 = vpop.f32.mrb[0].mxu0
  %6551 = vmatprep.mubr.f32.mxu0 0.0
  %6552 = vmatmul.mubr.f32.gmra.mrb[0].mxu0 %v6434
  %v6553 = vpop.f32.mrb[0].mxu0
  %v6554 = vadd.f32 %v6423, %v6553
  %v6555 = vpop.f32.mrb[0].mxu0
  %6556 = vmatprep.mubr.f32.mxu0 0.0
  %6557 = vmatmul.mubr.f32.gmra.mrb[0].mxu0 %v6437
  %v6558 = vpop.f32.mrb[0].mxu0
  %v6559 = vadd.f32 %v6423, %v6558
  %v6560 = vpop.f32.mrb[0].mxu0
  %6561 = vmatprep.mubr.f32.mxu0 0.0
  %6562 = vmatmul.mubr.f32.gmra.mrb[0].mxu0 %v6440
  %v6563 = vpop.f32.mrb[0].mxu0
  %v6564 = vadd.f32 %v6423, %v6563
  %v6565 = vpop.f32.mrb[0].mxu0
  %6566 = vmatprep.mubr.f32.mxu0 0.0
  %6567 = vmatmul.mubr.f32.gmra.mrb[0].mxu0 %v6443
  %v6568 = vpop.f32.mrb[0].mxu0
  %v6569 = vadd.f32 %v6423, %v6568
  %v6570 = vpop.f32.mrb[0].mxu0
  %6571 = vmatprep.mubr.f32.mxu0 0.0
  %6572 = vmatmul.mubr.f32.gmra.mrb[0].mxu0 %v6446
  %v6573 = vpop.f32.mrb[0].mxu0
  %v6574 = vadd.f32 %v6423, %v6573
  %v6575 = vpop.f32.mrb[0].mxu0
  %6576 = vmatprep.mubr.f32.mxu0 0.0
  %6577 = vmatmul.mubr.f32.gmra.mrb[0].mxu0 %v6449
  %v6578 = vpop.f32.mrb[0].mxu0
  %v6579 = vadd.f32 %v6423, %v6578
  %v6580 = vpop.f32.mrb[0].mxu0
  %6581 = vmatprep.mubr.f32.mxu0 0.0
  %6582 = vmatmul.mubr.f32.gmra.mrb[0].mxu0 %v6452
  %v6583 = vpop.f32.mrb[0].mxu0
  %v6584 = vadd.f32 %v6423, %v6583
  %v6585 = vpop.f32.mrb[0].mxu0
  %6586 = vmatprep.mubr.f32.mxu0 0.0
  %6587 = vmatmul.mubr.f32.gmra.mrb[0].mxu0 %v6455
  %v6588 = vpop.f32.mrb[0].mxu0
  %v6589 = vadd.f32 %v6423, %v6588
  %v6590 = vpop.f32.mrb[0].mxu0
  %6591 = vmatprep.mubr.f32.mxu0 0.0
  %6592 = vmatmul.mubr.f32.gmra.mrb[0].mxu0 %v6458
  %v6593 = vpop.f32.mrb[0].mxu0
  %v6594 = vadd.f32 %v6423, %v6593
  %v6595 = vpop.f32.mrb[0].mxu0
  %6596 = vmatprep.mubr.f32.mxu0 0.0
  %6597 = vmatmul.mubr.f32.gmra.mrb[0].mxu0 %v6461
  %v6598 = vpop.f32.mrb[0].mxu0
  %v6599 = vadd.f32 %v6423, %v6598
  %v6600 = vpop.f32.mrb[0].mxu0
  %6601 = vmatprep.mubr.f32.mxu0 0.0
  %6602 = vmatmul.mubr.f32.gmra.mrb[0].mxu0 %v6464
  %v6603 = vpop.f32.mrb[0].mxu0
  %v6604 = vadd.f32 %v6423, %v6603
  %v6605 = vpop.f32.mrb[0].mxu0
  %6606 = vmatprep.mubr.f32.mxu0 0.0
  %6607 = vmatmul.mubr.f32.gmra.mrb[0].mxu0 %v6467
  %v6608 = vpop.f32.mrb[0].mxu0
  %v6609 = vadd.f32 %v6423, %v6608
  %v6610 = vpop.f32.mrb[0].mxu0
  %6611 = vmatprep.mubr.f32.mxu0 0.0
  %6612 = vmatmul.mubr.f32.gmra.mrb[0].mxu0 %v6470
  %v6613 = vpop.f32.mrb[0].mxu0
  %v6614 = vadd.f32 %v6423, %v6613
  %v6615 = vpop.f32.mrb[0].mxu0
  %6616 = vdwg.mxu0
  %v6617 = vld [vmem:[%s6 + $0x1] sm:$0x1]
  %v6618 = vld [vmem:[%s6 + $0x2] sm:$0x1]
  %vm6619 = vcmask 31744
  %v6620 = vsel %vm6619, %v6539, 0.0
  %v6621 = vsel %vm6619, %v6544, 0.0
  %v6622 = vadd.f32 %v6620, %v6621
  %v6623 = vsel %vm6619, %v6549, 0.0
  %v6624 = vadd.f32 %v6622, %v6623
  %v6625 = vsel %vm6619, %v6554, 0.0
  %v6626 = vadd.f32 %v6624, %v6625
  %v6627 = vsel %vm6619, %v6559, 0.0
  %v6628 = vadd.f32 %v6626, %v6627
  %v6629 = vsel %vm6619, %v6564, 0.0
  %v6630 = vadd.f32 %v6628, %v6629
  %v6631 = vsel %vm6619, %v6569, 0.0
  %v6632 = vadd.f32 %v6630, %v6631
  %v6633 = vsel %vm6619, %v6574, 0.0
  %v6634 = vadd.f32 %v6632, %v6633
  %v6635 = vrot.slane %v6634, 4
  %v6636 = vadd.f32 %v6634, %v6635
  %v6637 = vrot.slane %v6636, 2
  %v6638 = vadd.f32 %v6636, %v6637
  %v6639 = vrot.slane %v6638, 1
  %v6640 = vadd.f32 %v6638, %v6639
  %v6641 = vsel %vm6619, %v6579, 0.0
  %v6642 = vsel %vm6619, %v6584, 0.0
  %v6643 = vadd.f32 %v6641, %v6642
  %v6644 = vsel %vm6619, %v6589, 0.0
  %v6645 = vadd.f32 %v6643, %v6644
  %v6646 = vsel %vm6619, %v6594, 0.0
  %v6647 = vadd.f32 %v6645, %v6646
  %v6648 = vsel %vm6619, %v6599, 0.0
  %v6649 = vadd.f32 %v6647, %v6648
  %v6650 = vsel %vm6619, %v6604, 0.0
  %v6651 = vadd.f32 %v6649, %v6650
  %v6652 = vsel %vm6619, %v6609, 0.0
  %v6653 = vadd.f32 %v6651, %v6652
  %v6654 = vsel %vm6619, %v6614, 0.0
  %v6655 = vadd.f32 %v6653, %v6654
  %v6656 = vrot.slane %v6655, 4
  %v6657 = vadd.f32 %v6655, %v6656
  %v6658 = vrot.slane %v6657, 2
  %v6659 = vadd.f32 %v6657, %v6658
  %v6660 = vrot.slane %v6659, 1
  %v6661 = vadd.f32 %v6659, %v6660
  %v6662 = vmul.f32 %v6539, %v6539
  %v6663 = vmul.f32 %v6544, %v6544
  %v6664 = vmul.f32 %v6549, %v6549
  %v6665 = vmul.f32 %v6554, %v6554
  %v6666 = vmul.f32 %v6559, %v6559
  %v6667 = vmul.f32 %v6564, %v6564
  %v6668 = vmul.f32 %v6569, %v6569
  %v6669 = vmul.f32 %v6574, %v6574
  %v6670 = vmul.f32 %v6579, %v6579
  %v6671 = vmul.f32 %v6584, %v6584
  %v6672 = vmul.f32 %v6589, %v6589
  %v6673 = vmul.f32 %v6594, %v6594
  %v6674 = vmul.f32 %v6599, %v6599
  %v6675 = vmul.f32 %v6604, %v6604
  %v6676 = vmul.f32 %v6609, %v6609
  %v6677 = vmul.f32 %v6614, %v6614
  %v6678 = vsel %vm6619, %v6662, 0.0
  %v6679 = vsel %vm6619, %v6663, 0.0
  %v6680 = vadd.f32 %v6678, %v6679
  %v6681 = vsel %vm6619, %v6664, 0.0
  %v6682 = vadd.f32 %v6680, %v6681
  %v6683 = vsel %vm6619, %v6665, 0.0
  %v6684 = vadd.f32 %v6682, %v6683
  %v6685 = vsel %vm6619, %v6666, 0.0
  %v6686 = vadd.f32 %v6684, %v6685
  %v6687 = vsel %vm6619, %v6667, 0.0
  %v6688 = vadd.f32 %v6686, %v6687
  %v6689 = vsel %vm6619, %v6668, 0.0
  %v6690 = vadd.f32 %v6688, %v6689
  %v6691 = vsel %vm6619, %v6669, 0.0
  %v6692 = vadd.f32 %v6690, %v6691
  %v6693 = vrot.slane %v6692, 4
  %v6694 = vadd.f32 %v6692, %v6693
  %v6695 = vrot.slane %v6694, 2
  %v6696 = vadd.f32 %v6694, %v6695
  %v6697 = vrot.slane %v6696, 1
  %v6698 = vadd.f32 %v6696, %v6697
  %v6699 = vsel %vm6619, %v6670, 0.0
  %v6700 = vsel %vm6619, %v6671, 0.0
  %v6701 = vadd.f32 %v6699, %v6700
  %v6702 = vsel %vm6619, %v6672, 0.0
  %v6703 = vadd.f32 %v6701, %v6702
  %v6704 = vsel %vm6619, %v6673, 0.0
  %v6705 = vadd.f32 %v6703, %v6704
  %v6706 = vsel %vm6619, %v6674, 0.0
  %v6707 = vadd.f32 %v6705, %v6706
  %v6708 = vsel %vm6619, %v6675, 0.0
  %v6709 = vadd.f32 %v6707, %v6708
  %v6710 = vsel %vm6619, %v6676, 0.0
  %v6711 = vadd.f32 %v6709, %v6710
  %v6712 = vsel %vm6619, %v6677, 0.0
  %v6713 = vadd.f32 %v6711, %v6712
  %v6714 = vrot.slane %v6713, 4
  %v6715 = vadd.f32 %v6713, %v6714
  %v6716 = vrot.slane %v6715, 2
  %v6717 = vadd.f32 %v6715, %v6716
  %v6718 = vrot.slane %v6717, 1
  %v6719 = vadd.f32 %v6717, %v6718
  %v6722 = vsel %vm421, %v6661, %v6640
  %v6723 = vsel %vm6619, %v6722, 0
  %vm6725 = vcmask 1043456
  %v6727 = vsel %vm6725, %v33, 0
  %6729 = vmatprep.subr.mxu0 0.0
  %6730 = vmatpush1.msra.mxu0 %v6727
  %6731 = vmatprep.subr.mxu0 0.0
  %6732 = vmatpush1.msra.mxu0 0.0
  %6733 = vmatprep.subr.mxu0 0.0
  %6734 = vmatpush1.msra.mxu0 0.0
  %6735 = vmatprep.subr.mxu0 0.0
  %6736 = vmatpush1.msra.mxu0 0.0
  %6737 = vmatprep.subr.mxu0 0.0
  %6738 = vmatpush1.msra.mxu0 0.0
  %6739 = vmatprep.subr.mxu0 0.0
  %6740 = vmatpush1.msra.mxu0 0.0
  %6741 = vmatprep.subr.mxu0 0.0
  %6742 = vmatpush1.msra.mxu0 0.0
  %6743 = vmatprep.subr.mxu0 0.0
  %6744 = vmatpush1.msra.mxu0 0.0
  %6745 = vmatprep.subr.mxu0 0.0
  %6746 = vmatpush1.msra.mxu0 0.0
  %6747 = vmatprep.subr.mxu0 0.0
  %6748 = vmatpush1.msra.mxu0 0.0
  %6749 = vmatprep.subr.mxu0 0.0
  %6750 = vmatpush1.msra.mxu0 0.0
  %6751 = vmatprep.subr.mxu0 0.0
  %6752 = vmatpush1.msra.mxu0 0.0
  %6753 = vmatprep.subr.mxu0 0.0
  %6754 = vmatpush1.msra.mxu0 0.0
  %6755 = vmatprep.subr.mxu0 0.0
  %6756 = vmatpush1.msra.mxu0 0.0
  %6757 = vmatprep.subr.mxu0 0.0
  %6758 = vmatpush1.msra.mxu0 0.0
  %6759 = vmatprep.subr.mxu0 0.0
  %6760 = vmatpush1.msra.mxu0 0.0
  %6761 = vmatprep.subr.mxu0 0.0
  %6762 = vmatpush1.msra.mxu0 0.0
  %6763 = vmatprep.subr.mxu0 0.0
  %6764 = vmatpush1.msra.mxu0 0.0
  %6765 = vmatprep.subr.mxu0 0.0
  %6766 = vmatpush1.msra.mxu0 0.0
  %6767 = vmatprep.subr.mxu0 0.0
  %6768 = vmatpush1.msra.mxu0 0.0
  %6769 = vmatprep.subr.mxu0 0.0
  %6770 = vmatpush1.msra.mxu0 0.0
  %6771 = vmatprep.subr.mxu0 0.0
  %6772 = vmatpush1.msra.mxu0 0.0
  %6773 = vmatprep.subr.mxu0 0.0
  %6774 = vmatpush1.msra.mxu0 0.0
  %6775 = vmatprep.subr.mxu0 0.0
  %6776 = vmatpush1.msra.mxu0 0.0
  %6777 = vmatprep.subr.mxu0 0.0
  %6778 = vmatpush1.msra.mxu0 0.0
  %6779 = vmatprep.subr.mxu0 0.0
  %6780 = vmatpush1.msra.mxu0 0.0
  %6781 = vmatprep.subr.mxu0 0.0
  %6782 = vmatpush1.msra.mxu0 0.0
  %6783 = vmatprep.subr.mxu0 0.0
  %6784 = vmatpush1.msra.mxu0 0.0
  %6785 = vmatprep.subr.mxu0 0.0
  %6786 = vmatpush1.msra.mxu0 0.0
  %6787 = vmatprep.subr.mxu0 0.0
  %6788 = vmatpush1.msra.mxu0 0.0
  %6789 = vmatprep.subr.mxu0 0.0
  %6790 = vmatpush1.msra.mxu0 0.0
  %6791 = vmatprep.subr.mxu0 0.0
  %6792 = vmatpush1.msra.mxu0 0.0
  %6793 = vmatprep.mubr.f32.mxu0 0.0
  %6794 = vmatmul.mubr.f32.gmra.mrb[0].mxu0 %v6723
  %v6795 = vpop.f32.mrb[0].mxu0
  %v6796 = vadd.f32 0.0, %v6795
  %v6797 = vpop.f32.mrb[0].mxu0
  %6798 = vdwg.mxu0
  %v6801 = vsel %vm421, %v6719, %v6698
  %v6802 = vsel %vm6619, %v6801, 0
  %6804 = vmatprep.subr.mxu0 0.0
  %6805 = vmatpush1.msra.mxu0 %v6727
  %6806 = vmatprep.subr.mxu0 0.0
  %6807 = vmatpush1.msra.mxu0 0.0
  %6808 = vmatprep.subr.mxu0 0.0
  %6809 = vmatpush1.msra.mxu0 0.0
  %6810 = vmatprep.subr.mxu0 0.0
  %6811 = vmatpush1.msra.mxu0 0.0
  %6812 = vmatprep.subr.mxu0 0.0
  %6813 = vmatpush1.msra.mxu0 0.0
  %6814 = vmatprep.subr.mxu0 0.0
  %6815 = vmatpush1.msra.mxu0 0.0
  %6816 = vmatprep.subr.mxu0 0.0
  %6817 = vmatpush1.msra.mxu0 0.0
  %6818 = vmatprep.subr.mxu0 0.0
  %6819 = vmatpush1.msra.mxu0 0.0
  %6820 = vmatprep.subr.mxu0 0.0
  %6821 = vmatpush1.msra.mxu0 0.0
  %6822 = vmatprep.subr.mxu0 0.0
  %6823 = vmatpush1.msra.mxu0 0.0
  %6824 = vmatprep.subr.mxu0 0.0
  %6825 = vmatpush1.msra.mxu0 0.0
  %6826 = vmatprep.subr.mxu0 0.0
  %6827 = vmatpush1.msra.mxu0 0.0
  %6828 = vmatprep.subr.mxu0 0.0
  %6829 = vmatpush1.msra.mxu0 0.0
  %6830 = vmatprep.subr.mxu0 0.0
  %6831 = vmatpush1.msra.mxu0 0.0
  %6832 = vmatprep.subr.mxu0 0.0
  %6833 = vmatpush1.msra.mxu0 0.0
  %6834 = vmatprep.subr.mxu0 0.0
  %6835 = vmatpush1.msra.mxu0 0.0
  %6836 = vmatprep.subr.mxu0 0.0
  %6837 = vmatpush1.msra.mxu0 0.0
  %6838 = vmatprep.subr.mxu0 0.0
  %6839 = vmatpush1.msra.mxu0 0.0
  %6840 = vmatprep.subr.mxu0 0.0
  %6841 = vmatpush1.msra.mxu0 0.0
  %6842 = vmatprep.subr.mxu0 0.0
  %6843 = vmatpush1.msra.mxu0 0.0
  %6844 = vmatprep.subr.mxu0 0.0
  %6845 = vmatpush1.msra.mxu0 0.0
  %6846 = vmatprep.subr.mxu0 0.0
  %6847 = vmatpush1.msra.mxu0 0.0
  %6848 = vmatprep.subr.mxu0 0.0
  %6849 = vmatpush1.msra.mxu0 0.0
  %6850 = vmatprep.subr.mxu0 0.0
  %6851 = vmatpush1.msra.mxu0 0.0
  %6852 = vmatprep.subr.mxu0 0.0
  %6853 = vmatpush1.msra.mxu0 0.0
  %6854 = vmatprep.subr.mxu0 0.0
  %6855 = vmatpush1.msra.mxu0 0.0
  %6856 = vmatprep.subr.mxu0 0.0
  %6857 = vmatpush1.msra.mxu0 0.0
  %6858 = vmatprep.subr.mxu0 0.0
  %6859 = vmatpush1.msra.mxu0 0.0
  %6860 = vmatprep.subr.mxu0 0.0
  %6861 = vmatpush1.msra.mxu0 0.0
  %6862 = vmatprep.subr.mxu0 0.0
  %6863 = vmatpush1.msra.mxu0 0.0
  %6864 = vmatprep.subr.mxu0 0.0
  %6865 = vmatpush1.msra.mxu0 0.0
  %6866 = vmatprep.subr.mxu0 0.0
  %6867 = vmatpush1.msra.mxu0 0.0
  %6868 = vmatprep.mubr.f32.mxu0 0.0
  %6869 = vmatmul.mubr.f32.gmra.mrb[0].mxu0 %v6802
  %v6870 = vpop.f32.mrb[0].mxu0
  %v6871 = vadd.f32 0.0, %v6870
  %v6872 = vpop.f32.mrb[0].mxu0
  %6873 = vdwg.mxu0
  %v6874 = vmul.f32 %v6796, %v6796
  %v6875 = vsub.f32 %v6871, %v6874
  %v6876 = vmax.f32 %v6875, 0.0
  %v6877 = vadd.f32 %v6876, 1e-05
  %v6878 = vrsqrt.pop %v6877
  %v6881 = vunpack.c.l.s4 1966171168
  %v6882 = vunpack.c.0.s8 %v6881
  %v6883 = vlaneseq
  %v6884 = vshrl.u32 %v6883, 7
  %v6885 = vsub.s32 %v6882, %v6884
  %v6886 = vrot.slane %v6796, %v6885
  %v6887 = vcombine.high %v6886, %v6886
  %v6889 = vunpack.c.l.s4 1966171168
  %v6890 = vunpack.c.0.s8 %v6889
  %v6891 = vlaneseq
  %v6892 = vshrl.u32 %v6891, 7
  %v6893 = vsub.s32 %v6890, %v6892
  %v6894 = vrot.slane %v6886, %v6893
  %v6896 = vunpack.c.l.s4 1966171168
  %v6897 = vunpack.c.0.s8 %v6896
  %v6898 = vlaneseq
  %v6899 = vshrl.u32 %v6898, 7
  %v6900 = vsub.s32 %v6897, %v6899
  %v6901 = vrot.slane %v6887, %v6900
  %v6902 = vlaneseq
  %v6903 = vshrl.u32 %v6902, 7
  %v6904 = vsub.s32 0, %v6903
  %v6905 = vrot.slane %v6894, %v6904
  %v6906 = vlaneseq
  %v6907 = vshrl.u32 %v6906, 7
  %v6908 = vsub.s32 0, %v6907
  %v6909 = vrot.slane %v6901, %v6908
  %v6912 = vsub.f32 %v6539, %v6905
  %v6913 = vsub.f32 %v6544, %v6905
  %v6914 = vsub.f32 %v6549, %v6905
  %v6915 = vsub.f32 %v6554, %v6905
  %v6916 = vsub.f32 %v6559, %v6905
  %v6917 = vsub.f32 %v6564, %v6905
  %v6918 = vsub.f32 %v6569, %v6905
  %v6919 = vsub.f32 %v6574, %v6905
  %v6920 = vsub.f32 %v6579, %v6909
  %v6921 = vsub.f32 %v6584, %v6909
  %v6922 = vsub.f32 %v6589, %v6909
  %v6923 = vsub.f32 %v6594, %v6909
  %v6924 = vsub.f32 %v6599, %v6909
  %v6925 = vsub.f32 %v6604, %v6909
  %v6926 = vsub.f32 %v6609, %v6909
  %v6927 = vsub.f32 %v6614, %v6909
  %v6930 = vunpack.c.l.s4 1966171168
  %v6931 = vunpack.c.0.s8 %v6930
  %v6932 = vlaneseq
  %v6933 = vshrl.u32 %v6932, 7
  %v6934 = vsub.s32 %v6931, %v6933
  %v6935 = vrot.slane %v6878, %v6934
  %v6936 = vcombine.high %v6935, %v6935
  %v6938 = vunpack.c.l.s4 1966171168
  %v6939 = vunpack.c.0.s8 %v6938
  %v6940 = vlaneseq
  %v6941 = vshrl.u32 %v6940, 7
  %v6942 = vsub.s32 %v6939, %v6941
  %v6943 = vrot.slane %v6935, %v6942
  %v6945 = vunpack.c.l.s4 1966171168
  %v6946 = vunpack.c.0.s8 %v6945
  %v6947 = vlaneseq
  %v6948 = vshrl.u32 %v6947, 7
  %v6949 = vsub.s32 %v6946, %v6948
  %v6950 = vrot.slane %v6936, %v6949
  %v6953 = vmul.f32 %v6943, %v6617
  %v6954 = vmul.f32 %v6950, %v6617
  %v6957 = vlaneseq
  %v6958 = vshrl.u32 %v6957, 7
  %v6959 = vsub.s32 0, %v6958
  %v6960 = vrot.slane %v6953, %v6959
  %v6961 = vlaneseq
  %v6962 = vshrl.u32 %v6961, 7
  %v6963 = vsub.s32 0, %v6962
  %v6964 = vrot.slane %v6954, %v6963
  %v6967 = vmul.f32 %v6912, %v6960
  %v6968 = vmul.f32 %v6913, %v6960
  %v6969 = vmul.f32 %v6914, %v6960
  %v6970 = vmul.f32 %v6915, %v6960
  %v6971 = vmul.f32 %v6916, %v6960
  %v6972 = vmul.f32 %v6917, %v6960
  %v6973 = vmul.f32 %v6918, %v6960
  %v6974 = vmul.f32 %v6919, %v6960
  %v6975 = vmul.f32 %v6920, %v6964
  %v6976 = vmul.f32 %v6921, %v6964
  %v6977 = vmul.f32 %v6922, %v6964
  %v6978 = vmul.f32 %v6923, %v6964
  %v6979 = vmul.f32 %v6924, %v6964
  %v6980 = vmul.f32 %v6925, %v6964
  %v6981 = vmul.f32 %v6926, %v6964
  %v6982 = vmul.f32 %v6927, %v6964
  %v6983 = vlaneseq
  %v6984 = vshrl.u32 %v6983, 7
  %v6985 = vsub.s32 0, %v6984
  %v6986 = vrot.slane %v6618, %v6985
  %v6987 = vadd.f32 %v6967, %v6986
  %v6988 = vadd.f32 %v6968, %v6986
  %v6989 = vadd.f32 %v6969, %v6986
  %v6990 = vadd.f32 %v6970, %v6986
  %v6991 = vadd.f32 %v6971, %v6986
  %v6992 = vadd.f32 %v6972, %v6986
  %v6993 = vadd.f32 %v6973, %v6986
  %v6994 = vadd.f32 %v6974, %v6986
  %v6995 = vadd.f32 %v6975, %v6986
  %v6996 = vadd.f32 %v6976, %v6986
  %v6997 = vadd.f32 %v6977, %v6986
  %v6998 = vadd.f32 %v6978, %v6986
  %v6999 = vadd.f32 %v6979, %v6986
  %v7000 = vadd.f32 %v6980, %v6986
  %v7001 = vadd.f32 %v6981, %v6986
  %v7002 = vadd.f32 %v6982, %v6986
  %v7003 = vmax.f32 %v6987, 0.0
  %v7004 = vmax.f32 %v6988, 0.0
  %v7005 = vmax.f32 %v6989, 0.0
  %v7006 = vmax.f32 %v6990, 0.0
  %v7007 = vmax.f32 %v6991, 0.0
  %v7008 = vmax.f32 %v6992, 0.0
  %v7009 = vmax.f32 %v6993, 0.0
  %v7010 = vmax.f32 %v6994, 0.0
  %v7011 = vmax.f32 %v6995, 0.0
  %v7012 = vmax.f32 %v6996, 0.0
  %v7013 = vmax.f32 %v6997, 0.0
  %v7014 = vmax.f32 %v6998, 0.0
  %v7015 = vmax.f32 %v6999, 0.0
  %v7016 = vmax.f32 %v7000, 0.0
  %v7017 = vmax.f32 %v7001, 0.0
  %v7018 = vmax.f32 %v7002, 0.0
  %v7019 = vld [vmem:[%s5 + $0x20] sm:$0xff]
  %v7020 = vld [vmem:[%s5 + $0x28] sm:$0xff]
  %v7021 = vld [vmem:[%s5 + $0x30] sm:$0xff]
  %v7022 = vld [vmem:[%s5 + $0x38] sm:$0xff]
  %v7023 = vld [vmem:[%s5 + $0x40] sm:$0xff]
  %v7024 = vld [vmem:[%s5 + $0x48] sm:$0xff]
  %v7025 = vld [vmem:[%s5 + $0x50] sm:$0xff]
  %v7026 = vld [vmem:[%s5 + $0x58] sm:$0xff]
  %v7027 = vmul.f32 %v7003, %v7019
  %v7028 = vmul.f32 %v7004, %v7020
  %v7029 = vmul.f32 %v7005, %v7021
  %v7030 = vmul.f32 %v7006, %v7022
  %v7031 = vmul.f32 %v7007, %v7023
  %v7032 = vmul.f32 %v7008, %v7024
  %v7033 = vmul.f32 %v7009, %v7025
  %v7034 = vmul.f32 %v7010, %v7026
  %v7035 = vmul.f32 %v7011, %v7019
  %v7036 = vmul.f32 %v7012, %v7020
  %v7037 = vmul.f32 %v7013, %v7021
  %v7038 = vmul.f32 %v7014, %v7022
  %v7039 = vmul.f32 %v7015, %v7023
  %v7040 = vmul.f32 %v7016, %v7024
  %v7041 = vmul.f32 %v7017, %v7025
  %v7042 = vmul.f32 %v7018, %v7026
  %v7043 = vsel %vm6619, %v7027, 0.0
  %7044 = vadd.xlane.f32.xlu0 %v7043
  %v7045 = vpop.xlane.xlu0 %7044
  %v7046 = vsel %vm6619, %v7028, 0.0
  %7047 = vadd.xlane.f32.xlu0 %v7046
  %v7048 = vpop.xlane.xlu0 %7047
  %v7049 = vsel %vm6619, %v7029, 0.0
  %7050 = vadd.xlane.f32.xlu0 %v7049
  %v7051 = vpop.xlane.xlu0 %7050
  %v7052 = vsel %vm6619, %v7030, 0.0
  %7053 = vadd.xlane.f32.xlu0 %v7052
  %v7054 = vpop.xlane.xlu0 %7053
  %v7055 = vsel %vm6619, %v7031, 0.0
  %7056 = vadd.xlane.f32.xlu0 %v7055
  %v7057 = vpop.xlane.xlu0 %7056
  %v7058 = vsel %vm6619, %v7032, 0.0
  %7059 = vadd.xlane.f32.xlu0 %v7058
  %v7060 = vpop.xlane.xlu0 %7059
  %v7061 = vsel %vm6619, %v7033, 0.0
  %7062 = vadd.xlane.f32.xlu0 %v7061
  %v7063 = vpop.xlane.xlu0 %7062
  %v7064 = vsel %vm6619, %v7034, 0.0
  %7065 = vadd.xlane.f32.xlu0 %v7064
  %v7066 = vpop.xlane.xlu0 %7065
  %v7067 = vsel %vm6619, %v7035, 0.0
  %7068 = vadd.xlane.f32.xlu0 %v7067
  %v7069 = vpop.xlane.xlu0 %7068
  %v7070 = vsel %vm6619, %v7036, 0.0
  %7071 = vadd.xlane.f32.xlu0 %v7070
  %v7072 = vpop.xlane.xlu0 %7071
  %v7073 = vsel %vm6619, %v7037, 0.0
  %7074 = vadd.xlane.f32.xlu0 %v7073
  %v7075 = vpop.xlane.xlu0 %7074
  %v7076 = vsel %vm6619, %v7038, 0.0
  %7077 = vadd.xlane.f32.xlu0 %v7076
  %v7078 = vpop.xlane.xlu0 %7077
  %v7079 = vsel %vm6619, %v7039, 0.0
  %7080 = vadd.xlane.f32.xlu0 %v7079
  %v7081 = vpop.xlane.xlu0 %7080
  %v7082 = vsel %vm6619, %v7040, 0.0
  %7083 = vadd.xlane.f32.xlu0 %v7082
  %v7084 = vpop.xlane.xlu0 %7083
  %v7085 = vsel %vm6619, %v7041, 0.0
  %7086 = vadd.xlane.f32.xlu0 %v7085
  %v7087 = vpop.xlane.xlu0 %7086
  %v7088 = vsel %vm6619, %v7042, 0.0
  %7089 = vadd.xlane.f32.xlu0 %v7088
  %v7090 = vpop.xlane.xlu0 %7089
  %v7107 = vlaneseq
  %v7108 = vand.u32 %v7107, 127
  %v7109 = vlaneseq
  %v7110 = vshrl.u32 %v7109, 7
  %v7111 = vsub.s32 %v7108, %v7110
  %v7112 = vrot.slane %v7045, %v7111
  %v7113 = vadd.s32 %v7108, 4294967288
  %v7114 = vlaneseq
  %v7115 = vshrl.u32 %v7114, 7
  %v7116 = vsub.s32 %v7113, %v7115
  %v7117 = vrot.slane %v7048, %v7116
  %vm7118 = vcmask 130112
  %v7119 = vsel %vm7118, %v7117, %v7112
  %v7120 = vadd.s32 %v7108, 4294967280
  %v7121 = vlaneseq
  %v7122 = vshrl.u32 %v7121, 7
  %v7123 = vsub.s32 %v7120, %v7122
  %v7124 = vrot.slane %v7051, %v7123
  %vm7125 = vcmask 195712
  %v7126 = vsel %vm7125, %v7124, %v7119
  %v7127 = vadd.s32 %v7108, 4294967272
  %v7128 = vlaneseq
  %v7129 = vshrl.u32 %v7128, 7
  %v7130 = vsub.s32 %v7127, %v7129
  %v7131 = vrot.slane %v7054, %v7130
  %vm7132 = vcmask 261312
  %v7133 = vsel %vm7132, %v7131, %v7126
  %v7134 = vadd.s32 %v7108, 4294967264
  %v7135 = vlaneseq
  %v7136 = vshrl.u32 %v7135, 7
  %v7137 = vsub.s32 %v7134, %v7136
  %v7138 = vrot.slane %v7057, %v7137
  %vm7139 = vcmask 326912
  %v7140 = vsel %vm7139, %v7138, %v7133
  %v7141 = vadd.s32 %v7108, 4294967256
  %v7142 = vlaneseq
  %v7143 = vshrl.u32 %v7142, 7
  %v7144 = vsub.s32 %v7141, %v7143
  %v7145 = vrot.slane %v7060, %v7144
  %vm7146 = vcmask 392512
  %v7147 = vsel %vm7146, %v7145, %v7140
  %v7148 = vadd.s32 %v7108, 4294967248
  %v7149 = vlaneseq
  %v7150 = vshrl.u32 %v7149, 7
  %v7151 = vsub.s32 %v7148, %v7150
  %v7152 = vrot.slane %v7063, %v7151
  %vm7153 = vcmask 458112
  %v7154 = vsel %vm7153, %v7152, %v7147
  %v7155 = vadd.s32 %v7108, 4294967240
  %v7156 = vlaneseq
  %v7157 = vshrl.u32 %v7156, 7
  %v7158 = vsub.s32 %v7155, %v7157
  %v7159 = vrot.slane %v7066, %v7158
  %vm7160 = vcmask 523712
  %v7161 = vsel %vm7160, %v7159, %v7154
  %v7162 = vlaneseq
  %v7163 = vshrl.u32 %v7162, 7
  %v7164 = vsub.s32 %v7108, %v7163
  %v7165 = vrot.slane %v7069, %v7164
  %v7166 = vlaneseq
  %v7167 = vshrl.u32 %v7166, 7
  %v7168 = vsub.s32 %v7113, %v7167
  %v7169 = vrot.slane %v7072, %v7168
  %v7170 = vsel %vm7118, %v7169, %v7165
  %v7171 = vlaneseq
  %v7172 = vshrl.u32 %v7171, 7
  %v7173 = vsub.s32 %v7120, %v7172
  %v7174 = vrot.slane %v7075, %v7173
  %v7175 = vsel %vm7125, %v7174, %v7170
  %v7176 = vlaneseq
  %v7177 = vshrl.u32 %v7176, 7
  %v7178 = vsub.s32 %v7127, %v7177
  %v7179 = vrot.slane %v7078, %v7178
  %v7180 = vsel %vm7132, %v7179, %v7175
  %v7181 = vlaneseq
  %v7182 = vshrl.u32 %v7181, 7
  %v7183 = vsub.s32 %v7134, %v7182
  %v7184 = vrot.slane %v7081, %v7183
  %v7185 = vsel %vm7139, %v7184, %v7180
  %v7186 = vlaneseq
  %v7187 = vshrl.u32 %v7186, 7
  %v7188 = vsub.s32 %v7141, %v7187
  %v7189 = vrot.slane %v7084, %v7188
  %v7190 = vsel %vm7146, %v7189, %v7185
  %v7191 = vlaneseq
  %v7192 = vshrl.u32 %v7191, 7
  %v7193 = vsub.s32 %v7148, %v7192
  %v7194 = vrot.slane %v7087, %v7193
  %v7195 = vsel %vm7153, %v7194, %v7190
  %v7196 = vlaneseq
  %v7197 = vshrl.u32 %v7196, 7
  %v7198 = vsub.s32 %v7155, %v7197
  %v7199 = vrot.slane %v7090, %v7198
  %v7200 = vsel %vm7160, %v7199, %v7195
  %v7201 = vsel %vm421, %v7200, %v7161
  %vm7203 = vcmask 517120
  %v7204 = vsel %vm7203, %v7201, 0.0
  %7205 = vadd.xlane.f32.xlu0 %v7204
  %v7206 = vpop.xlane.xlu0 %7205
  %v7207 = vld [vmem:[%s6 + $0x3] sm:$0x1]
  %v7208 = vlaneseq
  %v7209 = vshrl.u32 %v7208, 7
  %v7210 = vsub.s32 0, %v7209
  %v7211 = vrot.slane %v7207, %v7210
  %v7212 = vadd.f32 %v7206, %v7211
  %v7213 = vsub.f32 0.0, %v7212
  %v7214 = vmul.f32 %v7213, 1.442695
  %v7215 = vpow.pop %v7214
  %v7216 = vadd.f32 %v7215, 1.0
  %v7217 = vrcp.pop %v7216
  %v7218 = vmul.f32 1.0, %v7217
  %vm7219 = vcmask 1024
  %7220 = vst.msk [vmem:[%s8] sm:$0x3] %vm7219, %v7218
  // Predicated region
  $region34: #{_lambda_.1} parent=0 // pred_check
    _
  $region35: #{_lambda_.1} parent=0 // pred_check_branch
    %7222 = sbr.rel (0) target = $region37
  $region36: #{_lambda_.1} parent=0 // pred_region
    _
  $region37: #{_lambda_.1} parent=0 // pred_fallthru
    _
  // Predicated region
  $region38: #{_lambda_.1} parent=0 // pred_check
    _
  $region39: #{_lambda_.1} parent=0 // pred_check_branch
    %7224 = sbr.rel (0) target = $region41
  $region40: #{_lambda_.1} parent=0 // pred_region
    _
  $region41: #{_lambda_.1} parent=0 // pred_fallthru
    _

</llo_original>
